<compile_context>
chip_gen: v7x
topology: tpu7x:2x2x1
jax: 0.10.0
libtpu: 0.0.40
codegen_flags: <defaults>
</compile_context>

<pallas_src>
import functools

import jax
import jax.numpy as jnp
from jax.experimental import pallas as pl
from jax.experimental.pallas import tpu as pltpu

_LANE = 128
_VMEM_LIMIT = 32 * 1024 * 1024  # safe on v5e/v6e (128 MiB phys) and v7x (64 MiB)


# ---------------------------------------------------------------------------
# small helpers
# ---------------------------------------------------------------------------
def _rup(n, m=_LANE):
    return ((n + m - 1) // m) * m


def _pad_axis(a, size, axis):
    pad = size - a.shape[axis]
    if pad == 0:
        return a
    widths = [(0, 0)] * a.ndim
    widths[axis] = (0, pad)
    return jnp.pad(a, widths)


# ---------------------------------------------------------------------------
# Fused Bottleneck kernel (one image per grid step)
# ---------------------------------------------------------------------------
def _bottleneck_kernel(*refs, stride, has_sc):
    if has_sc:
        (x_ref, w1_ref, s1_ref, b1_ref, w2_ref, s2_ref, b2_ref,
         w3_ref, s3_ref, b3_ref, wsc_ref, ssc_ref, bsc_ref,
         o_ref, y1p_ref) = refs
    else:
        (x_ref, w1_ref, s1_ref, b1_ref, w2_ref, s2_ref, b2_ref,
         w3_ref, s3_ref, b3_ref, o_ref, y1p_ref) = refs
        wsc_ref = ssc_ref = bsc_ref = None

    h, w, cin = x_ref.shape            # unpadded spatial, padded channels
    cp = w1_ref.shape[1]               # padded bottleneck width (planes)
    co = w3_ref.shape[1]               # padded output channels
    ho, wo, _ = o_ref.shape
    hspan = (ho - 1) * stride + 1
    wspan = (wo - 1) * stride + 1

    # ---- conv1 (1x1) + bn1 + relu -----------------------------------------
    x2d = x_ref[...].reshape(h * w, cin)
    y1 = jnp.dot(x2d, w1_ref[...], preferred_element_type=jnp.float32)
    y1 = jnp.maximum(y1 * s1_ref[...] + b1_ref[...], 0.0)

    # Zero-padded (pad=1) copy of y1 kept in VMEM for the 3x3 taps.
    y1p_ref[...] = jnp.zeros_like(y1p_ref)
    y1p_ref[pl.ds(1, h), pl.ds(1, w), :] = (
        y1.reshape(h, w, cp).astype(y1p_ref.dtype))

    # ---- conv2 (3x3, stride, pad=1) + bn2 + relu ---------------------------
    acc = jnp.zeros((ho * wo, cp), jnp.float32)
    for kh in range(3):
        for kw in range(3):
            tap = y1p_ref[pl.ds(kh, hspan), pl.ds(kw, wspan), :]
            if stride > 1:
                # TODO(synk): strided decimation path (value-level strided
                # slice) is less tuned; main test exercises stride == 1.
                tap = tap[::stride, ::stride, :]
            acc = acc + jnp.dot(tap.reshape(ho * wo, cp),
                                w2_ref[3 * kh + kw],
                                preferred_element_type=jnp.float32)
    y2 = jnp.maximum(acc * s2_ref[...] + b2_ref[...], 0.0).astype(jnp.bfloat16)

    # ---- conv3 (1x1) + bn3 -------------------------------------------------
    y3 = jnp.dot(y2, w3_ref[...], preferred_element_type=jnp.float32)
    y3 = y3 * s3_ref[...] + b3_ref[...]

    # ---- shortcut (1x1 conv + bn, or identity) -----------------------------
    xs = x_ref[...]
    if stride > 1:
        xs = xs[::stride, ::stride, :]
    xs2d = xs.reshape(ho * wo, cin)
    if has_sc:
        sc = jnp.dot(xs2d, wsc_ref[...], preferred_element_type=jnp.float32)
        sc = sc * ssc_ref[...] + bsc_ref[...]
    else:
        sc = xs2d.astype(jnp.float32)          # identity: cin_p == co_p

    out = jnp.maximum(y3 + sc, 0.0)
    o_ref[...] = out.reshape(ho, wo, co).astype(o_ref.dtype)


def bottleneck_forward(x_nchw, pp, *, stride, out_channels):
    """Fused Bottleneck forward.  x_nchw: (N, C, H, W) f32 -> (N, Cout, Ho, Wo)."""
    x = jnp.transpose(x_nchw, (0, 2, 3, 1)).astype(jnp.bfloat16)   # NHWC bf16
    n, h, w, cin = x.shape
    cin_p, planes_p = pp["w1"].shape
    co_p = pp["w3"].shape[1]
    if cin_p != cin:
        x = _pad_axis(x, cin_p, 3)

    ho = (h - 1) // stride + 1
    wo = (w - 1) // stride + 1
    has_sc = "wsc" in pp
    if not has_sc:
        assert cin_p == co_p, "identity shortcut needs matching channel pads"

    args = [x, pp["w1"], pp["s1"], pp["b1"], pp["w2"], pp["s2"], pp["b2"],
            pp["w3"], pp["s3"], pp["b3"]]
    in_specs = [
        pl.BlockSpec((None, h, w, cin_p), lambda i: (i, 0, 0, 0)),      # x[i]
        pl.BlockSpec((cin_p, planes_p), lambda i: (0, 0)),              # w1
        pl.BlockSpec((1, planes_p), lambda i: (0, 0)),                  # s1
        pl.BlockSpec((1, planes_p), lambda i: (0, 0)),                  # b1
        pl.BlockSpec((9, planes_p, planes_p), lambda i: (0, 0, 0)),     # w2
        pl.BlockSpec((1, planes_p), lambda i: (0, 0)),                  # s2
        pl.BlockSpec((1, planes_p), lambda i: (0, 0)),                  # b2
        pl.BlockSpec((planes_p, co_p), lambda i: (0, 0)),               # w3
        pl.BlockSpec((1, co_p), lambda i: (0, 0)),                      # s3
        pl.BlockSpec((1, co_p), lambda i: (0, 0)),                      # b3
    ]
    if has_sc:
        args += [pp["wsc"], pp["ssc"], pp["bsc"]]
        in_specs += [
            pl.BlockSpec((cin_p, co_p), lambda i: (0, 0)),              # wsc
            pl.BlockSpec((1, co_p), lambda i: (0, 0)),                  # ssc
            pl.BlockSpec((1, co_p), lambda i: (0, 0)),                  # bsc
        ]

    y = pl.pallas_call(
        functools.partial(_bottleneck_kernel, stride=stride, has_sc=has_sc),
        out_shape=jax.ShapeDtypeStruct((n, ho, wo, co_p), jnp.bfloat16),
        grid_spec=pltpu.PrefetchScalarGridSpec(
            num_scalar_prefetch=0,
            grid=(n,),
            in_specs=in_specs,
            out_specs=pl.BlockSpec((None, ho, wo, co_p),
                                   lambda i: (i, 0, 0, 0)),
            scratch_shapes=[
                pltpu.VMEM((h + 2, w + 2, planes_p), jnp.bfloat16)],
        ),
        compiler_params=pltpu.CompilerParams(
            dimension_semantics=("parallel",),
            vmem_limit_bytes=_VMEM_LIMIT),
    )(*args)

    y = y[..., :out_channels].astype(jnp.float32)
    return jnp.transpose(y, (0, 3, 1, 2))   # -> NCHW


# ---------------------------------------------------------------------------
# Parameters (deterministic, synthetic) with BN folded to scale/bias
# ---------------------------------------------------------------------------
def _fold_bn(key, c, eps=1e-5):
    k1, k2, k3, k4 = jax.random.split(key, 4)
    gamma = 1.0 + 0.1 * jax.random.normal(k1, (c,), dtype=jnp.float32)
    beta = 0.1 * jax.random.normal(k2, (c,), dtype=jnp.float32)
    mean = 0.1 * jax.random.normal(k3, (c,), dtype=jnp.float32)
    var = jax.random.uniform(k4, (c,), minval=0.5, maxval=1.5,
                             dtype=jnp.float32)
    scale = gamma / jnp.sqrt(var + eps)
    bias = beta - mean * scale
    return scale, bias


def init_params(key, in_planes, planes, stride, expansion=4):
    cout = expansion * planes
    keys = jax.random.split(key, 8)
    p = {}
    p["w1"] = 0.2 * jax.random.normal(keys[0], (in_planes, planes),
                                      dtype=jnp.float32)
    p["s1"], p["b1"] = _fold_bn(keys[1], planes)
    p["w2_hwio"] = 0.2 * jax.random.normal(keys[2], (3, 3, planes, planes),
                                           dtype=jnp.float32)
    p["s2"], p["b2"] = _fold_bn(keys[3], planes)
    p["w3"] = 0.2 * jax.random.normal(keys[4], (planes, cout),
                                      dtype=jnp.float32)
    p["s3"], p["b3"] = _fold_bn(keys[5], cout)
    if stride != 1 or in_planes != cout:
        p["wsc"] = 0.2 * jax.random.normal(keys[6], (in_planes, cout),
                                           dtype=jnp.float32)
        p["ssc"], p["bsc"] = _fold_bn(keys[7], cout)
    return p


def prepare_params(params):
    """Pad channel dims to multiples of 128 (lane-dense), cast weights bf16."""
    cin, planes = params["w1"].shape
    cout = params["w3"].shape[1]
    cin_p, pln_p, co_p = _rup(cin), _rup(planes), _rup(cout)

    def pad_vec(v, size):
        return _pad_axis(v.astype(jnp.float32), size, 0).reshape(1, size)

    pp = {}
    pp["w1"] = _pad_axis(_pad_axis(params["w1"], cin_p, 0),
                         pln_p, 1).astype(jnp.bfloat16)
    pp["s1"] = pad_vec(params["s1"], pln_p)
    pp["b1"] = pad_vec(params["b1"], pln_p)

    w2 = _pad_axis(_pad_axis(params["w2_hwio"], pln_p, 2), pln_p, 3)
    pp["w2"] = w2.reshape(9, pln_p, pln_p).astype(jnp.bfloat16)
    pp["s2"] = pad_vec(params["s2"], pln_p)
    pp["b2"] = pad_vec(params["b2"], pln_p)

    pp["w3"] = _pad_axis(_pad_axis(params["w3"], pln_p, 0),
                         co_p, 1).astype(jnp.bfloat16)
    pp["s3"] = pad_vec(params["s3"], co_p)
    pp["b3"] = pad_vec(params["b3"], co_p)

    if "wsc" in params:
        pp["wsc"] = _pad_axis(_pad_axis(params["wsc"], cin_p, 0),
                              co_p, 1).astype(jnp.bfloat16)
        pp["ssc"] = pad_vec(params["ssc"], co_p)
        pp["bsc"] = pad_vec(params["bsc"], co_p)
    return pp


# ---------------------------------------------------------------------------
# Pure-JAX reference (bf16-roundtripped inputs/weights to match kernel dtype)
# ---------------------------------------------------------------------------
def reference_forward(x_nchw, params, stride):
    dn = ("NHWC", "HWIO", "NHWC")
    hi = jax.lax.Precision.HIGHEST

    def q(a):
        return a.astype(jnp.bfloat16).astype(jnp.float32)

    x = q(jnp.transpose(x_nchw, (0, 2, 3, 1)))
    cin = x.shape[-1]
    planes = params["w1"].shape[1]
    cout = params["w3"].shape[1]

    y = jax.lax.conv_general_dilated(
        x, q(params["w1"]).reshape(1, 1, cin, planes), (1, 1), "VALID",
        dimension_numbers=dn, precision=hi)
    y = jax.nn.relu(y * params["s1"] + params["b1"])
    y = jax.lax.conv_general_dilated(
        y, q(params["w2_hwio"]), (stride, stride), ((1, 1), (1, 1)),
        dimension_numbers=dn, precision=hi)
    y = jax.nn.relu(y * params["s2"] + params["b2"])
    y = jax.lax.conv_general_dilated(
        y, q(params["w3"]).reshape(1, 1, planes, cout), (1, 1), "VALID",
        dimension_numbers=dn, precision=hi)
    y = y * params["s3"] + params["b3"]
    if "wsc" in params:
        sc = jax.lax.conv_general_dilated(
            x, q(params["wsc"]).reshape(1, 1, cin, cout), (stride, stride),
            "VALID", dimension_numbers=dn, precision=hi)
        sc = sc * params["ssc"] + params["bsc"]
    else:
        sc = x
    y = jax.nn.relu(y + sc)
    return jnp.transpose(y, (0, 3, 1, 2))


if __name__ == "__main__":
    key = jax.random.PRNGKey(0)
    N, H, W = 2, 16, 16
    configs = [
        (4, 4, 1),    # projection shortcut (in_planes != expansion*planes)
        (16, 4, 1),   # identity shortcut  (in_planes == expansion*planes)
    ]
    for idx, (in_planes, planes, stride) in enumerate(configs):
        k_x, k_p = jax.random.split(jax.random.fold_in(key, idx))
        x = jax.random.normal(k_x, (N, in_planes, H, W), dtype=jnp.float32)
        params = init_params(k_p, in_planes, planes, stride)
        pp = prepare_params(params)

        fwd = jax.jit(functools.partial(bottleneck_forward, stride=stride,
                                        out_channels=4 * planes))
        out = jax.block_until_ready(fwd(x, pp))

        ref = reference_forward(x, params, stride)
        oh = (H - 1) // stride + 1
        ow = (W - 1) // stride + 1
        assert out.shape == ref.shape == (N, 4 * planes, oh, ow), out.shape
        assert jnp.allclose(out, ref, atol=3e-2, rtol=3e-2), (
            f"mismatch vs reference for config {(in_planes, planes, stride)}")

    print("KERNEL_OK")
</pallas_src>

<mosaic_0001>
module attributes {stable_mosaic.version = 11 : i64} {
  func.func @_bottleneck_kernel(%arg0: i32, %arg1: memref<1x16x16x128xbf16, #tpu.memory_space<vmem>>, %arg2: memref<128x128xbf16, #tpu.memory_space<vmem>>, %arg3: memref<1x128xf32, #tpu.memory_space<vmem>>, %arg4: memref<1x128xf32, #tpu.memory_space<vmem>>, %arg5: memref<9x128x128xbf16, #tpu.memory_space<vmem>>, %arg6: memref<1x128xf32, #tpu.memory_space<vmem>>, %arg7: memref<1x128xf32, #tpu.memory_space<vmem>>, %arg8: memref<128x128xbf16, #tpu.memory_space<vmem>>, %arg9: memref<1x128xf32, #tpu.memory_space<vmem>>, %arg10: memref<1x128xf32, #tpu.memory_space<vmem>>, %arg11: memref<128x128xbf16, #tpu.memory_space<vmem>>, %arg12: memref<1x128xf32, #tpu.memory_space<vmem>>, %arg13: memref<1x128xf32, #tpu.memory_space<vmem>>, %arg14: memref<1x16x16x128xbf16, #tpu.memory_space<vmem>>, %arg15: memref<18x18x128xbf16, #tpu.memory_space<vmem>>) attributes {dimension_semantics = [#tpu.dimension_semantics<parallel>], iteration_bounds = array<i64: 2>, scalar_prefetch = 0 : i64, scratch_operands = 1 : i64, tpu.core_type = #tpu.core_type<tc>, window_params = [{transform_indices = @transform_0, window_bounds = array<i64: 1, 16, 16, 128>}, {pipeline_mode = #tpu.pipeline_mode<synchronous>, transform_indices = @transform_1, window_bounds = array<i64: 128, 128>}, {pipeline_mode = #tpu.pipeline_mode<synchronous>, transform_indices = @transform_2, window_bounds = array<i64: 1, 128>}, {pipeline_mode = #tpu.pipeline_mode<synchronous>, transform_indices = @transform_3, window_bounds = array<i64: 1, 128>}, {pipeline_mode = #tpu.pipeline_mode<synchronous>, transform_indices = @transform_4, window_bounds = array<i64: 9, 128, 128>}, {pipeline_mode = #tpu.pipeline_mode<synchronous>, transform_indices = @transform_5, window_bounds = array<i64: 1, 128>}, {pipeline_mode = #tpu.pipeline_mode<synchronous>, transform_indices = @transform_6, window_bounds = array<i64: 1, 128>}, {pipeline_mode = #tpu.pipeline_mode<synchronous>, transform_indices = @transform_7, window_bounds = array<i64: 128, 128>}, {pipeline_mode = #tpu.pipeline_mode<synchronous>, transform_indices = @transform_8, window_bounds = array<i64: 1, 128>}, {pipeline_mode = #tpu.pipeline_mode<synchronous>, transform_indices = @transform_9, window_bounds = array<i64: 1, 128>}, {pipeline_mode = #tpu.pipeline_mode<synchronous>, transform_indices = @transform_10, window_bounds = array<i64: 128, 128>}, {pipeline_mode = #tpu.pipeline_mode<synchronous>, transform_indices = @transform_11, window_bounds = array<i64: 1, 128>}, {pipeline_mode = #tpu.pipeline_mode<synchronous>, transform_indices = @transform_12, window_bounds = array<i64: 1, 128>}, {transform_indices = @transform_13, window_bounds = array<i64: 1, 16, 16, 128>}]} {
    %c0 = arith.constant 0 : index
    %c0_0 = arith.constant 0 : index
    %c0_1 = arith.constant 0 : index
    %c0_2 = arith.constant 0 : index
    %0 = vector.load %arg1[%c0, %c0_0, %c0_1, %c0_2] : memref<1x16x16x128xbf16, #tpu.memory_space<vmem>>, vector<1x16x16x128xbf16>
    %1 = vector.shape_cast %0 : vector<1x16x16x128xbf16> to vector<16x16x128xbf16>
    %2 = vector.shape_cast %1 : vector<16x16x128xbf16> to vector<256x128xbf16>
    %c0_3 = arith.constant 0 : index
    %c0_4 = arith.constant 0 : index
    %3 = vector.load %arg2[%c0_3, %c0_4] : memref<128x128xbf16, #tpu.memory_space<vmem>>, vector<128x128xbf16>
    %cst = arith.constant dense<0.000000e+00> : vector<256x128xf32>
    %4 = tpu.matmul %2, %3, %cst {dimension_numbers = #tpu.dot_dimension_numbers<[1], [0], [0], [1], [0, 0, 1, 1], [], []>} : vector<256x128xbf16>, vector<128x128xbf16>, vector<256x128xf32> -> vector<256x128xf32>
    %c0_5 = arith.constant 0 : index
    %c0_6 = arith.constant 0 : index
    %5 = vector.load %arg3[%c0_5, %c0_6] : memref<1x128xf32, #tpu.memory_space<vmem>>, vector<1x128xf32>
    %6 = vector.broadcast %5 : vector<1x128xf32> to vector<256x128xf32>
    %7 = arith.mulf %4, %6 : vector<256x128xf32>
    %c0_7 = arith.constant 0 : index
    %c0_8 = arith.constant 0 : index
    %8 = vector.load %arg4[%c0_7, %c0_8] : memref<1x128xf32, #tpu.memory_space<vmem>>, vector<1x128xf32>
    %9 = vector.broadcast %8 : vector<1x128xf32> to vector<256x128xf32>
    %10 = arith.addf %7, %9 : vector<256x128xf32>
    %cst_9 = arith.constant 0.000000e+00 : f32
    %11 = vector.broadcast %cst_9 : f32 to vector<256x128xf32>
    %12 = arith.maximumf %10, %11 : vector<256x128xf32>
    %cst_10 = arith.constant 0.000000e+00 : bf16
    %13 = vector.broadcast %cst_10 : bf16 to vector<18x18x128xbf16>
    %c0_11 = arith.constant 0 : index
    %c0_12 = arith.constant 0 : index
    %c0_13 = arith.constant 0 : index
    %14 = vector.load %arg15[%c0_11, %c0_12, %c0_13] : memref<18x18x128xbf16, #tpu.memory_space<vmem>>, vector<18x18x128xbf16>
    tpu.vector_store %arg15[%c0_11, %c0_12, %c0_13], %13 {strides = array<i32>} : memref<18x18x128xbf16, #tpu.memory_space<vmem>>, vector<18x18x128xbf16>,
    %15 = vector.shape_cast %12 : vector<256x128xf32> to vector<16x16x128xf32>
    %16 = arith.truncf %15 : vector<16x16x128xf32> to vector<16x16x128xbf16>
    %c1 = arith.constant 1 : index
    %c1_14 = arith.constant 1 : index
    %c0_15 = arith.constant 0 : index
    %17 = vector.load %arg15[%c1, %c1_14, %c0_15] : memref<18x18x128xbf16, #tpu.memory_space<vmem>>, vector<16x16x128xbf16>
    tpu.vector_store %arg15[%c1, %c1_14, %c0_15], %16 {strides = array<i32>} : memref<18x18x128xbf16, #tpu.memory_space<vmem>>, vector<16x16x128xbf16>,
    %cst_16 = arith.constant 0.000000e+00 : f32
    %18 = vector.broadcast %cst_16 : f32 to vector<256x128xf32>
    %c0_17 = arith.constant 0 : index
    %c0_18 = arith.constant 0 : index
    %c0_19 = arith.constant 0 : index
    %19 = vector.load %arg15[%c0_17, %c0_18, %c0_19] : memref<18x18x128xbf16, #tpu.memory_space<vmem>>, vector<16x16x128xbf16>
    %20 = vector.shape_cast %19 : vector<16x16x128xbf16> to vector<256x128xbf16>
    %c0_20 = arith.constant 0 : index
    %c0_21 = arith.constant 0 : index
    %c0_22 = arith.constant 0 : index
    %21 = vector.load %arg5[%c0_20, %c0_21, %c0_22] : memref<9x128x128xbf16, #tpu.memory_space<vmem>>, vector<1x128x128xbf16>
    %22 = vector.shape_cast %21 : vector<1x128x128xbf16> to vector<128x128xbf16>
    %cst_23 = arith.constant dense<0.000000e+00> : vector<256x128xf32>
    %23 = tpu.matmul %20, %22, %cst_23 {dimension_numbers = #tpu.dot_dimension_numbers<[1], [0], [0], [1], [0, 0, 1, 1], [], []>} : vector<256x128xbf16>, vector<128x128xbf16>, vector<256x128xf32> -> vector<256x128xf32>
    %24 = arith.addf %18, %23 : vector<256x128xf32>
    %c0_24 = arith.constant 0 : index
    %c1_25 = arith.constant 1 : index
    %c0_26 = arith.constant 0 : index
    %25 = vector.load %arg15[%c0_24, %c1_25, %c0_26] : memref<18x18x128xbf16, #tpu.memory_space<vmem>>, vector<16x16x128xbf16>
    %26 = vector.shape_cast %25 : vector<16x16x128xbf16> to vector<256x128xbf16>
    %c1_27 = arith.constant 1 : index
    %c0_28 = arith.constant 0 : index
    %c0_29 = arith.constant 0 : index
    %27 = vector.load %arg5[%c1_27, %c0_28, %c0_29] : memref<9x128x128xbf16, #tpu.memory_space<vmem>>, vector<1x128x128xbf16>
    %28 = vector.shape_cast %27 : vector<1x128x128xbf16> to vector<128x128xbf16>
    %cst_30 = arith.constant dense<0.000000e+00> : vector<256x128xf32>
    %29 = tpu.matmul %26, %28, %cst_30 {dimension_numbers = #tpu.dot_dimension_numbers<[1], [0], [0], [1], [0, 0, 1, 1], [], []>} : vector<256x128xbf16>, vector<128x128xbf16>, vector<256x128xf32> -> vector<256x128xf32>
    %30 = arith.addf %24, %29 : vector<256x128xf32>
    %c0_31 = arith.constant 0 : index
    %c2 = arith.constant 2 : index
    %c0_32 = arith.constant 0 : index
    %31 = vector.load %arg15[%c0_31, %c2, %c0_32] : memref<18x18x128xbf16, #tpu.memory_space<vmem>>, vector<16x16x128xbf16>
    %32 = vector.shape_cast %31 : vector<16x16x128xbf16> to vector<256x128xbf16>
    %c2_33 = arith.constant 2 : index
    %c0_34 = arith.constant 0 : index
    %c0_35 = arith.constant 0 : index
    %33 = vector.load %arg5[%c2_33, %c0_34, %c0_35] : memref<9x128x128xbf16, #tpu.memory_space<vmem>>, vector<1x128x128xbf16>
    %34 = vector.shape_cast %33 : vector<1x128x128xbf16> to vector<128x128xbf16>
    %cst_36 = arith.constant dense<0.000000e+00> : vector<256x128xf32>
    %35 = tpu.matmul %32, %34, %cst_36 {dimension_numbers = #tpu.dot_dimension_numbers<[1], [0], [0], [1], [0, 0, 1, 1], [], []>} : vector<256x128xbf16>, vector<128x128xbf16>, vector<256x128xf32> -> vector<256x128xf32>
    %36 = arith.addf %30, %35 : vector<256x128xf32>
    %c1_37 = arith.constant 1 : index
    %c0_38 = arith.constant 0 : index
    %c0_39 = arith.constant 0 : index
    %37 = vector.load %arg15[%c1_37, %c0_38, %c0_39] : memref<18x18x128xbf16, #tpu.memory_space<vmem>>, vector<16x16x128xbf16>
    %38 = vector.shape_cast %37 : vector<16x16x128xbf16> to vector<256x128xbf16>
    %c3 = arith.constant 3 : index
    %c0_40 = arith.constant 0 : index
    %c0_41 = arith.constant 0 : index
    %39 = vector.load %arg5[%c3, %c0_40, %c0_41] : memref<9x128x128xbf16, #tpu.memory_space<vmem>>, vector<1x128x128xbf16>
    %40 = vector.shape_cast %39 : vector<1x128x128xbf16> to vector<128x128xbf16>
    %cst_42 = arith.constant dense<0.000000e+00> : vector<256x128xf32>
    %41 = tpu.matmul %38, %40, %cst_42 {dimension_numbers = #tpu.dot_dimension_numbers<[1], [0], [0], [1], [0, 0, 1, 1], [], []>} : vector<256x128xbf16>, vector<128x128xbf16>, vector<256x128xf32> -> vector<256x128xf32>
    %42 = arith.addf %36, %41 : vector<256x128xf32>
    %c1_43 = arith.constant 1 : index
    %c1_44 = arith.constant 1 : index
    %c0_45 = arith.constant 0 : index
    %43 = vector.load %arg15[%c1_43, %c1_44, %c0_45] : memref<18x18x128xbf16, #tpu.memory_space<vmem>>, vector<16x16x128xbf16>
    %44 = vector.shape_cast %43 : vector<16x16x128xbf16> to vector<256x128xbf16>
    %c4 = arith.constant 4 : index
    %c0_46 = arith.constant 0 : index
    %c0_47 = arith.constant 0 : index
    %45 = vector.load %arg5[%c4, %c0_46, %c0_47] : memref<9x128x128xbf16, #tpu.memory_space<vmem>>, vector<1x128x128xbf16>
    %46 = vector.shape_cast %45 : vector<1x128x128xbf16> to vector<128x128xbf16>
    %cst_48 = arith.constant dense<0.000000e+00> : vector<256x128xf32>
    %47 = tpu.matmul %44, %46, %cst_48 {dimension_numbers = #tpu.dot_dimension_numbers<[1], [0], [0], [1], [0, 0, 1, 1], [], []>} : vector<256x128xbf16>, vector<128x128xbf16>, vector<256x128xf32> -> vector<256x128xf32>
    %48 = arith.addf %42, %47 : vector<256x128xf32>
    %c1_49 = arith.constant 1 : index
    %c2_50 = arith.constant 2 : index
    %c0_51 = arith.constant 0 : index
    %49 = vector.load %arg15[%c1_49, %c2_50, %c0_51] : memref<18x18x128xbf16, #tpu.memory_space<vmem>>, vector<16x16x128xbf16>
    %50 = vector.shape_cast %49 : vector<16x16x128xbf16> to vector<256x128xbf16>
    %c5 = arith.constant 5 : index
    %c0_52 = arith.constant 0 : index
    %c0_53 = arith.constant 0 : index
    %51 = vector.load %arg5[%c5, %c0_52, %c0_53] : memref<9x128x128xbf16, #tpu.memory_space<vmem>>, vector<1x128x128xbf16>
    %52 = vector.shape_cast %51 : vector<1x128x128xbf16> to vector<128x128xbf16>
    %cst_54 = arith.constant dense<0.000000e+00> : vector<256x128xf32>
    %53 = tpu.matmul %50, %52, %cst_54 {dimension_numbers = #tpu.dot_dimension_numbers<[1], [0], [0], [1], [0, 0, 1, 1], [], []>} : vector<256x128xbf16>, vector<128x128xbf16>, vector<256x128xf32> -> vector<256x128xf32>
    %54 = arith.addf %48, %53 : vector<256x128xf32>
    %c2_55 = arith.constant 2 : index
    %c0_56 = arith.constant 0 : index
    %c0_57 = arith.constant 0 : index
    %55 = vector.load %arg15[%c2_55, %c0_56, %c0_57] : memref<18x18x128xbf16, #tpu.memory_space<vmem>>, vector<16x16x128xbf16>
    %56 = vector.shape_cast %55 : vector<16x16x128xbf16> to vector<256x128xbf16>
    %c6 = arith.constant 6 : index
    %c0_58 = arith.constant 0 : index
    %c0_59 = arith.constant 0 : index
    %57 = vector.load %arg5[%c6, %c0_58, %c0_59] : memref<9x128x128xbf16, #tpu.memory_space<vmem>>, vector<1x128x128xbf16>
    %58 = vector.shape_cast %57 : vector<1x128x128xbf16> to vector<128x128xbf16>
    %cst_60 = arith.constant dense<0.000000e+00> : vector<256x128xf32>
    %59 = tpu.matmul %56, %58, %cst_60 {dimension_numbers = #tpu.dot_dimension_numbers<[1], [0], [0], [1], [0, 0, 1, 1], [], []>} : vector<256x128xbf16>, vector<128x128xbf16>, vector<256x128xf32> -> vector<256x128xf32>
    %60 = arith.addf %54, %59 : vector<256x128xf32>
    %c2_61 = arith.constant 2 : index
    %c1_62 = arith.constant 1 : index
    %c0_63 = arith.constant 0 : index
    %61 = vector.load %arg15[%c2_61, %c1_62, %c0_63] : memref<18x18x128xbf16, #tpu.memory_space<vmem>>, vector<16x16x128xbf16>
    %62 = vector.shape_cast %61 : vector<16x16x128xbf16> to vector<256x128xbf16>
    %c7 = arith.constant 7 : index
    %c0_64 = arith.constant 0 : index
    %c0_65 = arith.constant 0 : index
    %63 = vector.load %arg5[%c7, %c0_64, %c0_65] : memref<9x128x128xbf16, #tpu.memory_space<vmem>>, vector<1x128x128xbf16>
    %64 = vector.shape_cast %63 : vector<1x128x128xbf16> to vector<128x128xbf16>
    %cst_66 = arith.constant dense<0.000000e+00> : vector<256x128xf32>
    %65 = tpu.matmul %62, %64, %cst_66 {dimension_numbers = #tpu.dot_dimension_numbers<[1], [0], [0], [1], [0, 0, 1, 1], [], []>} : vector<256x128xbf16>, vector<128x128xbf16>, vector<256x128xf32> -> vector<256x128xf32>
    %66 = arith.addf %60, %65 : vector<256x128xf32>
    %c2_67 = arith.constant 2 : index
    %c2_68 = arith.constant 2 : index
    %c0_69 = arith.constant 0 : index
    %67 = vector.load %arg15[%c2_67, %c2_68, %c0_69] : memref<18x18x128xbf16, #tpu.memory_space<vmem>>, vector<16x16x128xbf16>
    %68 = vector.shape_cast %67 : vector<16x16x128xbf16> to vector<256x128xbf16>
    %c8 = arith.constant 8 : index
    %c0_70 = arith.constant 0 : index
    %c0_71 = arith.constant 0 : index
    %69 = vector.load %arg5[%c8, %c0_70, %c0_71] : memref<9x128x128xbf16, #tpu.memory_space<vmem>>, vector<1x128x128xbf16>
    %70 = vector.shape_cast %69 : vector<1x128x128xbf16> to vector<128x128xbf16>
    %cst_72 = arith.constant dense<0.000000e+00> : vector<256x128xf32>
    %71 = tpu.matmul %68, %70, %cst_72 {dimension_numbers = #tpu.dot_dimension_numbers<[1], [0], [0], [1], [0, 0, 1, 1], [], []>} : vector<256x128xbf16>, vector<128x128xbf16>, vector<256x128xf32> -> vector<256x128xf32>
    %72 = arith.addf %66, %71 : vector<256x128xf32>
    %c0_73 = arith.constant 0 : index
    %c0_74 = arith.constant 0 : index
    %73 = vector.load %arg6[%c0_73, %c0_74] : memref<1x128xf32, #tpu.memory_space<vmem>>, vector<1x128xf32>
    %74 = vector.broadcast %73 : vector<1x128xf32> to vector<256x128xf32>
    %75 = arith.mulf %72, %74 : vector<256x128xf32>
    %c0_75 = arith.constant 0 : index
    %c0_76 = arith.constant 0 : index
    %76 = vector.load %arg7[%c0_75, %c0_76] : memref<1x128xf32, #tpu.memory_space<vmem>>, vector<1x128xf32>
    %77 = vector.broadcast %76 : vector<1x128xf32> to vector<256x128xf32>
    %78 = arith.addf %75, %77 : vector<256x128xf32>
    %cst_77 = arith.constant 0.000000e+00 : f32
    %79 = vector.broadcast %cst_77 : f32 to vector<256x128xf32>
    %80 = arith.maximumf %78, %79 : vector<256x128xf32>
    %81 = arith.truncf %80 : vector<256x128xf32> to vector<256x128xbf16>
    %c0_78 = arith.constant 0 : index
    %c0_79 = arith.constant 0 : index
    %82 = vector.load %arg8[%c0_78, %c0_79] : memref<128x128xbf16, #tpu.memory_space<vmem>>, vector<128x128xbf16>
    %cst_80 = arith.constant dense<0.000000e+00> : vector<256x128xf32>
    %83 = tpu.matmul %81, %82, %cst_80 {dimension_numbers = #tpu.dot_dimension_numbers<[1], [0], [0], [1], [0, 0, 1, 1], [], []>} : vector<256x128xbf16>, vector<128x128xbf16>, vector<256x128xf32> -> vector<256x128xf32>
    %c0_81 = arith.constant 0 : index
    %c0_82 = arith.constant 0 : index
    %84 = vector.load %arg9[%c0_81, %c0_82] : memref<1x128xf32, #tpu.memory_space<vmem>>, vector<1x128xf32>
    %85 = vector.broadcast %84 : vector<1x128xf32> to vector<256x128xf32>
    %86 = arith.mulf %83, %85 : vector<256x128xf32>
    %c0_83 = arith.constant 0 : index
    %c0_84 = arith.constant 0 : index
    %87 = vector.load %arg10[%c0_83, %c0_84] : memref<1x128xf32, #tpu.memory_space<vmem>>, vector<1x128xf32>
    %88 = vector.broadcast %87 : vector<1x128xf32> to vector<256x128xf32>
    %89 = arith.addf %86, %88 : vector<256x128xf32>
    %c0_85 = arith.constant 0 : index
    %c0_86 = arith.constant 0 : index
    %c0_87 = arith.constant 0 : index
    %c0_88 = arith.constant 0 : index
    %90 = vector.load %arg1[%c0_85, %c0_86, %c0_87, %c0_88] : memref<1x16x16x128xbf16, #tpu.memory_space<vmem>>, vector<1x16x16x128xbf16>
    %91 = vector.shape_cast %90 : vector<1x16x16x128xbf16> to vector<16x16x128xbf16>
    %92 = vector.shape_cast %91 : vector<16x16x128xbf16> to vector<256x128xbf16>
    %c0_89 = arith.constant 0 : index
    %c0_90 = arith.constant 0 : index
    %93 = vector.load %arg11[%c0_89, %c0_90] : memref<128x128xbf16, #tpu.memory_space<vmem>>, vector<128x128xbf16>
    %cst_91 = arith.constant dense<0.000000e+00> : vector<256x128xf32>
    %94 = tpu.matmul %92, %93, %cst_91 {dimension_numbers = #tpu.dot_dimension_numbers<[1], [0], [0], [1], [0, 0, 1, 1], [], []>} : vector<256x128xbf16>, vector<128x128xbf16>, vector<256x128xf32> -> vector<256x128xf32>
    %c0_92 = arith.constant 0 : index
    %c0_93 = arith.constant 0 : index
    %95 = vector.load %arg12[%c0_92, %c0_93] : memref<1x128xf32, #tpu.memory_space<vmem>>, vector<1x128xf32>
    %96 = vector.broadcast %95 : vector<1x128xf32> to vector<256x128xf32>
    %97 = arith.mulf %94, %96 : vector<256x128xf32>
    %c0_94 = arith.constant 0 : index
    %c0_95 = arith.constant 0 : index
    %98 = vector.load %arg13[%c0_94, %c0_95] : memref<1x128xf32, #tpu.memory_space<vmem>>, vector<1x128xf32>
    %99 = vector.broadcast %98 : vector<1x128xf32> to vector<256x128xf32>
    %100 = arith.addf %97, %99 : vector<256x128xf32>
    %101 = arith.addf %89, %100 : vector<256x128xf32>
    %cst_96 = arith.constant 0.000000e+00 : f32
    %102 = vector.broadcast %cst_96 : f32 to vector<256x128xf32>
    %103 = arith.maximumf %101, %102 : vector<256x128xf32>
    %104 = vector.shape_cast %103 : vector<256x128xf32> to vector<16x16x128xf32>
    %105 = arith.truncf %104 : vector<16x16x128xf32> to vector<16x16x128xbf16>
    %c0_97 = arith.constant 0 : index
    %c0_98 = arith.constant 0 : index
    %c0_99 = arith.constant 0 : index
    %c0_100 = arith.constant 0 : index
    %106 = vector.load %arg14[%c0_97, %c0_98, %c0_99, %c0_100] : memref<1x16x16x128xbf16, #tpu.memory_space<vmem>>, vector<1x16x16x128xbf16>
    %107 = vector.shape_cast %106 : vector<1x16x16x128xbf16> to vector<16x16x128xbf16>
    %108 = vector.shape_cast %105 : vector<16x16x128xbf16> to vector<1x16x16x128xbf16>
    tpu.vector_store %arg14[%c0_97, %c0_98, %c0_99, %c0_100], %108 {strides = array<i32>} : memref<1x16x16x128xbf16, #tpu.memory_space<vmem>>, vector<1x16x16x128xbf16>,
    return
  }
  func.func @transform_0(%arg0: i32) -> (i32, i32, i32, i32) {
    %c0_i32 = arith.constant 0 : i32
    %c0_i32_0 = arith.constant 0 : i32
    %c0_i32_1 = arith.constant 0 : i32
    %c0_i32_2 = arith.constant 0 : i32
    return %arg0, %c0_i32, %c0_i32_0, %c0_i32_1 : i32, i32, i32, i32
  }
  func.func @transform_1(%arg0: i32) -> (i32, i32) {
    %c0_i32 = arith.constant 0 : i32
    %c0_i32_0 = arith.constant 0 : i32
    %c0_i32_1 = arith.constant 0 : i32
    return %c0_i32, %c0_i32_0 : i32, i32
  }
  func.func @transform_2(%arg0: i32) -> (i32, i32) {
    %c0_i32 = arith.constant 0 : i32
    %c0_i32_0 = arith.constant 0 : i32
    %c0_i32_1 = arith.constant 0 : i32
    return %c0_i32, %c0_i32_0 : i32, i32
  }
  func.func @transform_3(%arg0: i32) -> (i32, i32) {
    %c0_i32 = arith.constant 0 : i32
    %c0_i32_0 = arith.constant 0 : i32
    %c0_i32_1 = arith.constant 0 : i32
    return %c0_i32, %c0_i32_0 : i32, i32
  }
  func.func @transform_4(%arg0: i32) -> (i32, i32, i32) {
    %c0_i32 = arith.constant 0 : i32
    %c0_i32_0 = arith.constant 0 : i32
    %c0_i32_1 = arith.constant 0 : i32
    %c0_i32_2 = arith.constant 0 : i32
    return %c0_i32, %c0_i32_0, %c0_i32_1 : i32, i32, i32
  }
  func.func @transform_5(%arg0: i32) -> (i32, i32) {
    %c0_i32 = arith.constant 0 : i32
    %c0_i32_0 = arith.constant 0 : i32
    %c0_i32_1 = arith.constant 0 : i32
    return %c0_i32, %c0_i32_0 : i32, i32
  }
  func.func @transform_6(%arg0: i32) -> (i32, i32) {
    %c0_i32 = arith.constant 0 : i32
    %c0_i32_0 = arith.constant 0 : i32
    %c0_i32_1 = arith.constant 0 : i32
    return %c0_i32, %c0_i32_0 : i32, i32
  }
  func.func @transform_7(%arg0: i32) -> (i32, i32) {
    %c0_i32 = arith.constant 0 : i32
    %c0_i32_0 = arith.constant 0 : i32
    %c0_i32_1 = arith.constant 0 : i32
    return %c0_i32, %c0_i32_0 : i32, i32
  }
  func.func @transform_8(%arg0: i32) -> (i32, i32) {
    %c0_i32 = arith.constant 0 : i32
    %c0_i32_0 = arith.constant 0 : i32
    %c0_i32_1 = arith.constant 0 : i32
    return %c0_i32, %c0_i32_0 : i32, i32
  }
  func.func @transform_9(%arg0: i32) -> (i32, i32) {
    %c0_i32 = arith.constant 0 : i32
    %c0_i32_0 = arith.constant 0 : i32
    %c0_i32_1 = arith.constant 0 : i32
    return %c0_i32, %c0_i32_0 : i32, i32
  }
  func.func @transform_10(%arg0: i32) -> (i32, i32) {
    %c0_i32 = arith.constant 0 : i32
    %c0_i32_0 = arith.constant 0 : i32
    %c0_i32_1 = arith.constant 0 : i32
    return %c0_i32, %c0_i32_0 : i32, i32
  }
  func.func @transform_11(%arg0: i32) -> (i32, i32) {
    %c0_i32 = arith.constant 0 : i32
    %c0_i32_0 = arith.constant 0 : i32
    %c0_i32_1 = arith.constant 0 : i32
    return %c0_i32, %c0_i32_0 : i32, i32
  }
  func.func @transform_12(%arg0: i32) -> (i32, i32) {
    %c0_i32 = arith.constant 0 : i32
    %c0_i32_0 = arith.constant 0 : i32
    %c0_i32_1 = arith.constant 0 : i32
    return %c0_i32, %c0_i32_0 : i32, i32
  }
  func.func @transform_13(%arg0: i32) -> (i32, i32, i32, i32) {
    %c0_i32 = arith.constant 0 : i32
    %c0_i32_0 = arith.constant 0 : i32
    %c0_i32_1 = arith.constant 0 : i32
    %c0_i32_2 = arith.constant 0 : i32
    return %arg0, %c0_i32, %c0_i32_0, %c0_i32_1 : i32, i32, i32, i32
  }
}

</mosaic_0001>

<llo_original>
// kernel: bottleneck_forward.1
$region0: #{bottleneck_forward.1}
  #allocation0 [shape = 'u32[]', space=smem, size = 0x4, offset = 0x4, fixed_abs, tag = 'smem constant byte address 0x4 - core index']
  #allocation1 [shape = 'u32[144,128]{1,0:T(1,128)}', space=vmem, size = 0x12000, scoped, tag = 'internal scratch']
  #allocation2 [shape = 'bf16[18,18,128]{2,1,0:T(8,128)(2,1)}', space=vmem, size = 0x1b000, scoped, tag = 'scratch operand']
  %s0 = inlined_call_operand.vmem [shape: bf16[2,16,16,128], index: 0, kind: input, shape index: {}]
  %s1 = inlined_call_operand.vmem [shape: bf16[128,128], index: 1, kind: input, shape index: {}]
  %s2 = inlined_call_operand.vmem [shape: f32[1,128], index: 2, kind: input, shape index: {}]
  %s3 = inlined_call_operand.vmem [shape: f32[1,128], index: 3, kind: input, shape index: {}]
  %s4 = inlined_call_operand.vmem [shape: bf16[9,128,128], index: 4, kind: input, shape index: {}]
  %s5 = inlined_call_operand.vmem [shape: f32[1,128], index: 5, kind: input, shape index: {}]
  %s6 = inlined_call_operand.vmem [shape: f32[1,128], index: 6, kind: input, shape index: {}]
  %s7 = inlined_call_operand.vmem [shape: bf16[128,128], index: 7, kind: input, shape index: {}]
  %s8 = inlined_call_operand.vmem [shape: f32[1,128], index: 8, kind: input, shape index: {}]
  %s9 = inlined_call_operand.vmem [shape: f32[1,128], index: 9, kind: input, shape index: {}]
  %s10 = inlined_call_operand.vmem [shape: bf16[128,128], index: 10, kind: input, shape index: {}]
  %s11 = inlined_call_operand.vmem [shape: f32[1,128], index: 11, kind: input, shape index: {}]
  %s12 = inlined_call_operand.vmem [shape: f32[1,128], index: 12, kind: input, shape index: {}]
  %s13 = inlined_call_operand.vmem [shape: bf16[2,16,16,128], index: 13, kind: output, shape index: {}]
  %s14 = sld [smem:[#allocation0]]
  $region85: #{bottleneck_forward.1} parent=0
    _
  %s16 = ssub.s32 1, %s14
  %s17 = scalar_select 0, %s16, %s14
  loop: start=0, step=1, limit=4
  $region2: #{bottleneck_forward.1} parent=0 // loop_pre_header
    _
  $region3: #{bottleneck_forward.1} parent=0 // loop_header
    %s19 = sphi 0, %s23
    %p20 = scmp.ge.s32.totalorder %s19, 4
    %s29 = sphi 0, %s31
    %s32 = sphi 0, %s29
    %s33 = sphi 0, %s32
    %s49 = sphi 0, %s33
    %s53 = sphi 0, %s53
    %s55 = sphi 0, %s53
    %s56 = sphi 0, %s55
    %s70 = sphi 0, %s56
    %s74 = sphi 0, %s74
    %s76 = sphi 0, %s74
    %s77 = sphi 0, %s76
    %s91 = sphi 0, %s77
    %s95 = sphi 0, %s95
    %s97 = sphi 0, %s95
    %s98 = sphi 0, %s97
    %s112 = sphi 0, %s98
    %s116 = sphi 0, %s116
    %s118 = sphi 0, %s116
    %s119 = sphi 0, %s118
    %s133 = sphi 0, %s119
    %s137 = sphi 0, %s137
    %s139 = sphi 0, %s137
    %s140 = sphi 0, %s139
    %s154 = sphi 0, %s140
    %s158 = sphi 0, %s158
    %s160 = sphi 0, %s158
    %s161 = sphi 0, %s160
    %s175 = sphi 0, %s161
    %s179 = sphi 0, %s179
    %s181 = sphi 0, %s179
    %s182 = sphi 0, %s181
    %s196 = sphi 0, %s182
    %s200 = sphi 0, %s200
    %s202 = sphi 0, %s200
    %s203 = sphi 0, %s202
    %s217 = sphi 0, %s203
    %s221 = sphi 0, %s221
    %s223 = sphi 0, %s221
    %s224 = sphi 0, %s223
    %s238 = sphi 0, %s224
    %s242 = sphi 0, %s242
    %s244 = sphi 0, %s242
    %s245 = sphi 0, %s244
    %s259 = sphi 0, %s245
    %s263 = sphi 0, %s263
    %s265 = sphi 0, %s263
    %s266 = sphi 0, %s265
    %s280 = sphi 0, %s266
    %s284 = sphi 0, %s284
    %s286 = sphi 0, %s284
    %s287 = sphi 0, %s286
    %s301 = sphi 0, %s287
    %s307 = sphi 0, %s309
    %s310 = sphi 0, %s307
    %s311 = sphi 0, %s310
    %s327 = sphi 0, %s311
  $region4: #{bottleneck_forward.1} parent=0 // loop_header_branch
    %22 = sbr.rel (%p20) target = $region8
  $region5: #{bottleneck_forward.1} parent=0 // loop_body
    %s24 = ssub.s32 %s19, 1
    %s25 = ssub.s32 %s19, 2
    %s26 = sadd.s32 %s19, 1
    %s27 = ssub.s32 %s19, %s26
    %p28 = scmp.eq.s32.totalorder %s27, 0
    %s30 = sadd.s32 %s29, 1
    %s31 = scalar_select %p28, %s29, %s30
    %p34 = pneg %p28
    %p35 = scmp.eq.s32.totalorder %s19, 1
    %p36 = por %p34, %p35
    %p37 = scmp.ne.s32.totalorder %s29, %s32
    %p38 = scmp.eq.s32.totalorder %s19, 0
    %p39 = por %p37, %p38
    %p40 = scmp.ne.s32.totalorder %s29, %s32
    %p41 = scmp.eq.s32.totalorder %s24, 1
    %p42 = por %p40, %p41
    %p43 = scmp.ne.s32.totalorder %s32, %s33
    %p44 = scmp.eq.s32.totalorder %s24, 0
    %p45 = por %p43, %p44
    %p46 = scmp.ne.s32.totalorder %s32, %s33
    %p47 = scmp.eq.s32.totalorder %s25, 1
    %p48 = por %p46, %p47
    %p50 = scmp.ne.s32.totalorder %s33, %s49
    %p51 = scmp.eq.s32.totalorder %s25, 0
    %p52 = por %p50, %p51
    %s54 = sadd.s32 %s53, 1
    %p57 = scmp.eq.s32.totalorder %s19, 1
    %p58 = scmp.ne.s32.totalorder %s53, %s55
    %p59 = scmp.eq.s32.totalorder %s19, 0
    %p60 = por %p58, %p59
    %p61 = scmp.ne.s32.totalorder %s53, %s55
    %p62 = scmp.eq.s32.totalorder %s24, 1
    %p63 = por %p61, %p62
    %p64 = scmp.ne.s32.totalorder %s55, %s56
    %p65 = scmp.eq.s32.totalorder %s24, 0
    %p66 = por %p64, %p65
    %p67 = scmp.ne.s32.totalorder %s55, %s56
    %p68 = scmp.eq.s32.totalorder %s25, 1
    %p69 = por %p67, %p68
    %p71 = scmp.ne.s32.totalorder %s56, %s70
    %p72 = scmp.eq.s32.totalorder %s25, 0
    %p73 = por %p71, %p72
    %s75 = sadd.s32 %s74, 1
    %p78 = scmp.eq.s32.totalorder %s19, 1
    %p79 = scmp.ne.s32.totalorder %s74, %s76
    %p80 = scmp.eq.s32.totalorder %s19, 0
    %p81 = por %p79, %p80
    %p82 = scmp.ne.s32.totalorder %s74, %s76
    %p83 = scmp.eq.s32.totalorder %s24, 1
    %p84 = por %p82, %p83
    %p85 = scmp.ne.s32.totalorder %s76, %s77
    %p86 = scmp.eq.s32.totalorder %s24, 0
    %p87 = por %p85, %p86
    %p88 = scmp.ne.s32.totalorder %s76, %s77
    %p89 = scmp.eq.s32.totalorder %s25, 1
    %p90 = por %p88, %p89
    %p92 = scmp.ne.s32.totalorder %s77, %s91
    %p93 = scmp.eq.s32.totalorder %s25, 0
    %p94 = por %p92, %p93
    %s96 = sadd.s32 %s95, 1
    %p99 = scmp.eq.s32.totalorder %s19, 1
    %p100 = scmp.ne.s32.totalorder %s95, %s97
    %p101 = scmp.eq.s32.totalorder %s19, 0
    %p102 = por %p100, %p101
    %p103 = scmp.ne.s32.totalorder %s95, %s97
    %p104 = scmp.eq.s32.totalorder %s24, 1
    %p105 = por %p103, %p104
    %p106 = scmp.ne.s32.totalorder %s97, %s98
    %p107 = scmp.eq.s32.totalorder %s24, 0
    %p108 = por %p106, %p107
    %p109 = scmp.ne.s32.totalorder %s97, %s98
    %p110 = scmp.eq.s32.totalorder %s25, 1
    %p111 = por %p109, %p110
    %p113 = scmp.ne.s32.totalorder %s98, %s112
    %p114 = scmp.eq.s32.totalorder %s25, 0
    %p115 = por %p113, %p114
    %s117 = sadd.s32 %s116, 1
    %p120 = scmp.eq.s32.totalorder %s19, 1
    %p121 = scmp.ne.s32.totalorder %s116, %s118
    %p122 = scmp.eq.s32.totalorder %s19, 0
    %p123 = por %p121, %p122
    %p124 = scmp.ne.s32.totalorder %s116, %s118
    %p125 = scmp.eq.s32.totalorder %s24, 1
    %p126 = por %p124, %p125
    %p127 = scmp.ne.s32.totalorder %s118, %s119
    %p128 = scmp.eq.s32.totalorder %s24, 0
    %p129 = por %p127, %p128
    %p130 = scmp.ne.s32.totalorder %s118, %s119
    %p131 = scmp.eq.s32.totalorder %s25, 1
    %p132 = por %p130, %p131
    %p134 = scmp.ne.s32.totalorder %s119, %s133
    %p135 = scmp.eq.s32.totalorder %s25, 0
    %p136 = por %p134, %p135
    %s138 = sadd.s32 %s137, 1
    %p141 = scmp.eq.s32.totalorder %s19, 1
    %p142 = scmp.ne.s32.totalorder %s137, %s139
    %p143 = scmp.eq.s32.totalorder %s19, 0
    %p144 = por %p142, %p143
    %p145 = scmp.ne.s32.totalorder %s137, %s139
    %p146 = scmp.eq.s32.totalorder %s24, 1
    %p147 = por %p145, %p146
    %p148 = scmp.ne.s32.totalorder %s139, %s140
    %p149 = scmp.eq.s32.totalorder %s24, 0
    %p150 = por %p148, %p149
    %p151 = scmp.ne.s32.totalorder %s139, %s140
    %p152 = scmp.eq.s32.totalorder %s25, 1
    %p153 = por %p151, %p152
    %p155 = scmp.ne.s32.totalorder %s140, %s154
    %p156 = scmp.eq.s32.totalorder %s25, 0
    %p157 = por %p155, %p156
    %s159 = sadd.s32 %s158, 1
    %p162 = scmp.eq.s32.totalorder %s19, 1
    %p163 = scmp.ne.s32.totalorder %s158, %s160
    %p164 = scmp.eq.s32.totalorder %s19, 0
    %p165 = por %p163, %p164
    %p166 = scmp.ne.s32.totalorder %s158, %s160
    %p167 = scmp.eq.s32.totalorder %s24, 1
    %p168 = por %p166, %p167
    %p169 = scmp.ne.s32.totalorder %s160, %s161
    %p170 = scmp.eq.s32.totalorder %s24, 0
    %p171 = por %p169, %p170
    %p172 = scmp.ne.s32.totalorder %s160, %s161
    %p173 = scmp.eq.s32.totalorder %s25, 1
    %p174 = por %p172, %p173
    %p176 = scmp.ne.s32.totalorder %s161, %s175
    %p177 = scmp.eq.s32.totalorder %s25, 0
    %p178 = por %p176, %p177
    %s180 = sadd.s32 %s179, 1
    %p183 = scmp.eq.s32.totalorder %s19, 1
    %p184 = scmp.ne.s32.totalorder %s179, %s181
    %p185 = scmp.eq.s32.totalorder %s19, 0
    %p186 = por %p184, %p185
    %p187 = scmp.ne.s32.totalorder %s179, %s181
    %p188 = scmp.eq.s32.totalorder %s24, 1
    %p189 = por %p187, %p188
    %p190 = scmp.ne.s32.totalorder %s181, %s182
    %p191 = scmp.eq.s32.totalorder %s24, 0
    %p192 = por %p190, %p191
    %p193 = scmp.ne.s32.totalorder %s181, %s182
    %p194 = scmp.eq.s32.totalorder %s25, 1
    %p195 = por %p193, %p194
    %p197 = scmp.ne.s32.totalorder %s182, %s196
    %p198 = scmp.eq.s32.totalorder %s25, 0
    %p199 = por %p197, %p198
    %s201 = sadd.s32 %s200, 1
    %p204 = scmp.eq.s32.totalorder %s19, 1
    %p205 = scmp.ne.s32.totalorder %s200, %s202
    %p206 = scmp.eq.s32.totalorder %s19, 0
    %p207 = por %p205, %p206
    %p208 = scmp.ne.s32.totalorder %s200, %s202
    %p209 = scmp.eq.s32.totalorder %s24, 1
    %p210 = por %p208, %p209
    %p211 = scmp.ne.s32.totalorder %s202, %s203
    %p212 = scmp.eq.s32.totalorder %s24, 0
    %p213 = por %p211, %p212
    %p214 = scmp.ne.s32.totalorder %s202, %s203
    %p215 = scmp.eq.s32.totalorder %s25, 1
    %p216 = por %p214, %p215
    %p218 = scmp.ne.s32.totalorder %s203, %s217
    %p219 = scmp.eq.s32.totalorder %s25, 0
    %p220 = por %p218, %p219
    %s222 = sadd.s32 %s221, 1
    %p225 = scmp.eq.s32.totalorder %s19, 1
    %p226 = scmp.ne.s32.totalorder %s221, %s223
    %p227 = scmp.eq.s32.totalorder %s19, 0
    %p228 = por %p226, %p227
    %p229 = scmp.ne.s32.totalorder %s221, %s223
    %p230 = scmp.eq.s32.totalorder %s24, 1
    %p231 = por %p229, %p230
    %p232 = scmp.ne.s32.totalorder %s223, %s224
    %p233 = scmp.eq.s32.totalorder %s24, 0
    %p234 = por %p232, %p233
    %p235 = scmp.ne.s32.totalorder %s223, %s224
    %p236 = scmp.eq.s32.totalorder %s25, 1
    %p237 = por %p235, %p236
    %p239 = scmp.ne.s32.totalorder %s224, %s238
    %p240 = scmp.eq.s32.totalorder %s25, 0
    %p241 = por %p239, %p240
    %s243 = sadd.s32 %s242, 1
    %p246 = scmp.eq.s32.totalorder %s19, 1
    %p247 = scmp.ne.s32.totalorder %s242, %s244
    %p248 = scmp.eq.s32.totalorder %s19, 0
    %p249 = por %p247, %p248
    %p250 = scmp.ne.s32.totalorder %s242, %s244
    %p251 = scmp.eq.s32.totalorder %s24, 1
    %p252 = por %p250, %p251
    %p253 = scmp.ne.s32.totalorder %s244, %s245
    %p254 = scmp.eq.s32.totalorder %s24, 0
    %p255 = por %p253, %p254
    %p256 = scmp.ne.s32.totalorder %s244, %s245
    %p257 = scmp.eq.s32.totalorder %s25, 1
    %p258 = por %p256, %p257
    %p260 = scmp.ne.s32.totalorder %s245, %s259
    %p261 = scmp.eq.s32.totalorder %s25, 0
    %p262 = por %p260, %p261
    %s264 = sadd.s32 %s263, 1
    %p267 = scmp.eq.s32.totalorder %s19, 1
    %p268 = scmp.ne.s32.totalorder %s263, %s265
    %p269 = scmp.eq.s32.totalorder %s19, 0
    %p270 = por %p268, %p269
    %p271 = scmp.ne.s32.totalorder %s263, %s265
    %p272 = scmp.eq.s32.totalorder %s24, 1
    %p273 = por %p271, %p272
    %p274 = scmp.ne.s32.totalorder %s265, %s266
    %p275 = scmp.eq.s32.totalorder %s24, 0
    %p276 = por %p274, %p275
    %p277 = scmp.ne.s32.totalorder %s265, %s266
    %p278 = scmp.eq.s32.totalorder %s25, 1
    %p279 = por %p277, %p278
    %p281 = scmp.ne.s32.totalorder %s266, %s280
    %p282 = scmp.eq.s32.totalorder %s25, 0
    %p283 = por %p281, %p282
    %s285 = sadd.s32 %s284, 1
    %p288 = scmp.eq.s32.totalorder %s19, 1
    %p289 = scmp.ne.s32.totalorder %s284, %s286
    %p290 = scmp.eq.s32.totalorder %s19, 0
    %p291 = por %p289, %p290
    %p292 = scmp.ne.s32.totalorder %s284, %s286
    %p293 = scmp.eq.s32.totalorder %s24, 1
    %p294 = por %p292, %p293
    %p295 = scmp.ne.s32.totalorder %s286, %s287
    %p296 = scmp.eq.s32.totalorder %s24, 0
    %p297 = por %p295, %p296
    %p298 = scmp.ne.s32.totalorder %s286, %s287
    %p299 = scmp.eq.s32.totalorder %s25, 1
    %p300 = por %p298, %p299
    %p302 = scmp.ne.s32.totalorder %s287, %s301
    %p303 = scmp.eq.s32.totalorder %s25, 0
    %p304 = por %p302, %p303
    %s305 = ssub.s32 %s19, %s26
    %p306 = scmp.eq.s32.totalorder %s305, 0
    %s308 = sadd.s32 %s307, 1
    %s309 = scalar_select %p306, %s307, %s308
    %p312 = pneg %p306
    %p313 = scmp.eq.s32.totalorder %s19, 1
    %p314 = por %p312, %p313
    %p315 = scmp.ne.s32.totalorder %s307, %s310
    %p316 = scmp.eq.s32.totalorder %s19, 0
    %p317 = por %p315, %p316
    %p318 = scmp.ne.s32.totalorder %s307, %s310
    %p319 = scmp.eq.s32.totalorder %s24, 1
    %p320 = por %p318, %p319
    %p321 = scmp.ne.s32.totalorder %s310, %s311
    %p322 = scmp.eq.s32.totalorder %s24, 0
    %p323 = por %p321, %p322
    %p324 = scmp.ne.s32.totalorder %s310, %s311
    %p325 = scmp.eq.s32.totalorder %s25, 1
    %p326 = por %p324, %p325
    %p328 = scmp.ne.s32.totalorder %s311, %s327
    %p329 = scmp.eq.s32.totalorder %s25, 0
    %p330 = por %p328, %p329
    %p331 = scmp.le.s32.totalorder 1, %s19
    %p332 = scmp.lt.s32.totalorder %s19, 3
    %p333 = pnand %p331, %p332
    %p334 = pneg %p333
    // Predicated region
    $region9: #{bottleneck_forward.1} parent=5 // pred_check
      _
    $region10: #{bottleneck_forward.1} parent=5 // pred_check_branch
      %336 = sbr.rel (%p333) target = $region12
    $region11: #{bottleneck_forward.1} parent=5 // pred_region
      %s337 = ssub.s32 %s19, 1
      // Predicated region
      $region13: #{bottleneck_forward.1} parent=11 // pred_check
        %p338 = pneg %p66
      $region14: #{bottleneck_forward.1} parent=11 // pred_check_branch
        %340 = sbr.rel (%p338) target = $region16
      $region15: #{bottleneck_forward.1} parent=11 // pred_region
        _
      $region16: #{bottleneck_forward.1} parent=11 // pred_fallthru
        _
      // Predicated region
      $region17: #{bottleneck_forward.1} parent=11 // pred_check
        %p341 = pneg %p87
      $region18: #{bottleneck_forward.1} parent=11 // pred_check_branch
        %343 = sbr.rel (%p341) target = $region20
      $region19: #{bottleneck_forward.1} parent=11 // pred_region
        _
      $region20: #{bottleneck_forward.1} parent=11 // pred_fallthru
        _
      // Predicated region
      $region21: #{bottleneck_forward.1} parent=11 // pred_check
        %p344 = pneg %p108
      $region22: #{bottleneck_forward.1} parent=11 // pred_check_branch
        %346 = sbr.rel (%p344) target = $region24
      $region23: #{bottleneck_forward.1} parent=11 // pred_region
        _
      $region24: #{bottleneck_forward.1} parent=11 // pred_fallthru
        _
      // Predicated region
      $region25: #{bottleneck_forward.1} parent=11 // pred_check
        %p347 = pneg %p129
      $region26: #{bottleneck_forward.1} parent=11 // pred_check_branch
        %349 = sbr.rel (%p347) target = $region28
      $region27: #{bottleneck_forward.1} parent=11 // pred_region
        _
      $region28: #{bottleneck_forward.1} parent=11 // pred_fallthru
        _
      // Predicated region
      $region29: #{bottleneck_forward.1} parent=11 // pred_check
        %p350 = pneg %p150
      $region30: #{bottleneck_forward.1} parent=11 // pred_check_branch
        %352 = sbr.rel (%p350) target = $region32
      $region31: #{bottleneck_forward.1} parent=11 // pred_region
        _
      $region32: #{bottleneck_forward.1} parent=11 // pred_fallthru
        _
      // Predicated region
      $region33: #{bottleneck_forward.1} parent=11 // pred_check
        %p353 = pneg %p171
      $region34: #{bottleneck_forward.1} parent=11 // pred_check_branch
        %355 = sbr.rel (%p353) target = $region36
      $region35: #{bottleneck_forward.1} parent=11 // pred_region
        _
      $region36: #{bottleneck_forward.1} parent=11 // pred_fallthru
        _
      // Predicated region
      $region37: #{bottleneck_forward.1} parent=11 // pred_check
        %p356 = pneg %p192
      $region38: #{bottleneck_forward.1} parent=11 // pred_check_branch
        %358 = sbr.rel (%p356) target = $region40
      $region39: #{bottleneck_forward.1} parent=11 // pred_region
        _
      $region40: #{bottleneck_forward.1} parent=11 // pred_fallthru
        _
      // Predicated region
      $region41: #{bottleneck_forward.1} parent=11 // pred_check
        %p359 = pneg %p213
      $region42: #{bottleneck_forward.1} parent=11 // pred_check_branch
        %361 = sbr.rel (%p359) target = $region44
      $region43: #{bottleneck_forward.1} parent=11 // pred_region
        _
      $region44: #{bottleneck_forward.1} parent=11 // pred_fallthru
        _
      // Predicated region
      $region45: #{bottleneck_forward.1} parent=11 // pred_check
        %p362 = pneg %p234
      $region46: #{bottleneck_forward.1} parent=11 // pred_check_branch
        %364 = sbr.rel (%p362) target = $region48
      $region47: #{bottleneck_forward.1} parent=11 // pred_region
        _
      $region48: #{bottleneck_forward.1} parent=11 // pred_fallthru
        _
      // Predicated region
      $region49: #{bottleneck_forward.1} parent=11 // pred_check
        %p365 = pneg %p255
      $region50: #{bottleneck_forward.1} parent=11 // pred_check_branch
        %367 = sbr.rel (%p365) target = $region52
      $region51: #{bottleneck_forward.1} parent=11 // pred_region
        _
      $region52: #{bottleneck_forward.1} parent=11 // pred_fallthru
        _
      // Predicated region
      $region53: #{bottleneck_forward.1} parent=11 // pred_check
        %p368 = pneg %p276
      $region54: #{bottleneck_forward.1} parent=11 // pred_check_branch
        %370 = sbr.rel (%p368) target = $region56
      $region55: #{bottleneck_forward.1} parent=11 // pred_region
        _
      $region56: #{bottleneck_forward.1} parent=11 // pred_fallthru
        _
      // Predicated region
      $region57: #{bottleneck_forward.1} parent=11 // pred_check
        %p371 = pneg %p297
      $region58: #{bottleneck_forward.1} parent=11 // pred_check_branch
        %373 = sbr.rel (%p371) target = $region60
      $region59: #{bottleneck_forward.1} parent=11 // pred_region
        _
      $region60: #{bottleneck_forward.1} parent=11 // pred_fallthru
        _
    $region12: #{bottleneck_forward.1} parent=5 // pred_fallthru
      _
    %p374 = scmp.lt.s32.totalorder %s19, 2
    // Predicated region
    $region61: #{bottleneck_forward.1} parent=5 // pred_check
      %p375 = pneg %p374
    $region62: #{bottleneck_forward.1} parent=5 // pred_check_branch
      %377 = sbr.rel (%p375) target = $region64
    $region63: #{bottleneck_forward.1} parent=5 // pred_region
      // Predicated region
      $region65: #{bottleneck_forward.1} parent=63 // pred_check
        %p378 = pneg %p39
      $region66: #{bottleneck_forward.1} parent=63 // pred_check_branch
        %380 = sbr.rel (%p378) target = $region68
      $region67: #{bottleneck_forward.1} parent=63 // pred_region
        %p381 = scmp.lt.s32.totalorder %s19, 1
        %s382 = scalar_select %p381, %s19, 1
        %s383 = smul.addr %s382, 32
        %s384 = smul.addr %s383, 4
        %s385 = scalar_lea.vmem %s0, %s384
      $region68: #{bottleneck_forward.1} parent=63 // pred_fallthru
        _
    $region64: #{bottleneck_forward.1} parent=5 // pred_fallthru
      _
    %p386 = scmp.le.s32.totalorder 1, %s19
    %p387 = scmp.lt.s32.totalorder %s19, 3
    %p388 = pnand %p386, %p387
    %p389 = pneg %p388
    // Predicated region
    $region69: #{bottleneck_forward.1} parent=5 // pred_check
      _
    $region70: #{bottleneck_forward.1} parent=5 // pred_check_branch
      %391 = sbr.rel (%p388) target = $region72
    $region71: #{bottleneck_forward.1} parent=5 // pred_region
      %s392 = ssub.s32 %s19, 1
      %p393 = scmp.lt.s32.totalorder %s24, 1
      %s394 = scalar_select %p393, %s24, 1
      %s395 = smul.addr %s394, 32
      %s396 = smul.addr %s395, 4
      %s397 = scalar_lea.vmem %s0, %s396
      %p398 = pneg %p45
      %p399 = pneg %p42
      %p400 = pneg %p66
      %p401 = pneg %p63
      %p402 = pneg %p87
      %p403 = pneg %p84
      %p404 = pneg %p108
      %p405 = pneg %p105
      %p406 = pneg %p129
      %p407 = pneg %p126
      %p408 = pneg %p150
      %p409 = pneg %p147
      %p410 = pneg %p171
      %p411 = pneg %p168
      %p412 = pneg %p192
      %p413 = pneg %p189
      %p414 = pneg %p213
      %p415 = pneg %p210
      %p416 = pneg %p234
      %p417 = pneg %p231
      %p418 = pneg %p255
      %p419 = pneg %p252
      %p420 = pneg %p276
      %p421 = pneg %p273
      %p422 = pneg %p297
      %p423 = pneg %p294
      %p424 = pneg %p323
      %p425 = pneg %p320
      %p426 = scmp.lt.s32.totalorder %s24, 1
      %s427 = scalar_select %p426, %s24, 1
      %s428 = smul.addr %s427, 32
      %s429 = smul.addr %s428, 4
      %s430 = scalar_lea.vmem %s13, %s429
      %p431 = scmp.lt.s32.totalorder %s24, 1
      %s432 = scalar_select %p431, %s24, 1
      %s433 = smul.addr %s432, 32
      %s434 = smul.addr %s433, 4
      %s435 = scalar_lea.vmem %s0, %s434
      %p436 = scmp.lt.s32.totalorder %s24, 1
      %s437 = scalar_select %p436, %s24, 1
      %s438 = smul.addr %s437, 32
      %s439 = smul.addr %s438, 4
      %s440 = scalar_lea.vmem %s13, %s439
      %v442 = vld [vmem:[%s435] sm:$0xf]
      %v443 = vld [vmem:[%s435 + $0x4] sm:$0xf]
      %v444 = vld [vmem:[%s435 + $0x8] sm:$0xf]
      %v445 = vld [vmem:[%s435 + $0xc] sm:$0xf]
      %v446 = vld [vmem:[%s435 + $0x10] sm:$0xf]
      %v447 = vld [vmem:[%s435 + $0x14] sm:$0xf]
      %v448 = vld [vmem:[%s435 + $0x18] sm:$0xf]
      %v449 = vld [vmem:[%s435 + $0x1c] sm:$0xf]
      %v450 = vld [vmem:[%s435 + $0x20] sm:$0xf]
      %v451 = vld [vmem:[%s435 + $0x24] sm:$0xf]
      %v452 = vld [vmem:[%s435 + $0x28] sm:$0xf]
      %v453 = vld [vmem:[%s435 + $0x2c] sm:$0xf]
      %v454 = vld [vmem:[%s435 + $0x30] sm:$0xf]
      %v455 = vld [vmem:[%s435 + $0x34] sm:$0xf]
      %v456 = vld [vmem:[%s435 + $0x38] sm:$0xf]
      %v457 = vld [vmem:[%s435 + $0x3c] sm:$0xf]
      %v458 = vld [vmem:[%s435 + $0x40] sm:$0xf]
      %v459 = vld [vmem:[%s435 + $0x44] sm:$0xf]
      %v460 = vld [vmem:[%s435 + $0x48] sm:$0xf]
      %v461 = vld [vmem:[%s435 + $0x4c] sm:$0xf]
      %v462 = vld [vmem:[%s435 + $0x50] sm:$0xf]
      %v463 = vld [vmem:[%s435 + $0x54] sm:$0xf]
      %v464 = vld [vmem:[%s435 + $0x58] sm:$0xf]
      %v465 = vld [vmem:[%s435 + $0x5c] sm:$0xf]
      %v466 = vld [vmem:[%s435 + $0x60] sm:$0xf]
      %v467 = vld [vmem:[%s435 + $0x64] sm:$0xf]
      %v468 = vld [vmem:[%s435 + $0x68] sm:$0xf]
      %v469 = vld [vmem:[%s435 + $0x6c] sm:$0xf]
      %v470 = vld [vmem:[%s435 + $0x70] sm:$0xf]
      %v471 = vld [vmem:[%s435 + $0x74] sm:$0xf]
      %v472 = vld [vmem:[%s435 + $0x78] sm:$0xf]
      %v473 = vld [vmem:[%s435 + $0x7c] sm:$0xf]
      %v474 = vld [vmem:[%s1] sm:$0xf]
      %v475 = vld [vmem:[%s1 + $0x4] sm:$0xf]
      %v476 = vld [vmem:[%s1 + $0x8] sm:$0xf]
      %v477 = vld [vmem:[%s1 + $0xc] sm:$0xf]
      %v478 = vld [vmem:[%s1 + $0x10] sm:$0xf]
      %v479 = vld [vmem:[%s1 + $0x14] sm:$0xf]
      %v480 = vld [vmem:[%s1 + $0x18] sm:$0xf]
      %v481 = vld [vmem:[%s1 + $0x1c] sm:$0xf]
      %v482 = vld [vmem:[%s1 + $0x20] sm:$0xf]
      %v483 = vld [vmem:[%s1 + $0x24] sm:$0xf]
      %v484 = vld [vmem:[%s1 + $0x28] sm:$0xf]
      %v485 = vld [vmem:[%s1 + $0x2c] sm:$0xf]
      %v486 = vld [vmem:[%s1 + $0x30] sm:$0xf]
      %v487 = vld [vmem:[%s1 + $0x34] sm:$0xf]
      %v488 = vld [vmem:[%s1 + $0x38] sm:$0xf]
      %v489 = vld [vmem:[%s1 + $0x3c] sm:$0xf]
      %v522 = vunpack.c.l.b16 %v442
      %v523 = vunpack.c.l.b16 %v443
      %v524 = vunpack.c.l.b16 %v444
      %v525 = vunpack.c.l.b16 %v445
      %v526 = vunpack.c.l.b16 %v446
      %v527 = vunpack.c.l.b16 %v447
      %v528 = vunpack.c.l.b16 %v448
      %v529 = vunpack.c.l.b16 %v449
      %v530 = vunpack.c.l.b16 %v450
      %v531 = vunpack.c.l.b16 %v451
      %v532 = vunpack.c.l.b16 %v452
      %v533 = vunpack.c.l.b16 %v453
      %v534 = vunpack.c.l.b16 %v454
      %v535 = vunpack.c.l.b16 %v455
      %v536 = vunpack.c.l.b16 %v456
      %v537 = vunpack.c.l.b16 %v457
      %v538 = vunpack.c.l.b16 %v458
      %v539 = vunpack.c.l.b16 %v459
      %v540 = vunpack.c.l.b16 %v460
      %v541 = vunpack.c.l.b16 %v461
      %v542 = vunpack.c.l.b16 %v462
      %v543 = vunpack.c.l.b16 %v463
      %v544 = vunpack.c.l.b16 %v464
      %v545 = vunpack.c.l.b16 %v465
      %v546 = vunpack.c.l.b16 %v466
      %v547 = vunpack.c.l.b16 %v467
      %v548 = vunpack.c.l.b16 %v468
      %v549 = vunpack.c.l.b16 %v469
      %v550 = vunpack.c.l.b16 %v470
      %v551 = vunpack.c.l.b16 %v471
      %v552 = vunpack.c.l.b16 %v472
      %v553 = vunpack.c.l.b16 %v473
      %v554 = vpack.c.b16 %v523, %v522
      %v555 = vpack.c.b16 %v525, %v524
      %v556 = vpack.c.b16 %v527, %v526
      %v557 = vpack.c.b16 %v529, %v528
      %v558 = vpack.c.b16 %v531, %v530
      %v559 = vpack.c.b16 %v533, %v532
      %v560 = vpack.c.b16 %v535, %v534
      %v561 = vpack.c.b16 %v537, %v536
      %v562 = vpack.c.b16 %v539, %v538
      %v563 = vpack.c.b16 %v541, %v540
      %v564 = vpack.c.b16 %v543, %v542
      %v565 = vpack.c.b16 %v545, %v544
      %v566 = vpack.c.b16 %v547, %v546
      %v567 = vpack.c.b16 %v549, %v548
      %v568 = vpack.c.b16 %v551, %v550
      %v569 = vpack.c.b16 %v553, %v552
      %v602 = vunpack.c.l.b16 %v474
      %v603 = vunpack.c.l.b16 %v475
      %v604 = vunpack.c.l.b16 %v476
      %v605 = vunpack.c.l.b16 %v477
      %v606 = vunpack.c.l.b16 %v478
      %v607 = vunpack.c.l.b16 %v479
      %v608 = vunpack.c.l.b16 %v480
      %v609 = vunpack.c.l.b16 %v481
      %v610 = vunpack.c.l.b16 %v482
      %v611 = vunpack.c.l.b16 %v483
      %v612 = vunpack.c.l.b16 %v484
      %v613 = vunpack.c.l.b16 %v485
      %v614 = vunpack.c.l.b16 %v486
      %v615 = vunpack.c.l.b16 %v487
      %v616 = vunpack.c.l.b16 %v488
      %v617 = vunpack.c.l.b16 %v489
      %v618 = vpack.c.b16 %v603, %v602
      %v619 = vpack.c.b16 %v605, %v604
      %v620 = vpack.c.b16 %v607, %v606
      %v621 = vpack.c.b16 %v609, %v608
      %v622 = vpack.c.b16 %v611, %v610
      %v623 = vpack.c.b16 %v613, %v612
      %v624 = vpack.c.b16 %v615, %v614
      %v625 = vpack.c.b16 %v617, %v616
      %634 = vmatprep.subr.bf16.mxu0 0
      %635 = vmatpush1.bf16.msra.mxu0 %v618
      %636 = vmatprep.subr.bf16.mxu0 0
      %637 = vmatpush1.bf16.msra.mxu0 %v619
      %638 = vmatprep.subr.bf16.mxu0 0
      %639 = vmatpush1.bf16.msra.mxu0 %v620
      %640 = vmatprep.subr.bf16.mxu0 0
      %641 = vmatpush1.bf16.msra.mxu0 %v621
      %642 = vmatprep.subr.bf16.mxu0 0
      %643 = vmatpush1.bf16.msra.mxu0 %v622
      %644 = vmatprep.subr.bf16.mxu0 0
      %645 = vmatpush1.bf16.msra.mxu0 %v623
      %646 = vmatprep.subr.bf16.mxu0 0
      %647 = vmatpush1.bf16.msra.mxu0 %v624
      %648 = vmatprep.subr.bf16.mxu0 0
      %649 = vmatpush1.bf16.msra.mxu0 %v625
      %650 = vmatprep.subr.bf16.mxu0 0
      %651 = vmatpush1.bf16.msra.mxu0 0
      %652 = vmatprep.subr.bf16.mxu0 0
      %653 = vmatpush1.bf16.msra.mxu0 0
      %654 = vmatprep.subr.bf16.mxu0 0
      %655 = vmatpush1.bf16.msra.mxu0 0
      %656 = vmatprep.subr.bf16.mxu0 0
      %657 = vmatpush1.bf16.msra.mxu0 0
      %658 = vmatprep.subr.bf16.mxu0 0
      %659 = vmatpush1.bf16.msra.mxu0 0
      %660 = vmatprep.subr.bf16.mxu0 0
      %661 = vmatpush1.bf16.msra.mxu0 0
      %662 = vmatprep.subr.bf16.mxu0 0
      %663 = vmatpush1.bf16.msra.mxu0 0
      %664 = vmatprep.subr.bf16.mxu0 0
      %665 = vmatpush1.bf16.msra.mxu0 0
      %666 = vmatprep.mubr.bf16.mxu0 0
      %667 = vmatmul.mubr.bf16.gmra.mrb[0].mxu0 %v554
      %v668 = vpop.f32.mrb[0].mxu0
      %v669 = vadd.f32 0.0, %v668
      %v670 = vpop.f32.mrb[0].mxu0
      %v671 = vpop.f32.mrb[0].mxu0
      %v672 = vadd.f32 0.0, %v671
      %v673 = vpop.f32.mrb[0].mxu0
      %674 = vmatprep.mubr.bf16.mxu0 0
      %675 = vmatmul.mubr.bf16.gmra.mrb[0].mxu0 %v555
      %v676 = vpop.f32.mrb[0].mxu0
      %v677 = vadd.f32 0.0, %v676
      %v678 = vpop.f32.mrb[0].mxu0
      %v679 = vpop.f32.mrb[0].mxu0
      %v680 = vadd.f32 0.0, %v679
      %v681 = vpop.f32.mrb[0].mxu0
      %682 = vmatprep.mubr.bf16.mxu0 0
      %683 = vmatmul.mubr.bf16.gmra.mrb[0].mxu0 %v556
      %v684 = vpop.f32.mrb[0].mxu0
      %v685 = vadd.f32 0.0, %v684
      %v686 = vpop.f32.mrb[0].mxu0
      %v687 = vpop.f32.mrb[0].mxu0
      %v688 = vadd.f32 0.0, %v687
      %v689 = vpop.f32.mrb[0].mxu0
      %690 = vmatprep.mubr.bf16.mxu0 0
      %691 = vmatmul.mubr.bf16.gmra.mrb[0].mxu0 %v557
      %v692 = vpop.f32.mrb[0].mxu0
      %v693 = vadd.f32 0.0, %v692
      %v694 = vpop.f32.mrb[0].mxu0
      %v695 = vpop.f32.mrb[0].mxu0
      %v696 = vadd.f32 0.0, %v695
      %v697 = vpop.f32.mrb[0].mxu0
      %698 = vmatprep.mubr.bf16.mxu0 0
      %699 = vmatmul.mubr.bf16.gmra.mrb[0].mxu0 %v558
      %v700 = vpop.f32.mrb[0].mxu0
      %v701 = vadd.f32 0.0, %v700
      %v702 = vpop.f32.mrb[0].mxu0
      %v703 = vpop.f32.mrb[0].mxu0
      %v704 = vadd.f32 0.0, %v703
      %v705 = vpop.f32.mrb[0].mxu0
      %706 = vmatprep.mubr.bf16.mxu0 0
      %707 = vmatmul.mubr.bf16.gmra.mrb[0].mxu0 %v559
      %v708 = vpop.f32.mrb[0].mxu0
      %v709 = vadd.f32 0.0, %v708
      %v710 = vpop.f32.mrb[0].mxu0
      %v711 = vpop.f32.mrb[0].mxu0
      %v712 = vadd.f32 0.0, %v711
      %v713 = vpop.f32.mrb[0].mxu0
      %714 = vmatprep.mubr.bf16.mxu0 0
      %715 = vmatmul.mubr.bf16.gmra.mrb[0].mxu0 %v560
      %v716 = vpop.f32.mrb[0].mxu0
      %v717 = vadd.f32 0.0, %v716
      %v718 = vpop.f32.mrb[0].mxu0
      %v719 = vpop.f32.mrb[0].mxu0
      %v720 = vadd.f32 0.0, %v719
      %v721 = vpop.f32.mrb[0].mxu0
      %722 = vmatprep.mubr.bf16.mxu0 0
      %723 = vmatmul.mubr.bf16.gmra.mrb[0].mxu0 %v561
      %v724 = vpop.f32.mrb[0].mxu0
      %v725 = vadd.f32 0.0, %v724
      %v726 = vpop.f32.mrb[0].mxu0
      %v727 = vpop.f32.mrb[0].mxu0
      %v728 = vadd.f32 0.0, %v727
      %v729 = vpop.f32.mrb[0].mxu0
      %730 = vmatprep.mubr.bf16.mxu0 0
      %731 = vmatmul.mubr.bf16.gmra.mrb[0].mxu0 %v562
      %v732 = vpop.f32.mrb[0].mxu0
      %v733 = vadd.f32 0.0, %v732
      %v734 = vpop.f32.mrb[0].mxu0
      %v735 = vpop.f32.mrb[0].mxu0
      %v736 = vadd.f32 0.0, %v735
      %v737 = vpop.f32.mrb[0].mxu0
      %738 = vmatprep.mubr.bf16.mxu0 0
      %739 = vmatmul.mubr.bf16.gmra.mrb[0].mxu0 %v563
      %v740 = vpop.f32.mrb[0].mxu0
      %v741 = vadd.f32 0.0, %v740
      %v742 = vpop.f32.mrb[0].mxu0
      %v743 = vpop.f32.mrb[0].mxu0
      %v744 = vadd.f32 0.0, %v743
      %v745 = vpop.f32.mrb[0].mxu0
      %746 = vmatprep.mubr.bf16.mxu0 0
      %747 = vmatmul.mubr.bf16.gmra.mrb[0].mxu0 %v564
      %v748 = vpop.f32.mrb[0].mxu0
      %v749 = vadd.f32 0.0, %v748
      %v750 = vpop.f32.mrb[0].mxu0
      %v751 = vpop.f32.mrb[0].mxu0
      %v752 = vadd.f32 0.0, %v751
      %v753 = vpop.f32.mrb[0].mxu0
      %754 = vmatprep.mubr.bf16.mxu0 0
      %755 = vmatmul.mubr.bf16.gmra.mrb[0].mxu0 %v565
      %v756 = vpop.f32.mrb[0].mxu0
      %v757 = vadd.f32 0.0, %v756
      %v758 = vpop.f32.mrb[0].mxu0
      %v759 = vpop.f32.mrb[0].mxu0
      %v760 = vadd.f32 0.0, %v759
      %v761 = vpop.f32.mrb[0].mxu0
      %762 = vmatprep.mubr.bf16.mxu0 0
      %763 = vmatmul.mubr.bf16.gmra.mrb[0].mxu0 %v566
      %v764 = vpop.f32.mrb[0].mxu0
      %v765 = vadd.f32 0.0, %v764
      %v766 = vpop.f32.mrb[0].mxu0
      %v767 = vpop.f32.mrb[0].mxu0
      %v768 = vadd.f32 0.0, %v767
      %v769 = vpop.f32.mrb[0].mxu0
      %770 = vmatprep.mubr.bf16.mxu0 0
      %771 = vmatmul.mubr.bf16.gmra.mrb[0].mxu0 %v567
      %v772 = vpop.f32.mrb[0].mxu0
      %v773 = vadd.f32 0.0, %v772
      %v774 = vpop.f32.mrb[0].mxu0
      %v775 = vpop.f32.mrb[0].mxu0
      %v776 = vadd.f32 0.0, %v775
      %v777 = vpop.f32.mrb[0].mxu0
      %778 = vmatprep.mubr.bf16.mxu0 0
      %779 = vmatmul.mubr.bf16.gmra.mrb[0].mxu0 %v568
      %v780 = vpop.f32.mrb[0].mxu0
      %v781 = vadd.f32 0.0, %v780
      %v782 = vpop.f32.mrb[0].mxu0
      %v783 = vpop.f32.mrb[0].mxu0
      %v784 = vadd.f32 0.0, %v783
      %v785 = vpop.f32.mrb[0].mxu0
      %786 = vmatprep.mubr.bf16.mxu0 0
      %787 = vmatmul.mubr.bf16.gmra.mrb[0].mxu0 %v569
      %v788 = vpop.f32.mrb[0].mxu0
      %v789 = vadd.f32 0.0, %v788
      %v790 = vpop.f32.mrb[0].mxu0
      %v791 = vpop.f32.mrb[0].mxu0
      %v792 = vadd.f32 0.0, %v791
      %v793 = vpop.f32.mrb[0].mxu0
      %794 = vdwg.mxu0
      %v795 = vld [vmem:[%s2] sm:$0x1]
      %v797 = vlaneseq
      %v798 = vshrl.u32 %v797, 7
      %v799 = vsub.s32 0, %v798
      %v800 = vrot.slane %v795, %v799
      %v802 = vmul.f32 %v669, %v800
      %v803 = vmul.f32 %v672, %v800
      %v804 = vmul.f32 %v677, %v800
      %v805 = vmul.f32 %v680, %v800
      %v806 = vmul.f32 %v685, %v800
      %v807 = vmul.f32 %v688, %v800
      %v808 = vmul.f32 %v693, %v800
      %v809 = vmul.f32 %v696, %v800
      %v810 = vmul.f32 %v701, %v800
      %v811 = vmul.f32 %v704, %v800
      %v812 = vmul.f32 %v709, %v800
      %v813 = vmul.f32 %v712, %v800
      %v814 = vmul.f32 %v717, %v800
      %v815 = vmul.f32 %v720, %v800
      %v816 = vmul.f32 %v725, %v800
      %v817 = vmul.f32 %v728, %v800
      %v818 = vmul.f32 %v733, %v800
      %v819 = vmul.f32 %v736, %v800
      %v820 = vmul.f32 %v741, %v800
      %v821 = vmul.f32 %v744, %v800
      %v822 = vmul.f32 %v749, %v800
      %v823 = vmul.f32 %v752, %v800
      %v824 = vmul.f32 %v757, %v800
      %v825 = vmul.f32 %v760, %v800
      %v826 = vmul.f32 %v765, %v800
      %v827 = vmul.f32 %v768, %v800
      %v828 = vmul.f32 %v773, %v800
      %v829 = vmul.f32 %v776, %v800
      %v830 = vmul.f32 %v781, %v800
      %v831 = vmul.f32 %v784, %v800
      %v832 = vmul.f32 %v789, %v800
      %v833 = vmul.f32 %v792, %v800
      %v834 = vld [vmem:[%s3] sm:$0x1]
      %v836 = vlaneseq
      %v837 = vshrl.u32 %v836, 7
      %v838 = vsub.s32 0, %v837
      %v839 = vrot.slane %v834, %v838
      %v841 = vadd.f32 %v802, %v839
      %v842 = vadd.f32 %v803, %v839
      %v843 = vadd.f32 %v804, %v839
      %v844 = vadd.f32 %v805, %v839
      %v845 = vadd.f32 %v806, %v839
      %v846 = vadd.f32 %v807, %v839
      %v847 = vadd.f32 %v808, %v839
      %v848 = vadd.f32 %v809, %v839
      %v849 = vadd.f32 %v810, %v839
      %v850 = vadd.f32 %v811, %v839
      %v851 = vadd.f32 %v812, %v839
      %v852 = vadd.f32 %v813, %v839
      %v853 = vadd.f32 %v814, %v839
      %v854 = vadd.f32 %v815, %v839
      %v855 = vadd.f32 %v816, %v839
      %v856 = vadd.f32 %v817, %v839
      %v857 = vadd.f32 %v818, %v839
      %v858 = vadd.f32 %v819, %v839
      %v859 = vadd.f32 %v820, %v839
      %v860 = vadd.f32 %v821, %v839
      %v861 = vadd.f32 %v822, %v839
      %v862 = vadd.f32 %v823, %v839
      %v863 = vadd.f32 %v824, %v839
      %v864 = vadd.f32 %v825, %v839
      %v865 = vadd.f32 %v826, %v839
      %v866 = vadd.f32 %v827, %v839
      %v867 = vadd.f32 %v828, %v839
      %v868 = vadd.f32 %v829, %v839
      %v869 = vadd.f32 %v830, %v839
      %v870 = vadd.f32 %v831, %v839
      %v871 = vadd.f32 %v832, %v839
      %v872 = vadd.f32 %v833, %v839
      %v873 = vmax.f32 %v841, 0.0
      %v874 = vmax.f32 %v842, 0.0
      %v875 = vmax.f32 %v843, 0.0
      %v876 = vmax.f32 %v844, 0.0
      %v877 = vmax.f32 %v845, 0.0
      %v878 = vmax.f32 %v846, 0.0
      %v879 = vmax.f32 %v847, 0.0
      %v880 = vmax.f32 %v848, 0.0
      %v881 = vmax.f32 %v849, 0.0
      %v882 = vmax.f32 %v850, 0.0
      %v883 = vmax.f32 %v851, 0.0
      %v884 = vmax.f32 %v852, 0.0
      %v885 = vmax.f32 %v853, 0.0
      %v886 = vmax.f32 %v854, 0.0
      %v887 = vmax.f32 %v855, 0.0
      %v888 = vmax.f32 %v856, 0.0
      %v889 = vmax.f32 %v857, 0.0
      %v890 = vmax.f32 %v858, 0.0
      %v891 = vmax.f32 %v859, 0.0
      %v892 = vmax.f32 %v860, 0.0
      %v893 = vmax.f32 %v861, 0.0
      %v894 = vmax.f32 %v862, 0.0
      %v895 = vmax.f32 %v863, 0.0
      %v896 = vmax.f32 %v864, 0.0
      %v897 = vmax.f32 %v865, 0.0
      %v898 = vmax.f32 %v866, 0.0
      %v899 = vmax.f32 %v867, 0.0
      %v900 = vmax.f32 %v868, 0.0
      %v901 = vmax.f32 %v869, 0.0
      %v902 = vmax.f32 %v870, 0.0
      %v903 = vmax.f32 %v871, 0.0
      %v904 = vmax.f32 %v872, 0.0
      %905 = vst [vmem:[#allocation2] sm:$0xf] 0
      %906 = vst [vmem:[#allocation2 + $0x4] sm:$0xf] 0
      %907 = vst [vmem:[#allocation2 + $0x8] sm:$0x1] 0
      %908 = vst [vmem:[#allocation2 + $0xc] sm:$0xf] 0
      %909 = vst [vmem:[#allocation2 + $0x10] sm:$0xf] 0
      %910 = vst [vmem:[#allocation2 + $0x14] sm:$0x1] 0
      %911 = vst [vmem:[#allocation2 + $0x18] sm:$0xf] 0
      %912 = vst [vmem:[#allocation2 + $0x1c] sm:$0xf] 0
      %913 = vst [vmem:[#allocation2 + $0x20] sm:$0x1] 0
      %914 = vst [vmem:[#allocation2 + $0x24] sm:$0xf] 0
      %915 = vst [vmem:[#allocation2 + $0x28] sm:$0xf] 0
      %916 = vst [vmem:[#allocation2 + $0x2c] sm:$0x1] 0
      %917 = vst [vmem:[#allocation2 + $0x30] sm:$0xf] 0
      %918 = vst [vmem:[#allocation2 + $0x34] sm:$0xf] 0
      %919 = vst [vmem:[#allocation2 + $0x38] sm:$0x1] 0
      %920 = vst [vmem:[#allocation2 + $0x3c] sm:$0xf] 0
      %921 = vst [vmem:[#allocation2 + $0x40] sm:$0xf] 0
      %922 = vst [vmem:[#allocation2 + $0x44] sm:$0x1] 0
      %923 = vst [vmem:[#allocation2 + $0x48] sm:$0xf] 0
      %924 = vst [vmem:[#allocation2 + $0x4c] sm:$0xf] 0
      %925 = vst [vmem:[#allocation2 + $0x50] sm:$0x1] 0
      %926 = vst [vmem:[#allocation2 + $0x54] sm:$0xf] 0
      %927 = vst [vmem:[#allocation2 + $0x58] sm:$0xf] 0
      %928 = vst [vmem:[#allocation2 + $0x5c] sm:$0x1] 0
      %929 = vst [vmem:[#allocation2 + $0x60] sm:$0xf] 0
      %930 = vst [vmem:[#allocation2 + $0x64] sm:$0xf] 0
      %931 = vst [vmem:[#allocation2 + $0x68] sm:$0x1] 0
      %932 = vst [vmem:[#allocation2 + $0x6c] sm:$0xf] 0
      %933 = vst [vmem:[#allocation2 + $0x70] sm:$0xf] 0
      %934 = vst [vmem:[#allocation2 + $0x74] sm:$0x1] 0
      %935 = vst [vmem:[#allocation2 + $0x78] sm:$0xf] 0
      %936 = vst [vmem:[#allocation2 + $0x7c] sm:$0xf] 0
      %937 = vst [vmem:[#allocation2 + $0x80] sm:$0x1] 0
      %938 = vst [vmem:[#allocation2 + $0x84] sm:$0xf] 0
      %939 = vst [vmem:[#allocation2 + $0x88] sm:$0xf] 0
      %940 = vst [vmem:[#allocation2 + $0x8c] sm:$0x1] 0
      %941 = vst [vmem:[#allocation2 + $0x90] sm:$0xf] 0
      %942 = vst [vmem:[#allocation2 + $0x94] sm:$0xf] 0
      %943 = vst [vmem:[#allocation2 + $0x98] sm:$0x1] 0
      %944 = vst [vmem:[#allocation2 + $0x9c] sm:$0xf] 0
      %945 = vst [vmem:[#allocation2 + $0xa0] sm:$0xf] 0
      %946 = vst [vmem:[#allocation2 + $0xa4] sm:$0x1] 0
      %947 = vst [vmem:[#allocation2 + $0xa8] sm:$0xf] 0
      %948 = vst [vmem:[#allocation2 + $0xac] sm:$0xf] 0
      %949 = vst [vmem:[#allocation2 + $0xb0] sm:$0x1] 0
      %950 = vst [vmem:[#allocation2 + $0xb4] sm:$0xf] 0
      %951 = vst [vmem:[#allocation2 + $0xb8] sm:$0xf] 0
      %952 = vst [vmem:[#allocation2 + $0xbc] sm:$0x1] 0
      %953 = vst [vmem:[#allocation2 + $0xc0] sm:$0xf] 0
      %954 = vst [vmem:[#allocation2 + $0xc4] sm:$0xf] 0
      %955 = vst [vmem:[#allocation2 + $0xc8] sm:$0x1] 0
      %956 = vst [vmem:[#allocation2 + $0xcc] sm:$0xf] 0
      %957 = vst [vmem:[#allocation2 + $0xd0] sm:$0xf] 0
      %958 = vst [vmem:[#allocation2 + $0xd4] sm:$0x1] 0
      %v959 = vpack.c.bf16 %v874, %v873
      %v960 = vpack.c.bf16 %v876, %v875
      %v961 = vpack.c.bf16 %v878, %v877
      %v962 = vpack.c.bf16 %v880, %v879
      %v963 = vpack.c.bf16 %v882, %v881
      %v964 = vpack.c.bf16 %v884, %v883
      %v965 = vpack.c.bf16 %v886, %v885
      %v966 = vpack.c.bf16 %v888, %v887
      %v967 = vpack.c.bf16 %v890, %v889
      %v968 = vpack.c.bf16 %v892, %v891
      %v969 = vpack.c.bf16 %v894, %v893
      %v970 = vpack.c.bf16 %v896, %v895
      %v971 = vpack.c.bf16 %v898, %v897
      %v972 = vpack.c.bf16 %v900, %v899
      %v973 = vpack.c.bf16 %v902, %v901
      %v974 = vpack.c.bf16 %v904, %v903
      %v991 = vunpack.c.l.b16 %v959
      %v992 = vunpack.c.h.b16 %v959
      %v993 = vunpack.c.l.b16 %v960
      %v994 = vunpack.c.h.b16 %v960
      %v995 = vunpack.c.l.b16 %v961
      %v996 = vunpack.c.h.b16 %v961
      %v997 = vunpack.c.l.b16 %v962
      %v998 = vunpack.c.h.b16 %v962
      %v999 = vunpack.c.l.b16 %v963
      %v1000 = vunpack.c.h.b16 %v963
      %v1001 = vunpack.c.l.b16 %v964
      %v1002 = vunpack.c.h.b16 %v964
      %v1003 = vunpack.c.l.b16 %v965
      %v1004 = vunpack.c.h.b16 %v965
      %v1005 = vunpack.c.l.b16 %v966
      %v1006 = vunpack.c.h.b16 %v966
      %v1007 = vunpack.c.l.b16 %v967
      %v1008 = vunpack.c.h.b16 %v967
      %v1009 = vunpack.c.l.b16 %v968
      %v1010 = vunpack.c.h.b16 %v968
      %v1011 = vunpack.c.l.b16 %v969
      %v1012 = vunpack.c.h.b16 %v969
      %v1013 = vunpack.c.l.b16 %v970
      %v1014 = vunpack.c.h.b16 %v970
      %v1015 = vunpack.c.l.b16 %v971
      %v1016 = vunpack.c.h.b16 %v971
      %v1017 = vunpack.c.l.b16 %v972
      %v1018 = vunpack.c.h.b16 %v972
      %v1019 = vunpack.c.l.b16 %v973
      %v1020 = vunpack.c.h.b16 %v973
      %v1021 = vunpack.c.l.b16 %v974
      %v1022 = vunpack.c.h.b16 %v974
      %v1023 = vpack.c.b16 %v991, %v991
      %v1024 = vpack.c.b16 %v992, %v992
      %v1025 = vpack.c.b16 %v993, %v993
      %v1026 = vpack.c.b16 %v994, %v994
      %v1027 = vpack.c.b16 %v995, %v995
      %v1028 = vpack.c.b16 %v996, %v996
      %v1029 = vpack.c.b16 %v997, %v997
      %v1030 = vpack.c.b16 %v998, %v998
      %v1031 = vpack.c.b16 %v999, %v999
      %v1032 = vpack.c.b16 %v1000, %v1000
      %v1033 = vpack.c.b16 %v1001, %v1001
      %v1034 = vpack.c.b16 %v1002, %v1002
      %v1035 = vpack.c.b16 %v1003, %v1003
      %v1036 = vpack.c.b16 %v1004, %v1004
      %v1037 = vpack.c.b16 %v1005, %v1005
      %v1038 = vpack.c.b16 %v1006, %v1006
      %v1039 = vpack.c.b16 %v1007, %v1007
      %v1040 = vpack.c.b16 %v1008, %v1008
      %v1041 = vpack.c.b16 %v1009, %v1009
      %v1042 = vpack.c.b16 %v1010, %v1010
      %v1043 = vpack.c.b16 %v1011, %v1011
      %v1044 = vpack.c.b16 %v1012, %v1012
      %v1045 = vpack.c.b16 %v1013, %v1013
      %v1046 = vpack.c.b16 %v1014, %v1014
      %v1047 = vpack.c.b16 %v1015, %v1015
      %v1048 = vpack.c.b16 %v1016, %v1016
      %v1049 = vpack.c.b16 %v1017, %v1017
      %v1050 = vpack.c.b16 %v1018, %v1018
      %v1051 = vpack.c.b16 %v1019, %v1019
      %v1052 = vpack.c.b16 %v1020, %v1020
      %v1053 = vpack.c.b16 %v1021, %v1021
      %v1054 = vpack.c.b16 %v1022, %v1022
      %vm1055 = vsmask.f32 256
      %vm1056 = vsmask.f32 4368
      %vm1057 = vmor %vm1055, %vm1056
      %v1059 = vshrl.u32 %v1023, 16
      %v1061 = vrot.slane %v1059, 7
      %v1062 = vshll.u32 %v1023, 16
      %v1064 = vor.u32 %v1061, %v1062
      %v1065 = vrot.slane %v1061, 4
      %v1067 = vshrl.u32 %v1024, 16
      %v1069 = vrot.slane %v1067, 7
      %v1070 = vshll.u32 %v1024, 16
      %v1072 = vor.u32 %v1069, %v1070
      %v1073 = vsel %vm1057, %v1065, %v1072
      %v1074 = vrot.slane %v1069, 4
      %v1076 = vshrl.u32 %v1025, 16
      %v1078 = vrot.slane %v1076, 7
      %v1079 = vshll.u32 %v1025, 16
      %v1081 = vor.u32 %v1078, %v1079
      %v1082 = vrot.slane %v1078, 4
      %v1084 = vshrl.u32 %v1026, 16
      %v1086 = vrot.slane %v1084, 7
      %v1087 = vshll.u32 %v1026, 16
      %v1089 = vor.u32 %v1086, %v1087
      %v1090 = vsel %vm1057, %v1082, %v1089
      %v1091 = vrot.slane %v1086, 4
      %v1093 = vshrl.u32 %v1027, 16
      %v1095 = vrot.slane %v1093, 7
      %v1096 = vshll.u32 %v1027, 16
      %v1098 = vor.u32 %v1095, %v1096
      %v1099 = vrot.slane %v1095, 4
      %v1101 = vshrl.u32 %v1028, 16
      %v1103 = vrot.slane %v1101, 7
      %v1104 = vshll.u32 %v1028, 16
      %v1106 = vor.u32 %v1103, %v1104
      %v1107 = vsel %vm1057, %v1099, %v1106
      %v1108 = vrot.slane %v1103, 4
      %v1110 = vshrl.u32 %v1029, 16
      %v1112 = vrot.slane %v1110, 7
      %v1113 = vshll.u32 %v1029, 16
      %v1115 = vor.u32 %v1112, %v1113
      %v1116 = vrot.slane %v1112, 4
      %v1118 = vshrl.u32 %v1030, 16
      %v1120 = vrot.slane %v1118, 7
      %v1121 = vshll.u32 %v1030, 16
      %v1123 = vor.u32 %v1120, %v1121
      %v1124 = vsel %vm1057, %v1116, %v1123
      %v1125 = vrot.slane %v1120, 4
      %v1127 = vshrl.u32 %v1031, 16
      %v1129 = vrot.slane %v1127, 7
      %v1130 = vshll.u32 %v1031, 16
      %v1132 = vor.u32 %v1129, %v1130
      %v1133 = vrot.slane %v1129, 4
      %v1135 = vshrl.u32 %v1032, 16
      %v1137 = vrot.slane %v1135, 7
      %v1138 = vshll.u32 %v1032, 16
      %v1140 = vor.u32 %v1137, %v1138
      %v1141 = vsel %vm1057, %v1133, %v1140
      %v1142 = vrot.slane %v1137, 4
      %v1144 = vshrl.u32 %v1033, 16
      %v1146 = vrot.slane %v1144, 7
      %v1147 = vshll.u32 %v1033, 16
      %v1149 = vor.u32 %v1146, %v1147
      %v1150 = vrot.slane %v1146, 4
      %v1152 = vshrl.u32 %v1034, 16
      %v1154 = vrot.slane %v1152, 7
      %v1155 = vshll.u32 %v1034, 16
      %v1157 = vor.u32 %v1154, %v1155
      %v1158 = vsel %vm1057, %v1150, %v1157
      %v1159 = vrot.slane %v1154, 4
      %v1161 = vshrl.u32 %v1035, 16
      %v1163 = vrot.slane %v1161, 7
      %v1164 = vshll.u32 %v1035, 16
      %v1166 = vor.u32 %v1163, %v1164
      %v1167 = vrot.slane %v1163, 4
      %v1169 = vshrl.u32 %v1036, 16
      %v1171 = vrot.slane %v1169, 7
      %v1172 = vshll.u32 %v1036, 16
      %v1174 = vor.u32 %v1171, %v1172
      %v1175 = vsel %vm1057, %v1167, %v1174
      %v1176 = vrot.slane %v1171, 4
      %v1178 = vshrl.u32 %v1037, 16
      %v1180 = vrot.slane %v1178, 7
      %v1181 = vshll.u32 %v1037, 16
      %v1183 = vor.u32 %v1180, %v1181
      %v1184 = vrot.slane %v1180, 4
      %v1186 = vshrl.u32 %v1038, 16
      %v1188 = vrot.slane %v1186, 7
      %v1189 = vshll.u32 %v1038, 16
      %v1191 = vor.u32 %v1188, %v1189
      %v1192 = vsel %vm1057, %v1184, %v1191
      %v1193 = vrot.slane %v1188, 4
      %v1195 = vshrl.u32 %v1039, 16
      %v1197 = vrot.slane %v1195, 7
      %v1198 = vshll.u32 %v1039, 16
      %v1200 = vor.u32 %v1197, %v1198
      %v1201 = vrot.slane %v1197, 4
      %v1203 = vshrl.u32 %v1040, 16
      %v1205 = vrot.slane %v1203, 7
      %v1206 = vshll.u32 %v1040, 16
      %v1208 = vor.u32 %v1205, %v1206
      %v1209 = vsel %vm1057, %v1201, %v1208
      %v1210 = vrot.slane %v1205, 4
      %v1212 = vshrl.u32 %v1041, 16
      %v1214 = vrot.slane %v1212, 7
      %v1215 = vshll.u32 %v1041, 16
      %v1217 = vor.u32 %v1214, %v1215
      %v1218 = vrot.slane %v1214, 4
      %v1220 = vshrl.u32 %v1042, 16
      %v1222 = vrot.slane %v1220, 7
      %v1223 = vshll.u32 %v1042, 16
      %v1225 = vor.u32 %v1222, %v1223
      %v1226 = vsel %vm1057, %v1218, %v1225
      %v1227 = vrot.slane %v1222, 4
      %v1229 = vshrl.u32 %v1043, 16
      %v1231 = vrot.slane %v1229, 7
      %v1232 = vshll.u32 %v1043, 16
      %v1234 = vor.u32 %v1231, %v1232
      %v1235 = vrot.slane %v1231, 4
      %v1237 = vshrl.u32 %v1044, 16
      %v1239 = vrot.slane %v1237, 7
      %v1240 = vshll.u32 %v1044, 16
      %v1242 = vor.u32 %v1239, %v1240
      %v1243 = vsel %vm1057, %v1235, %v1242
      %v1244 = vrot.slane %v1239, 4
      %v1246 = vshrl.u32 %v1045, 16
      %v1248 = vrot.slane %v1246, 7
      %v1249 = vshll.u32 %v1045, 16
      %v1251 = vor.u32 %v1248, %v1249
      %v1252 = vrot.slane %v1248, 4
      %v1254 = vshrl.u32 %v1046, 16
      %v1256 = vrot.slane %v1254, 7
      %v1257 = vshll.u32 %v1046, 16
      %v1259 = vor.u32 %v1256, %v1257
      %v1260 = vsel %vm1057, %v1252, %v1259
      %v1261 = vrot.slane %v1256, 4
      %v1263 = vshrl.u32 %v1047, 16
      %v1265 = vrot.slane %v1263, 7
      %v1266 = vshll.u32 %v1047, 16
      %v1268 = vor.u32 %v1265, %v1266
      %v1269 = vrot.slane %v1265, 4
      %v1271 = vshrl.u32 %v1048, 16
      %v1273 = vrot.slane %v1271, 7
      %v1274 = vshll.u32 %v1048, 16
      %v1276 = vor.u32 %v1273, %v1274
      %v1277 = vsel %vm1057, %v1269, %v1276
      %v1278 = vrot.slane %v1273, 4
      %v1280 = vshrl.u32 %v1049, 16
      %v1282 = vrot.slane %v1280, 7
      %v1283 = vshll.u32 %v1049, 16
      %v1285 = vor.u32 %v1282, %v1283
      %v1286 = vrot.slane %v1282, 4
      %v1288 = vshrl.u32 %v1050, 16
      %v1290 = vrot.slane %v1288, 7
      %v1291 = vshll.u32 %v1050, 16
      %v1293 = vor.u32 %v1290, %v1291
      %v1294 = vsel %vm1057, %v1286, %v1293
      %v1295 = vrot.slane %v1290, 4
      %v1297 = vshrl.u32 %v1051, 16
      %v1299 = vrot.slane %v1297, 7
      %v1300 = vshll.u32 %v1051, 16
      %v1302 = vor.u32 %v1299, %v1300
      %v1303 = vrot.slane %v1299, 4
      %v1305 = vshrl.u32 %v1052, 16
      %v1307 = vrot.slane %v1305, 7
      %v1308 = vshll.u32 %v1052, 16
      %v1310 = vor.u32 %v1307, %v1308
      %v1311 = vsel %vm1057, %v1303, %v1310
      %v1312 = vrot.slane %v1307, 4
      %v1314 = vshrl.u32 %v1053, 16
      %v1316 = vrot.slane %v1314, 7
      %v1317 = vshll.u32 %v1053, 16
      %v1319 = vor.u32 %v1316, %v1317
      %v1320 = vrot.slane %v1316, 4
      %v1322 = vshrl.u32 %v1054, 16
      %v1324 = vrot.slane %v1322, 7
      %v1325 = vshll.u32 %v1054, 16
      %v1327 = vor.u32 %v1324, %v1325
      %v1328 = vsel %vm1057, %v1320, %v1327
      %v1329 = vrot.slane %v1324, 4
      %s1378 = scalar_lea.vmem [#allocation2], 12
      %vm1379 = vcmask 1043456
      %vm1380 = vsmask.f32 7938
      %vm1381 = vmand %vm1379, %vm1380
      %v1382 = vld [vmem:[%s1378] sm:$0xf]
      %v1383 = vsel %vm1381, %v1064, %v1382
      %1384 = vst [vmem:[%s1378] sm:$0xf] %v1383
      %1385 = vst [vmem:[%s1378 + $0x4] sm:$0xf] %v1073
      %vm1386 = vcmask 1040384
      %vm1387 = vmand %vm1386, %vm1055
      %v1388 = vld [vmem:[%s1378 + $0x8] sm:$0x1]
      %v1389 = vsel %vm1387, %v1074, %v1388
      %1390 = vst [vmem:[%s1378 + $0x8] sm:$0x1] %v1389
      %v1391 = vld [vmem:[%s1378 + $0xc] sm:$0xf]
      %v1392 = vsel %vm1381, %v1081, %v1391
      %1393 = vst [vmem:[%s1378 + $0xc] sm:$0xf] %v1392
      %1394 = vst [vmem:[%s1378 + $0x10] sm:$0xf] %v1090
      %v1395 = vld [vmem:[%s1378 + $0x14] sm:$0x1]
      %v1396 = vsel %vm1387, %v1091, %v1395
      %1397 = vst [vmem:[%s1378 + $0x14] sm:$0x1] %v1396
      %v1398 = vld [vmem:[%s1378 + $0x18] sm:$0xf]
      %v1399 = vsel %vm1381, %v1098, %v1398
      %1400 = vst [vmem:[%s1378 + $0x18] sm:$0xf] %v1399
      %1401 = vst [vmem:[%s1378 + $0x1c] sm:$0xf] %v1107
      %v1402 = vld [vmem:[%s1378 + $0x20] sm:$0x1]
      %v1403 = vsel %vm1387, %v1108, %v1402
      %1404 = vst [vmem:[%s1378 + $0x20] sm:$0x1] %v1403
      %v1405 = vld [vmem:[%s1378 + $0x24] sm:$0xf]
      %v1406 = vsel %vm1381, %v1115, %v1405
      %1407 = vst [vmem:[%s1378 + $0x24] sm:$0xf] %v1406
      %1408 = vst [vmem:[%s1378 + $0x28] sm:$0xf] %v1124
      %v1409 = vld [vmem:[%s1378 + $0x2c] sm:$0x1]
      %v1410 = vsel %vm1387, %v1125, %v1409
      %1411 = vst [vmem:[%s1378 + $0x2c] sm:$0x1] %v1410
      %v1412 = vld [vmem:[%s1378 + $0x30] sm:$0xf]
      %v1413 = vsel %vm1381, %v1132, %v1412
      %1414 = vst [vmem:[%s1378 + $0x30] sm:$0xf] %v1413
      %1415 = vst [vmem:[%s1378 + $0x34] sm:$0xf] %v1141
      %v1416 = vld [vmem:[%s1378 + $0x38] sm:$0x1]
      %v1417 = vsel %vm1387, %v1142, %v1416
      %1418 = vst [vmem:[%s1378 + $0x38] sm:$0x1] %v1417
      %v1419 = vld [vmem:[%s1378 + $0x3c] sm:$0xf]
      %v1420 = vsel %vm1381, %v1149, %v1419
      %1421 = vst [vmem:[%s1378 + $0x3c] sm:$0xf] %v1420
      %1422 = vst [vmem:[%s1378 + $0x40] sm:$0xf] %v1158
      %v1423 = vld [vmem:[%s1378 + $0x44] sm:$0x1]
      %v1424 = vsel %vm1387, %v1159, %v1423
      %1425 = vst [vmem:[%s1378 + $0x44] sm:$0x1] %v1424
      %v1426 = vld [vmem:[%s1378 + $0x48] sm:$0xf]
      %v1427 = vsel %vm1381, %v1166, %v1426
      %1428 = vst [vmem:[%s1378 + $0x48] sm:$0xf] %v1427
      %1429 = vst [vmem:[%s1378 + $0x4c] sm:$0xf] %v1175
      %v1430 = vld [vmem:[%s1378 + $0x50] sm:$0x1]
      %v1431 = vsel %vm1387, %v1176, %v1430
      %1432 = vst [vmem:[%s1378 + $0x50] sm:$0x1] %v1431
      %v1433 = vld [vmem:[%s1378 + $0x54] sm:$0xf]
      %v1434 = vsel %vm1381, %v1183, %v1433
      %1435 = vst [vmem:[%s1378 + $0x54] sm:$0xf] %v1434
      %1436 = vst [vmem:[%s1378 + $0x58] sm:$0xf] %v1192
      %v1437 = vld [vmem:[%s1378 + $0x5c] sm:$0x1]
      %v1438 = vsel %vm1387, %v1193, %v1437
      %1439 = vst [vmem:[%s1378 + $0x5c] sm:$0x1] %v1438
      %v1440 = vld [vmem:[%s1378 + $0x60] sm:$0xf]
      %v1441 = vsel %vm1381, %v1200, %v1440
      %1442 = vst [vmem:[%s1378 + $0x60] sm:$0xf] %v1441
      %1443 = vst [vmem:[%s1378 + $0x64] sm:$0xf] %v1209
      %v1444 = vld [vmem:[%s1378 + $0x68] sm:$0x1]
      %v1445 = vsel %vm1387, %v1210, %v1444
      %1446 = vst [vmem:[%s1378 + $0x68] sm:$0x1] %v1445
      %v1447 = vld [vmem:[%s1378 + $0x6c] sm:$0xf]
      %v1448 = vsel %vm1381, %v1217, %v1447
      %1449 = vst [vmem:[%s1378 + $0x6c] sm:$0xf] %v1448
      %1450 = vst [vmem:[%s1378 + $0x70] sm:$0xf] %v1226
      %v1451 = vld [vmem:[%s1378 + $0x74] sm:$0x1]
      %v1452 = vsel %vm1387, %v1227, %v1451
      %1453 = vst [vmem:[%s1378 + $0x74] sm:$0x1] %v1452
      %v1454 = vld [vmem:[%s1378 + $0x78] sm:$0xf]
      %v1455 = vsel %vm1381, %v1234, %v1454
      %1456 = vst [vmem:[%s1378 + $0x78] sm:$0xf] %v1455
      %1457 = vst [vmem:[%s1378 + $0x7c] sm:$0xf] %v1243
      %v1458 = vld [vmem:[%s1378 + $0x80] sm:$0x1]
      %v1459 = vsel %vm1387, %v1244, %v1458
      %1460 = vst [vmem:[%s1378 + $0x80] sm:$0x1] %v1459
      %v1461 = vld [vmem:[%s1378 + $0x84] sm:$0xf]
      %v1462 = vsel %vm1381, %v1251, %v1461
      %1463 = vst [vmem:[%s1378 + $0x84] sm:$0xf] %v1462
      %1464 = vst [vmem:[%s1378 + $0x88] sm:$0xf] %v1260
      %v1465 = vld [vmem:[%s1378 + $0x8c] sm:$0x1]
      %v1466 = vsel %vm1387, %v1261, %v1465
      %1467 = vst [vmem:[%s1378 + $0x8c] sm:$0x1] %v1466
      %v1468 = vld [vmem:[%s1378 + $0x90] sm:$0xf]
      %v1469 = vsel %vm1381, %v1268, %v1468
      %1470 = vst [vmem:[%s1378 + $0x90] sm:$0xf] %v1469
      %1471 = vst [vmem:[%s1378 + $0x94] sm:$0xf] %v1277
      %v1472 = vld [vmem:[%s1378 + $0x98] sm:$0x1]
      %v1473 = vsel %vm1387, %v1278, %v1472
      %1474 = vst [vmem:[%s1378 + $0x98] sm:$0x1] %v1473
      %v1475 = vld [vmem:[%s1378 + $0x9c] sm:$0xf]
      %v1476 = vsel %vm1381, %v1285, %v1475
      %1477 = vst [vmem:[%s1378 + $0x9c] sm:$0xf] %v1476
      %1478 = vst [vmem:[%s1378 + $0xa0] sm:$0xf] %v1294
      %v1479 = vld [vmem:[%s1378 + $0xa4] sm:$0x1]
      %v1480 = vsel %vm1387, %v1295, %v1479
      %1481 = vst [vmem:[%s1378 + $0xa4] sm:$0x1] %v1480
      %v1482 = vld [vmem:[%s1378 + $0xa8] sm:$0xf]
      %v1483 = vsel %vm1381, %v1302, %v1482
      %1484 = vst [vmem:[%s1378 + $0xa8] sm:$0xf] %v1483
      %1485 = vst [vmem:[%s1378 + $0xac] sm:$0xf] %v1311
      %v1486 = vld [vmem:[%s1378 + $0xb0] sm:$0x1]
      %v1487 = vsel %vm1387, %v1312, %v1486
      %1488 = vst [vmem:[%s1378 + $0xb0] sm:$0x1] %v1487
      %v1489 = vld [vmem:[%s1378 + $0xb4] sm:$0xf]
      %v1490 = vsel %vm1381, %v1319, %v1489
      %1491 = vst [vmem:[%s1378 + $0xb4] sm:$0xf] %v1490
      %1492 = vst [vmem:[%s1378 + $0xb8] sm:$0xf] %v1328
      %v1493 = vld [vmem:[%s1378 + $0xbc] sm:$0x1]
      %v1494 = vsel %vm1387, %v1329, %v1493
      %1495 = vst [vmem:[%s1378 + $0xbc] sm:$0x1] %v1494
      %v1496 = vld [vmem:[#allocation2] sm:$0xf]
      %v1497 = vld [vmem:[#allocation2 + $0x4] sm:$0xf]
      %v1498 = vld [vmem:[#allocation2 + $0xc] sm:$0xf]
      %v1499 = vld [vmem:[#allocation2 + $0x10] sm:$0xf]
      %v1500 = vld [vmem:[#allocation2 + $0x18] sm:$0xf]
      %v1501 = vld [vmem:[#allocation2 + $0x1c] sm:$0xf]
      %v1502 = vld [vmem:[#allocation2 + $0x24] sm:$0xf]
      %v1503 = vld [vmem:[#allocation2 + $0x28] sm:$0xf]
      %v1504 = vld [vmem:[#allocation2 + $0x30] sm:$0xf]
      %v1505 = vld [vmem:[#allocation2 + $0x34] sm:$0xf]
      %v1506 = vld [vmem:[#allocation2 + $0x3c] sm:$0xf]
      %v1507 = vld [vmem:[#allocation2 + $0x40] sm:$0xf]
      %v1508 = vld [vmem:[#allocation2 + $0x48] sm:$0xf]
      %v1509 = vld [vmem:[#allocation2 + $0x4c] sm:$0xf]
      %v1510 = vld [vmem:[#allocation2 + $0x54] sm:$0xf]
      %v1511 = vld [vmem:[#allocation2 + $0x58] sm:$0xf]
      %v1512 = vld [vmem:[#allocation2 + $0x60] sm:$0xf]
      %v1513 = vld [vmem:[#allocation2 + $0x64] sm:$0xf]
      %v1514 = vld [vmem:[#allocation2 + $0x6c] sm:$0xf]
      %v1515 = vld [vmem:[#allocation2 + $0x70] sm:$0xf]
      %v1516 = vld [vmem:[#allocation2 + $0x78] sm:$0xf]
      %v1517 = vld [vmem:[#allocation2 + $0x7c] sm:$0xf]
      %v1518 = vld [vmem:[#allocation2 + $0x84] sm:$0xf]
      %v1519 = vld [vmem:[#allocation2 + $0x88] sm:$0xf]
      %v1520 = vld [vmem:[#allocation2 + $0x90] sm:$0xf]
      %v1521 = vld [vmem:[#allocation2 + $0x94] sm:$0xf]
      %v1522 = vld [vmem:[#allocation2 + $0x9c] sm:$0xf]
      %v1523 = vld [vmem:[#allocation2 + $0xa0] sm:$0xf]
      %v1524 = vld [vmem:[#allocation2 + $0xa8] sm:$0xf]
      %v1525 = vld [vmem:[#allocation2 + $0xac] sm:$0xf]
      %v1526 = vld [vmem:[#allocation2 + $0xb4] sm:$0xf]
      %v1527 = vld [vmem:[#allocation2 + $0xb8] sm:$0xf]
      %v1528 = vld [vmem:[%s4] sm:$0xf]
      %v1529 = vld [vmem:[%s4 + $0x4] sm:$0xf]
      %v1530 = vld [vmem:[%s4 + $0x8] sm:$0xf]
      %v1531 = vld [vmem:[%s4 + $0xc] sm:$0xf]
      %v1532 = vld [vmem:[%s4 + $0x10] sm:$0xf]
      %v1533 = vld [vmem:[%s4 + $0x14] sm:$0xf]
      %v1534 = vld [vmem:[%s4 + $0x18] sm:$0xf]
      %v1535 = vld [vmem:[%s4 + $0x1c] sm:$0xf]
      %v1536 = vld [vmem:[%s4 + $0x20] sm:$0xf]
      %v1537 = vld [vmem:[%s4 + $0x24] sm:$0xf]
      %v1538 = vld [vmem:[%s4 + $0x28] sm:$0xf]
      %v1539 = vld [vmem:[%s4 + $0x2c] sm:$0xf]
      %v1540 = vld [vmem:[%s4 + $0x30] sm:$0xf]
      %v1541 = vld [vmem:[%s4 + $0x34] sm:$0xf]
      %v1542 = vld [vmem:[%s4 + $0x38] sm:$0xf]
      %v1543 = vld [vmem:[%s4 + $0x3c] sm:$0xf]
      %v1544 = vld [vmem:[#allocation2 + $0x8] sm:$0x1]
      %v1545 = vld [vmem:[#allocation2 + $0x14] sm:$0x1]
      %v1546 = vld [vmem:[#allocation2 + $0x20] sm:$0x1]
      %v1547 = vld [vmem:[#allocation2 + $0x2c] sm:$0x1]
      %v1548 = vld [vmem:[#allocation2 + $0x38] sm:$0x1]
      %v1549 = vld [vmem:[#allocation2 + $0x44] sm:$0x1]
      %v1550 = vld [vmem:[#allocation2 + $0x50] sm:$0x1]
      %v1551 = vld [vmem:[#allocation2 + $0x5c] sm:$0x1]
      %v1552 = vld [vmem:[#allocation2 + $0x68] sm:$0x1]
      %v1553 = vld [vmem:[#allocation2 + $0x74] sm:$0x1]
      %v1554 = vld [vmem:[#allocation2 + $0x80] sm:$0x1]
      %v1555 = vld [vmem:[#allocation2 + $0x8c] sm:$0x1]
      %v1556 = vld [vmem:[#allocation2 + $0x98] sm:$0x1]
      %v1557 = vld [vmem:[#allocation2 + $0xa4] sm:$0x1]
      %v1558 = vld [vmem:[#allocation2 + $0xb0] sm:$0x1]
      %v1559 = vld [vmem:[#allocation2 + $0xbc] sm:$0x1]
      %vm1560 = vsmask.f32 3328
      %vm1561 = vsmask.f32 7440
      %vm1562 = vmor %vm1560, %vm1561
      %v1564 = vshrl.u32 %v1496, 16
      %v1566 = vrot.slane %v1564, 4
      %v1567 = vshll.u32 %v1496, 16
      %v1569 = vrot.slane %v1567, 5
      %v1570 = vor.u32 %v1566, %v1569
      %v1571 = vrot.slane %v1570, 4
      %v1573 = vshll.u32 %v1497, 16
      %v1575 = vrot.slane %v1573, 5
      %v1576 = vsel %vm1562, %v1571, %v1575
      %v1577 = vshrl.u32 %v1497, 16
      %v1579 = vrot.slane %v1577, 4
      %v1580 = vor.u32 %v1579, %v1575
      %v1581 = vrot.slane %v1580, 4
      %v1583 = vshll.u32 %v1544, 16
      %v1585 = vrot.slane %v1583, 5
      %v1586 = vsel %vm1562, %v1581, %v1585
      %v1588 = vshrl.u32 %v1498, 16
      %v1590 = vrot.slane %v1588, 4
      %v1591 = vshll.u32 %v1498, 16
      %v1593 = vrot.slane %v1591, 5
      %v1594 = vor.u32 %v1590, %v1593
      %v1595 = vrot.slane %v1594, 4
      %v1597 = vshll.u32 %v1499, 16
      %v1599 = vrot.slane %v1597, 5
      %v1600 = vsel %vm1562, %v1595, %v1599
      %v1601 = vshrl.u32 %v1499, 16
      %v1603 = vrot.slane %v1601, 4
      %v1604 = vor.u32 %v1603, %v1599
      %v1605 = vrot.slane %v1604, 4
      %v1607 = vshll.u32 %v1545, 16
      %v1609 = vrot.slane %v1607, 5
      %v1610 = vsel %vm1562, %v1605, %v1609
      %v1612 = vshrl.u32 %v1500, 16
      %v1614 = vrot.slane %v1612, 4
      %v1615 = vshll.u32 %v1500, 16
      %v1617 = vrot.slane %v1615, 5
      %v1618 = vor.u32 %v1614, %v1617
      %v1619 = vrot.slane %v1618, 4
      %v1621 = vshll.u32 %v1501, 16
      %v1623 = vrot.slane %v1621, 5
      %v1624 = vsel %vm1562, %v1619, %v1623
      %v1625 = vshrl.u32 %v1501, 16
      %v1627 = vrot.slane %v1625, 4
      %v1628 = vor.u32 %v1627, %v1623
      %v1629 = vrot.slane %v1628, 4
      %v1631 = vshll.u32 %v1546, 16
      %v1633 = vrot.slane %v1631, 5
      %v1634 = vsel %vm1562, %v1629, %v1633
      %v1636 = vshrl.u32 %v1502, 16
      %v1638 = vrot.slane %v1636, 4
      %v1639 = vshll.u32 %v1502, 16
      %v1641 = vrot.slane %v1639, 5
      %v1642 = vor.u32 %v1638, %v1641
      %v1643 = vrot.slane %v1642, 4
      %v1645 = vshll.u32 %v1503, 16
      %v1647 = vrot.slane %v1645, 5
      %v1648 = vsel %vm1562, %v1643, %v1647
      %v1649 = vshrl.u32 %v1503, 16
      %v1651 = vrot.slane %v1649, 4
      %v1652 = vor.u32 %v1651, %v1647
      %v1653 = vrot.slane %v1652, 4
      %v1655 = vshll.u32 %v1547, 16
      %v1657 = vrot.slane %v1655, 5
      %v1658 = vsel %vm1562, %v1653, %v1657
      %v1660 = vshrl.u32 %v1504, 16
      %v1662 = vrot.slane %v1660, 4
      %v1663 = vshll.u32 %v1504, 16
      %v1665 = vrot.slane %v1663, 5
      %v1666 = vor.u32 %v1662, %v1665
      %v1667 = vrot.slane %v1666, 4
      %v1669 = vshll.u32 %v1505, 16
      %v1671 = vrot.slane %v1669, 5
      %v1672 = vsel %vm1562, %v1667, %v1671
      %v1673 = vshrl.u32 %v1505, 16
      %v1675 = vrot.slane %v1673, 4
      %v1676 = vor.u32 %v1675, %v1671
      %v1677 = vrot.slane %v1676, 4
      %v1679 = vshll.u32 %v1548, 16
      %v1681 = vrot.slane %v1679, 5
      %v1682 = vsel %vm1562, %v1677, %v1681
      %v1684 = vshrl.u32 %v1506, 16
      %v1686 = vrot.slane %v1684, 4
      %v1687 = vshll.u32 %v1506, 16
      %v1689 = vrot.slane %v1687, 5
      %v1690 = vor.u32 %v1686, %v1689
      %v1691 = vrot.slane %v1690, 4
      %v1693 = vshll.u32 %v1507, 16
      %v1695 = vrot.slane %v1693, 5
      %v1696 = vsel %vm1562, %v1691, %v1695
      %v1697 = vshrl.u32 %v1507, 16
      %v1699 = vrot.slane %v1697, 4
      %v1700 = vor.u32 %v1699, %v1695
      %v1701 = vrot.slane %v1700, 4
      %v1703 = vshll.u32 %v1549, 16
      %v1705 = vrot.slane %v1703, 5
      %v1706 = vsel %vm1562, %v1701, %v1705
      %v1708 = vshrl.u32 %v1508, 16
      %v1710 = vrot.slane %v1708, 4
      %v1711 = vshll.u32 %v1508, 16
      %v1713 = vrot.slane %v1711, 5
      %v1714 = vor.u32 %v1710, %v1713
      %v1715 = vrot.slane %v1714, 4
      %v1717 = vshll.u32 %v1509, 16
      %v1719 = vrot.slane %v1717, 5
      %v1720 = vsel %vm1562, %v1715, %v1719
      %v1721 = vshrl.u32 %v1509, 16
      %v1723 = vrot.slane %v1721, 4
      %v1724 = vor.u32 %v1723, %v1719
      %v1725 = vrot.slane %v1724, 4
      %v1727 = vshll.u32 %v1550, 16
      %v1729 = vrot.slane %v1727, 5
      %v1730 = vsel %vm1562, %v1725, %v1729
      %v1732 = vshrl.u32 %v1510, 16
      %v1734 = vrot.slane %v1732, 4
      %v1735 = vshll.u32 %v1510, 16
      %v1737 = vrot.slane %v1735, 5
      %v1738 = vor.u32 %v1734, %v1737
      %v1739 = vrot.slane %v1738, 4
      %v1741 = vshll.u32 %v1511, 16
      %v1743 = vrot.slane %v1741, 5
      %v1744 = vsel %vm1562, %v1739, %v1743
      %v1745 = vshrl.u32 %v1511, 16
      %v1747 = vrot.slane %v1745, 4
      %v1748 = vor.u32 %v1747, %v1743
      %v1749 = vrot.slane %v1748, 4
      %v1751 = vshll.u32 %v1551, 16
      %v1753 = vrot.slane %v1751, 5
      %v1754 = vsel %vm1562, %v1749, %v1753
      %v1756 = vshrl.u32 %v1512, 16
      %v1758 = vrot.slane %v1756, 4
      %v1759 = vshll.u32 %v1512, 16
      %v1761 = vrot.slane %v1759, 5
      %v1762 = vor.u32 %v1758, %v1761
      %v1763 = vrot.slane %v1762, 4
      %v1765 = vshll.u32 %v1513, 16
      %v1767 = vrot.slane %v1765, 5
      %v1768 = vsel %vm1562, %v1763, %v1767
      %v1769 = vshrl.u32 %v1513, 16
      %v1771 = vrot.slane %v1769, 4
      %v1772 = vor.u32 %v1771, %v1767
      %v1773 = vrot.slane %v1772, 4
      %v1775 = vshll.u32 %v1552, 16
      %v1777 = vrot.slane %v1775, 5
      %v1778 = vsel %vm1562, %v1773, %v1777
      %v1780 = vshrl.u32 %v1514, 16
      %v1782 = vrot.slane %v1780, 4
      %v1783 = vshll.u32 %v1514, 16
      %v1785 = vrot.slane %v1783, 5
      %v1786 = vor.u32 %v1782, %v1785
      %v1787 = vrot.slane %v1786, 4
      %v1789 = vshll.u32 %v1515, 16
      %v1791 = vrot.slane %v1789, 5
      %v1792 = vsel %vm1562, %v1787, %v1791
      %v1793 = vshrl.u32 %v1515, 16
      %v1795 = vrot.slane %v1793, 4
      %v1796 = vor.u32 %v1795, %v1791
      %v1797 = vrot.slane %v1796, 4
      %v1799 = vshll.u32 %v1553, 16
      %v1801 = vrot.slane %v1799, 5
      %v1802 = vsel %vm1562, %v1797, %v1801
      %v1804 = vshrl.u32 %v1516, 16
      %v1806 = vrot.slane %v1804, 4
      %v1807 = vshll.u32 %v1516, 16
      %v1809 = vrot.slane %v1807, 5
      %v1810 = vor.u32 %v1806, %v1809
      %v1811 = vrot.slane %v1810, 4
      %v1813 = vshll.u32 %v1517, 16
      %v1815 = vrot.slane %v1813, 5
      %v1816 = vsel %vm1562, %v1811, %v1815
      %v1817 = vshrl.u32 %v1517, 16
      %v1819 = vrot.slane %v1817, 4
      %v1820 = vor.u32 %v1819, %v1815
      %v1821 = vrot.slane %v1820, 4
      %v1823 = vshll.u32 %v1554, 16
      %v1825 = vrot.slane %v1823, 5
      %v1826 = vsel %vm1562, %v1821, %v1825
      %v1828 = vshrl.u32 %v1518, 16
      %v1830 = vrot.slane %v1828, 4
      %v1831 = vshll.u32 %v1518, 16
      %v1833 = vrot.slane %v1831, 5
      %v1834 = vor.u32 %v1830, %v1833
      %v1835 = vrot.slane %v1834, 4
      %v1837 = vshll.u32 %v1519, 16
      %v1839 = vrot.slane %v1837, 5
      %v1840 = vsel %vm1562, %v1835, %v1839
      %v1841 = vshrl.u32 %v1519, 16
      %v1843 = vrot.slane %v1841, 4
      %v1844 = vor.u32 %v1843, %v1839
      %v1845 = vrot.slane %v1844, 4
      %v1847 = vshll.u32 %v1555, 16
      %v1849 = vrot.slane %v1847, 5
      %v1850 = vsel %vm1562, %v1845, %v1849
      %v1852 = vshrl.u32 %v1520, 16
      %v1854 = vrot.slane %v1852, 4
      %v1855 = vshll.u32 %v1520, 16
      %v1857 = vrot.slane %v1855, 5
      %v1858 = vor.u32 %v1854, %v1857
      %v1859 = vrot.slane %v1858, 4
      %v1861 = vshll.u32 %v1521, 16
      %v1863 = vrot.slane %v1861, 5
      %v1864 = vsel %vm1562, %v1859, %v1863
      %v1865 = vshrl.u32 %v1521, 16
      %v1867 = vrot.slane %v1865, 4
      %v1868 = vor.u32 %v1867, %v1863
      %v1869 = vrot.slane %v1868, 4
      %v1871 = vshll.u32 %v1556, 16
      %v1873 = vrot.slane %v1871, 5
      %v1874 = vsel %vm1562, %v1869, %v1873
      %v1876 = vshrl.u32 %v1522, 16
      %v1878 = vrot.slane %v1876, 4
      %v1879 = vshll.u32 %v1522, 16
      %v1881 = vrot.slane %v1879, 5
      %v1882 = vor.u32 %v1878, %v1881
      %v1883 = vrot.slane %v1882, 4
      %v1885 = vshll.u32 %v1523, 16
      %v1887 = vrot.slane %v1885, 5
      %v1888 = vsel %vm1562, %v1883, %v1887
      %v1889 = vshrl.u32 %v1523, 16
      %v1891 = vrot.slane %v1889, 4
      %v1892 = vor.u32 %v1891, %v1887
      %v1893 = vrot.slane %v1892, 4
      %v1895 = vshll.u32 %v1557, 16
      %v1897 = vrot.slane %v1895, 5
      %v1898 = vsel %vm1562, %v1893, %v1897
      %v1900 = vshrl.u32 %v1524, 16
      %v1902 = vrot.slane %v1900, 4
      %v1903 = vshll.u32 %v1524, 16
      %v1905 = vrot.slane %v1903, 5
      %v1906 = vor.u32 %v1902, %v1905
      %v1907 = vrot.slane %v1906, 4
      %v1909 = vshll.u32 %v1525, 16
      %v1911 = vrot.slane %v1909, 5
      %v1912 = vsel %vm1562, %v1907, %v1911
      %v1913 = vshrl.u32 %v1525, 16
      %v1915 = vrot.slane %v1913, 4
      %v1916 = vor.u32 %v1915, %v1911
      %v1917 = vrot.slane %v1916, 4
      %v1919 = vshll.u32 %v1558, 16
      %v1921 = vrot.slane %v1919, 5
      %v1922 = vsel %vm1562, %v1917, %v1921
      %v1924 = vshrl.u32 %v1526, 16
      %v1926 = vrot.slane %v1924, 4
      %v1927 = vshll.u32 %v1526, 16
      %v1929 = vrot.slane %v1927, 5
      %v1930 = vor.u32 %v1926, %v1929
      %v1931 = vrot.slane %v1930, 4
      %v1933 = vshll.u32 %v1527, 16
      %v1935 = vrot.slane %v1933, 5
      %v1936 = vsel %vm1562, %v1931, %v1935
      %v1937 = vshrl.u32 %v1527, 16
      %v1939 = vrot.slane %v1937, 4
      %v1940 = vor.u32 %v1939, %v1935
      %v1941 = vrot.slane %v1940, 4
      %v1943 = vshll.u32 %v1559, 16
      %v1945 = vrot.slane %v1943, 5
      %v1946 = vsel %vm1562, %v1941, %v1945
      %s1947 = scalar_lea.vmem %s4, 64
      %v1948 = vld [vmem:[%s1947] sm:$0xf]
      %v1949 = vld [vmem:[%s1947 + $0x4] sm:$0xf]
      %v1950 = vld [vmem:[%s1947 + $0x8] sm:$0xf]
      %v1951 = vld [vmem:[%s1947 + $0xc] sm:$0xf]
      %v1952 = vld [vmem:[%s1947 + $0x10] sm:$0xf]
      %v1953 = vld [vmem:[%s1947 + $0x14] sm:$0xf]
      %v1954 = vld [vmem:[%s1947 + $0x18] sm:$0xf]
      %v1955 = vld [vmem:[%s1947 + $0x1c] sm:$0xf]
      %v1956 = vld [vmem:[%s1947 + $0x20] sm:$0xf]
      %v1957 = vld [vmem:[%s1947 + $0x24] sm:$0xf]
      %v1958 = vld [vmem:[%s1947 + $0x28] sm:$0xf]
      %v1959 = vld [vmem:[%s1947 + $0x2c] sm:$0xf]
      %v1960 = vld [vmem:[%s1947 + $0x30] sm:$0xf]
      %v1961 = vld [vmem:[%s1947 + $0x34] sm:$0xf]
      %v1962 = vld [vmem:[%s1947 + $0x38] sm:$0xf]
      %v1963 = vld [vmem:[%s1947 + $0x3c] sm:$0xf]
      %v1964 = vunpack.c.l.b16 %v1576
      %v1965 = vunpack.c.l.b16 %v1586
      %v1966 = vunpack.c.l.b16 %v1600
      %v1967 = vunpack.c.l.b16 %v1610
      %v1968 = vunpack.c.l.b16 %v1624
      %v1969 = vunpack.c.l.b16 %v1634
      %v1970 = vunpack.c.l.b16 %v1648
      %v1971 = vunpack.c.l.b16 %v1658
      %v1972 = vunpack.c.l.b16 %v1672
      %v1973 = vunpack.c.l.b16 %v1682
      %v1974 = vunpack.c.l.b16 %v1696
      %v1975 = vunpack.c.l.b16 %v1706
      %v1976 = vunpack.c.l.b16 %v1720
      %v1977 = vunpack.c.l.b16 %v1730
      %v1978 = vunpack.c.l.b16 %v1744
      %v1979 = vunpack.c.l.b16 %v1754
      %v1980 = vunpack.c.l.b16 %v1768
      %v1981 = vunpack.c.l.b16 %v1778
      %v1982 = vunpack.c.l.b16 %v1792
      %v1983 = vunpack.c.l.b16 %v1802
      %v1984 = vunpack.c.l.b16 %v1816
      %v1985 = vunpack.c.l.b16 %v1826
      %v1986 = vunpack.c.l.b16 %v1840
      %v1987 = vunpack.c.l.b16 %v1850
      %v1988 = vunpack.c.l.b16 %v1864
      %v1989 = vunpack.c.l.b16 %v1874
      %v1990 = vunpack.c.l.b16 %v1888
      %v1991 = vunpack.c.l.b16 %v1898
      %v1992 = vunpack.c.l.b16 %v1912
      %v1993 = vunpack.c.l.b16 %v1922
      %v1994 = vunpack.c.l.b16 %v1936
      %v1995 = vunpack.c.l.b16 %v1946
      %v1996 = vpack.c.b16 %v1965, %v1964
      %v1997 = vpack.c.b16 %v1967, %v1966
      %v1998 = vpack.c.b16 %v1969, %v1968
      %v1999 = vpack.c.b16 %v1971, %v1970
      %v2000 = vpack.c.b16 %v1973, %v1972
      %v2001 = vpack.c.b16 %v1975, %v1974
      %v2002 = vpack.c.b16 %v1977, %v1976
      %v2003 = vpack.c.b16 %v1979, %v1978
      %v2004 = vpack.c.b16 %v1981, %v1980
      %v2005 = vpack.c.b16 %v1983, %v1982
      %v2006 = vpack.c.b16 %v1985, %v1984
      %v2007 = vpack.c.b16 %v1987, %v1986
      %v2008 = vpack.c.b16 %v1989, %v1988
      %v2009 = vpack.c.b16 %v1991, %v1990
      %v2010 = vpack.c.b16 %v1993, %v1992
      %v2011 = vpack.c.b16 %v1995, %v1994
      %v2044 = vunpack.c.l.b16 %v1948
      %v2045 = vunpack.c.l.b16 %v1949
      %v2046 = vunpack.c.l.b16 %v1950
      %v2047 = vunpack.c.l.b16 %v1951
      %v2048 = vunpack.c.l.b16 %v1952
      %v2049 = vunpack.c.l.b16 %v1953
      %v2050 = vunpack.c.l.b16 %v1954
      %v2051 = vunpack.c.l.b16 %v1955
      %v2052 = vunpack.c.l.b16 %v1956
      %v2053 = vunpack.c.l.b16 %v1957
      %v2054 = vunpack.c.l.b16 %v1958
      %v2055 = vunpack.c.l.b16 %v1959
      %v2056 = vunpack.c.l.b16 %v1960
      %v2057 = vunpack.c.l.b16 %v1961
      %v2058 = vunpack.c.l.b16 %v1962
      %v2059 = vunpack.c.l.b16 %v1963
      %v2060 = vpack.c.b16 %v2045, %v2044
      %v2061 = vpack.c.b16 %v2047, %v2046
      %v2062 = vpack.c.b16 %v2049, %v2048
      %v2063 = vpack.c.b16 %v2051, %v2050
      %v2064 = vpack.c.b16 %v2053, %v2052
      %v2065 = vpack.c.b16 %v2055, %v2054
      %v2066 = vpack.c.b16 %v2057, %v2056
      %v2067 = vpack.c.b16 %v2059, %v2058
      %2076 = vmatprep.subr.bf16.mxu0 0
      %2077 = vmatpush1.bf16.msra.mxu0 %v2060
      %2078 = vmatprep.subr.bf16.mxu0 0
      %2079 = vmatpush1.bf16.msra.mxu0 %v2061
      %2080 = vmatprep.subr.bf16.mxu0 0
      %2081 = vmatpush1.bf16.msra.mxu0 %v2062
      %2082 = vmatprep.subr.bf16.mxu0 0
      %2083 = vmatpush1.bf16.msra.mxu0 %v2063
      %2084 = vmatprep.subr.bf16.mxu0 0
      %2085 = vmatpush1.bf16.msra.mxu0 %v2064
      %2086 = vmatprep.subr.bf16.mxu0 0
      %2087 = vmatpush1.bf16.msra.mxu0 %v2065
      %2088 = vmatprep.subr.bf16.mxu0 0
      %2089 = vmatpush1.bf16.msra.mxu0 %v2066
      %2090 = vmatprep.subr.bf16.mxu0 0
      %2091 = vmatpush1.bf16.msra.mxu0 %v2067
      %2092 = vmatprep.subr.bf16.mxu0 0
      %2093 = vmatpush1.bf16.msra.mxu0 0
      %2094 = vmatprep.subr.bf16.mxu0 0
      %2095 = vmatpush1.bf16.msra.mxu0 0
      %2096 = vmatprep.subr.bf16.mxu0 0
      %2097 = vmatpush1.bf16.msra.mxu0 0
      %2098 = vmatprep.subr.bf16.mxu0 0
      %2099 = vmatpush1.bf16.msra.mxu0 0
      %2100 = vmatprep.subr.bf16.mxu0 0
      %2101 = vmatpush1.bf16.msra.mxu0 0
      %2102 = vmatprep.subr.bf16.mxu0 0
      %2103 = vmatpush1.bf16.msra.mxu0 0
      %2104 = vmatprep.subr.bf16.mxu0 0
      %2105 = vmatpush1.bf16.msra.mxu0 0
      %2106 = vmatprep.subr.bf16.mxu0 0
      %2107 = vmatpush1.bf16.msra.mxu0 0
      %2108 = vmatprep.mubr.bf16.mxu0 0
      %2109 = vmatmul.mubr.bf16.gmra.mrb[0].mxu0 %v1996
      %v2110 = vpop.f32.mrb[0].mxu0
      %v2111 = vadd.f32 0.0, %v2110
      %v2112 = vpop.f32.mrb[0].mxu0
      %v2113 = vpop.f32.mrb[0].mxu0
      %v2114 = vadd.f32 0.0, %v2113
      %v2115 = vpop.f32.mrb[0].mxu0
      %2116 = vmatprep.mubr.bf16.mxu0 0
      %2117 = vmatmul.mubr.bf16.gmra.mrb[0].mxu0 %v1997
      %v2118 = vpop.f32.mrb[0].mxu0
      %v2119 = vadd.f32 0.0, %v2118
      %v2120 = vpop.f32.mrb[0].mxu0
      %v2121 = vpop.f32.mrb[0].mxu0
      %v2122 = vadd.f32 0.0, %v2121
      %v2123 = vpop.f32.mrb[0].mxu0
      %2124 = vmatprep.mubr.bf16.mxu0 0
      %2125 = vmatmul.mubr.bf16.gmra.mrb[0].mxu0 %v1998
      %v2126 = vpop.f32.mrb[0].mxu0
      %v2127 = vadd.f32 0.0, %v2126
      %v2128 = vpop.f32.mrb[0].mxu0
      %v2129 = vpop.f32.mrb[0].mxu0
      %v2130 = vadd.f32 0.0, %v2129
      %v2131 = vpop.f32.mrb[0].mxu0
      %2132 = vmatprep.mubr.bf16.mxu0 0
      %2133 = vmatmul.mubr.bf16.gmra.mrb[0].mxu0 %v1999
      %v2134 = vpop.f32.mrb[0].mxu0
      %v2135 = vadd.f32 0.0, %v2134
      %v2136 = vpop.f32.mrb[0].mxu0
      %v2137 = vpop.f32.mrb[0].mxu0
      %v2138 = vadd.f32 0.0, %v2137
      %v2139 = vpop.f32.mrb[0].mxu0
      %2140 = vmatprep.mubr.bf16.mxu0 0
      %2141 = vmatmul.mubr.bf16.gmra.mrb[0].mxu0 %v2000
      %v2142 = vpop.f32.mrb[0].mxu0
      %v2143 = vadd.f32 0.0, %v2142
      %v2144 = vpop.f32.mrb[0].mxu0
      %v2145 = vpop.f32.mrb[0].mxu0
      %v2146 = vadd.f32 0.0, %v2145
      %v2147 = vpop.f32.mrb[0].mxu0
      %2148 = vmatprep.mubr.bf16.mxu0 0
      %2149 = vmatmul.mubr.bf16.gmra.mrb[0].mxu0 %v2001
      %v2150 = vpop.f32.mrb[0].mxu0
      %v2151 = vadd.f32 0.0, %v2150
      %v2152 = vpop.f32.mrb[0].mxu0
      %v2153 = vpop.f32.mrb[0].mxu0
      %v2154 = vadd.f32 0.0, %v2153
      %v2155 = vpop.f32.mrb[0].mxu0
      %2156 = vmatprep.mubr.bf16.mxu0 0
      %2157 = vmatmul.mubr.bf16.gmra.mrb[0].mxu0 %v2002
      %v2158 = vpop.f32.mrb[0].mxu0
      %v2159 = vadd.f32 0.0, %v2158
      %v2160 = vpop.f32.mrb[0].mxu0
      %v2161 = vpop.f32.mrb[0].mxu0
      %v2162 = vadd.f32 0.0, %v2161
      %v2163 = vpop.f32.mrb[0].mxu0
      %2164 = vmatprep.mubr.bf16.mxu0 0
      %2165 = vmatmul.mubr.bf16.gmra.mrb[0].mxu0 %v2003
      %v2166 = vpop.f32.mrb[0].mxu0
      %v2167 = vadd.f32 0.0, %v2166
      %v2168 = vpop.f32.mrb[0].mxu0
      %v2169 = vpop.f32.mrb[0].mxu0
      %v2170 = vadd.f32 0.0, %v2169
      %v2171 = vpop.f32.mrb[0].mxu0
      %2172 = vmatprep.mubr.bf16.mxu0 0
      %2173 = vmatmul.mubr.bf16.gmra.mrb[0].mxu0 %v2004
      %v2174 = vpop.f32.mrb[0].mxu0
      %v2175 = vadd.f32 0.0, %v2174
      %v2176 = vpop.f32.mrb[0].mxu0
      %v2177 = vpop.f32.mrb[0].mxu0
      %v2178 = vadd.f32 0.0, %v2177
      %v2179 = vpop.f32.mrb[0].mxu0
      %2180 = vmatprep.mubr.bf16.mxu0 0
      %2181 = vmatmul.mubr.bf16.gmra.mrb[0].mxu0 %v2005
      %v2182 = vpop.f32.mrb[0].mxu0
      %v2183 = vadd.f32 0.0, %v2182
      %v2184 = vpop.f32.mrb[0].mxu0
      %v2185 = vpop.f32.mrb[0].mxu0
      %v2186 = vadd.f32 0.0, %v2185
      %v2187 = vpop.f32.mrb[0].mxu0
      %2188 = vmatprep.mubr.bf16.mxu0 0
      %2189 = vmatmul.mubr.bf16.gmra.mrb[0].mxu0 %v2006
      %v2190 = vpop.f32.mrb[0].mxu0
      %v2191 = vadd.f32 0.0, %v2190
      %v2192 = vpop.f32.mrb[0].mxu0
      %v2193 = vpop.f32.mrb[0].mxu0
      %v2194 = vadd.f32 0.0, %v2193
      %v2195 = vpop.f32.mrb[0].mxu0
      %2196 = vmatprep.mubr.bf16.mxu0 0
      %2197 = vmatmul.mubr.bf16.gmra.mrb[0].mxu0 %v2007
      %v2198 = vpop.f32.mrb[0].mxu0
      %v2199 = vadd.f32 0.0, %v2198
      %v2200 = vpop.f32.mrb[0].mxu0
      %v2201 = vpop.f32.mrb[0].mxu0
      %v2202 = vadd.f32 0.0, %v2201
      %v2203 = vpop.f32.mrb[0].mxu0
      %2204 = vmatprep.mubr.bf16.mxu0 0
      %2205 = vmatmul.mubr.bf16.gmra.mrb[0].mxu0 %v2008
      %v2206 = vpop.f32.mrb[0].mxu0
      %v2207 = vadd.f32 0.0, %v2206
      %v2208 = vpop.f32.mrb[0].mxu0
      %v2209 = vpop.f32.mrb[0].mxu0
      %v2210 = vadd.f32 0.0, %v2209
      %v2211 = vpop.f32.mrb[0].mxu0
      %2212 = vmatprep.mubr.bf16.mxu0 0
      %2213 = vmatmul.mubr.bf16.gmra.mrb[0].mxu0 %v2009
      %v2214 = vpop.f32.mrb[0].mxu0
      %v2215 = vadd.f32 0.0, %v2214
      %v2216 = vpop.f32.mrb[0].mxu0
      %v2217 = vpop.f32.mrb[0].mxu0
      %v2218 = vadd.f32 0.0, %v2217
      %v2219 = vpop.f32.mrb[0].mxu0
      %2220 = vmatprep.mubr.bf16.mxu0 0
      %2221 = vmatmul.mubr.bf16.gmra.mrb[0].mxu0 %v2010
      %v2222 = vpop.f32.mrb[0].mxu0
      %v2223 = vadd.f32 0.0, %v2222
      %v2224 = vpop.f32.mrb[0].mxu0
      %v2225 = vpop.f32.mrb[0].mxu0
      %v2226 = vadd.f32 0.0, %v2225
      %v2227 = vpop.f32.mrb[0].mxu0
      %2228 = vmatprep.mubr.bf16.mxu0 0
      %2229 = vmatmul.mubr.bf16.gmra.mrb[0].mxu0 %v2011
      %v2230 = vpop.f32.mrb[0].mxu0
      %v2231 = vadd.f32 0.0, %v2230
      %v2232 = vpop.f32.mrb[0].mxu0
      %v2233 = vpop.f32.mrb[0].mxu0
      %v2234 = vadd.f32 0.0, %v2233
      %v2235 = vpop.f32.mrb[0].mxu0
      %2236 = vdwg.mxu0
      %v2269 = vunpack.c.l.b16 %v1496
      %v2270 = vunpack.c.l.b16 %v1497
      %v2271 = vunpack.c.l.b16 %v1498
      %v2272 = vunpack.c.l.b16 %v1499
      %v2273 = vunpack.c.l.b16 %v1500
      %v2274 = vunpack.c.l.b16 %v1501
      %v2275 = vunpack.c.l.b16 %v1502
      %v2276 = vunpack.c.l.b16 %v1503
      %v2277 = vunpack.c.l.b16 %v1504
      %v2278 = vunpack.c.l.b16 %v1505
      %v2279 = vunpack.c.l.b16 %v1506
      %v2280 = vunpack.c.l.b16 %v1507
      %v2281 = vunpack.c.l.b16 %v1508
      %v2282 = vunpack.c.l.b16 %v1509
      %v2283 = vunpack.c.l.b16 %v1510
      %v2284 = vunpack.c.l.b16 %v1511
      %v2285 = vunpack.c.l.b16 %v1512
      %v2286 = vunpack.c.l.b16 %v1513
      %v2287 = vunpack.c.l.b16 %v1514
      %v2288 = vunpack.c.l.b16 %v1515
      %v2289 = vunpack.c.l.b16 %v1516
      %v2290 = vunpack.c.l.b16 %v1517
      %v2291 = vunpack.c.l.b16 %v1518
      %v2292 = vunpack.c.l.b16 %v1519
      %v2293 = vunpack.c.l.b16 %v1520
      %v2294 = vunpack.c.l.b16 %v1521
      %v2295 = vunpack.c.l.b16 %v1522
      %v2296 = vunpack.c.l.b16 %v1523
      %v2297 = vunpack.c.l.b16 %v1524
      %v2298 = vunpack.c.l.b16 %v1525
      %v2299 = vunpack.c.l.b16 %v1526
      %v2300 = vunpack.c.l.b16 %v1527
      %v2301 = vpack.c.b16 %v2270, %v2269
      %v2302 = vpack.c.b16 %v2272, %v2271
      %v2303 = vpack.c.b16 %v2274, %v2273
      %v2304 = vpack.c.b16 %v2276, %v2275
      %v2305 = vpack.c.b16 %v2278, %v2277
      %v2306 = vpack.c.b16 %v2280, %v2279
      %v2307 = vpack.c.b16 %v2282, %v2281
      %v2308 = vpack.c.b16 %v2284, %v2283
      %v2309 = vpack.c.b16 %v2286, %v2285
      %v2310 = vpack.c.b16 %v2288, %v2287
      %v2311 = vpack.c.b16 %v2290, %v2289
      %v2312 = vpack.c.b16 %v2292, %v2291
      %v2313 = vpack.c.b16 %v2294, %v2293
      %v2314 = vpack.c.b16 %v2296, %v2295
      %v2315 = vpack.c.b16 %v2298, %v2297
      %v2316 = vpack.c.b16 %v2300, %v2299
      %v2349 = vunpack.c.l.b16 %v1528
      %v2350 = vunpack.c.l.b16 %v1529
      %v2351 = vunpack.c.l.b16 %v1530
      %v2352 = vunpack.c.l.b16 %v1531
      %v2353 = vunpack.c.l.b16 %v1532
      %v2354 = vunpack.c.l.b16 %v1533
      %v2355 = vunpack.c.l.b16 %v1534
      %v2356 = vunpack.c.l.b16 %v1535
      %v2357 = vunpack.c.l.b16 %v1536
      %v2358 = vunpack.c.l.b16 %v1537
      %v2359 = vunpack.c.l.b16 %v1538
      %v2360 = vunpack.c.l.b16 %v1539
      %v2361 = vunpack.c.l.b16 %v1540
      %v2362 = vunpack.c.l.b16 %v1541
      %v2363 = vunpack.c.l.b16 %v1542
      %v2364 = vunpack.c.l.b16 %v1543
      %v2365 = vpack.c.b16 %v2350, %v2349
      %v2366 = vpack.c.b16 %v2352, %v2351
      %v2367 = vpack.c.b16 %v2354, %v2353
      %v2368 = vpack.c.b16 %v2356, %v2355
      %v2369 = vpack.c.b16 %v2358, %v2357
      %v2370 = vpack.c.b16 %v2360, %v2359
      %v2371 = vpack.c.b16 %v2362, %v2361
      %v2372 = vpack.c.b16 %v2364, %v2363
      %2381 = vmatprep.subr.bf16.mxu0 0
      %2382 = vmatpush1.bf16.msra.mxu0 %v2365
      %2383 = vmatprep.subr.bf16.mxu0 0
      %2384 = vmatpush1.bf16.msra.mxu0 %v2366
      %2385 = vmatprep.subr.bf16.mxu0 0
      %2386 = vmatpush1.bf16.msra.mxu0 %v2367
      %2387 = vmatprep.subr.bf16.mxu0 0
      %2388 = vmatpush1.bf16.msra.mxu0 %v2368
      %2389 = vmatprep.subr.bf16.mxu0 0
      %2390 = vmatpush1.bf16.msra.mxu0 %v2369
      %2391 = vmatprep.subr.bf16.mxu0 0
      %2392 = vmatpush1.bf16.msra.mxu0 %v2370
      %2393 = vmatprep.subr.bf16.mxu0 0
      %2394 = vmatpush1.bf16.msra.mxu0 %v2371
      %2395 = vmatprep.subr.bf16.mxu0 0
      %2396 = vmatpush1.bf16.msra.mxu0 %v2372
      %2397 = vmatprep.subr.bf16.mxu0 0
      %2398 = vmatpush1.bf16.msra.mxu0 0
      %2399 = vmatprep.subr.bf16.mxu0 0
      %2400 = vmatpush1.bf16.msra.mxu0 0
      %2401 = vmatprep.subr.bf16.mxu0 0
      %2402 = vmatpush1.bf16.msra.mxu0 0
      %2403 = vmatprep.subr.bf16.mxu0 0
      %2404 = vmatpush1.bf16.msra.mxu0 0
      %2405 = vmatprep.subr.bf16.mxu0 0
      %2406 = vmatpush1.bf16.msra.mxu0 0
      %2407 = vmatprep.subr.bf16.mxu0 0
      %2408 = vmatpush1.bf16.msra.mxu0 0
      %2409 = vmatprep.subr.bf16.mxu0 0
      %2410 = vmatpush1.bf16.msra.mxu0 0
      %2411 = vmatprep.subr.bf16.mxu0 0
      %2412 = vmatpush1.bf16.msra.mxu0 0
      %2413 = vmatprep.mubr.bf16.mxu0 0
      %2414 = vmatmul.mubr.bf16.gmra.mrb[0].mxu0 %v2301
      %v2415 = vpop.f32.mrb[0].mxu0
      %v2416 = vadd.f32 %v2111, %v2415
      %v2417 = vpop.f32.mrb[0].mxu0
      %v2418 = vpop.f32.mrb[0].mxu0
      %v2419 = vadd.f32 %v2114, %v2418
      %v2420 = vpop.f32.mrb[0].mxu0
      %2421 = vmatprep.mubr.bf16.mxu0 0
      %2422 = vmatmul.mubr.bf16.gmra.mrb[0].mxu0 %v2302
      %v2423 = vpop.f32.mrb[0].mxu0
      %v2424 = vadd.f32 %v2119, %v2423
      %v2425 = vpop.f32.mrb[0].mxu0
      %v2426 = vpop.f32.mrb[0].mxu0
      %v2427 = vadd.f32 %v2122, %v2426
      %v2428 = vpop.f32.mrb[0].mxu0
      %2429 = vmatprep.mubr.bf16.mxu0 0
      %2430 = vmatmul.mubr.bf16.gmra.mrb[0].mxu0 %v2303
      %v2431 = vpop.f32.mrb[0].mxu0
      %v2432 = vadd.f32 %v2127, %v2431
      %v2433 = vpop.f32.mrb[0].mxu0
      %v2434 = vpop.f32.mrb[0].mxu0
      %v2435 = vadd.f32 %v2130, %v2434
      %v2436 = vpop.f32.mrb[0].mxu0
      %2437 = vmatprep.mubr.bf16.mxu0 0
      %2438 = vmatmul.mubr.bf16.gmra.mrb[0].mxu0 %v2304
      %v2439 = vpop.f32.mrb[0].mxu0
      %v2440 = vadd.f32 %v2135, %v2439
      %v2441 = vpop.f32.mrb[0].mxu0
      %v2442 = vpop.f32.mrb[0].mxu0
      %v2443 = vadd.f32 %v2138, %v2442
      %v2444 = vpop.f32.mrb[0].mxu0
      %2445 = vmatprep.mubr.bf16.mxu0 0
      %2446 = vmatmul.mubr.bf16.gmra.mrb[0].mxu0 %v2305
      %v2447 = vpop.f32.mrb[0].mxu0
      %v2448 = vadd.f32 %v2143, %v2447
      %v2449 = vpop.f32.mrb[0].mxu0
      %v2450 = vpop.f32.mrb[0].mxu0
      %v2451 = vadd.f32 %v2146, %v2450
      %v2452 = vpop.f32.mrb[0].mxu0
      %2453 = vmatprep.mubr.bf16.mxu0 0
      %2454 = vmatmul.mubr.bf16.gmra.mrb[0].mxu0 %v2306
      %v2455 = vpop.f32.mrb[0].mxu0
      %v2456 = vadd.f32 %v2151, %v2455
      %v2457 = vpop.f32.mrb[0].mxu0
      %v2458 = vpop.f32.mrb[0].mxu0
      %v2459 = vadd.f32 %v2154, %v2458
      %v2460 = vpop.f32.mrb[0].mxu0
      %2461 = vmatprep.mubr.bf16.mxu0 0
      %2462 = vmatmul.mubr.bf16.gmra.mrb[0].mxu0 %v2307
      %v2463 = vpop.f32.mrb[0].mxu0
      %v2464 = vadd.f32 %v2159, %v2463
      %v2465 = vpop.f32.mrb[0].mxu0
      %v2466 = vpop.f32.mrb[0].mxu0
      %v2467 = vadd.f32 %v2162, %v2466
      %v2468 = vpop.f32.mrb[0].mxu0
      %2469 = vmatprep.mubr.bf16.mxu0 0
      %2470 = vmatmul.mubr.bf16.gmra.mrb[0].mxu0 %v2308
      %v2471 = vpop.f32.mrb[0].mxu0
      %v2472 = vadd.f32 %v2167, %v2471
      %v2473 = vpop.f32.mrb[0].mxu0
      %v2474 = vpop.f32.mrb[0].mxu0
      %v2475 = vadd.f32 %v2170, %v2474
      %v2476 = vpop.f32.mrb[0].mxu0
      %2477 = vmatprep.mubr.bf16.mxu0 0
      %2478 = vmatmul.mubr.bf16.gmra.mrb[0].mxu0 %v2309
      %v2479 = vpop.f32.mrb[0].mxu0
      %v2480 = vadd.f32 %v2175, %v2479
      %v2481 = vpop.f32.mrb[0].mxu0
      %v2482 = vpop.f32.mrb[0].mxu0
      %v2483 = vadd.f32 %v2178, %v2482
      %v2484 = vpop.f32.mrb[0].mxu0
      %2485 = vmatprep.mubr.bf16.mxu0 0
      %2486 = vmatmul.mubr.bf16.gmra.mrb[0].mxu0 %v2310
      %v2487 = vpop.f32.mrb[0].mxu0
      %v2488 = vadd.f32 %v2183, %v2487
      %v2489 = vpop.f32.mrb[0].mxu0
      %v2490 = vpop.f32.mrb[0].mxu0
      %v2491 = vadd.f32 %v2186, %v2490
      %v2492 = vpop.f32.mrb[0].mxu0
      %2493 = vmatprep.mubr.bf16.mxu0 0
      %2494 = vmatmul.mubr.bf16.gmra.mrb[0].mxu0 %v2311
      %v2495 = vpop.f32.mrb[0].mxu0
      %v2496 = vadd.f32 %v2191, %v2495
      %v2497 = vpop.f32.mrb[0].mxu0
      %v2498 = vpop.f32.mrb[0].mxu0
      %v2499 = vadd.f32 %v2194, %v2498
      %v2500 = vpop.f32.mrb[0].mxu0
      %2501 = vmatprep.mubr.bf16.mxu0 0
      %2502 = vmatmul.mubr.bf16.gmra.mrb[0].mxu0 %v2312
      %v2503 = vpop.f32.mrb[0].mxu0
      %v2504 = vadd.f32 %v2199, %v2503
      %v2505 = vpop.f32.mrb[0].mxu0
      %v2506 = vpop.f32.mrb[0].mxu0
      %v2507 = vadd.f32 %v2202, %v2506
      %v2508 = vpop.f32.mrb[0].mxu0
      %2509 = vmatprep.mubr.bf16.mxu0 0
      %2510 = vmatmul.mubr.bf16.gmra.mrb[0].mxu0 %v2313
      %v2511 = vpop.f32.mrb[0].mxu0
      %v2512 = vadd.f32 %v2207, %v2511
      %v2513 = vpop.f32.mrb[0].mxu0
      %v2514 = vpop.f32.mrb[0].mxu0
      %v2515 = vadd.f32 %v2210, %v2514
      %v2516 = vpop.f32.mrb[0].mxu0
      %2517 = vmatprep.mubr.bf16.mxu0 0
      %2518 = vmatmul.mubr.bf16.gmra.mrb[0].mxu0 %v2314
      %v2519 = vpop.f32.mrb[0].mxu0
      %v2520 = vadd.f32 %v2215, %v2519
      %v2521 = vpop.f32.mrb[0].mxu0
      %v2522 = vpop.f32.mrb[0].mxu0
      %v2523 = vadd.f32 %v2218, %v2522
      %v2524 = vpop.f32.mrb[0].mxu0
      %2525 = vmatprep.mubr.bf16.mxu0 0
      %2526 = vmatmul.mubr.bf16.gmra.mrb[0].mxu0 %v2315
      %v2527 = vpop.f32.mrb[0].mxu0
      %v2528 = vadd.f32 %v2223, %v2527
      %v2529 = vpop.f32.mrb[0].mxu0
      %v2530 = vpop.f32.mrb[0].mxu0
      %v2531 = vadd.f32 %v2226, %v2530
      %v2532 = vpop.f32.mrb[0].mxu0
      %2533 = vmatprep.mubr.bf16.mxu0 0
      %2534 = vmatmul.mubr.bf16.gmra.mrb[0].mxu0 %v2316
      %v2535 = vpop.f32.mrb[0].mxu0
      %v2536 = vadd.f32 %v2231, %v2535
      %v2537 = vpop.f32.mrb[0].mxu0
      %v2538 = vpop.f32.mrb[0].mxu0
      %v2539 = vadd.f32 %v2234, %v2538
      %v2540 = vpop.f32.mrb[0].mxu0
      %2541 = vdwg.mxu0
      %v2542 = vld [vmem:[#allocation2] sm:$0xe]
      %v2543 = vld [vmem:[#allocation2 + $0xc] sm:$0xe]
      %v2544 = vld [vmem:[#allocation2 + $0x18] sm:$0xe]
      %v2545 = vld [vmem:[#allocation2 + $0x24] sm:$0xe]
      %v2546 = vld [vmem:[#allocation2 + $0x30] sm:$0xe]
      %v2547 = vld [vmem:[#allocation2 + $0x3c] sm:$0xe]
      %v2548 = vld [vmem:[#allocation2 + $0x48] sm:$0xe]
      %v2549 = vld [vmem:[#allocation2 + $0x54] sm:$0xe]
      %v2550 = vld [vmem:[#allocation2 + $0x60] sm:$0xe]
      %v2551 = vld [vmem:[#allocation2 + $0x6c] sm:$0xe]
      %v2552 = vld [vmem:[#allocation2 + $0x78] sm:$0xe]
      %v2553 = vld [vmem:[#allocation2 + $0x84] sm:$0xe]
      %v2554 = vld [vmem:[#allocation2 + $0x90] sm:$0xe]
      %v2555 = vld [vmem:[#allocation2 + $0x9c] sm:$0xe]
      %v2556 = vld [vmem:[#allocation2 + $0xa8] sm:$0xe]
      %v2557 = vld [vmem:[#allocation2 + $0xb4] sm:$0xe]
      %vm2590 = vcmask 1042432
      %vm2591 = vcmask 1046532
      %vm2592 = vmor %vm2590, %vm2591
      %v2593 = vrot.slane %v2542, 5
      %v2594 = vrot.slane %v2593, 4
      %v2595 = vrot.slane %v1497, 5
      %v2596 = vsel %vm2592, %v2594, %v2595
      %v2597 = vrot.slane %v2595, 4
      %v2598 = vrot.slane %v1544, 5
      %v2599 = vsel %vm2592, %v2597, %v2598
      %v2600 = vrot.slane %v2543, 5
      %v2601 = vrot.slane %v2600, 4
      %v2602 = vrot.slane %v1499, 5
      %v2603 = vsel %vm2592, %v2601, %v2602
      %v2604 = vrot.slane %v2602, 4
      %v2605 = vrot.slane %v1545, 5
      %v2606 = vsel %vm2592, %v2604, %v2605
      %v2607 = vrot.slane %v2544, 5
      %v2608 = vrot.slane %v2607, 4
      %v2609 = vrot.slane %v1501, 5
      %v2610 = vsel %vm2592, %v2608, %v2609
      %v2611 = vrot.slane %v2609, 4
      %v2612 = vrot.slane %v1546, 5
      %v2613 = vsel %vm2592, %v2611, %v2612
      %v2614 = vrot.slane %v2545, 5
      %v2615 = vrot.slane %v2614, 4
      %v2616 = vrot.slane %v1503, 5
      %v2617 = vsel %vm2592, %v2615, %v2616
      %v2618 = vrot.slane %v2616, 4
      %v2619 = vrot.slane %v1547, 5
      %v2620 = vsel %vm2592, %v2618, %v2619
      %v2621 = vrot.slane %v2546, 5
      %v2622 = vrot.slane %v2621, 4
      %v2623 = vrot.slane %v1505, 5
      %v2624 = vsel %vm2592, %v2622, %v2623
      %v2625 = vrot.slane %v2623, 4
      %v2626 = vrot.slane %v1548, 5
      %v2627 = vsel %vm2592, %v2625, %v2626
      %v2628 = vrot.slane %v2547, 5
      %v2629 = vrot.slane %v2628, 4
      %v2630 = vrot.slane %v1507, 5
      %v2631 = vsel %vm2592, %v2629, %v2630
      %v2632 = vrot.slane %v2630, 4
      %v2633 = vrot.slane %v1549, 5
      %v2634 = vsel %vm2592, %v2632, %v2633
      %v2635 = vrot.slane %v2548, 5
      %v2636 = vrot.slane %v2635, 4
      %v2637 = vrot.slane %v1509, 5
      %v2638 = vsel %vm2592, %v2636, %v2637
      %v2639 = vrot.slane %v2637, 4
      %v2640 = vrot.slane %v1550, 5
      %v2641 = vsel %vm2592, %v2639, %v2640
      %v2642 = vrot.slane %v2549, 5
      %v2643 = vrot.slane %v2642, 4
      %v2644 = vrot.slane %v1511, 5
      %v2645 = vsel %vm2592, %v2643, %v2644
      %v2646 = vrot.slane %v2644, 4
      %v2647 = vrot.slane %v1551, 5
      %v2648 = vsel %vm2592, %v2646, %v2647
      %v2649 = vrot.slane %v2550, 5
      %v2650 = vrot.slane %v2649, 4
      %v2651 = vrot.slane %v1513, 5
      %v2652 = vsel %vm2592, %v2650, %v2651
      %v2653 = vrot.slane %v2651, 4
      %v2654 = vrot.slane %v1552, 5
      %v2655 = vsel %vm2592, %v2653, %v2654
      %v2656 = vrot.slane %v2551, 5
      %v2657 = vrot.slane %v2656, 4
      %v2658 = vrot.slane %v1515, 5
      %v2659 = vsel %vm2592, %v2657, %v2658
      %v2660 = vrot.slane %v2658, 4
      %v2661 = vrot.slane %v1553, 5
      %v2662 = vsel %vm2592, %v2660, %v2661
      %v2663 = vrot.slane %v2552, 5
      %v2664 = vrot.slane %v2663, 4
      %v2665 = vrot.slane %v1517, 5
      %v2666 = vsel %vm2592, %v2664, %v2665
      %v2667 = vrot.slane %v2665, 4
      %v2668 = vrot.slane %v1554, 5
      %v2669 = vsel %vm2592, %v2667, %v2668
      %v2670 = vrot.slane %v2553, 5
      %v2671 = vrot.slane %v2670, 4
      %v2672 = vrot.slane %v1519, 5
      %v2673 = vsel %vm2592, %v2671, %v2672
      %v2674 = vrot.slane %v2672, 4
      %v2675 = vrot.slane %v1555, 5
      %v2676 = vsel %vm2592, %v2674, %v2675
      %v2677 = vrot.slane %v2554, 5
      %v2678 = vrot.slane %v2677, 4
      %v2679 = vrot.slane %v1521, 5
      %v2680 = vsel %vm2592, %v2678, %v2679
      %v2681 = vrot.slane %v2679, 4
      %v2682 = vrot.slane %v1556, 5
      %v2683 = vsel %vm2592, %v2681, %v2682
      %v2684 = vrot.slane %v2555, 5
      %v2685 = vrot.slane %v2684, 4
      %v2686 = vrot.slane %v1523, 5
      %v2687 = vsel %vm2592, %v2685, %v2686
      %v2688 = vrot.slane %v2686, 4
      %v2689 = vrot.slane %v1557, 5
      %v2690 = vsel %vm2592, %v2688, %v2689
      %v2691 = vrot.slane %v2556, 5
      %v2692 = vrot.slane %v2691, 4
      %v2693 = vrot.slane %v1525, 5
      %v2694 = vsel %vm2592, %v2692, %v2693
      %v2695 = vrot.slane %v2693, 4
      %v2696 = vrot.slane %v1558, 5
      %v2697 = vsel %vm2592, %v2695, %v2696
      %v2698 = vrot.slane %v2557, 5
      %v2699 = vrot.slane %v2698, 4
      %v2700 = vrot.slane %v1527, 5
      %v2701 = vsel %vm2592, %v2699, %v2700
      %v2702 = vrot.slane %v2700, 4
      %v2703 = vrot.slane %v1559, 5
      %v2704 = vsel %vm2592, %v2702, %v2703
      %s2705 = scalar_lea.vmem %s4, 128
      %v2706 = vld [vmem:[%s2705] sm:$0xf]
      %v2707 = vld [vmem:[%s2705 + $0x4] sm:$0xf]
      %v2708 = vld [vmem:[%s2705 + $0x8] sm:$0xf]
      %v2709 = vld [vmem:[%s2705 + $0xc] sm:$0xf]
      %v2710 = vld [vmem:[%s2705 + $0x10] sm:$0xf]
      %v2711 = vld [vmem:[%s2705 + $0x14] sm:$0xf]
      %v2712 = vld [vmem:[%s2705 + $0x18] sm:$0xf]
      %v2713 = vld [vmem:[%s2705 + $0x1c] sm:$0xf]
      %v2714 = vld [vmem:[%s2705 + $0x20] sm:$0xf]
      %v2715 = vld [vmem:[%s2705 + $0x24] sm:$0xf]
      %v2716 = vld [vmem:[%s2705 + $0x28] sm:$0xf]
      %v2717 = vld [vmem:[%s2705 + $0x2c] sm:$0xf]
      %v2718 = vld [vmem:[%s2705 + $0x30] sm:$0xf]
      %v2719 = vld [vmem:[%s2705 + $0x34] sm:$0xf]
      %v2720 = vld [vmem:[%s2705 + $0x38] sm:$0xf]
      %v2721 = vld [vmem:[%s2705 + $0x3c] sm:$0xf]
      %v2722 = vunpack.c.l.b16 %v2596
      %v2723 = vunpack.c.l.b16 %v2599
      %v2724 = vunpack.c.l.b16 %v2603
      %v2725 = vunpack.c.l.b16 %v2606
      %v2726 = vunpack.c.l.b16 %v2610
      %v2727 = vunpack.c.l.b16 %v2613
      %v2728 = vunpack.c.l.b16 %v2617
      %v2729 = vunpack.c.l.b16 %v2620
      %v2730 = vunpack.c.l.b16 %v2624
      %v2731 = vunpack.c.l.b16 %v2627
      %v2732 = vunpack.c.l.b16 %v2631
      %v2733 = vunpack.c.l.b16 %v2634
      %v2734 = vunpack.c.l.b16 %v2638
      %v2735 = vunpack.c.l.b16 %v2641
      %v2736 = vunpack.c.l.b16 %v2645
      %v2737 = vunpack.c.l.b16 %v2648
      %v2738 = vunpack.c.l.b16 %v2652
      %v2739 = vunpack.c.l.b16 %v2655
      %v2740 = vunpack.c.l.b16 %v2659
      %v2741 = vunpack.c.l.b16 %v2662
      %v2742 = vunpack.c.l.b16 %v2666
      %v2743 = vunpack.c.l.b16 %v2669
      %v2744 = vunpack.c.l.b16 %v2673
      %v2745 = vunpack.c.l.b16 %v2676
      %v2746 = vunpack.c.l.b16 %v2680
      %v2747 = vunpack.c.l.b16 %v2683
      %v2748 = vunpack.c.l.b16 %v2687
      %v2749 = vunpack.c.l.b16 %v2690
      %v2750 = vunpack.c.l.b16 %v2694
      %v2751 = vunpack.c.l.b16 %v2697
      %v2752 = vunpack.c.l.b16 %v2701
      %v2753 = vunpack.c.l.b16 %v2704
      %v2754 = vpack.c.b16 %v2723, %v2722
      %v2755 = vpack.c.b16 %v2725, %v2724
      %v2756 = vpack.c.b16 %v2727, %v2726
      %v2757 = vpack.c.b16 %v2729, %v2728
      %v2758 = vpack.c.b16 %v2731, %v2730
      %v2759 = vpack.c.b16 %v2733, %v2732
      %v2760 = vpack.c.b16 %v2735, %v2734
      %v2761 = vpack.c.b16 %v2737, %v2736
      %v2762 = vpack.c.b16 %v2739, %v2738
      %v2763 = vpack.c.b16 %v2741, %v2740
      %v2764 = vpack.c.b16 %v2743, %v2742
      %v2765 = vpack.c.b16 %v2745, %v2744
      %v2766 = vpack.c.b16 %v2747, %v2746
      %v2767 = vpack.c.b16 %v2749, %v2748
      %v2768 = vpack.c.b16 %v2751, %v2750
      %v2769 = vpack.c.b16 %v2753, %v2752
      %v2802 = vunpack.c.l.b16 %v2706
      %v2803 = vunpack.c.l.b16 %v2707
      %v2804 = vunpack.c.l.b16 %v2708
      %v2805 = vunpack.c.l.b16 %v2709
      %v2806 = vunpack.c.l.b16 %v2710
      %v2807 = vunpack.c.l.b16 %v2711
      %v2808 = vunpack.c.l.b16 %v2712
      %v2809 = vunpack.c.l.b16 %v2713
      %v2810 = vunpack.c.l.b16 %v2714
      %v2811 = vunpack.c.l.b16 %v2715
      %v2812 = vunpack.c.l.b16 %v2716
      %v2813 = vunpack.c.l.b16 %v2717
      %v2814 = vunpack.c.l.b16 %v2718
      %v2815 = vunpack.c.l.b16 %v2719
      %v2816 = vunpack.c.l.b16 %v2720
      %v2817 = vunpack.c.l.b16 %v2721
      %v2818 = vpack.c.b16 %v2803, %v2802
      %v2819 = vpack.c.b16 %v2805, %v2804
      %v2820 = vpack.c.b16 %v2807, %v2806
      %v2821 = vpack.c.b16 %v2809, %v2808
      %v2822 = vpack.c.b16 %v2811, %v2810
      %v2823 = vpack.c.b16 %v2813, %v2812
      %v2824 = vpack.c.b16 %v2815, %v2814
      %v2825 = vpack.c.b16 %v2817, %v2816
      %2834 = vmatprep.subr.bf16.mxu0 0
      %2835 = vmatpush1.bf16.msra.mxu0 %v2818
      %2836 = vmatprep.subr.bf16.mxu0 0
      %2837 = vmatpush1.bf16.msra.mxu0 %v2819
      %2838 = vmatprep.subr.bf16.mxu0 0
      %2839 = vmatpush1.bf16.msra.mxu0 %v2820
      %2840 = vmatprep.subr.bf16.mxu0 0
      %2841 = vmatpush1.bf16.msra.mxu0 %v2821
      %2842 = vmatprep.subr.bf16.mxu0 0
      %2843 = vmatpush1.bf16.msra.mxu0 %v2822
      %2844 = vmatprep.subr.bf16.mxu0 0
      %2845 = vmatpush1.bf16.msra.mxu0 %v2823
      %2846 = vmatprep.subr.bf16.mxu0 0
      %2847 = vmatpush1.bf16.msra.mxu0 %v2824
      %2848 = vmatprep.subr.bf16.mxu0 0
      %2849 = vmatpush1.bf16.msra.mxu0 %v2825
      %2850 = vmatprep.subr.bf16.mxu0 0
      %2851 = vmatpush1.bf16.msra.mxu0 0
      %2852 = vmatprep.subr.bf16.mxu0 0
      %2853 = vmatpush1.bf16.msra.mxu0 0
      %2854 = vmatprep.subr.bf16.mxu0 0
      %2855 = vmatpush1.bf16.msra.mxu0 0
      %2856 = vmatprep.subr.bf16.mxu0 0
      %2857 = vmatpush1.bf16.msra.mxu0 0
      %2858 = vmatprep.subr.bf16.mxu0 0
      %2859 = vmatpush1.bf16.msra.mxu0 0
      %2860 = vmatprep.subr.bf16.mxu0 0
      %2861 = vmatpush1.bf16.msra.mxu0 0
      %2862 = vmatprep.subr.bf16.mxu0 0
      %2863 = vmatpush1.bf16.msra.mxu0 0
      %2864 = vmatprep.subr.bf16.mxu0 0
      %2865 = vmatpush1.bf16.msra.mxu0 0
      %2866 = vmatprep.mubr.bf16.mxu0 0
      %2867 = vmatmul.mubr.bf16.gmra.mrb[0].mxu0 %v2754
      %v2868 = vpop.f32.mrb[0].mxu0
      %v2869 = vadd.f32 0.0, %v2868
      %v2870 = vpop.f32.mrb[0].mxu0
      %v2871 = vpop.f32.mrb[0].mxu0
      %v2872 = vadd.f32 0.0, %v2871
      %v2873 = vpop.f32.mrb[0].mxu0
      %2874 = vmatprep.mubr.bf16.mxu0 0
      %2875 = vmatmul.mubr.bf16.gmra.mrb[0].mxu0 %v2755
      %v2876 = vpop.f32.mrb[0].mxu0
      %v2877 = vadd.f32 0.0, %v2876
      %v2878 = vpop.f32.mrb[0].mxu0
      %v2879 = vpop.f32.mrb[0].mxu0
      %v2880 = vadd.f32 0.0, %v2879
      %v2881 = vpop.f32.mrb[0].mxu0
      %2882 = vmatprep.mubr.bf16.mxu0 0
      %2883 = vmatmul.mubr.bf16.gmra.mrb[0].mxu0 %v2756
      %v2884 = vpop.f32.mrb[0].mxu0
      %v2885 = vadd.f32 0.0, %v2884
      %v2886 = vpop.f32.mrb[0].mxu0
      %v2887 = vpop.f32.mrb[0].mxu0
      %v2888 = vadd.f32 0.0, %v2887
      %v2889 = vpop.f32.mrb[0].mxu0
      %2890 = vmatprep.mubr.bf16.mxu0 0
      %2891 = vmatmul.mubr.bf16.gmra.mrb[0].mxu0 %v2757
      %v2892 = vpop.f32.mrb[0].mxu0
      %v2893 = vadd.f32 0.0, %v2892
      %v2894 = vpop.f32.mrb[0].mxu0
      %v2895 = vpop.f32.mrb[0].mxu0
      %v2896 = vadd.f32 0.0, %v2895
      %v2897 = vpop.f32.mrb[0].mxu0
      %2898 = vmatprep.mubr.bf16.mxu0 0
      %2899 = vmatmul.mubr.bf16.gmra.mrb[0].mxu0 %v2758
      %v2900 = vpop.f32.mrb[0].mxu0
      %v2901 = vadd.f32 0.0, %v2900
      %v2902 = vpop.f32.mrb[0].mxu0
      %v2903 = vpop.f32.mrb[0].mxu0
      %v2904 = vadd.f32 0.0, %v2903
      %v2905 = vpop.f32.mrb[0].mxu0
      %2906 = vmatprep.mubr.bf16.mxu0 0
      %2907 = vmatmul.mubr.bf16.gmra.mrb[0].mxu0 %v2759
      %v2908 = vpop.f32.mrb[0].mxu0
      %v2909 = vadd.f32 0.0, %v2908
      %v2910 = vpop.f32.mrb[0].mxu0
      %v2911 = vpop.f32.mrb[0].mxu0
      %v2912 = vadd.f32 0.0, %v2911
      %v2913 = vpop.f32.mrb[0].mxu0
      %2914 = vmatprep.mubr.bf16.mxu0 0
      %2915 = vmatmul.mubr.bf16.gmra.mrb[0].mxu0 %v2760
      %v2916 = vpop.f32.mrb[0].mxu0
      %v2917 = vadd.f32 0.0, %v2916
      %v2918 = vpop.f32.mrb[0].mxu0
      %v2919 = vpop.f32.mrb[0].mxu0
      %v2920 = vadd.f32 0.0, %v2919
      %v2921 = vpop.f32.mrb[0].mxu0
      %2922 = vmatprep.mubr.bf16.mxu0 0
      %2923 = vmatmul.mubr.bf16.gmra.mrb[0].mxu0 %v2761
      %v2924 = vpop.f32.mrb[0].mxu0
      %v2925 = vadd.f32 0.0, %v2924
      %v2926 = vpop.f32.mrb[0].mxu0
      %v2927 = vpop.f32.mrb[0].mxu0
      %v2928 = vadd.f32 0.0, %v2927
      %v2929 = vpop.f32.mrb[0].mxu0
      %2930 = vmatprep.mubr.bf16.mxu0 0
      %2931 = vmatmul.mubr.bf16.gmra.mrb[0].mxu0 %v2762
      %v2932 = vpop.f32.mrb[0].mxu0
      %v2933 = vadd.f32 0.0, %v2932
      %v2934 = vpop.f32.mrb[0].mxu0
      %v2935 = vpop.f32.mrb[0].mxu0
      %v2936 = vadd.f32 0.0, %v2935
      %v2937 = vpop.f32.mrb[0].mxu0
      %2938 = vmatprep.mubr.bf16.mxu0 0
      %2939 = vmatmul.mubr.bf16.gmra.mrb[0].mxu0 %v2763
      %v2940 = vpop.f32.mrb[0].mxu0
      %v2941 = vadd.f32 0.0, %v2940
      %v2942 = vpop.f32.mrb[0].mxu0
      %v2943 = vpop.f32.mrb[0].mxu0
      %v2944 = vadd.f32 0.0, %v2943
      %v2945 = vpop.f32.mrb[0].mxu0
      %2946 = vmatprep.mubr.bf16.mxu0 0
      %2947 = vmatmul.mubr.bf16.gmra.mrb[0].mxu0 %v2764
      %v2948 = vpop.f32.mrb[0].mxu0
      %v2949 = vadd.f32 0.0, %v2948
      %v2950 = vpop.f32.mrb[0].mxu0
      %v2951 = vpop.f32.mrb[0].mxu0
      %v2952 = vadd.f32 0.0, %v2951
      %v2953 = vpop.f32.mrb[0].mxu0
      %2954 = vmatprep.mubr.bf16.mxu0 0
      %2955 = vmatmul.mubr.bf16.gmra.mrb[0].mxu0 %v2765
      %v2956 = vpop.f32.mrb[0].mxu0
      %v2957 = vadd.f32 0.0, %v2956
      %v2958 = vpop.f32.mrb[0].mxu0
      %v2959 = vpop.f32.mrb[0].mxu0
      %v2960 = vadd.f32 0.0, %v2959
      %v2961 = vpop.f32.mrb[0].mxu0
      %2962 = vmatprep.mubr.bf16.mxu0 0
      %2963 = vmatmul.mubr.bf16.gmra.mrb[0].mxu0 %v2766
      %v2964 = vpop.f32.mrb[0].mxu0
      %v2965 = vadd.f32 0.0, %v2964
      %v2966 = vpop.f32.mrb[0].mxu0
      %v2967 = vpop.f32.mrb[0].mxu0
      %v2968 = vadd.f32 0.0, %v2967
      %v2969 = vpop.f32.mrb[0].mxu0
      %2970 = vmatprep.mubr.bf16.mxu0 0
      %2971 = vmatmul.mubr.bf16.gmra.mrb[0].mxu0 %v2767
      %v2972 = vpop.f32.mrb[0].mxu0
      %v2973 = vadd.f32 0.0, %v2972
      %v2974 = vpop.f32.mrb[0].mxu0
      %v2975 = vpop.f32.mrb[0].mxu0
      %v2976 = vadd.f32 0.0, %v2975
      %v2977 = vpop.f32.mrb[0].mxu0
      %2978 = vmatprep.mubr.bf16.mxu0 0
      %2979 = vmatmul.mubr.bf16.gmra.mrb[0].mxu0 %v2768
      %v2980 = vpop.f32.mrb[0].mxu0
      %v2981 = vadd.f32 0.0, %v2980
      %v2982 = vpop.f32.mrb[0].mxu0
      %v2983 = vpop.f32.mrb[0].mxu0
      %v2984 = vadd.f32 0.0, %v2983
      %v2985 = vpop.f32.mrb[0].mxu0
      %2986 = vmatprep.mubr.bf16.mxu0 0
      %2987 = vmatmul.mubr.bf16.gmra.mrb[0].mxu0 %v2769
      %v2988 = vpop.f32.mrb[0].mxu0
      %v2989 = vadd.f32 0.0, %v2988
      %v2990 = vpop.f32.mrb[0].mxu0
      %v2991 = vpop.f32.mrb[0].mxu0
      %v2992 = vadd.f32 0.0, %v2991
      %v2993 = vpop.f32.mrb[0].mxu0
      %2994 = vdwg.mxu0
      %v2995 = vadd.f32 %v2416, %v2869
      %v2996 = vadd.f32 %v2419, %v2872
      %v2997 = vadd.f32 %v2424, %v2877
      %v2998 = vadd.f32 %v2427, %v2880
      %v2999 = vadd.f32 %v2432, %v2885
      %v3000 = vadd.f32 %v2435, %v2888
      %v3001 = vadd.f32 %v2440, %v2893
      %v3002 = vadd.f32 %v2443, %v2896
      %v3003 = vadd.f32 %v2448, %v2901
      %v3004 = vadd.f32 %v2451, %v2904
      %v3005 = vadd.f32 %v2456, %v2909
      %v3006 = vadd.f32 %v2459, %v2912
      %v3007 = vadd.f32 %v2464, %v2917
      %v3008 = vadd.f32 %v2467, %v2920
      %v3009 = vadd.f32 %v2472, %v2925
      %v3010 = vadd.f32 %v2475, %v2928
      %v3011 = vadd.f32 %v2480, %v2933
      %v3012 = vadd.f32 %v2483, %v2936
      %v3013 = vadd.f32 %v2488, %v2941
      %v3014 = vadd.f32 %v2491, %v2944
      %v3015 = vadd.f32 %v2496, %v2949
      %v3016 = vadd.f32 %v2499, %v2952
      %v3017 = vadd.f32 %v2504, %v2957
      %v3018 = vadd.f32 %v2507, %v2960
      %v3019 = vadd.f32 %v2512, %v2965
      %v3020 = vadd.f32 %v2515, %v2968
      %v3021 = vadd.f32 %v2520, %v2973
      %v3022 = vadd.f32 %v2523, %v2976
      %v3023 = vadd.f32 %v2528, %v2981
      %v3024 = vadd.f32 %v2531, %v2984
      %v3025 = vadd.f32 %v2536, %v2989
      %v3026 = vadd.f32 %v2539, %v2992
      %v3027 = vld [vmem:[%s1378] sm:$0xf]
      %v3028 = vld [vmem:[%s1378 + $0x4] sm:$0xf]
      %v3029 = vld [vmem:[%s1378 + $0xc] sm:$0xf]
      %v3030 = vld [vmem:[%s1378 + $0x10] sm:$0xf]
      %v3031 = vld [vmem:[%s1378 + $0x18] sm:$0xf]
      %v3032 = vld [vmem:[%s1378 + $0x1c] sm:$0xf]
      %v3033 = vld [vmem:[%s1378 + $0x24] sm:$0xf]
      %v3034 = vld [vmem:[%s1378 + $0x28] sm:$0xf]
      %v3035 = vld [vmem:[%s1378 + $0x30] sm:$0xf]
      %v3036 = vld [vmem:[%s1378 + $0x34] sm:$0xf]
      %v3037 = vld [vmem:[%s1378 + $0x3c] sm:$0xf]
      %v3038 = vld [vmem:[%s1378 + $0x40] sm:$0xf]
      %v3039 = vld [vmem:[%s1378 + $0x48] sm:$0xf]
      %v3040 = vld [vmem:[%s1378 + $0x4c] sm:$0xf]
      %v3041 = vld [vmem:[%s1378 + $0x54] sm:$0xf]
      %v3042 = vld [vmem:[%s1378 + $0x58] sm:$0xf]
      %v3043 = vld [vmem:[%s1378 + $0x60] sm:$0xf]
      %v3044 = vld [vmem:[%s1378 + $0x64] sm:$0xf]
      %v3045 = vld [vmem:[%s1378 + $0x6c] sm:$0xf]
      %v3046 = vld [vmem:[%s1378 + $0x70] sm:$0xf]
      %v3047 = vld [vmem:[%s1378 + $0x78] sm:$0xf]
      %v3048 = vld [vmem:[%s1378 + $0x7c] sm:$0xf]
      %v3049 = vld [vmem:[%s1378 + $0x84] sm:$0xf]
      %v3050 = vld [vmem:[%s1378 + $0x88] sm:$0xf]
      %v3051 = vld [vmem:[%s1378 + $0x90] sm:$0xf]
      %v3052 = vld [vmem:[%s1378 + $0x94] sm:$0xf]
      %v3053 = vld [vmem:[%s1378 + $0x9c] sm:$0xf]
      %v3054 = vld [vmem:[%s1378 + $0xa0] sm:$0xf]
      %v3055 = vld [vmem:[%s1378 + $0xa8] sm:$0xf]
      %v3056 = vld [vmem:[%s1378 + $0xac] sm:$0xf]
      %v3057 = vld [vmem:[%s1378 + $0xb4] sm:$0xf]
      %v3058 = vld [vmem:[%s1378 + $0xb8] sm:$0xf]
      %s3059 = scalar_lea.vmem %s4, 192
      %v3060 = vld [vmem:[%s3059] sm:$0xf]
      %v3061 = vld [vmem:[%s3059 + $0x4] sm:$0xf]
      %v3062 = vld [vmem:[%s3059 + $0x8] sm:$0xf]
      %v3063 = vld [vmem:[%s3059 + $0xc] sm:$0xf]
      %v3064 = vld [vmem:[%s3059 + $0x10] sm:$0xf]
      %v3065 = vld [vmem:[%s3059 + $0x14] sm:$0xf]
      %v3066 = vld [vmem:[%s3059 + $0x18] sm:$0xf]
      %v3067 = vld [vmem:[%s3059 + $0x1c] sm:$0xf]
      %v3068 = vld [vmem:[%s3059 + $0x20] sm:$0xf]
      %v3069 = vld [vmem:[%s3059 + $0x24] sm:$0xf]
      %v3070 = vld [vmem:[%s3059 + $0x28] sm:$0xf]
      %v3071 = vld [vmem:[%s3059 + $0x2c] sm:$0xf]
      %v3072 = vld [vmem:[%s3059 + $0x30] sm:$0xf]
      %v3073 = vld [vmem:[%s3059 + $0x34] sm:$0xf]
      %v3074 = vld [vmem:[%s3059 + $0x38] sm:$0xf]
      %v3075 = vld [vmem:[%s3059 + $0x3c] sm:$0xf]
      %v3108 = vunpack.c.l.b16 %v3027
      %v3109 = vunpack.c.l.b16 %v3028
      %v3110 = vunpack.c.l.b16 %v3029
      %v3111 = vunpack.c.l.b16 %v3030
      %v3112 = vunpack.c.l.b16 %v3031
      %v3113 = vunpack.c.l.b16 %v3032
      %v3114 = vunpack.c.l.b16 %v3033
      %v3115 = vunpack.c.l.b16 %v3034
      %v3116 = vunpack.c.l.b16 %v3035
      %v3117 = vunpack.c.l.b16 %v3036
      %v3118 = vunpack.c.l.b16 %v3037
      %v3119 = vunpack.c.l.b16 %v3038
      %v3120 = vunpack.c.l.b16 %v3039
      %v3121 = vunpack.c.l.b16 %v3040
      %v3122 = vunpack.c.l.b16 %v3041
      %v3123 = vunpack.c.l.b16 %v3042
      %v3124 = vunpack.c.l.b16 %v3043
      %v3125 = vunpack.c.l.b16 %v3044
      %v3126 = vunpack.c.l.b16 %v3045
      %v3127 = vunpack.c.l.b16 %v3046
      %v3128 = vunpack.c.l.b16 %v3047
      %v3129 = vunpack.c.l.b16 %v3048
      %v3130 = vunpack.c.l.b16 %v3049
      %v3131 = vunpack.c.l.b16 %v3050
      %v3132 = vunpack.c.l.b16 %v3051
      %v3133 = vunpack.c.l.b16 %v3052
      %v3134 = vunpack.c.l.b16 %v3053
      %v3135 = vunpack.c.l.b16 %v3054
      %v3136 = vunpack.c.l.b16 %v3055
      %v3137 = vunpack.c.l.b16 %v3056
      %v3138 = vunpack.c.l.b16 %v3057
      %v3139 = vunpack.c.l.b16 %v3058
      %v3140 = vpack.c.b16 %v3109, %v3108
      %v3141 = vpack.c.b16 %v3111, %v3110
      %v3142 = vpack.c.b16 %v3113, %v3112
      %v3143 = vpack.c.b16 %v3115, %v3114
      %v3144 = vpack.c.b16 %v3117, %v3116
      %v3145 = vpack.c.b16 %v3119, %v3118
      %v3146 = vpack.c.b16 %v3121, %v3120
      %v3147 = vpack.c.b16 %v3123, %v3122
      %v3148 = vpack.c.b16 %v3125, %v3124
      %v3149 = vpack.c.b16 %v3127, %v3126
      %v3150 = vpack.c.b16 %v3129, %v3128
      %v3151 = vpack.c.b16 %v3131, %v3130
      %v3152 = vpack.c.b16 %v3133, %v3132
      %v3153 = vpack.c.b16 %v3135, %v3134
      %v3154 = vpack.c.b16 %v3137, %v3136
      %v3155 = vpack.c.b16 %v3139, %v3138
      %v3188 = vunpack.c.l.b16 %v3060
      %v3189 = vunpack.c.l.b16 %v3061
      %v3190 = vunpack.c.l.b16 %v3062
      %v3191 = vunpack.c.l.b16 %v3063
      %v3192 = vunpack.c.l.b16 %v3064
      %v3193 = vunpack.c.l.b16 %v3065
      %v3194 = vunpack.c.l.b16 %v3066
      %v3195 = vunpack.c.l.b16 %v3067
      %v3196 = vunpack.c.l.b16 %v3068
      %v3197 = vunpack.c.l.b16 %v3069
      %v3198 = vunpack.c.l.b16 %v3070
      %v3199 = vunpack.c.l.b16 %v3071
      %v3200 = vunpack.c.l.b16 %v3072
      %v3201 = vunpack.c.l.b16 %v3073
      %v3202 = vunpack.c.l.b16 %v3074
      %v3203 = vunpack.c.l.b16 %v3075
      %v3204 = vpack.c.b16 %v3189, %v3188
      %v3205 = vpack.c.b16 %v3191, %v3190
      %v3206 = vpack.c.b16 %v3193, %v3192
      %v3207 = vpack.c.b16 %v3195, %v3194
      %v3208 = vpack.c.b16 %v3197, %v3196
      %v3209 = vpack.c.b16 %v3199, %v3198
      %v3210 = vpack.c.b16 %v3201, %v3200
      %v3211 = vpack.c.b16 %v3203, %v3202
      %3220 = vmatprep.subr.bf16.mxu0 0
      %3221 = vmatpush1.bf16.msra.mxu0 %v3204
      %3222 = vmatprep.subr.bf16.mxu0 0
      %3223 = vmatpush1.bf16.msra.mxu0 %v3205
      %3224 = vmatprep.subr.bf16.mxu0 0
      %3225 = vmatpush1.bf16.msra.mxu0 %v3206
      %3226 = vmatprep.subr.bf16.mxu0 0
      %3227 = vmatpush1.bf16.msra.mxu0 %v3207
      %3228 = vmatprep.subr.bf16.mxu0 0
      %3229 = vmatpush1.bf16.msra.mxu0 %v3208
      %3230 = vmatprep.subr.bf16.mxu0 0
      %3231 = vmatpush1.bf16.msra.mxu0 %v3209
      %3232 = vmatprep.subr.bf16.mxu0 0
      %3233 = vmatpush1.bf16.msra.mxu0 %v3210
      %3234 = vmatprep.subr.bf16.mxu0 0
      %3235 = vmatpush1.bf16.msra.mxu0 %v3211
      %3236 = vmatprep.subr.bf16.mxu0 0
      %3237 = vmatpush1.bf16.msra.mxu0 0
      %3238 = vmatprep.subr.bf16.mxu0 0
      %3239 = vmatpush1.bf16.msra.mxu0 0
      %3240 = vmatprep.subr.bf16.mxu0 0
      %3241 = vmatpush1.bf16.msra.mxu0 0
      %3242 = vmatprep.subr.bf16.mxu0 0
      %3243 = vmatpush1.bf16.msra.mxu0 0
      %3244 = vmatprep.subr.bf16.mxu0 0
      %3245 = vmatpush1.bf16.msra.mxu0 0
      %3246 = vmatprep.subr.bf16.mxu0 0
      %3247 = vmatpush1.bf16.msra.mxu0 0
      %3248 = vmatprep.subr.bf16.mxu0 0
      %3249 = vmatpush1.bf16.msra.mxu0 0
      %3250 = vmatprep.subr.bf16.mxu0 0
      %3251 = vmatpush1.bf16.msra.mxu0 0
      %3252 = vmatprep.mubr.bf16.mxu0 0
      %3253 = vmatmul.mubr.bf16.gmra.mrb[0].mxu0 %v3140
      %v3254 = vpop.f32.mrb[0].mxu0
      %v3255 = vadd.f32 0.0, %v3254
      %v3256 = vpop.f32.mrb[0].mxu0
      %v3257 = vpop.f32.mrb[0].mxu0
      %v3258 = vadd.f32 0.0, %v3257
      %v3259 = vpop.f32.mrb[0].mxu0
      %3260 = vmatprep.mubr.bf16.mxu0 0
      %3261 = vmatmul.mubr.bf16.gmra.mrb[0].mxu0 %v3141
      %v3262 = vpop.f32.mrb[0].mxu0
      %v3263 = vadd.f32 0.0, %v3262
      %v3264 = vpop.f32.mrb[0].mxu0
      %v3265 = vpop.f32.mrb[0].mxu0
      %v3266 = vadd.f32 0.0, %v3265
      %v3267 = vpop.f32.mrb[0].mxu0
      %3268 = vmatprep.mubr.bf16.mxu0 0
      %3269 = vmatmul.mubr.bf16.gmra.mrb[0].mxu0 %v3142
      %v3270 = vpop.f32.mrb[0].mxu0
      %v3271 = vadd.f32 0.0, %v3270
      %v3272 = vpop.f32.mrb[0].mxu0
      %v3273 = vpop.f32.mrb[0].mxu0
      %v3274 = vadd.f32 0.0, %v3273
      %v3275 = vpop.f32.mrb[0].mxu0
      %3276 = vmatprep.mubr.bf16.mxu0 0
      %3277 = vmatmul.mubr.bf16.gmra.mrb[0].mxu0 %v3143
      %v3278 = vpop.f32.mrb[0].mxu0
      %v3279 = vadd.f32 0.0, %v3278
      %v3280 = vpop.f32.mrb[0].mxu0
      %v3281 = vpop.f32.mrb[0].mxu0
      %v3282 = vadd.f32 0.0, %v3281
      %v3283 = vpop.f32.mrb[0].mxu0
      %3284 = vmatprep.mubr.bf16.mxu0 0
      %3285 = vmatmul.mubr.bf16.gmra.mrb[0].mxu0 %v3144
      %v3286 = vpop.f32.mrb[0].mxu0
      %v3287 = vadd.f32 0.0, %v3286
      %v3288 = vpop.f32.mrb[0].mxu0
      %v3289 = vpop.f32.mrb[0].mxu0
      %v3290 = vadd.f32 0.0, %v3289
      %v3291 = vpop.f32.mrb[0].mxu0
      %3292 = vmatprep.mubr.bf16.mxu0 0
      %3293 = vmatmul.mubr.bf16.gmra.mrb[0].mxu0 %v3145
      %v3294 = vpop.f32.mrb[0].mxu0
      %v3295 = vadd.f32 0.0, %v3294
      %v3296 = vpop.f32.mrb[0].mxu0
      %v3297 = vpop.f32.mrb[0].mxu0
      %v3298 = vadd.f32 0.0, %v3297
      %v3299 = vpop.f32.mrb[0].mxu0
      %3300 = vmatprep.mubr.bf16.mxu0 0
      %3301 = vmatmul.mubr.bf16.gmra.mrb[0].mxu0 %v3146
      %v3302 = vpop.f32.mrb[0].mxu0
      %v3303 = vadd.f32 0.0, %v3302
      %v3304 = vpop.f32.mrb[0].mxu0
      %v3305 = vpop.f32.mrb[0].mxu0
      %v3306 = vadd.f32 0.0, %v3305
      %v3307 = vpop.f32.mrb[0].mxu0
      %3308 = vmatprep.mubr.bf16.mxu0 0
      %3309 = vmatmul.mubr.bf16.gmra.mrb[0].mxu0 %v3147
      %v3310 = vpop.f32.mrb[0].mxu0
      %v3311 = vadd.f32 0.0, %v3310
      %v3312 = vpop.f32.mrb[0].mxu0
      %v3313 = vpop.f32.mrb[0].mxu0
      %v3314 = vadd.f32 0.0, %v3313
      %v3315 = vpop.f32.mrb[0].mxu0
      %3316 = vmatprep.mubr.bf16.mxu0 0
      %3317 = vmatmul.mubr.bf16.gmra.mrb[0].mxu0 %v3148
      %v3318 = vpop.f32.mrb[0].mxu0
      %v3319 = vadd.f32 0.0, %v3318
      %v3320 = vpop.f32.mrb[0].mxu0
      %v3321 = vpop.f32.mrb[0].mxu0
      %v3322 = vadd.f32 0.0, %v3321
      %v3323 = vpop.f32.mrb[0].mxu0
      %3324 = vmatprep.mubr.bf16.mxu0 0
      %3325 = vmatmul.mubr.bf16.gmra.mrb[0].mxu0 %v3149
      %v3326 = vpop.f32.mrb[0].mxu0
      %v3327 = vadd.f32 0.0, %v3326
      %v3328 = vpop.f32.mrb[0].mxu0
      %v3329 = vpop.f32.mrb[0].mxu0
      %v3330 = vadd.f32 0.0, %v3329
      %v3331 = vpop.f32.mrb[0].mxu0
      %3332 = vmatprep.mubr.bf16.mxu0 0
      %3333 = vmatmul.mubr.bf16.gmra.mrb[0].mxu0 %v3150
      %v3334 = vpop.f32.mrb[0].mxu0
      %v3335 = vadd.f32 0.0, %v3334
      %v3336 = vpop.f32.mrb[0].mxu0
      %v3337 = vpop.f32.mrb[0].mxu0
      %v3338 = vadd.f32 0.0, %v3337
      %v3339 = vpop.f32.mrb[0].mxu0
      %3340 = vmatprep.mubr.bf16.mxu0 0
      %3341 = vmatmul.mubr.bf16.gmra.mrb[0].mxu0 %v3151
      %v3342 = vpop.f32.mrb[0].mxu0
      %v3343 = vadd.f32 0.0, %v3342
      %v3344 = vpop.f32.mrb[0].mxu0
      %v3345 = vpop.f32.mrb[0].mxu0
      %v3346 = vadd.f32 0.0, %v3345
      %v3347 = vpop.f32.mrb[0].mxu0
      %3348 = vmatprep.mubr.bf16.mxu0 0
      %3349 = vmatmul.mubr.bf16.gmra.mrb[0].mxu0 %v3152
      %v3350 = vpop.f32.mrb[0].mxu0
      %v3351 = vadd.f32 0.0, %v3350
      %v3352 = vpop.f32.mrb[0].mxu0
      %v3353 = vpop.f32.mrb[0].mxu0
      %v3354 = vadd.f32 0.0, %v3353
      %v3355 = vpop.f32.mrb[0].mxu0
      %3356 = vmatprep.mubr.bf16.mxu0 0
      %3357 = vmatmul.mubr.bf16.gmra.mrb[0].mxu0 %v3153
      %v3358 = vpop.f32.mrb[0].mxu0
      %v3359 = vadd.f32 0.0, %v3358
      %v3360 = vpop.f32.mrb[0].mxu0
      %v3361 = vpop.f32.mrb[0].mxu0
      %v3362 = vadd.f32 0.0, %v3361
      %v3363 = vpop.f32.mrb[0].mxu0
      %3364 = vmatprep.mubr.bf16.mxu0 0
      %3365 = vmatmul.mubr.bf16.gmra.mrb[0].mxu0 %v3154
      %v3366 = vpop.f32.mrb[0].mxu0
      %v3367 = vadd.f32 0.0, %v3366
      %v3368 = vpop.f32.mrb[0].mxu0
      %v3369 = vpop.f32.mrb[0].mxu0
      %v3370 = vadd.f32 0.0, %v3369
      %v3371 = vpop.f32.mrb[0].mxu0
      %3372 = vmatprep.mubr.bf16.mxu0 0
      %3373 = vmatmul.mubr.bf16.gmra.mrb[0].mxu0 %v3155
      %v3374 = vpop.f32.mrb[0].mxu0
      %v3375 = vadd.f32 0.0, %v3374
      %v3376 = vpop.f32.mrb[0].mxu0
      %v3377 = vpop.f32.mrb[0].mxu0
      %v3378 = vadd.f32 0.0, %v3377
      %v3379 = vpop.f32.mrb[0].mxu0
      %3380 = vdwg.mxu0
      %v3381 = vadd.f32 %v2995, %v3255
      %v3382 = vadd.f32 %v2996, %v3258
      %v3383 = vadd.f32 %v2997, %v3263
      %v3384 = vadd.f32 %v2998, %v3266
      %v3385 = vadd.f32 %v2999, %v3271
      %v3386 = vadd.f32 %v3000, %v3274
      %v3387 = vadd.f32 %v3001, %v3279
      %v3388 = vadd.f32 %v3002, %v3282
      %v3389 = vadd.f32 %v3003, %v3287
      %v3390 = vadd.f32 %v3004, %v3290
      %v3391 = vadd.f32 %v3005, %v3295
      %v3392 = vadd.f32 %v3006, %v3298
      %v3393 = vadd.f32 %v3007, %v3303
      %v3394 = vadd.f32 %v3008, %v3306
      %v3395 = vadd.f32 %v3009, %v3311
      %v3396 = vadd.f32 %v3010, %v3314
      %v3397 = vadd.f32 %v3011, %v3319
      %v3398 = vadd.f32 %v3012, %v3322
      %v3399 = vadd.f32 %v3013, %v3327
      %v3400 = vadd.f32 %v3014, %v3330
      %v3401 = vadd.f32 %v3015, %v3335
      %v3402 = vadd.f32 %v3016, %v3338
      %v3403 = vadd.f32 %v3017, %v3343
      %v3404 = vadd.f32 %v3018, %v3346
      %v3405 = vadd.f32 %v3019, %v3351
      %v3406 = vadd.f32 %v3020, %v3354
      %v3407 = vadd.f32 %v3021, %v3359
      %v3408 = vadd.f32 %v3022, %v3362
      %v3409 = vadd.f32 %v3023, %v3367
      %v3410 = vadd.f32 %v3024, %v3370
      %v3411 = vadd.f32 %v3025, %v3375
      %v3412 = vadd.f32 %v3026, %v3378
      %v3413 = vld [vmem:[%s1378] sm:$0xf]
      %v3414 = vld [vmem:[%s1378 + $0x4] sm:$0xf]
      %v3415 = vld [vmem:[%s1378 + $0x8] sm:$0x1]
      %v3416 = vld [vmem:[%s1378 + $0xc] sm:$0xf]
      %v3417 = vld [vmem:[%s1378 + $0x10] sm:$0xf]
      %v3418 = vld [vmem:[%s1378 + $0x14] sm:$0x1]
      %v3419 = vld [vmem:[%s1378 + $0x18] sm:$0xf]
      %v3420 = vld [vmem:[%s1378 + $0x1c] sm:$0xf]
      %v3421 = vld [vmem:[%s1378 + $0x20] sm:$0x1]
      %v3422 = vld [vmem:[%s1378 + $0x24] sm:$0xf]
      %v3423 = vld [vmem:[%s1378 + $0x28] sm:$0xf]
      %v3424 = vld [vmem:[%s1378 + $0x2c] sm:$0x1]
      %v3425 = vld [vmem:[%s1378 + $0x30] sm:$0xf]
      %v3426 = vld [vmem:[%s1378 + $0x34] sm:$0xf]
      %v3427 = vld [vmem:[%s1378 + $0x38] sm:$0x1]
      %v3428 = vld [vmem:[%s1378 + $0x3c] sm:$0xf]
      %v3429 = vld [vmem:[%s1378 + $0x40] sm:$0xf]
      %v3430 = vld [vmem:[%s1378 + $0x44] sm:$0x1]
      %v3431 = vld [vmem:[%s1378 + $0x48] sm:$0xf]
      %v3432 = vld [vmem:[%s1378 + $0x4c] sm:$0xf]
      %v3433 = vld [vmem:[%s1378 + $0x50] sm:$0x1]
      %v3434 = vld [vmem:[%s1378 + $0x54] sm:$0xf]
      %v3435 = vld [vmem:[%s1378 + $0x58] sm:$0xf]
      %v3436 = vld [vmem:[%s1378 + $0x5c] sm:$0x1]
      %v3437 = vld [vmem:[%s1378 + $0x60] sm:$0xf]
      %v3438 = vld [vmem:[%s1378 + $0x64] sm:$0xf]
      %v3439 = vld [vmem:[%s1378 + $0x68] sm:$0x1]
      %v3440 = vld [vmem:[%s1378 + $0x6c] sm:$0xf]
      %v3441 = vld [vmem:[%s1378 + $0x70] sm:$0xf]
      %v3442 = vld [vmem:[%s1378 + $0x74] sm:$0x1]
      %v3443 = vld [vmem:[%s1378 + $0x78] sm:$0xf]
      %v3444 = vld [vmem:[%s1378 + $0x7c] sm:$0xf]
      %v3445 = vld [vmem:[%s1378 + $0x80] sm:$0x1]
      %v3446 = vld [vmem:[%s1378 + $0x84] sm:$0xf]
      %v3447 = vld [vmem:[%s1378 + $0x88] sm:$0xf]
      %v3448 = vld [vmem:[%s1378 + $0x8c] sm:$0x1]
      %v3449 = vld [vmem:[%s1378 + $0x90] sm:$0xf]
      %v3450 = vld [vmem:[%s1378 + $0x94] sm:$0xf]
      %v3451 = vld [vmem:[%s1378 + $0x98] sm:$0x1]
      %v3452 = vld [vmem:[%s1378 + $0x9c] sm:$0xf]
      %v3453 = vld [vmem:[%s1378 + $0xa0] sm:$0xf]
      %v3454 = vld [vmem:[%s1378 + $0xa4] sm:$0x1]
      %v3455 = vld [vmem:[%s1378 + $0xa8] sm:$0xf]
      %v3456 = vld [vmem:[%s1378 + $0xac] sm:$0xf]
      %v3457 = vld [vmem:[%s1378 + $0xb0] sm:$0x1]
      %v3458 = vld [vmem:[%s1378 + $0xb4] sm:$0xf]
      %v3459 = vld [vmem:[%s1378 + $0xb8] sm:$0xf]
      %v3460 = vld [vmem:[%s1378 + $0xbc] sm:$0x1]
      %v3462 = vshrl.u32 %v3413, 16
      %v3464 = vrot.slane %v3462, 4
      %v3465 = vshll.u32 %v3413, 16
      %v3467 = vrot.slane %v3465, 5
      %v3468 = vor.u32 %v3464, %v3467
      %v3469 = vrot.slane %v3468, 4
      %v3471 = vshll.u32 %v3414, 16
      %v3473 = vrot.slane %v3471, 5
      %v3474 = vsel %vm1562, %v3469, %v3473
      %v3475 = vshrl.u32 %v3414, 16
      %v3477 = vrot.slane %v3475, 4
      %v3478 = vor.u32 %v3477, %v3473
      %v3479 = vrot.slane %v3478, 4
      %v3481 = vshll.u32 %v3415, 16
      %v3483 = vrot.slane %v3481, 5
      %v3484 = vsel %vm1562, %v3479, %v3483
      %v3486 = vshrl.u32 %v3416, 16
      %v3488 = vrot.slane %v3486, 4
      %v3489 = vshll.u32 %v3416, 16
      %v3491 = vrot.slane %v3489, 5
      %v3492 = vor.u32 %v3488, %v3491
      %v3493 = vrot.slane %v3492, 4
      %v3495 = vshll.u32 %v3417, 16
      %v3497 = vrot.slane %v3495, 5
      %v3498 = vsel %vm1562, %v3493, %v3497
      %v3499 = vshrl.u32 %v3417, 16
      %v3501 = vrot.slane %v3499, 4
      %v3502 = vor.u32 %v3501, %v3497
      %v3503 = vrot.slane %v3502, 4
      %v3505 = vshll.u32 %v3418, 16
      %v3507 = vrot.slane %v3505, 5
      %v3508 = vsel %vm1562, %v3503, %v3507
      %v3510 = vshrl.u32 %v3419, 16
      %v3512 = vrot.slane %v3510, 4
      %v3513 = vshll.u32 %v3419, 16
      %v3515 = vrot.slane %v3513, 5
      %v3516 = vor.u32 %v3512, %v3515
      %v3517 = vrot.slane %v3516, 4
      %v3519 = vshll.u32 %v3420, 16
      %v3521 = vrot.slane %v3519, 5
      %v3522 = vsel %vm1562, %v3517, %v3521
      %v3523 = vshrl.u32 %v3420, 16
      %v3525 = vrot.slane %v3523, 4
      %v3526 = vor.u32 %v3525, %v3521
      %v3527 = vrot.slane %v3526, 4
      %v3529 = vshll.u32 %v3421, 16
      %v3531 = vrot.slane %v3529, 5
      %v3532 = vsel %vm1562, %v3527, %v3531
      %v3534 = vshrl.u32 %v3422, 16
      %v3536 = vrot.slane %v3534, 4
      %v3537 = vshll.u32 %v3422, 16
      %v3539 = vrot.slane %v3537, 5
      %v3540 = vor.u32 %v3536, %v3539
      %v3541 = vrot.slane %v3540, 4
      %v3543 = vshll.u32 %v3423, 16
      %v3545 = vrot.slane %v3543, 5
      %v3546 = vsel %vm1562, %v3541, %v3545
      %v3547 = vshrl.u32 %v3423, 16
      %v3549 = vrot.slane %v3547, 4
      %v3550 = vor.u32 %v3549, %v3545
      %v3551 = vrot.slane %v3550, 4
      %v3553 = vshll.u32 %v3424, 16
      %v3555 = vrot.slane %v3553, 5
      %v3556 = vsel %vm1562, %v3551, %v3555
      %v3558 = vshrl.u32 %v3425, 16
      %v3560 = vrot.slane %v3558, 4
      %v3561 = vshll.u32 %v3425, 16
      %v3563 = vrot.slane %v3561, 5
      %v3564 = vor.u32 %v3560, %v3563
      %v3565 = vrot.slane %v3564, 4
      %v3567 = vshll.u32 %v3426, 16
      %v3569 = vrot.slane %v3567, 5
      %v3570 = vsel %vm1562, %v3565, %v3569
      %v3571 = vshrl.u32 %v3426, 16
      %v3573 = vrot.slane %v3571, 4
      %v3574 = vor.u32 %v3573, %v3569
      %v3575 = vrot.slane %v3574, 4
      %v3577 = vshll.u32 %v3427, 16
      %v3579 = vrot.slane %v3577, 5
      %v3580 = vsel %vm1562, %v3575, %v3579
      %v3582 = vshrl.u32 %v3428, 16
      %v3584 = vrot.slane %v3582, 4
      %v3585 = vshll.u32 %v3428, 16
      %v3587 = vrot.slane %v3585, 5
      %v3588 = vor.u32 %v3584, %v3587
      %v3589 = vrot.slane %v3588, 4
      %v3591 = vshll.u32 %v3429, 16
      %v3593 = vrot.slane %v3591, 5
      %v3594 = vsel %vm1562, %v3589, %v3593
      %v3595 = vshrl.u32 %v3429, 16
      %v3597 = vrot.slane %v3595, 4
      %v3598 = vor.u32 %v3597, %v3593
      %v3599 = vrot.slane %v3598, 4
      %v3601 = vshll.u32 %v3430, 16
      %v3603 = vrot.slane %v3601, 5
      %v3604 = vsel %vm1562, %v3599, %v3603
      %v3606 = vshrl.u32 %v3431, 16
      %v3608 = vrot.slane %v3606, 4
      %v3609 = vshll.u32 %v3431, 16
      %v3611 = vrot.slane %v3609, 5
      %v3612 = vor.u32 %v3608, %v3611
      %v3613 = vrot.slane %v3612, 4
      %v3615 = vshll.u32 %v3432, 16
      %v3617 = vrot.slane %v3615, 5
      %v3618 = vsel %vm1562, %v3613, %v3617
      %v3619 = vshrl.u32 %v3432, 16
      %v3621 = vrot.slane %v3619, 4
      %v3622 = vor.u32 %v3621, %v3617
      %v3623 = vrot.slane %v3622, 4
      %v3625 = vshll.u32 %v3433, 16
      %v3627 = vrot.slane %v3625, 5
      %v3628 = vsel %vm1562, %v3623, %v3627
      %v3630 = vshrl.u32 %v3434, 16
      %v3632 = vrot.slane %v3630, 4
      %v3633 = vshll.u32 %v3434, 16
      %v3635 = vrot.slane %v3633, 5
      %v3636 = vor.u32 %v3632, %v3635
      %v3637 = vrot.slane %v3636, 4
      %v3639 = vshll.u32 %v3435, 16
      %v3641 = vrot.slane %v3639, 5
      %v3642 = vsel %vm1562, %v3637, %v3641
      %v3643 = vshrl.u32 %v3435, 16
      %v3645 = vrot.slane %v3643, 4
      %v3646 = vor.u32 %v3645, %v3641
      %v3647 = vrot.slane %v3646, 4
      %v3649 = vshll.u32 %v3436, 16
      %v3651 = vrot.slane %v3649, 5
      %v3652 = vsel %vm1562, %v3647, %v3651
      %v3654 = vshrl.u32 %v3437, 16
      %v3656 = vrot.slane %v3654, 4
      %v3657 = vshll.u32 %v3437, 16
      %v3659 = vrot.slane %v3657, 5
      %v3660 = vor.u32 %v3656, %v3659
      %v3661 = vrot.slane %v3660, 4
      %v3663 = vshll.u32 %v3438, 16
      %v3665 = vrot.slane %v3663, 5
      %v3666 = vsel %vm1562, %v3661, %v3665
      %v3667 = vshrl.u32 %v3438, 16
      %v3669 = vrot.slane %v3667, 4
      %v3670 = vor.u32 %v3669, %v3665
      %v3671 = vrot.slane %v3670, 4
      %v3673 = vshll.u32 %v3439, 16
      %v3675 = vrot.slane %v3673, 5
      %v3676 = vsel %vm1562, %v3671, %v3675
      %v3678 = vshrl.u32 %v3440, 16
      %v3680 = vrot.slane %v3678, 4
      %v3681 = vshll.u32 %v3440, 16
      %v3683 = vrot.slane %v3681, 5
      %v3684 = vor.u32 %v3680, %v3683
      %v3685 = vrot.slane %v3684, 4
      %v3687 = vshll.u32 %v3441, 16
      %v3689 = vrot.slane %v3687, 5
      %v3690 = vsel %vm1562, %v3685, %v3689
      %v3691 = vshrl.u32 %v3441, 16
      %v3693 = vrot.slane %v3691, 4
      %v3694 = vor.u32 %v3693, %v3689
      %v3695 = vrot.slane %v3694, 4
      %v3697 = vshll.u32 %v3442, 16
      %v3699 = vrot.slane %v3697, 5
      %v3700 = vsel %vm1562, %v3695, %v3699
      %v3702 = vshrl.u32 %v3443, 16
      %v3704 = vrot.slane %v3702, 4
      %v3705 = vshll.u32 %v3443, 16
      %v3707 = vrot.slane %v3705, 5
      %v3708 = vor.u32 %v3704, %v3707
      %v3709 = vrot.slane %v3708, 4
      %v3711 = vshll.u32 %v3444, 16
      %v3713 = vrot.slane %v3711, 5
      %v3714 = vsel %vm1562, %v3709, %v3713
      %v3715 = vshrl.u32 %v3444, 16
      %v3717 = vrot.slane %v3715, 4
      %v3718 = vor.u32 %v3717, %v3713
      %v3719 = vrot.slane %v3718, 4
      %v3721 = vshll.u32 %v3445, 16
      %v3723 = vrot.slane %v3721, 5
      %v3724 = vsel %vm1562, %v3719, %v3723
      %v3726 = vshrl.u32 %v3446, 16
      %v3728 = vrot.slane %v3726, 4
      %v3729 = vshll.u32 %v3446, 16
      %v3731 = vrot.slane %v3729, 5
      %v3732 = vor.u32 %v3728, %v3731
      %v3733 = vrot.slane %v3732, 4
      %v3735 = vshll.u32 %v3447, 16
      %v3737 = vrot.slane %v3735, 5
      %v3738 = vsel %vm1562, %v3733, %v3737
      %v3739 = vshrl.u32 %v3447, 16
      %v3741 = vrot.slane %v3739, 4
      %v3742 = vor.u32 %v3741, %v3737
      %v3743 = vrot.slane %v3742, 4
      %v3745 = vshll.u32 %v3448, 16
      %v3747 = vrot.slane %v3745, 5
      %v3748 = vsel %vm1562, %v3743, %v3747
      %v3750 = vshrl.u32 %v3449, 16
      %v3752 = vrot.slane %v3750, 4
      %v3753 = vshll.u32 %v3449, 16
      %v3755 = vrot.slane %v3753, 5
      %v3756 = vor.u32 %v3752, %v3755
      %v3757 = vrot.slane %v3756, 4
      %v3759 = vshll.u32 %v3450, 16
      %v3761 = vrot.slane %v3759, 5
      %v3762 = vsel %vm1562, %v3757, %v3761
      %v3763 = vshrl.u32 %v3450, 16
      %v3765 = vrot.slane %v3763, 4
      %v3766 = vor.u32 %v3765, %v3761
      %v3767 = vrot.slane %v3766, 4
      %v3769 = vshll.u32 %v3451, 16
      %v3771 = vrot.slane %v3769, 5
      %v3772 = vsel %vm1562, %v3767, %v3771
      %v3774 = vshrl.u32 %v3452, 16
      %v3776 = vrot.slane %v3774, 4
      %v3777 = vshll.u32 %v3452, 16
      %v3779 = vrot.slane %v3777, 5
      %v3780 = vor.u32 %v3776, %v3779
      %v3781 = vrot.slane %v3780, 4
      %v3783 = vshll.u32 %v3453, 16
      %v3785 = vrot.slane %v3783, 5
      %v3786 = vsel %vm1562, %v3781, %v3785
      %v3787 = vshrl.u32 %v3453, 16
      %v3789 = vrot.slane %v3787, 4
      %v3790 = vor.u32 %v3789, %v3785
      %v3791 = vrot.slane %v3790, 4
      %v3793 = vshll.u32 %v3454, 16
      %v3795 = vrot.slane %v3793, 5
      %v3796 = vsel %vm1562, %v3791, %v3795
      %v3798 = vshrl.u32 %v3455, 16
      %v3800 = vrot.slane %v3798, 4
      %v3801 = vshll.u32 %v3455, 16
      %v3803 = vrot.slane %v3801, 5
      %v3804 = vor.u32 %v3800, %v3803
      %v3805 = vrot.slane %v3804, 4
      %v3807 = vshll.u32 %v3456, 16
      %v3809 = vrot.slane %v3807, 5
      %v3810 = vsel %vm1562, %v3805, %v3809
      %v3811 = vshrl.u32 %v3456, 16
      %v3813 = vrot.slane %v3811, 4
      %v3814 = vor.u32 %v3813, %v3809
      %v3815 = vrot.slane %v3814, 4
      %v3817 = vshll.u32 %v3457, 16
      %v3819 = vrot.slane %v3817, 5
      %v3820 = vsel %vm1562, %v3815, %v3819
      %v3822 = vshrl.u32 %v3458, 16
      %v3824 = vrot.slane %v3822, 4
      %v3825 = vshll.u32 %v3458, 16
      %v3827 = vrot.slane %v3825, 5
      %v3828 = vor.u32 %v3824, %v3827
      %v3829 = vrot.slane %v3828, 4
      %v3831 = vshll.u32 %v3459, 16
      %v3833 = vrot.slane %v3831, 5
      %v3834 = vsel %vm1562, %v3829, %v3833
      %v3835 = vshrl.u32 %v3459, 16
      %v3837 = vrot.slane %v3835, 4
      %v3838 = vor.u32 %v3837, %v3833
      %v3839 = vrot.slane %v3838, 4
      %v3841 = vshll.u32 %v3460, 16
      %v3843 = vrot.slane %v3841, 5
      %v3844 = vsel %vm1562, %v3839, %v3843
      %s3845 = scalar_lea.vmem %s4, 256
      %v3846 = vld [vmem:[%s3845] sm:$0xf]
      %v3847 = vld [vmem:[%s3845 + $0x4] sm:$0xf]
      %v3848 = vld [vmem:[%s3845 + $0x8] sm:$0xf]
      %v3849 = vld [vmem:[%s3845 + $0xc] sm:$0xf]
      %v3850 = vld [vmem:[%s3845 + $0x10] sm:$0xf]
      %v3851 = vld [vmem:[%s3845 + $0x14] sm:$0xf]
      %v3852 = vld [vmem:[%s3845 + $0x18] sm:$0xf]
      %v3853 = vld [vmem:[%s3845 + $0x1c] sm:$0xf]
      %v3854 = vld [vmem:[%s3845 + $0x20] sm:$0xf]
      %v3855 = vld [vmem:[%s3845 + $0x24] sm:$0xf]
      %v3856 = vld [vmem:[%s3845 + $0x28] sm:$0xf]
      %v3857 = vld [vmem:[%s3845 + $0x2c] sm:$0xf]
      %v3858 = vld [vmem:[%s3845 + $0x30] sm:$0xf]
      %v3859 = vld [vmem:[%s3845 + $0x34] sm:$0xf]
      %v3860 = vld [vmem:[%s3845 + $0x38] sm:$0xf]
      %v3861 = vld [vmem:[%s3845 + $0x3c] sm:$0xf]
      %v3862 = vunpack.c.l.b16 %v3474
      %v3863 = vunpack.c.l.b16 %v3484
      %v3864 = vunpack.c.l.b16 %v3498
      %v3865 = vunpack.c.l.b16 %v3508
      %v3866 = vunpack.c.l.b16 %v3522
      %v3867 = vunpack.c.l.b16 %v3532
      %v3868 = vunpack.c.l.b16 %v3546
      %v3869 = vunpack.c.l.b16 %v3556
      %v3870 = vunpack.c.l.b16 %v3570
      %v3871 = vunpack.c.l.b16 %v3580
      %v3872 = vunpack.c.l.b16 %v3594
      %v3873 = vunpack.c.l.b16 %v3604
      %v3874 = vunpack.c.l.b16 %v3618
      %v3875 = vunpack.c.l.b16 %v3628
      %v3876 = vunpack.c.l.b16 %v3642
      %v3877 = vunpack.c.l.b16 %v3652
      %v3878 = vunpack.c.l.b16 %v3666
      %v3879 = vunpack.c.l.b16 %v3676
      %v3880 = vunpack.c.l.b16 %v3690
      %v3881 = vunpack.c.l.b16 %v3700
      %v3882 = vunpack.c.l.b16 %v3714
      %v3883 = vunpack.c.l.b16 %v3724
      %v3884 = vunpack.c.l.b16 %v3738
      %v3885 = vunpack.c.l.b16 %v3748
      %v3886 = vunpack.c.l.b16 %v3762
      %v3887 = vunpack.c.l.b16 %v3772
      %v3888 = vunpack.c.l.b16 %v3786
      %v3889 = vunpack.c.l.b16 %v3796
      %v3890 = vunpack.c.l.b16 %v3810
      %v3891 = vunpack.c.l.b16 %v3820
      %v3892 = vunpack.c.l.b16 %v3834
      %v3893 = vunpack.c.l.b16 %v3844
      %v3894 = vpack.c.b16 %v3863, %v3862
      %v3895 = vpack.c.b16 %v3865, %v3864
      %v3896 = vpack.c.b16 %v3867, %v3866
      %v3897 = vpack.c.b16 %v3869, %v3868
      %v3898 = vpack.c.b16 %v3871, %v3870
      %v3899 = vpack.c.b16 %v3873, %v3872
      %v3900 = vpack.c.b16 %v3875, %v3874
      %v3901 = vpack.c.b16 %v3877, %v3876
      %v3902 = vpack.c.b16 %v3879, %v3878
      %v3903 = vpack.c.b16 %v3881, %v3880
      %v3904 = vpack.c.b16 %v3883, %v3882
      %v3905 = vpack.c.b16 %v3885, %v3884
      %v3906 = vpack.c.b16 %v3887, %v3886
      %v3907 = vpack.c.b16 %v3889, %v3888
      %v3908 = vpack.c.b16 %v3891, %v3890
      %v3909 = vpack.c.b16 %v3893, %v3892
      %v3942 = vunpack.c.l.b16 %v3846
      %v3943 = vunpack.c.l.b16 %v3847
      %v3944 = vunpack.c.l.b16 %v3848
      %v3945 = vunpack.c.l.b16 %v3849
      %v3946 = vunpack.c.l.b16 %v3850
      %v3947 = vunpack.c.l.b16 %v3851
      %v3948 = vunpack.c.l.b16 %v3852
      %v3949 = vunpack.c.l.b16 %v3853
      %v3950 = vunpack.c.l.b16 %v3854
      %v3951 = vunpack.c.l.b16 %v3855
      %v3952 = vunpack.c.l.b16 %v3856
      %v3953 = vunpack.c.l.b16 %v3857
      %v3954 = vunpack.c.l.b16 %v3858
      %v3955 = vunpack.c.l.b16 %v3859
      %v3956 = vunpack.c.l.b16 %v3860
      %v3957 = vunpack.c.l.b16 %v3861
      %v3958 = vpack.c.b16 %v3943, %v3942
      %v3959 = vpack.c.b16 %v3945, %v3944
      %v3960 = vpack.c.b16 %v3947, %v3946
      %v3961 = vpack.c.b16 %v3949, %v3948
      %v3962 = vpack.c.b16 %v3951, %v3950
      %v3963 = vpack.c.b16 %v3953, %v3952
      %v3964 = vpack.c.b16 %v3955, %v3954
      %v3965 = vpack.c.b16 %v3957, %v3956
      %3974 = vmatprep.subr.bf16.mxu0 0
      %3975 = vmatpush1.bf16.msra.mxu0 %v3958
      %3976 = vmatprep.subr.bf16.mxu0 0
      %3977 = vmatpush1.bf16.msra.mxu0 %v3959
      %3978 = vmatprep.subr.bf16.mxu0 0
      %3979 = vmatpush1.bf16.msra.mxu0 %v3960
      %3980 = vmatprep.subr.bf16.mxu0 0
      %3981 = vmatpush1.bf16.msra.mxu0 %v3961
      %3982 = vmatprep.subr.bf16.mxu0 0
      %3983 = vmatpush1.bf16.msra.mxu0 %v3962
      %3984 = vmatprep.subr.bf16.mxu0 0
      %3985 = vmatpush1.bf16.msra.mxu0 %v3963
      %3986 = vmatprep.subr.bf16.mxu0 0
      %3987 = vmatpush1.bf16.msra.mxu0 %v3964
      %3988 = vmatprep.subr.bf16.mxu0 0
      %3989 = vmatpush1.bf16.msra.mxu0 %v3965
      %3990 = vmatprep.subr.bf16.mxu0 0
      %3991 = vmatpush1.bf16.msra.mxu0 0
      %3992 = vmatprep.subr.bf16.mxu0 0
      %3993 = vmatpush1.bf16.msra.mxu0 0
      %3994 = vmatprep.subr.bf16.mxu0 0
      %3995 = vmatpush1.bf16.msra.mxu0 0
      %3996 = vmatprep.subr.bf16.mxu0 0
      %3997 = vmatpush1.bf16.msra.mxu0 0
      %3998 = vmatprep.subr.bf16.mxu0 0
      %3999 = vmatpush1.bf16.msra.mxu0 0
      %4000 = vmatprep.subr.bf16.mxu0 0
      %4001 = vmatpush1.bf16.msra.mxu0 0
      %4002 = vmatprep.subr.bf16.mxu0 0
      %4003 = vmatpush1.bf16.msra.mxu0 0
      %4004 = vmatprep.subr.bf16.mxu0 0
      %4005 = vmatpush1.bf16.msra.mxu0 0
      %4006 = vmatprep.mubr.bf16.mxu0 0
      %4007 = vmatmul.mubr.bf16.gmra.mrb[0].mxu0 %v3894
      %v4008 = vpop.f32.mrb[0].mxu0
      %v4009 = vadd.f32 0.0, %v4008
      %v4010 = vpop.f32.mrb[0].mxu0
      %v4011 = vpop.f32.mrb[0].mxu0
      %v4012 = vadd.f32 0.0, %v4011
      %v4013 = vpop.f32.mrb[0].mxu0
      %4014 = vmatprep.mubr.bf16.mxu0 0
      %4015 = vmatmul.mubr.bf16.gmra.mrb[0].mxu0 %v3895
      %v4016 = vpop.f32.mrb[0].mxu0
      %v4017 = vadd.f32 0.0, %v4016
      %v4018 = vpop.f32.mrb[0].mxu0
      %v4019 = vpop.f32.mrb[0].mxu0
      %v4020 = vadd.f32 0.0, %v4019
      %v4021 = vpop.f32.mrb[0].mxu0
      %4022 = vmatprep.mubr.bf16.mxu0 0
      %4023 = vmatmul.mubr.bf16.gmra.mrb[0].mxu0 %v3896
      %v4024 = vpop.f32.mrb[0].mxu0
      %v4025 = vadd.f32 0.0, %v4024
      %v4026 = vpop.f32.mrb[0].mxu0
      %v4027 = vpop.f32.mrb[0].mxu0
      %v4028 = vadd.f32 0.0, %v4027
      %v4029 = vpop.f32.mrb[0].mxu0
      %4030 = vmatprep.mubr.bf16.mxu0 0
      %4031 = vmatmul.mubr.bf16.gmra.mrb[0].mxu0 %v3897
      %v4032 = vpop.f32.mrb[0].mxu0
      %v4033 = vadd.f32 0.0, %v4032
      %v4034 = vpop.f32.mrb[0].mxu0
      %v4035 = vpop.f32.mrb[0].mxu0
      %v4036 = vadd.f32 0.0, %v4035
      %v4037 = vpop.f32.mrb[0].mxu0
      %4038 = vmatprep.mubr.bf16.mxu0 0
      %4039 = vmatmul.mubr.bf16.gmra.mrb[0].mxu0 %v3898
      %v4040 = vpop.f32.mrb[0].mxu0
      %v4041 = vadd.f32 0.0, %v4040
      %v4042 = vpop.f32.mrb[0].mxu0
      %v4043 = vpop.f32.mrb[0].mxu0
      %v4044 = vadd.f32 0.0, %v4043
      %v4045 = vpop.f32.mrb[0].mxu0
      %4046 = vmatprep.mubr.bf16.mxu0 0
      %4047 = vmatmul.mubr.bf16.gmra.mrb[0].mxu0 %v3899
      %v4048 = vpop.f32.mrb[0].mxu0
      %v4049 = vadd.f32 0.0, %v4048
      %v4050 = vpop.f32.mrb[0].mxu0
      %v4051 = vpop.f32.mrb[0].mxu0
      %v4052 = vadd.f32 0.0, %v4051
      %v4053 = vpop.f32.mrb[0].mxu0
      %4054 = vmatprep.mubr.bf16.mxu0 0
      %4055 = vmatmul.mubr.bf16.gmra.mrb[0].mxu0 %v3900
      %v4056 = vpop.f32.mrb[0].mxu0
      %v4057 = vadd.f32 0.0, %v4056
      %v4058 = vpop.f32.mrb[0].mxu0
      %v4059 = vpop.f32.mrb[0].mxu0
      %v4060 = vadd.f32 0.0, %v4059
      %v4061 = vpop.f32.mrb[0].mxu0
      %4062 = vmatprep.mubr.bf16.mxu0 0
      %4063 = vmatmul.mubr.bf16.gmra.mrb[0].mxu0 %v3901
      %v4064 = vpop.f32.mrb[0].mxu0
      %v4065 = vadd.f32 0.0, %v4064
      %v4066 = vpop.f32.mrb[0].mxu0
      %v4067 = vpop.f32.mrb[0].mxu0
      %v4068 = vadd.f32 0.0, %v4067
      %v4069 = vpop.f32.mrb[0].mxu0
      %4070 = vmatprep.mubr.bf16.mxu0 0
      %4071 = vmatmul.mubr.bf16.gmra.mrb[0].mxu0 %v3902
      %v4072 = vpop.f32.mrb[0].mxu0
      %v4073 = vadd.f32 0.0, %v4072
      %v4074 = vpop.f32.mrb[0].mxu0
      %v4075 = vpop.f32.mrb[0].mxu0
      %v4076 = vadd.f32 0.0, %v4075
      %v4077 = vpop.f32.mrb[0].mxu0
      %4078 = vmatprep.mubr.bf16.mxu0 0
      %4079 = vmatmul.mubr.bf16.gmra.mrb[0].mxu0 %v3903
      %v4080 = vpop.f32.mrb[0].mxu0
      %v4081 = vadd.f32 0.0, %v4080
      %v4082 = vpop.f32.mrb[0].mxu0
      %v4083 = vpop.f32.mrb[0].mxu0
      %v4084 = vadd.f32 0.0, %v4083
      %v4085 = vpop.f32.mrb[0].mxu0
      %4086 = vmatprep.mubr.bf16.mxu0 0
      %4087 = vmatmul.mubr.bf16.gmra.mrb[0].mxu0 %v3904
      %v4088 = vpop.f32.mrb[0].mxu0
      %v4089 = vadd.f32 0.0, %v4088
      %v4090 = vpop.f32.mrb[0].mxu0
      %v4091 = vpop.f32.mrb[0].mxu0
      %v4092 = vadd.f32 0.0, %v4091
      %v4093 = vpop.f32.mrb[0].mxu0
      %4094 = vmatprep.mubr.bf16.mxu0 0
      %4095 = vmatmul.mubr.bf16.gmra.mrb[0].mxu0 %v3905
      %v4096 = vpop.f32.mrb[0].mxu0
      %v4097 = vadd.f32 0.0, %v4096
      %v4098 = vpop.f32.mrb[0].mxu0
      %v4099 = vpop.f32.mrb[0].mxu0
      %v4100 = vadd.f32 0.0, %v4099
      %v4101 = vpop.f32.mrb[0].mxu0
      %4102 = vmatprep.mubr.bf16.mxu0 0
      %4103 = vmatmul.mubr.bf16.gmra.mrb[0].mxu0 %v3906
      %v4104 = vpop.f32.mrb[0].mxu0
      %v4105 = vadd.f32 0.0, %v4104
      %v4106 = vpop.f32.mrb[0].mxu0
      %v4107 = vpop.f32.mrb[0].mxu0
      %v4108 = vadd.f32 0.0, %v4107
      %v4109 = vpop.f32.mrb[0].mxu0
      %4110 = vmatprep.mubr.bf16.mxu0 0
      %4111 = vmatmul.mubr.bf16.gmra.mrb[0].mxu0 %v3907
      %v4112 = vpop.f32.mrb[0].mxu0
      %v4113 = vadd.f32 0.0, %v4112
      %v4114 = vpop.f32.mrb[0].mxu0
      %v4115 = vpop.f32.mrb[0].mxu0
      %v4116 = vadd.f32 0.0, %v4115
      %v4117 = vpop.f32.mrb[0].mxu0
      %4118 = vmatprep.mubr.bf16.mxu0 0
      %4119 = vmatmul.mubr.bf16.gmra.mrb[0].mxu0 %v3908
      %v4120 = vpop.f32.mrb[0].mxu0
      %v4121 = vadd.f32 0.0, %v4120
      %v4122 = vpop.f32.mrb[0].mxu0
      %v4123 = vpop.f32.mrb[0].mxu0
      %v4124 = vadd.f32 0.0, %v4123
      %v4125 = vpop.f32.mrb[0].mxu0
      %4126 = vmatprep.mubr.bf16.mxu0 0
      %4127 = vmatmul.mubr.bf16.gmra.mrb[0].mxu0 %v3909
      %v4128 = vpop.f32.mrb[0].mxu0
      %v4129 = vadd.f32 0.0, %v4128
      %v4130 = vpop.f32.mrb[0].mxu0
      %v4131 = vpop.f32.mrb[0].mxu0
      %v4132 = vadd.f32 0.0, %v4131
      %v4133 = vpop.f32.mrb[0].mxu0
      %4134 = vdwg.mxu0
      %v4135 = vadd.f32 %v3381, %v4009
      %v4136 = vadd.f32 %v3382, %v4012
      %v4137 = vadd.f32 %v3383, %v4017
      %v4138 = vadd.f32 %v3384, %v4020
      %v4139 = vadd.f32 %v3385, %v4025
      %v4140 = vadd.f32 %v3386, %v4028
      %v4141 = vadd.f32 %v3387, %v4033
      %v4142 = vadd.f32 %v3388, %v4036
      %v4143 = vadd.f32 %v3389, %v4041
      %v4144 = vadd.f32 %v3390, %v4044
      %v4145 = vadd.f32 %v3391, %v4049
      %v4146 = vadd.f32 %v3392, %v4052
      %v4147 = vadd.f32 %v3393, %v4057
      %v4148 = vadd.f32 %v3394, %v4060
      %v4149 = vadd.f32 %v3395, %v4065
      %v4150 = vadd.f32 %v3396, %v4068
      %v4151 = vadd.f32 %v3397, %v4073
      %v4152 = vadd.f32 %v3398, %v4076
      %v4153 = vadd.f32 %v3399, %v4081
      %v4154 = vadd.f32 %v3400, %v4084
      %v4155 = vadd.f32 %v3401, %v4089
      %v4156 = vadd.f32 %v3402, %v4092
      %v4157 = vadd.f32 %v3403, %v4097
      %v4158 = vadd.f32 %v3404, %v4100
      %v4159 = vadd.f32 %v3405, %v4105
      %v4160 = vadd.f32 %v3406, %v4108
      %v4161 = vadd.f32 %v3407, %v4113
      %v4162 = vadd.f32 %v3408, %v4116
      %v4163 = vadd.f32 %v3409, %v4121
      %v4164 = vadd.f32 %v3410, %v4124
      %v4165 = vadd.f32 %v3411, %v4129
      %v4166 = vadd.f32 %v3412, %v4132
      %v4167 = vld [vmem:[%s1378] sm:$0xe]
      %v4168 = vld [vmem:[%s1378 + $0xc] sm:$0xe]
      %v4169 = vld [vmem:[%s1378 + $0x18] sm:$0xe]
      %v4170 = vld [vmem:[%s1378 + $0x24] sm:$0xe]
      %v4171 = vld [vmem:[%s1378 + $0x30] sm:$0xe]
      %v4172 = vld [vmem:[%s1378 + $0x3c] sm:$0xe]
      %v4173 = vld [vmem:[%s1378 + $0x48] sm:$0xe]
      %v4174 = vld [vmem:[%s1378 + $0x54] sm:$0xe]
      %v4175 = vld [vmem:[%s1378 + $0x60] sm:$0xe]
      %v4176 = vld [vmem:[%s1378 + $0x6c] sm:$0xe]
      %v4177 = vld [vmem:[%s1378 + $0x78] sm:$0xe]
      %v4178 = vld [vmem:[%s1378 + $0x84] sm:$0xe]
      %v4179 = vld [vmem:[%s1378 + $0x90] sm:$0xe]
      %v4180 = vld [vmem:[%s1378 + $0x9c] sm:$0xe]
      %v4181 = vld [vmem:[%s1378 + $0xa8] sm:$0xe]
      %v4182 = vld [vmem:[%s1378 + $0xb4] sm:$0xe]
      %v4231 = vrot.slane %v4167, 5
      %v4232 = vrot.slane %v4231, 4
      %v4233 = vrot.slane %v3414, 5
      %v4234 = vsel %vm2592, %v4232, %v4233
      %v4235 = vrot.slane %v4233, 4
      %v4236 = vrot.slane %v3415, 5
      %v4237 = vsel %vm2592, %v4235, %v4236
      %v4238 = vrot.slane %v4168, 5
      %v4239 = vrot.slane %v4238, 4
      %v4240 = vrot.slane %v3417, 5
      %v4241 = vsel %vm2592, %v4239, %v4240
      %v4242 = vrot.slane %v4240, 4
      %v4243 = vrot.slane %v3418, 5
      %v4244 = vsel %vm2592, %v4242, %v4243
      %v4245 = vrot.slane %v4169, 5
      %v4246 = vrot.slane %v4245, 4
      %v4247 = vrot.slane %v3420, 5
      %v4248 = vsel %vm2592, %v4246, %v4247
      %v4249 = vrot.slane %v4247, 4
      %v4250 = vrot.slane %v3421, 5
      %v4251 = vsel %vm2592, %v4249, %v4250
      %v4252 = vrot.slane %v4170, 5
      %v4253 = vrot.slane %v4252, 4
      %v4254 = vrot.slane %v3423, 5
      %v4255 = vsel %vm2592, %v4253, %v4254
      %v4256 = vrot.slane %v4254, 4
      %v4257 = vrot.slane %v3424, 5
      %v4258 = vsel %vm2592, %v4256, %v4257
      %v4259 = vrot.slane %v4171, 5
      %v4260 = vrot.slane %v4259, 4
      %v4261 = vrot.slane %v3426, 5
      %v4262 = vsel %vm2592, %v4260, %v4261
      %v4263 = vrot.slane %v4261, 4
      %v4264 = vrot.slane %v3427, 5
      %v4265 = vsel %vm2592, %v4263, %v4264
      %v4266 = vrot.slane %v4172, 5
      %v4267 = vrot.slane %v4266, 4
      %v4268 = vrot.slane %v3429, 5
      %v4269 = vsel %vm2592, %v4267, %v4268
      %v4270 = vrot.slane %v4268, 4
      %v4271 = vrot.slane %v3430, 5
      %v4272 = vsel %vm2592, %v4270, %v4271
      %v4273 = vrot.slane %v4173, 5
      %v4274 = vrot.slane %v4273, 4
      %v4275 = vrot.slane %v3432, 5
      %v4276 = vsel %vm2592, %v4274, %v4275
      %v4277 = vrot.slane %v4275, 4
      %v4278 = vrot.slane %v3433, 5
      %v4279 = vsel %vm2592, %v4277, %v4278
      %v4280 = vrot.slane %v4174, 5
      %v4281 = vrot.slane %v4280, 4
      %v4282 = vrot.slane %v3435, 5
      %v4283 = vsel %vm2592, %v4281, %v4282
      %v4284 = vrot.slane %v4282, 4
      %v4285 = vrot.slane %v3436, 5
      %v4286 = vsel %vm2592, %v4284, %v4285
      %v4287 = vrot.slane %v4175, 5
      %v4288 = vrot.slane %v4287, 4
      %v4289 = vrot.slane %v3438, 5
      %v4290 = vsel %vm2592, %v4288, %v4289
      %v4291 = vrot.slane %v4289, 4
      %v4292 = vrot.slane %v3439, 5
      %v4293 = vsel %vm2592, %v4291, %v4292
      %v4294 = vrot.slane %v4176, 5
      %v4295 = vrot.slane %v4294, 4
      %v4296 = vrot.slane %v3441, 5
      %v4297 = vsel %vm2592, %v4295, %v4296
      %v4298 = vrot.slane %v4296, 4
      %v4299 = vrot.slane %v3442, 5
      %v4300 = vsel %vm2592, %v4298, %v4299
      %v4301 = vrot.slane %v4177, 5
      %v4302 = vrot.slane %v4301, 4
      %v4303 = vrot.slane %v3444, 5
      %v4304 = vsel %vm2592, %v4302, %v4303
      %v4305 = vrot.slane %v4303, 4
      %v4306 = vrot.slane %v3445, 5
      %v4307 = vsel %vm2592, %v4305, %v4306
      %v4308 = vrot.slane %v4178, 5
      %v4309 = vrot.slane %v4308, 4
      %v4310 = vrot.slane %v3447, 5
      %v4311 = vsel %vm2592, %v4309, %v4310
      %v4312 = vrot.slane %v4310, 4
      %v4313 = vrot.slane %v3448, 5
      %v4314 = vsel %vm2592, %v4312, %v4313
      %v4315 = vrot.slane %v4179, 5
      %v4316 = vrot.slane %v4315, 4
      %v4317 = vrot.slane %v3450, 5
      %v4318 = vsel %vm2592, %v4316, %v4317
      %v4319 = vrot.slane %v4317, 4
      %v4320 = vrot.slane %v3451, 5
      %v4321 = vsel %vm2592, %v4319, %v4320
      %v4322 = vrot.slane %v4180, 5
      %v4323 = vrot.slane %v4322, 4
      %v4324 = vrot.slane %v3453, 5
      %v4325 = vsel %vm2592, %v4323, %v4324
      %v4326 = vrot.slane %v4324, 4
      %v4327 = vrot.slane %v3454, 5
      %v4328 = vsel %vm2592, %v4326, %v4327
      %v4329 = vrot.slane %v4181, 5
      %v4330 = vrot.slane %v4329, 4
      %v4331 = vrot.slane %v3456, 5
      %v4332 = vsel %vm2592, %v4330, %v4331
      %v4333 = vrot.slane %v4331, 4
      %v4334 = vrot.slane %v3457, 5
      %v4335 = vsel %vm2592, %v4333, %v4334
      %v4336 = vrot.slane %v4182, 5
      %v4337 = vrot.slane %v4336, 4
      %v4338 = vrot.slane %v3459, 5
      %v4339 = vsel %vm2592, %v4337, %v4338
      %v4340 = vrot.slane %v4338, 4
      %v4341 = vrot.slane %v3460, 5
      %v4342 = vsel %vm2592, %v4340, %v4341
      %s4343 = scalar_lea.vmem %s4, 320
      %v4344 = vld [vmem:[%s4343] sm:$0xf]
      %v4345 = vld [vmem:[%s4343 + $0x4] sm:$0xf]
      %v4346 = vld [vmem:[%s4343 + $0x8] sm:$0xf]
      %v4347 = vld [vmem:[%s4343 + $0xc] sm:$0xf]
      %v4348 = vld [vmem:[%s4343 + $0x10] sm:$0xf]
      %v4349 = vld [vmem:[%s4343 + $0x14] sm:$0xf]
      %v4350 = vld [vmem:[%s4343 + $0x18] sm:$0xf]
      %v4351 = vld [vmem:[%s4343 + $0x1c] sm:$0xf]
      %v4352 = vld [vmem:[%s4343 + $0x20] sm:$0xf]
      %v4353 = vld [vmem:[%s4343 + $0x24] sm:$0xf]
      %v4354 = vld [vmem:[%s4343 + $0x28] sm:$0xf]
      %v4355 = vld [vmem:[%s4343 + $0x2c] sm:$0xf]
      %v4356 = vld [vmem:[%s4343 + $0x30] sm:$0xf]
      %v4357 = vld [vmem:[%s4343 + $0x34] sm:$0xf]
      %v4358 = vld [vmem:[%s4343 + $0x38] sm:$0xf]
      %v4359 = vld [vmem:[%s4343 + $0x3c] sm:$0xf]
      %v4360 = vunpack.c.l.b16 %v4234
      %v4361 = vunpack.c.l.b16 %v4237
      %v4362 = vunpack.c.l.b16 %v4241
      %v4363 = vunpack.c.l.b16 %v4244
      %v4364 = vunpack.c.l.b16 %v4248
      %v4365 = vunpack.c.l.b16 %v4251
      %v4366 = vunpack.c.l.b16 %v4255
      %v4367 = vunpack.c.l.b16 %v4258
      %v4368 = vunpack.c.l.b16 %v4262
      %v4369 = vunpack.c.l.b16 %v4265
      %v4370 = vunpack.c.l.b16 %v4269
      %v4371 = vunpack.c.l.b16 %v4272
      %v4372 = vunpack.c.l.b16 %v4276
      %v4373 = vunpack.c.l.b16 %v4279
      %v4374 = vunpack.c.l.b16 %v4283
      %v4375 = vunpack.c.l.b16 %v4286
      %v4376 = vunpack.c.l.b16 %v4290
      %v4377 = vunpack.c.l.b16 %v4293
      %v4378 = vunpack.c.l.b16 %v4297
      %v4379 = vunpack.c.l.b16 %v4300
      %v4380 = vunpack.c.l.b16 %v4304
      %v4381 = vunpack.c.l.b16 %v4307
      %v4382 = vunpack.c.l.b16 %v4311
      %v4383 = vunpack.c.l.b16 %v4314
      %v4384 = vunpack.c.l.b16 %v4318
      %v4385 = vunpack.c.l.b16 %v4321
      %v4386 = vunpack.c.l.b16 %v4325
      %v4387 = vunpack.c.l.b16 %v4328
      %v4388 = vunpack.c.l.b16 %v4332
      %v4389 = vunpack.c.l.b16 %v4335
      %v4390 = vunpack.c.l.b16 %v4339
      %v4391 = vunpack.c.l.b16 %v4342
      %v4392 = vpack.c.b16 %v4361, %v4360
      %v4393 = vpack.c.b16 %v4363, %v4362
      %v4394 = vpack.c.b16 %v4365, %v4364
      %v4395 = vpack.c.b16 %v4367, %v4366
      %v4396 = vpack.c.b16 %v4369, %v4368
      %v4397 = vpack.c.b16 %v4371, %v4370
      %v4398 = vpack.c.b16 %v4373, %v4372
      %v4399 = vpack.c.b16 %v4375, %v4374
      %v4400 = vpack.c.b16 %v4377, %v4376
      %v4401 = vpack.c.b16 %v4379, %v4378
      %v4402 = vpack.c.b16 %v4381, %v4380
      %v4403 = vpack.c.b16 %v4383, %v4382
      %v4404 = vpack.c.b16 %v4385, %v4384
      %v4405 = vpack.c.b16 %v4387, %v4386
      %v4406 = vpack.c.b16 %v4389, %v4388
      %v4407 = vpack.c.b16 %v4391, %v4390
      %v4440 = vunpack.c.l.b16 %v4344
      %v4441 = vunpack.c.l.b16 %v4345
      %v4442 = vunpack.c.l.b16 %v4346
      %v4443 = vunpack.c.l.b16 %v4347
      %v4444 = vunpack.c.l.b16 %v4348
      %v4445 = vunpack.c.l.b16 %v4349
      %v4446 = vunpack.c.l.b16 %v4350
      %v4447 = vunpack.c.l.b16 %v4351
      %v4448 = vunpack.c.l.b16 %v4352
      %v4449 = vunpack.c.l.b16 %v4353
      %v4450 = vunpack.c.l.b16 %v4354
      %v4451 = vunpack.c.l.b16 %v4355
      %v4452 = vunpack.c.l.b16 %v4356
      %v4453 = vunpack.c.l.b16 %v4357
      %v4454 = vunpack.c.l.b16 %v4358
      %v4455 = vunpack.c.l.b16 %v4359
      %v4456 = vpack.c.b16 %v4441, %v4440
      %v4457 = vpack.c.b16 %v4443, %v4442
      %v4458 = vpack.c.b16 %v4445, %v4444
      %v4459 = vpack.c.b16 %v4447, %v4446
      %v4460 = vpack.c.b16 %v4449, %v4448
      %v4461 = vpack.c.b16 %v4451, %v4450
      %v4462 = vpack.c.b16 %v4453, %v4452
      %v4463 = vpack.c.b16 %v4455, %v4454
      %4472 = vmatprep.subr.bf16.mxu0 0
      %4473 = vmatpush1.bf16.msra.mxu0 %v4456
      %4474 = vmatprep.subr.bf16.mxu0 0
      %4475 = vmatpush1.bf16.msra.mxu0 %v4457
      %4476 = vmatprep.subr.bf16.mxu0 0
      %4477 = vmatpush1.bf16.msra.mxu0 %v4458
      %4478 = vmatprep.subr.bf16.mxu0 0
      %4479 = vmatpush1.bf16.msra.mxu0 %v4459
      %4480 = vmatprep.subr.bf16.mxu0 0
      %4481 = vmatpush1.bf16.msra.mxu0 %v4460
      %4482 = vmatprep.subr.bf16.mxu0 0
      %4483 = vmatpush1.bf16.msra.mxu0 %v4461
      %4484 = vmatprep.subr.bf16.mxu0 0
      %4485 = vmatpush1.bf16.msra.mxu0 %v4462
      %4486 = vmatprep.subr.bf16.mxu0 0
      %4487 = vmatpush1.bf16.msra.mxu0 %v4463
      %4488 = vmatprep.subr.bf16.mxu0 0
      %4489 = vmatpush1.bf16.msra.mxu0 0
      %4490 = vmatprep.subr.bf16.mxu0 0
      %4491 = vmatpush1.bf16.msra.mxu0 0
      %4492 = vmatprep.subr.bf16.mxu0 0
      %4493 = vmatpush1.bf16.msra.mxu0 0
      %4494 = vmatprep.subr.bf16.mxu0 0
      %4495 = vmatpush1.bf16.msra.mxu0 0
      %4496 = vmatprep.subr.bf16.mxu0 0
      %4497 = vmatpush1.bf16.msra.mxu0 0
      %4498 = vmatprep.subr.bf16.mxu0 0
      %4499 = vmatpush1.bf16.msra.mxu0 0
      %4500 = vmatprep.subr.bf16.mxu0 0
      %4501 = vmatpush1.bf16.msra.mxu0 0
      %4502 = vmatprep.subr.bf16.mxu0 0
      %4503 = vmatpush1.bf16.msra.mxu0 0
      %4504 = vmatprep.mubr.bf16.mxu0 0
      %4505 = vmatmul.mubr.bf16.gmra.mrb[0].mxu0 %v4392
      %v4506 = vpop.f32.mrb[0].mxu0
      %v4507 = vadd.f32 0.0, %v4506
      %v4508 = vpop.f32.mrb[0].mxu0
      %v4509 = vpop.f32.mrb[0].mxu0
      %v4510 = vadd.f32 0.0, %v4509
      %v4511 = vpop.f32.mrb[0].mxu0
      %4512 = vmatprep.mubr.bf16.mxu0 0
      %4513 = vmatmul.mubr.bf16.gmra.mrb[0].mxu0 %v4393
      %v4514 = vpop.f32.mrb[0].mxu0
      %v4515 = vadd.f32 0.0, %v4514
      %v4516 = vpop.f32.mrb[0].mxu0
      %v4517 = vpop.f32.mrb[0].mxu0
      %v4518 = vadd.f32 0.0, %v4517
      %v4519 = vpop.f32.mrb[0].mxu0
      %4520 = vmatprep.mubr.bf16.mxu0 0
      %4521 = vmatmul.mubr.bf16.gmra.mrb[0].mxu0 %v4394
      %v4522 = vpop.f32.mrb[0].mxu0
      %v4523 = vadd.f32 0.0, %v4522
      %v4524 = vpop.f32.mrb[0].mxu0
      %v4525 = vpop.f32.mrb[0].mxu0
      %v4526 = vadd.f32 0.0, %v4525
      %v4527 = vpop.f32.mrb[0].mxu0
      %4528 = vmatprep.mubr.bf16.mxu0 0
      %4529 = vmatmul.mubr.bf16.gmra.mrb[0].mxu0 %v4395
      %v4530 = vpop.f32.mrb[0].mxu0
      %v4531 = vadd.f32 0.0, %v4530
      %v4532 = vpop.f32.mrb[0].mxu0
      %v4533 = vpop.f32.mrb[0].mxu0
      %v4534 = vadd.f32 0.0, %v4533
      %v4535 = vpop.f32.mrb[0].mxu0
      %4536 = vmatprep.mubr.bf16.mxu0 0
      %4537 = vmatmul.mubr.bf16.gmra.mrb[0].mxu0 %v4396
      %v4538 = vpop.f32.mrb[0].mxu0
      %v4539 = vadd.f32 0.0, %v4538
      %v4540 = vpop.f32.mrb[0].mxu0
      %v4541 = vpop.f32.mrb[0].mxu0
      %v4542 = vadd.f32 0.0, %v4541
      %v4543 = vpop.f32.mrb[0].mxu0
      %4544 = vmatprep.mubr.bf16.mxu0 0
      %4545 = vmatmul.mubr.bf16.gmra.mrb[0].mxu0 %v4397
      %v4546 = vpop.f32.mrb[0].mxu0
      %v4547 = vadd.f32 0.0, %v4546
      %v4548 = vpop.f32.mrb[0].mxu0
      %v4549 = vpop.f32.mrb[0].mxu0
      %v4550 = vadd.f32 0.0, %v4549
      %v4551 = vpop.f32.mrb[0].mxu0
      %4552 = vmatprep.mubr.bf16.mxu0 0
      %4553 = vmatmul.mubr.bf16.gmra.mrb[0].mxu0 %v4398
      %v4554 = vpop.f32.mrb[0].mxu0
      %v4555 = vadd.f32 0.0, %v4554
      %v4556 = vpop.f32.mrb[0].mxu0
      %v4557 = vpop.f32.mrb[0].mxu0
      %v4558 = vadd.f32 0.0, %v4557
      %v4559 = vpop.f32.mrb[0].mxu0
      %4560 = vmatprep.mubr.bf16.mxu0 0
      %4561 = vmatmul.mubr.bf16.gmra.mrb[0].mxu0 %v4399
      %v4562 = vpop.f32.mrb[0].mxu0
      %v4563 = vadd.f32 0.0, %v4562
      %v4564 = vpop.f32.mrb[0].mxu0
      %v4565 = vpop.f32.mrb[0].mxu0
      %v4566 = vadd.f32 0.0, %v4565
      %v4567 = vpop.f32.mrb[0].mxu0
      %4568 = vmatprep.mubr.bf16.mxu0 0
      %4569 = vmatmul.mubr.bf16.gmra.mrb[0].mxu0 %v4400
      %v4570 = vpop.f32.mrb[0].mxu0
      %v4571 = vadd.f32 0.0, %v4570
      %v4572 = vpop.f32.mrb[0].mxu0
      %v4573 = vpop.f32.mrb[0].mxu0
      %v4574 = vadd.f32 0.0, %v4573
      %v4575 = vpop.f32.mrb[0].mxu0
      %4576 = vmatprep.mubr.bf16.mxu0 0
      %4577 = vmatmul.mubr.bf16.gmra.mrb[0].mxu0 %v4401
      %v4578 = vpop.f32.mrb[0].mxu0
      %v4579 = vadd.f32 0.0, %v4578
      %v4580 = vpop.f32.mrb[0].mxu0
      %v4581 = vpop.f32.mrb[0].mxu0
      %v4582 = vadd.f32 0.0, %v4581
      %v4583 = vpop.f32.mrb[0].mxu0
      %4584 = vmatprep.mubr.bf16.mxu0 0
      %4585 = vmatmul.mubr.bf16.gmra.mrb[0].mxu0 %v4402
      %v4586 = vpop.f32.mrb[0].mxu0
      %v4587 = vadd.f32 0.0, %v4586
      %v4588 = vpop.f32.mrb[0].mxu0
      %v4589 = vpop.f32.mrb[0].mxu0
      %v4590 = vadd.f32 0.0, %v4589
      %v4591 = vpop.f32.mrb[0].mxu0
      %4592 = vmatprep.mubr.bf16.mxu0 0
      %4593 = vmatmul.mubr.bf16.gmra.mrb[0].mxu0 %v4403
      %v4594 = vpop.f32.mrb[0].mxu0
      %v4595 = vadd.f32 0.0, %v4594
      %v4596 = vpop.f32.mrb[0].mxu0
      %v4597 = vpop.f32.mrb[0].mxu0
      %v4598 = vadd.f32 0.0, %v4597
      %v4599 = vpop.f32.mrb[0].mxu0
      %4600 = vmatprep.mubr.bf16.mxu0 0
      %4601 = vmatmul.mubr.bf16.gmra.mrb[0].mxu0 %v4404
      %v4602 = vpop.f32.mrb[0].mxu0
      %v4603 = vadd.f32 0.0, %v4602
      %v4604 = vpop.f32.mrb[0].mxu0
      %v4605 = vpop.f32.mrb[0].mxu0
      %v4606 = vadd.f32 0.0, %v4605
      %v4607 = vpop.f32.mrb[0].mxu0
      %4608 = vmatprep.mubr.bf16.mxu0 0
      %4609 = vmatmul.mubr.bf16.gmra.mrb[0].mxu0 %v4405
      %v4610 = vpop.f32.mrb[0].mxu0
      %v4611 = vadd.f32 0.0, %v4610
      %v4612 = vpop.f32.mrb[0].mxu0
      %v4613 = vpop.f32.mrb[0].mxu0
      %v4614 = vadd.f32 0.0, %v4613
      %v4615 = vpop.f32.mrb[0].mxu0
      %4616 = vmatprep.mubr.bf16.mxu0 0
      %4617 = vmatmul.mubr.bf16.gmra.mrb[0].mxu0 %v4406
      %v4618 = vpop.f32.mrb[0].mxu0
      %v4619 = vadd.f32 0.0, %v4618
      %v4620 = vpop.f32.mrb[0].mxu0
      %v4621 = vpop.f32.mrb[0].mxu0
      %v4622 = vadd.f32 0.0, %v4621
      %v4623 = vpop.f32.mrb[0].mxu0
      %4624 = vmatprep.mubr.bf16.mxu0 0
      %4625 = vmatmul.mubr.bf16.gmra.mrb[0].mxu0 %v4407
      %v4626 = vpop.f32.mrb[0].mxu0
      %v4627 = vadd.f32 0.0, %v4626
      %v4628 = vpop.f32.mrb[0].mxu0
      %v4629 = vpop.f32.mrb[0].mxu0
      %v4630 = vadd.f32 0.0, %v4629
      %v4631 = vpop.f32.mrb[0].mxu0
      %4632 = vdwg.mxu0
      %v4633 = vadd.f32 %v4135, %v4507
      %v4634 = vadd.f32 %v4136, %v4510
      %v4635 = vadd.f32 %v4137, %v4515
      %v4636 = vadd.f32 %v4138, %v4518
      %v4637 = vadd.f32 %v4139, %v4523
      %v4638 = vadd.f32 %v4140, %v4526
      %v4639 = vadd.f32 %v4141, %v4531
      %v4640 = vadd.f32 %v4142, %v4534
      %v4641 = vadd.f32 %v4143, %v4539
      %v4642 = vadd.f32 %v4144, %v4542
      %v4643 = vadd.f32 %v4145, %v4547
      %v4644 = vadd.f32 %v4146, %v4550
      %v4645 = vadd.f32 %v4147, %v4555
      %v4646 = vadd.f32 %v4148, %v4558
      %v4647 = vadd.f32 %v4149, %v4563
      %v4648 = vadd.f32 %v4150, %v4566
      %v4649 = vadd.f32 %v4151, %v4571
      %v4650 = vadd.f32 %v4152, %v4574
      %v4651 = vadd.f32 %v4153, %v4579
      %v4652 = vadd.f32 %v4154, %v4582
      %v4653 = vadd.f32 %v4155, %v4587
      %v4654 = vadd.f32 %v4156, %v4590
      %v4655 = vadd.f32 %v4157, %v4595
      %v4656 = vadd.f32 %v4158, %v4598
      %v4657 = vadd.f32 %v4159, %v4603
      %v4658 = vadd.f32 %v4160, %v4606
      %v4659 = vadd.f32 %v4161, %v4611
      %v4660 = vadd.f32 %v4162, %v4614
      %v4661 = vadd.f32 %v4163, %v4619
      %v4662 = vadd.f32 %v4164, %v4622
      %v4663 = vadd.f32 %v4165, %v4627
      %v4664 = vadd.f32 %v4166, %v4630
      %s4665 = scalar_lea.vmem [#allocation2], 24
      %v4666 = vld [vmem:[%s4665] sm:$0xf]
      %v4667 = vld [vmem:[%s4665 + $0x4] sm:$0xf]
      %v4668 = vld [vmem:[%s4665 + $0xc] sm:$0xf]
      %v4669 = vld [vmem:[%s4665 + $0x10] sm:$0xf]
      %v4670 = vld [vmem:[%s4665 + $0x18] sm:$0xf]
      %v4671 = vld [vmem:[%s4665 + $0x1c] sm:$0xf]
      %v4672 = vld [vmem:[%s4665 + $0x24] sm:$0xf]
      %v4673 = vld [vmem:[%s4665 + $0x28] sm:$0xf]
      %v4674 = vld [vmem:[%s4665 + $0x30] sm:$0xf]
      %v4675 = vld [vmem:[%s4665 + $0x34] sm:$0xf]
      %v4676 = vld [vmem:[%s4665 + $0x3c] sm:$0xf]
      %v4677 = vld [vmem:[%s4665 + $0x40] sm:$0xf]
      %v4678 = vld [vmem:[%s4665 + $0x48] sm:$0xf]
      %v4679 = vld [vmem:[%s4665 + $0x4c] sm:$0xf]
      %v4680 = vld [vmem:[%s4665 + $0x54] sm:$0xf]
      %v4681 = vld [vmem:[%s4665 + $0x58] sm:$0xf]
      %v4682 = vld [vmem:[%s4665 + $0x60] sm:$0xf]
      %v4683 = vld [vmem:[%s4665 + $0x64] sm:$0xf]
      %v4684 = vld [vmem:[%s4665 + $0x6c] sm:$0xf]
      %v4685 = vld [vmem:[%s4665 + $0x70] sm:$0xf]
      %v4686 = vld [vmem:[%s4665 + $0x78] sm:$0xf]
      %v4687 = vld [vmem:[%s4665 + $0x7c] sm:$0xf]
      %v4688 = vld [vmem:[%s4665 + $0x84] sm:$0xf]
      %v4689 = vld [vmem:[%s4665 + $0x88] sm:$0xf]
      %v4690 = vld [vmem:[%s4665 + $0x90] sm:$0xf]
      %v4691 = vld [vmem:[%s4665 + $0x94] sm:$0xf]
      %v4692 = vld [vmem:[%s4665 + $0x9c] sm:$0xf]
      %v4693 = vld [vmem:[%s4665 + $0xa0] sm:$0xf]
      %v4694 = vld [vmem:[%s4665 + $0xa8] sm:$0xf]
      %v4695 = vld [vmem:[%s4665 + $0xac] sm:$0xf]
      %v4696 = vld [vmem:[%s4665 + $0xb4] sm:$0xf]
      %v4697 = vld [vmem:[%s4665 + $0xb8] sm:$0xf]
      %s4698 = scalar_lea.vmem %s4, 384
      %v4699 = vld [vmem:[%s4698] sm:$0xf]
      %v4700 = vld [vmem:[%s4698 + $0x4] sm:$0xf]
      %v4701 = vld [vmem:[%s4698 + $0x8] sm:$0xf]
      %v4702 = vld [vmem:[%s4698 + $0xc] sm:$0xf]
      %v4703 = vld [vmem:[%s4698 + $0x10] sm:$0xf]
      %v4704 = vld [vmem:[%s4698 + $0x14] sm:$0xf]
      %v4705 = vld [vmem:[%s4698 + $0x18] sm:$0xf]
      %v4706 = vld [vmem:[%s4698 + $0x1c] sm:$0xf]
      %v4707 = vld [vmem:[%s4698 + $0x20] sm:$0xf]
      %v4708 = vld [vmem:[%s4698 + $0x24] sm:$0xf]
      %v4709 = vld [vmem:[%s4698 + $0x28] sm:$0xf]
      %v4710 = vld [vmem:[%s4698 + $0x2c] sm:$0xf]
      %v4711 = vld [vmem:[%s4698 + $0x30] sm:$0xf]
      %v4712 = vld [vmem:[%s4698 + $0x34] sm:$0xf]
      %v4713 = vld [vmem:[%s4698 + $0x38] sm:$0xf]
      %v4714 = vld [vmem:[%s4698 + $0x3c] sm:$0xf]
      %v4747 = vunpack.c.l.b16 %v4666
      %v4748 = vunpack.c.l.b16 %v4667
      %v4749 = vunpack.c.l.b16 %v4668
      %v4750 = vunpack.c.l.b16 %v4669
      %v4751 = vunpack.c.l.b16 %v4670
      %v4752 = vunpack.c.l.b16 %v4671
      %v4753 = vunpack.c.l.b16 %v4672
      %v4754 = vunpack.c.l.b16 %v4673
      %v4755 = vunpack.c.l.b16 %v4674
      %v4756 = vunpack.c.l.b16 %v4675
      %v4757 = vunpack.c.l.b16 %v4676
      %v4758 = vunpack.c.l.b16 %v4677
      %v4759 = vunpack.c.l.b16 %v4678
      %v4760 = vunpack.c.l.b16 %v4679
      %v4761 = vunpack.c.l.b16 %v4680
      %v4762 = vunpack.c.l.b16 %v4681
      %v4763 = vunpack.c.l.b16 %v4682
      %v4764 = vunpack.c.l.b16 %v4683
      %v4765 = vunpack.c.l.b16 %v4684
      %v4766 = vunpack.c.l.b16 %v4685
      %v4767 = vunpack.c.l.b16 %v4686
      %v4768 = vunpack.c.l.b16 %v4687
      %v4769 = vunpack.c.l.b16 %v4688
      %v4770 = vunpack.c.l.b16 %v4689
      %v4771 = vunpack.c.l.b16 %v4690
      %v4772 = vunpack.c.l.b16 %v4691
      %v4773 = vunpack.c.l.b16 %v4692
      %v4774 = vunpack.c.l.b16 %v4693
      %v4775 = vunpack.c.l.b16 %v4694
      %v4776 = vunpack.c.l.b16 %v4695
      %v4777 = vunpack.c.l.b16 %v4696
      %v4778 = vunpack.c.l.b16 %v4697
      %v4779 = vpack.c.b16 %v4748, %v4747
      %v4780 = vpack.c.b16 %v4750, %v4749
      %v4781 = vpack.c.b16 %v4752, %v4751
      %v4782 = vpack.c.b16 %v4754, %v4753
      %v4783 = vpack.c.b16 %v4756, %v4755
      %v4784 = vpack.c.b16 %v4758, %v4757
      %v4785 = vpack.c.b16 %v4760, %v4759
      %v4786 = vpack.c.b16 %v4762, %v4761
      %v4787 = vpack.c.b16 %v4764, %v4763
      %v4788 = vpack.c.b16 %v4766, %v4765
      %v4789 = vpack.c.b16 %v4768, %v4767
      %v4790 = vpack.c.b16 %v4770, %v4769
      %v4791 = vpack.c.b16 %v4772, %v4771
      %v4792 = vpack.c.b16 %v4774, %v4773
      %v4793 = vpack.c.b16 %v4776, %v4775
      %v4794 = vpack.c.b16 %v4778, %v4777
      %v4827 = vunpack.c.l.b16 %v4699
      %v4828 = vunpack.c.l.b16 %v4700
      %v4829 = vunpack.c.l.b16 %v4701
      %v4830 = vunpack.c.l.b16 %v4702
      %v4831 = vunpack.c.l.b16 %v4703
      %v4832 = vunpack.c.l.b16 %v4704
      %v4833 = vunpack.c.l.b16 %v4705
      %v4834 = vunpack.c.l.b16 %v4706
      %v4835 = vunpack.c.l.b16 %v4707
      %v4836 = vunpack.c.l.b16 %v4708
      %v4837 = vunpack.c.l.b16 %v4709
      %v4838 = vunpack.c.l.b16 %v4710
      %v4839 = vunpack.c.l.b16 %v4711
      %v4840 = vunpack.c.l.b16 %v4712
      %v4841 = vunpack.c.l.b16 %v4713
      %v4842 = vunpack.c.l.b16 %v4714
      %v4843 = vpack.c.b16 %v4828, %v4827
      %v4844 = vpack.c.b16 %v4830, %v4829
      %v4845 = vpack.c.b16 %v4832, %v4831
      %v4846 = vpack.c.b16 %v4834, %v4833
      %v4847 = vpack.c.b16 %v4836, %v4835
      %v4848 = vpack.c.b16 %v4838, %v4837
      %v4849 = vpack.c.b16 %v4840, %v4839
      %v4850 = vpack.c.b16 %v4842, %v4841
      %4859 = vmatprep.subr.bf16.mxu0 0
      %4860 = vmatpush1.bf16.msra.mxu0 %v4843
      %4861 = vmatprep.subr.bf16.mxu0 0
      %4862 = vmatpush1.bf16.msra.mxu0 %v4844
      %4863 = vmatprep.subr.bf16.mxu0 0
      %4864 = vmatpush1.bf16.msra.mxu0 %v4845
      %4865 = vmatprep.subr.bf16.mxu0 0
      %4866 = vmatpush1.bf16.msra.mxu0 %v4846
      %4867 = vmatprep.subr.bf16.mxu0 0
      %4868 = vmatpush1.bf16.msra.mxu0 %v4847
      %4869 = vmatprep.subr.bf16.mxu0 0
      %4870 = vmatpush1.bf16.msra.mxu0 %v4848
      %4871 = vmatprep.subr.bf16.mxu0 0
      %4872 = vmatpush1.bf16.msra.mxu0 %v4849
      %4873 = vmatprep.subr.bf16.mxu0 0
      %4874 = vmatpush1.bf16.msra.mxu0 %v4850
      %4875 = vmatprep.subr.bf16.mxu0 0
      %4876 = vmatpush1.bf16.msra.mxu0 0
      %4877 = vmatprep.subr.bf16.mxu0 0
      %4878 = vmatpush1.bf16.msra.mxu0 0
      %4879 = vmatprep.subr.bf16.mxu0 0
      %4880 = vmatpush1.bf16.msra.mxu0 0
      %4881 = vmatprep.subr.bf16.mxu0 0
      %4882 = vmatpush1.bf16.msra.mxu0 0
      %4883 = vmatprep.subr.bf16.mxu0 0
      %4884 = vmatpush1.bf16.msra.mxu0 0
      %4885 = vmatprep.subr.bf16.mxu0 0
      %4886 = vmatpush1.bf16.msra.mxu0 0
      %4887 = vmatprep.subr.bf16.mxu0 0
      %4888 = vmatpush1.bf16.msra.mxu0 0
      %4889 = vmatprep.subr.bf16.mxu0 0
      %4890 = vmatpush1.bf16.msra.mxu0 0
      %4891 = vmatprep.mubr.bf16.mxu0 0
      %4892 = vmatmul.mubr.bf16.gmra.mrb[0].mxu0 %v4779
      %v4893 = vpop.f32.mrb[0].mxu0
      %v4894 = vadd.f32 0.0, %v4893
      %v4895 = vpop.f32.mrb[0].mxu0
      %v4896 = vpop.f32.mrb[0].mxu0
      %v4897 = vadd.f32 0.0, %v4896
      %v4898 = vpop.f32.mrb[0].mxu0
      %4899 = vmatprep.mubr.bf16.mxu0 0
      %4900 = vmatmul.mubr.bf16.gmra.mrb[0].mxu0 %v4780
      %v4901 = vpop.f32.mrb[0].mxu0
      %v4902 = vadd.f32 0.0, %v4901
      %v4903 = vpop.f32.mrb[0].mxu0
      %v4904 = vpop.f32.mrb[0].mxu0
      %v4905 = vadd.f32 0.0, %v4904
      %v4906 = vpop.f32.mrb[0].mxu0
      %4907 = vmatprep.mubr.bf16.mxu0 0
      %4908 = vmatmul.mubr.bf16.gmra.mrb[0].mxu0 %v4781
      %v4909 = vpop.f32.mrb[0].mxu0
      %v4910 = vadd.f32 0.0, %v4909
      %v4911 = vpop.f32.mrb[0].mxu0
      %v4912 = vpop.f32.mrb[0].mxu0
      %v4913 = vadd.f32 0.0, %v4912
      %v4914 = vpop.f32.mrb[0].mxu0
      %4915 = vmatprep.mubr.bf16.mxu0 0
      %4916 = vmatmul.mubr.bf16.gmra.mrb[0].mxu0 %v4782
      %v4917 = vpop.f32.mrb[0].mxu0
      %v4918 = vadd.f32 0.0, %v4917
      %v4919 = vpop.f32.mrb[0].mxu0
      %v4920 = vpop.f32.mrb[0].mxu0
      %v4921 = vadd.f32 0.0, %v4920
      %v4922 = vpop.f32.mrb[0].mxu0
      %4923 = vmatprep.mubr.bf16.mxu0 0
      %4924 = vmatmul.mubr.bf16.gmra.mrb[0].mxu0 %v4783
      %v4925 = vpop.f32.mrb[0].mxu0
      %v4926 = vadd.f32 0.0, %v4925
      %v4927 = vpop.f32.mrb[0].mxu0
      %v4928 = vpop.f32.mrb[0].mxu0
      %v4929 = vadd.f32 0.0, %v4928
      %v4930 = vpop.f32.mrb[0].mxu0
      %4931 = vmatprep.mubr.bf16.mxu0 0
      %4932 = vmatmul.mubr.bf16.gmra.mrb[0].mxu0 %v4784
      %v4933 = vpop.f32.mrb[0].mxu0
      %v4934 = vadd.f32 0.0, %v4933
      %v4935 = vpop.f32.mrb[0].mxu0
      %v4936 = vpop.f32.mrb[0].mxu0
      %v4937 = vadd.f32 0.0, %v4936
      %v4938 = vpop.f32.mrb[0].mxu0
      %4939 = vmatprep.mubr.bf16.mxu0 0
      %4940 = vmatmul.mubr.bf16.gmra.mrb[0].mxu0 %v4785
      %v4941 = vpop.f32.mrb[0].mxu0
      %v4942 = vadd.f32 0.0, %v4941
      %v4943 = vpop.f32.mrb[0].mxu0
      %v4944 = vpop.f32.mrb[0].mxu0
      %v4945 = vadd.f32 0.0, %v4944
      %v4946 = vpop.f32.mrb[0].mxu0
      %4947 = vmatprep.mubr.bf16.mxu0 0
      %4948 = vmatmul.mubr.bf16.gmra.mrb[0].mxu0 %v4786
      %v4949 = vpop.f32.mrb[0].mxu0
      %v4950 = vadd.f32 0.0, %v4949
      %v4951 = vpop.f32.mrb[0].mxu0
      %v4952 = vpop.f32.mrb[0].mxu0
      %v4953 = vadd.f32 0.0, %v4952
      %v4954 = vpop.f32.mrb[0].mxu0
      %4955 = vmatprep.mubr.bf16.mxu0 0
      %4956 = vmatmul.mubr.bf16.gmra.mrb[0].mxu0 %v4787
      %v4957 = vpop.f32.mrb[0].mxu0
      %v4958 = vadd.f32 0.0, %v4957
      %v4959 = vpop.f32.mrb[0].mxu0
      %v4960 = vpop.f32.mrb[0].mxu0
      %v4961 = vadd.f32 0.0, %v4960
      %v4962 = vpop.f32.mrb[0].mxu0
      %4963 = vmatprep.mubr.bf16.mxu0 0
      %4964 = vmatmul.mubr.bf16.gmra.mrb[0].mxu0 %v4788
      %v4965 = vpop.f32.mrb[0].mxu0
      %v4966 = vadd.f32 0.0, %v4965
      %v4967 = vpop.f32.mrb[0].mxu0
      %v4968 = vpop.f32.mrb[0].mxu0
      %v4969 = vadd.f32 0.0, %v4968
      %v4970 = vpop.f32.mrb[0].mxu0
      %4971 = vmatprep.mubr.bf16.mxu0 0
      %4972 = vmatmul.mubr.bf16.gmra.mrb[0].mxu0 %v4789
      %v4973 = vpop.f32.mrb[0].mxu0
      %v4974 = vadd.f32 0.0, %v4973
      %v4975 = vpop.f32.mrb[0].mxu0
      %v4976 = vpop.f32.mrb[0].mxu0
      %v4977 = vadd.f32 0.0, %v4976
      %v4978 = vpop.f32.mrb[0].mxu0
      %4979 = vmatprep.mubr.bf16.mxu0 0
      %4980 = vmatmul.mubr.bf16.gmra.mrb[0].mxu0 %v4790
      %v4981 = vpop.f32.mrb[0].mxu0
      %v4982 = vadd.f32 0.0, %v4981
      %v4983 = vpop.f32.mrb[0].mxu0
      %v4984 = vpop.f32.mrb[0].mxu0
      %v4985 = vadd.f32 0.0, %v4984
      %v4986 = vpop.f32.mrb[0].mxu0
      %4987 = vmatprep.mubr.bf16.mxu0 0
      %4988 = vmatmul.mubr.bf16.gmra.mrb[0].mxu0 %v4791
      %v4989 = vpop.f32.mrb[0].mxu0
      %v4990 = vadd.f32 0.0, %v4989
      %v4991 = vpop.f32.mrb[0].mxu0
      %v4992 = vpop.f32.mrb[0].mxu0
      %v4993 = vadd.f32 0.0, %v4992
      %v4994 = vpop.f32.mrb[0].mxu0
      %4995 = vmatprep.mubr.bf16.mxu0 0
      %4996 = vmatmul.mubr.bf16.gmra.mrb[0].mxu0 %v4792
      %v4997 = vpop.f32.mrb[0].mxu0
      %v4998 = vadd.f32 0.0, %v4997
      %v4999 = vpop.f32.mrb[0].mxu0
      %v5000 = vpop.f32.mrb[0].mxu0
      %v5001 = vadd.f32 0.0, %v5000
      %v5002 = vpop.f32.mrb[0].mxu0
      %5003 = vmatprep.mubr.bf16.mxu0 0
      %5004 = vmatmul.mubr.bf16.gmra.mrb[0].mxu0 %v4793
      %v5005 = vpop.f32.mrb[0].mxu0
      %v5006 = vadd.f32 0.0, %v5005
      %v5007 = vpop.f32.mrb[0].mxu0
      %v5008 = vpop.f32.mrb[0].mxu0
      %v5009 = vadd.f32 0.0, %v5008
      %v5010 = vpop.f32.mrb[0].mxu0
      %5011 = vmatprep.mubr.bf16.mxu0 0
      %5012 = vmatmul.mubr.bf16.gmra.mrb[0].mxu0 %v4794
      %v5013 = vpop.f32.mrb[0].mxu0
      %v5014 = vadd.f32 0.0, %v5013
      %v5015 = vpop.f32.mrb[0].mxu0
      %v5016 = vpop.f32.mrb[0].mxu0
      %v5017 = vadd.f32 0.0, %v5016
      %v5018 = vpop.f32.mrb[0].mxu0
      %5019 = vdwg.mxu0
      %v5020 = vadd.f32 %v4633, %v4894
      %v5021 = vadd.f32 %v4634, %v4897
      %v5022 = vadd.f32 %v4635, %v4902
      %v5023 = vadd.f32 %v4636, %v4905
      %v5024 = vadd.f32 %v4637, %v4910
      %v5025 = vadd.f32 %v4638, %v4913
      %v5026 = vadd.f32 %v4639, %v4918
      %v5027 = vadd.f32 %v4640, %v4921
      %v5028 = vadd.f32 %v4641, %v4926
      %v5029 = vadd.f32 %v4642, %v4929
      %v5030 = vadd.f32 %v4643, %v4934
      %v5031 = vadd.f32 %v4644, %v4937
      %v5032 = vadd.f32 %v4645, %v4942
      %v5033 = vadd.f32 %v4646, %v4945
      %v5034 = vadd.f32 %v4647, %v4950
      %v5035 = vadd.f32 %v4648, %v4953
      %v5036 = vadd.f32 %v4649, %v4958
      %v5037 = vadd.f32 %v4650, %v4961
      %v5038 = vadd.f32 %v4651, %v4966
      %v5039 = vadd.f32 %v4652, %v4969
      %v5040 = vadd.f32 %v4653, %v4974
      %v5041 = vadd.f32 %v4654, %v4977
      %v5042 = vadd.f32 %v4655, %v4982
      %v5043 = vadd.f32 %v4656, %v4985
      %v5044 = vadd.f32 %v4657, %v4990
      %v5045 = vadd.f32 %v4658, %v4993
      %v5046 = vadd.f32 %v4659, %v4998
      %v5047 = vadd.f32 %v4660, %v5001
      %v5048 = vadd.f32 %v4661, %v5006
      %v5049 = vadd.f32 %v4662, %v5009
      %v5050 = vadd.f32 %v4663, %v5014
      %v5051 = vadd.f32 %v4664, %v5017
      %v5052 = vld [vmem:[%s4665] sm:$0xf]
      %v5053 = vld [vmem:[%s4665 + $0x4] sm:$0xf]
      %v5054 = vld [vmem:[%s4665 + $0x8] sm:$0x1]
      %v5055 = vld [vmem:[%s4665 + $0xc] sm:$0xf]
      %v5056 = vld [vmem:[%s4665 + $0x10] sm:$0xf]
      %v5057 = vld [vmem:[%s4665 + $0x14] sm:$0x1]
      %v5058 = vld [vmem:[%s4665 + $0x18] sm:$0xf]
      %v5059 = vld [vmem:[%s4665 + $0x1c] sm:$0xf]
      %v5060 = vld [vmem:[%s4665 + $0x20] sm:$0x1]
      %v5061 = vld [vmem:[%s4665 + $0x24] sm:$0xf]
      %v5062 = vld [vmem:[%s4665 + $0x28] sm:$0xf]
      %v5063 = vld [vmem:[%s4665 + $0x2c] sm:$0x1]
      %v5064 = vld [vmem:[%s4665 + $0x30] sm:$0xf]
      %v5065 = vld [vmem:[%s4665 + $0x34] sm:$0xf]
      %v5066 = vld [vmem:[%s4665 + $0x38] sm:$0x1]
      %v5067 = vld [vmem:[%s4665 + $0x3c] sm:$0xf]
      %v5068 = vld [vmem:[%s4665 + $0x40] sm:$0xf]
      %v5069 = vld [vmem:[%s4665 + $0x44] sm:$0x1]
      %v5070 = vld [vmem:[%s4665 + $0x48] sm:$0xf]
      %v5071 = vld [vmem:[%s4665 + $0x4c] sm:$0xf]
      %v5072 = vld [vmem:[%s4665 + $0x50] sm:$0x1]
      %v5073 = vld [vmem:[%s4665 + $0x54] sm:$0xf]
      %v5074 = vld [vmem:[%s4665 + $0x58] sm:$0xf]
      %v5075 = vld [vmem:[%s4665 + $0x5c] sm:$0x1]
      %v5076 = vld [vmem:[%s4665 + $0x60] sm:$0xf]
      %v5077 = vld [vmem:[%s4665 + $0x64] sm:$0xf]
      %v5078 = vld [vmem:[%s4665 + $0x68] sm:$0x1]
      %v5079 = vld [vmem:[%s4665 + $0x6c] sm:$0xf]
      %v5080 = vld [vmem:[%s4665 + $0x70] sm:$0xf]
      %v5081 = vld [vmem:[%s4665 + $0x74] sm:$0x1]
      %v5082 = vld [vmem:[%s4665 + $0x78] sm:$0xf]
      %v5083 = vld [vmem:[%s4665 + $0x7c] sm:$0xf]
      %v5084 = vld [vmem:[%s4665 + $0x80] sm:$0x1]
      %v5085 = vld [vmem:[%s4665 + $0x84] sm:$0xf]
      %v5086 = vld [vmem:[%s4665 + $0x88] sm:$0xf]
      %v5087 = vld [vmem:[%s4665 + $0x8c] sm:$0x1]
      %v5088 = vld [vmem:[%s4665 + $0x90] sm:$0xf]
      %v5089 = vld [vmem:[%s4665 + $0x94] sm:$0xf]
      %v5090 = vld [vmem:[%s4665 + $0x98] sm:$0x1]
      %v5091 = vld [vmem:[%s4665 + $0x9c] sm:$0xf]
      %v5092 = vld [vmem:[%s4665 + $0xa0] sm:$0xf]
      %v5093 = vld [vmem:[%s4665 + $0xa4] sm:$0x1]
      %v5094 = vld [vmem:[%s4665 + $0xa8] sm:$0xf]
      %v5095 = vld [vmem:[%s4665 + $0xac] sm:$0xf]
      %v5096 = vld [vmem:[%s4665 + $0xb0] sm:$0x1]
      %v5097 = vld [vmem:[%s4665 + $0xb4] sm:$0xf]
      %v5098 = vld [vmem:[%s4665 + $0xb8] sm:$0xf]
      %v5099 = vld [vmem:[%s4665 + $0xbc] sm:$0x1]
      %v5101 = vshrl.u32 %v5052, 16
      %v5103 = vrot.slane %v5101, 4
      %v5104 = vshll.u32 %v5052, 16
      %v5106 = vrot.slane %v5104, 5
      %v5107 = vor.u32 %v5103, %v5106
      %v5108 = vrot.slane %v5107, 4
      %v5110 = vshll.u32 %v5053, 16
      %v5112 = vrot.slane %v5110, 5
      %v5113 = vsel %vm1562, %v5108, %v5112
      %v5114 = vshrl.u32 %v5053, 16
      %v5116 = vrot.slane %v5114, 4
      %v5117 = vor.u32 %v5116, %v5112
      %v5118 = vrot.slane %v5117, 4
      %v5120 = vshll.u32 %v5054, 16
      %v5122 = vrot.slane %v5120, 5
      %v5123 = vsel %vm1562, %v5118, %v5122
      %v5125 = vshrl.u32 %v5055, 16
      %v5127 = vrot.slane %v5125, 4
      %v5128 = vshll.u32 %v5055, 16
      %v5130 = vrot.slane %v5128, 5
      %v5131 = vor.u32 %v5127, %v5130
      %v5132 = vrot.slane %v5131, 4
      %v5134 = vshll.u32 %v5056, 16
      %v5136 = vrot.slane %v5134, 5
      %v5137 = vsel %vm1562, %v5132, %v5136
      %v5138 = vshrl.u32 %v5056, 16
      %v5140 = vrot.slane %v5138, 4
      %v5141 = vor.u32 %v5140, %v5136
      %v5142 = vrot.slane %v5141, 4
      %v5144 = vshll.u32 %v5057, 16
      %v5146 = vrot.slane %v5144, 5
      %v5147 = vsel %vm1562, %v5142, %v5146
      %v5149 = vshrl.u32 %v5058, 16
      %v5151 = vrot.slane %v5149, 4
      %v5152 = vshll.u32 %v5058, 16
      %v5154 = vrot.slane %v5152, 5
      %v5155 = vor.u32 %v5151, %v5154
      %v5156 = vrot.slane %v5155, 4
      %v5158 = vshll.u32 %v5059, 16
      %v5160 = vrot.slane %v5158, 5
      %v5161 = vsel %vm1562, %v5156, %v5160
      %v5162 = vshrl.u32 %v5059, 16
      %v5164 = vrot.slane %v5162, 4
      %v5165 = vor.u32 %v5164, %v5160
      %v5166 = vrot.slane %v5165, 4
      %v5168 = vshll.u32 %v5060, 16
      %v5170 = vrot.slane %v5168, 5
      %v5171 = vsel %vm1562, %v5166, %v5170
      %v5173 = vshrl.u32 %v5061, 16
      %v5175 = vrot.slane %v5173, 4
      %v5176 = vshll.u32 %v5061, 16
      %v5178 = vrot.slane %v5176, 5
      %v5179 = vor.u32 %v5175, %v5178
      %v5180 = vrot.slane %v5179, 4
      %v5182 = vshll.u32 %v5062, 16
      %v5184 = vrot.slane %v5182, 5
      %v5185 = vsel %vm1562, %v5180, %v5184
      %v5186 = vshrl.u32 %v5062, 16
      %v5188 = vrot.slane %v5186, 4
      %v5189 = vor.u32 %v5188, %v5184
      %v5190 = vrot.slane %v5189, 4
      %v5192 = vshll.u32 %v5063, 16
      %v5194 = vrot.slane %v5192, 5
      %v5195 = vsel %vm1562, %v5190, %v5194
      %v5197 = vshrl.u32 %v5064, 16
      %v5199 = vrot.slane %v5197, 4
      %v5200 = vshll.u32 %v5064, 16
      %v5202 = vrot.slane %v5200, 5
      %v5203 = vor.u32 %v5199, %v5202
      %v5204 = vrot.slane %v5203, 4
      %v5206 = vshll.u32 %v5065, 16
      %v5208 = vrot.slane %v5206, 5
      %v5209 = vsel %vm1562, %v5204, %v5208
      %v5210 = vshrl.u32 %v5065, 16
      %v5212 = vrot.slane %v5210, 4
      %v5213 = vor.u32 %v5212, %v5208
      %v5214 = vrot.slane %v5213, 4
      %v5216 = vshll.u32 %v5066, 16
      %v5218 = vrot.slane %v5216, 5
      %v5219 = vsel %vm1562, %v5214, %v5218
      %v5221 = vshrl.u32 %v5067, 16
      %v5223 = vrot.slane %v5221, 4
      %v5224 = vshll.u32 %v5067, 16
      %v5226 = vrot.slane %v5224, 5
      %v5227 = vor.u32 %v5223, %v5226
      %v5228 = vrot.slane %v5227, 4
      %v5230 = vshll.u32 %v5068, 16
      %v5232 = vrot.slane %v5230, 5
      %v5233 = vsel %vm1562, %v5228, %v5232
      %v5234 = vshrl.u32 %v5068, 16
      %v5236 = vrot.slane %v5234, 4
      %v5237 = vor.u32 %v5236, %v5232
      %v5238 = vrot.slane %v5237, 4
      %v5240 = vshll.u32 %v5069, 16
      %v5242 = vrot.slane %v5240, 5
      %v5243 = vsel %vm1562, %v5238, %v5242
      %v5245 = vshrl.u32 %v5070, 16
      %v5247 = vrot.slane %v5245, 4
      %v5248 = vshll.u32 %v5070, 16
      %v5250 = vrot.slane %v5248, 5
      %v5251 = vor.u32 %v5247, %v5250
      %v5252 = vrot.slane %v5251, 4
      %v5254 = vshll.u32 %v5071, 16
      %v5256 = vrot.slane %v5254, 5
      %v5257 = vsel %vm1562, %v5252, %v5256
      %v5258 = vshrl.u32 %v5071, 16
      %v5260 = vrot.slane %v5258, 4
      %v5261 = vor.u32 %v5260, %v5256
      %v5262 = vrot.slane %v5261, 4
      %v5264 = vshll.u32 %v5072, 16
      %v5266 = vrot.slane %v5264, 5
      %v5267 = vsel %vm1562, %v5262, %v5266
      %v5269 = vshrl.u32 %v5073, 16
      %v5271 = vrot.slane %v5269, 4
      %v5272 = vshll.u32 %v5073, 16
      %v5274 = vrot.slane %v5272, 5
      %v5275 = vor.u32 %v5271, %v5274
      %v5276 = vrot.slane %v5275, 4
      %v5278 = vshll.u32 %v5074, 16
      %v5280 = vrot.slane %v5278, 5
      %v5281 = vsel %vm1562, %v5276, %v5280
      %v5282 = vshrl.u32 %v5074, 16
      %v5284 = vrot.slane %v5282, 4
      %v5285 = vor.u32 %v5284, %v5280
      %v5286 = vrot.slane %v5285, 4
      %v5288 = vshll.u32 %v5075, 16
      %v5290 = vrot.slane %v5288, 5
      %v5291 = vsel %vm1562, %v5286, %v5290
      %v5293 = vshrl.u32 %v5076, 16
      %v5295 = vrot.slane %v5293, 4
      %v5296 = vshll.u32 %v5076, 16
      %v5298 = vrot.slane %v5296, 5
      %v5299 = vor.u32 %v5295, %v5298
      %v5300 = vrot.slane %v5299, 4
      %v5302 = vshll.u32 %v5077, 16
      %v5304 = vrot.slane %v5302, 5
      %v5305 = vsel %vm1562, %v5300, %v5304
      %v5306 = vshrl.u32 %v5077, 16
      %v5308 = vrot.slane %v5306, 4
      %v5309 = vor.u32 %v5308, %v5304
      %v5310 = vrot.slane %v5309, 4
      %v5312 = vshll.u32 %v5078, 16
      %v5314 = vrot.slane %v5312, 5
      %v5315 = vsel %vm1562, %v5310, %v5314
      %v5317 = vshrl.u32 %v5079, 16
      %v5319 = vrot.slane %v5317, 4
      %v5320 = vshll.u32 %v5079, 16
      %v5322 = vrot.slane %v5320, 5
      %v5323 = vor.u32 %v5319, %v5322
      %v5324 = vrot.slane %v5323, 4
      %v5326 = vshll.u32 %v5080, 16
      %v5328 = vrot.slane %v5326, 5
      %v5329 = vsel %vm1562, %v5324, %v5328
      %v5330 = vshrl.u32 %v5080, 16
      %v5332 = vrot.slane %v5330, 4
      %v5333 = vor.u32 %v5332, %v5328
      %v5334 = vrot.slane %v5333, 4
      %v5336 = vshll.u32 %v5081, 16
      %v5338 = vrot.slane %v5336, 5
      %v5339 = vsel %vm1562, %v5334, %v5338
      %v5341 = vshrl.u32 %v5082, 16
      %v5343 = vrot.slane %v5341, 4
      %v5344 = vshll.u32 %v5082, 16
      %v5346 = vrot.slane %v5344, 5
      %v5347 = vor.u32 %v5343, %v5346
      %v5348 = vrot.slane %v5347, 4
      %v5350 = vshll.u32 %v5083, 16
      %v5352 = vrot.slane %v5350, 5
      %v5353 = vsel %vm1562, %v5348, %v5352
      %v5354 = vshrl.u32 %v5083, 16
      %v5356 = vrot.slane %v5354, 4
      %v5357 = vor.u32 %v5356, %v5352
      %v5358 = vrot.slane %v5357, 4
      %v5360 = vshll.u32 %v5084, 16
      %v5362 = vrot.slane %v5360, 5
      %v5363 = vsel %vm1562, %v5358, %v5362
      %v5365 = vshrl.u32 %v5085, 16
      %v5367 = vrot.slane %v5365, 4
      %v5368 = vshll.u32 %v5085, 16
      %v5370 = vrot.slane %v5368, 5
      %v5371 = vor.u32 %v5367, %v5370
      %v5372 = vrot.slane %v5371, 4
      %v5374 = vshll.u32 %v5086, 16
      %v5376 = vrot.slane %v5374, 5
      %v5377 = vsel %vm1562, %v5372, %v5376
      %v5378 = vshrl.u32 %v5086, 16
      %v5380 = vrot.slane %v5378, 4
      %v5381 = vor.u32 %v5380, %v5376
      %v5382 = vrot.slane %v5381, 4
      %v5384 = vshll.u32 %v5087, 16
      %v5386 = vrot.slane %v5384, 5
      %v5387 = vsel %vm1562, %v5382, %v5386
      %v5389 = vshrl.u32 %v5088, 16
      %v5391 = vrot.slane %v5389, 4
      %v5392 = vshll.u32 %v5088, 16
      %v5394 = vrot.slane %v5392, 5
      %v5395 = vor.u32 %v5391, %v5394
      %v5396 = vrot.slane %v5395, 4
      %v5398 = vshll.u32 %v5089, 16
      %v5400 = vrot.slane %v5398, 5
      %v5401 = vsel %vm1562, %v5396, %v5400
      %v5402 = vshrl.u32 %v5089, 16
      %v5404 = vrot.slane %v5402, 4
      %v5405 = vor.u32 %v5404, %v5400
      %v5406 = vrot.slane %v5405, 4
      %v5408 = vshll.u32 %v5090, 16
      %v5410 = vrot.slane %v5408, 5
      %v5411 = vsel %vm1562, %v5406, %v5410
      %v5413 = vshrl.u32 %v5091, 16
      %v5415 = vrot.slane %v5413, 4
      %v5416 = vshll.u32 %v5091, 16
      %v5418 = vrot.slane %v5416, 5
      %v5419 = vor.u32 %v5415, %v5418
      %v5420 = vrot.slane %v5419, 4
      %v5422 = vshll.u32 %v5092, 16
      %v5424 = vrot.slane %v5422, 5
      %v5425 = vsel %vm1562, %v5420, %v5424
      %v5426 = vshrl.u32 %v5092, 16
      %v5428 = vrot.slane %v5426, 4
      %v5429 = vor.u32 %v5428, %v5424
      %v5430 = vrot.slane %v5429, 4
      %v5432 = vshll.u32 %v5093, 16
      %v5434 = vrot.slane %v5432, 5
      %v5435 = vsel %vm1562, %v5430, %v5434
      %v5437 = vshrl.u32 %v5094, 16
      %v5439 = vrot.slane %v5437, 4
      %v5440 = vshll.u32 %v5094, 16
      %v5442 = vrot.slane %v5440, 5
      %v5443 = vor.u32 %v5439, %v5442
      %v5444 = vrot.slane %v5443, 4
      %v5446 = vshll.u32 %v5095, 16
      %v5448 = vrot.slane %v5446, 5
      %v5449 = vsel %vm1562, %v5444, %v5448
      %v5450 = vshrl.u32 %v5095, 16
      %v5452 = vrot.slane %v5450, 4
      %v5453 = vor.u32 %v5452, %v5448
      %v5454 = vrot.slane %v5453, 4
      %v5456 = vshll.u32 %v5096, 16
      %v5458 = vrot.slane %v5456, 5
      %v5459 = vsel %vm1562, %v5454, %v5458
      %v5461 = vshrl.u32 %v5097, 16
      %v5463 = vrot.slane %v5461, 4
      %v5464 = vshll.u32 %v5097, 16
      %v5466 = vrot.slane %v5464, 5
      %v5467 = vor.u32 %v5463, %v5466
      %v5468 = vrot.slane %v5467, 4
      %v5470 = vshll.u32 %v5098, 16
      %v5472 = vrot.slane %v5470, 5
      %v5473 = vsel %vm1562, %v5468, %v5472
      %v5474 = vshrl.u32 %v5098, 16
      %v5476 = vrot.slane %v5474, 4
      %v5477 = vor.u32 %v5476, %v5472
      %v5478 = vrot.slane %v5477, 4
      %v5480 = vshll.u32 %v5099, 16
      %v5482 = vrot.slane %v5480, 5
      %v5483 = vsel %vm1562, %v5478, %v5482
      %s5484 = scalar_lea.vmem %s4, 448
      %v5485 = vld [vmem:[%s5484] sm:$0xf]
      %v5486 = vld [vmem:[%s5484 + $0x4] sm:$0xf]
      %v5487 = vld [vmem:[%s5484 + $0x8] sm:$0xf]
      %v5488 = vld [vmem:[%s5484 + $0xc] sm:$0xf]
      %v5489 = vld [vmem:[%s5484 + $0x10] sm:$0xf]
      %v5490 = vld [vmem:[%s5484 + $0x14] sm:$0xf]
      %v5491 = vld [vmem:[%s5484 + $0x18] sm:$0xf]
      %v5492 = vld [vmem:[%s5484 + $0x1c] sm:$0xf]
      %v5493 = vld [vmem:[%s5484 + $0x20] sm:$0xf]
      %v5494 = vld [vmem:[%s5484 + $0x24] sm:$0xf]
      %v5495 = vld [vmem:[%s5484 + $0x28] sm:$0xf]
      %v5496 = vld [vmem:[%s5484 + $0x2c] sm:$0xf]
      %v5497 = vld [vmem:[%s5484 + $0x30] sm:$0xf]
      %v5498 = vld [vmem:[%s5484 + $0x34] sm:$0xf]
      %v5499 = vld [vmem:[%s5484 + $0x38] sm:$0xf]
      %v5500 = vld [vmem:[%s5484 + $0x3c] sm:$0xf]
      %v5501 = vunpack.c.l.b16 %v5113
      %v5502 = vunpack.c.l.b16 %v5123
      %v5503 = vunpack.c.l.b16 %v5137
      %v5504 = vunpack.c.l.b16 %v5147
      %v5505 = vunpack.c.l.b16 %v5161
      %v5506 = vunpack.c.l.b16 %v5171
      %v5507 = vunpack.c.l.b16 %v5185
      %v5508 = vunpack.c.l.b16 %v5195
      %v5509 = vunpack.c.l.b16 %v5209
      %v5510 = vunpack.c.l.b16 %v5219
      %v5511 = vunpack.c.l.b16 %v5233
      %v5512 = vunpack.c.l.b16 %v5243
      %v5513 = vunpack.c.l.b16 %v5257
      %v5514 = vunpack.c.l.b16 %v5267
      %v5515 = vunpack.c.l.b16 %v5281
      %v5516 = vunpack.c.l.b16 %v5291
      %v5517 = vunpack.c.l.b16 %v5305
      %v5518 = vunpack.c.l.b16 %v5315
      %v5519 = vunpack.c.l.b16 %v5329
      %v5520 = vunpack.c.l.b16 %v5339
      %v5521 = vunpack.c.l.b16 %v5353
      %v5522 = vunpack.c.l.b16 %v5363
      %v5523 = vunpack.c.l.b16 %v5377
      %v5524 = vunpack.c.l.b16 %v5387
      %v5525 = vunpack.c.l.b16 %v5401
      %v5526 = vunpack.c.l.b16 %v5411
      %v5527 = vunpack.c.l.b16 %v5425
      %v5528 = vunpack.c.l.b16 %v5435
      %v5529 = vunpack.c.l.b16 %v5449
      %v5530 = vunpack.c.l.b16 %v5459
      %v5531 = vunpack.c.l.b16 %v5473
      %v5532 = vunpack.c.l.b16 %v5483
      %v5533 = vpack.c.b16 %v5502, %v5501
      %v5534 = vpack.c.b16 %v5504, %v5503
      %v5535 = vpack.c.b16 %v5506, %v5505
      %v5536 = vpack.c.b16 %v5508, %v5507
      %v5537 = vpack.c.b16 %v5510, %v5509
      %v5538 = vpack.c.b16 %v5512, %v5511
      %v5539 = vpack.c.b16 %v5514, %v5513
      %v5540 = vpack.c.b16 %v5516, %v5515
      %v5541 = vpack.c.b16 %v5518, %v5517
      %v5542 = vpack.c.b16 %v5520, %v5519
      %v5543 = vpack.c.b16 %v5522, %v5521
      %v5544 = vpack.c.b16 %v5524, %v5523
      %v5545 = vpack.c.b16 %v5526, %v5525
      %v5546 = vpack.c.b16 %v5528, %v5527
      %v5547 = vpack.c.b16 %v5530, %v5529
      %v5548 = vpack.c.b16 %v5532, %v5531
      %v5581 = vunpack.c.l.b16 %v5485
      %v5582 = vunpack.c.l.b16 %v5486
      %v5583 = vunpack.c.l.b16 %v5487
      %v5584 = vunpack.c.l.b16 %v5488
      %v5585 = vunpack.c.l.b16 %v5489
      %v5586 = vunpack.c.l.b16 %v5490
      %v5587 = vunpack.c.l.b16 %v5491
      %v5588 = vunpack.c.l.b16 %v5492
      %v5589 = vunpack.c.l.b16 %v5493
      %v5590 = vunpack.c.l.b16 %v5494
      %v5591 = vunpack.c.l.b16 %v5495
      %v5592 = vunpack.c.l.b16 %v5496
      %v5593 = vunpack.c.l.b16 %v5497
      %v5594 = vunpack.c.l.b16 %v5498
      %v5595 = vunpack.c.l.b16 %v5499
      %v5596 = vunpack.c.l.b16 %v5500
      %v5597 = vpack.c.b16 %v5582, %v5581
      %v5598 = vpack.c.b16 %v5584, %v5583
      %v5599 = vpack.c.b16 %v5586, %v5585
      %v5600 = vpack.c.b16 %v5588, %v5587
      %v5601 = vpack.c.b16 %v5590, %v5589
      %v5602 = vpack.c.b16 %v5592, %v5591
      %v5603 = vpack.c.b16 %v5594, %v5593
      %v5604 = vpack.c.b16 %v5596, %v5595
      %5613 = vmatprep.subr.bf16.mxu0 0
      %5614 = vmatpush1.bf16.msra.mxu0 %v5597
      %5615 = vmatprep.subr.bf16.mxu0 0
      %5616 = vmatpush1.bf16.msra.mxu0 %v5598
      %5617 = vmatprep.subr.bf16.mxu0 0
      %5618 = vmatpush1.bf16.msra.mxu0 %v5599
      %5619 = vmatprep.subr.bf16.mxu0 0
      %5620 = vmatpush1.bf16.msra.mxu0 %v5600
      %5621 = vmatprep.subr.bf16.mxu0 0
      %5622 = vmatpush1.bf16.msra.mxu0 %v5601
      %5623 = vmatprep.subr.bf16.mxu0 0
      %5624 = vmatpush1.bf16.msra.mxu0 %v5602
      %5625 = vmatprep.subr.bf16.mxu0 0
      %5626 = vmatpush1.bf16.msra.mxu0 %v5603
      %5627 = vmatprep.subr.bf16.mxu0 0
      %5628 = vmatpush1.bf16.msra.mxu0 %v5604
      %5629 = vmatprep.subr.bf16.mxu0 0
      %5630 = vmatpush1.bf16.msra.mxu0 0
      %5631 = vmatprep.subr.bf16.mxu0 0
      %5632 = vmatpush1.bf16.msra.mxu0 0
      %5633 = vmatprep.subr.bf16.mxu0 0
      %5634 = vmatpush1.bf16.msra.mxu0 0
      %5635 = vmatprep.subr.bf16.mxu0 0
      %5636 = vmatpush1.bf16.msra.mxu0 0
      %5637 = vmatprep.subr.bf16.mxu0 0
      %5638 = vmatpush1.bf16.msra.mxu0 0
      %5639 = vmatprep.subr.bf16.mxu0 0
      %5640 = vmatpush1.bf16.msra.mxu0 0
      %5641 = vmatprep.subr.bf16.mxu0 0
      %5642 = vmatpush1.bf16.msra.mxu0 0
      %5643 = vmatprep.subr.bf16.mxu0 0
      %5644 = vmatpush1.bf16.msra.mxu0 0
      %5645 = vmatprep.mubr.bf16.mxu0 0
      %5646 = vmatmul.mubr.bf16.gmra.mrb[0].mxu0 %v5533
      %v5647 = vpop.f32.mrb[0].mxu0
      %v5648 = vadd.f32 0.0, %v5647
      %v5649 = vpop.f32.mrb[0].mxu0
      %v5650 = vpop.f32.mrb[0].mxu0
      %v5651 = vadd.f32 0.0, %v5650
      %v5652 = vpop.f32.mrb[0].mxu0
      %5653 = vmatprep.mubr.bf16.mxu0 0
      %5654 = vmatmul.mubr.bf16.gmra.mrb[0].mxu0 %v5534
      %v5655 = vpop.f32.mrb[0].mxu0
      %v5656 = vadd.f32 0.0, %v5655
      %v5657 = vpop.f32.mrb[0].mxu0
      %v5658 = vpop.f32.mrb[0].mxu0
      %v5659 = vadd.f32 0.0, %v5658
      %v5660 = vpop.f32.mrb[0].mxu0
      %5661 = vmatprep.mubr.bf16.mxu0 0
      %5662 = vmatmul.mubr.bf16.gmra.mrb[0].mxu0 %v5535
      %v5663 = vpop.f32.mrb[0].mxu0
      %v5664 = vadd.f32 0.0, %v5663
      %v5665 = vpop.f32.mrb[0].mxu0
      %v5666 = vpop.f32.mrb[0].mxu0
      %v5667 = vadd.f32 0.0, %v5666
      %v5668 = vpop.f32.mrb[0].mxu0
      %5669 = vmatprep.mubr.bf16.mxu0 0
      %5670 = vmatmul.mubr.bf16.gmra.mrb[0].mxu0 %v5536
      %v5671 = vpop.f32.mrb[0].mxu0
      %v5672 = vadd.f32 0.0, %v5671
      %v5673 = vpop.f32.mrb[0].mxu0
      %v5674 = vpop.f32.mrb[0].mxu0
      %v5675 = vadd.f32 0.0, %v5674
      %v5676 = vpop.f32.mrb[0].mxu0
      %5677 = vmatprep.mubr.bf16.mxu0 0
      %5678 = vmatmul.mubr.bf16.gmra.mrb[0].mxu0 %v5537
      %v5679 = vpop.f32.mrb[0].mxu0
      %v5680 = vadd.f32 0.0, %v5679
      %v5681 = vpop.f32.mrb[0].mxu0
      %v5682 = vpop.f32.mrb[0].mxu0
      %v5683 = vadd.f32 0.0, %v5682
      %v5684 = vpop.f32.mrb[0].mxu0
      %5685 = vmatprep.mubr.bf16.mxu0 0
      %5686 = vmatmul.mubr.bf16.gmra.mrb[0].mxu0 %v5538
      %v5687 = vpop.f32.mrb[0].mxu0
      %v5688 = vadd.f32 0.0, %v5687
      %v5689 = vpop.f32.mrb[0].mxu0
      %v5690 = vpop.f32.mrb[0].mxu0
      %v5691 = vadd.f32 0.0, %v5690
      %v5692 = vpop.f32.mrb[0].mxu0
      %5693 = vmatprep.mubr.bf16.mxu0 0
      %5694 = vmatmul.mubr.bf16.gmra.mrb[0].mxu0 %v5539
      %v5695 = vpop.f32.mrb[0].mxu0
      %v5696 = vadd.f32 0.0, %v5695
      %v5697 = vpop.f32.mrb[0].mxu0
      %v5698 = vpop.f32.mrb[0].mxu0
      %v5699 = vadd.f32 0.0, %v5698
      %v5700 = vpop.f32.mrb[0].mxu0
      %5701 = vmatprep.mubr.bf16.mxu0 0
      %5702 = vmatmul.mubr.bf16.gmra.mrb[0].mxu0 %v5540
      %v5703 = vpop.f32.mrb[0].mxu0
      %v5704 = vadd.f32 0.0, %v5703
      %v5705 = vpop.f32.mrb[0].mxu0
      %v5706 = vpop.f32.mrb[0].mxu0
      %v5707 = vadd.f32 0.0, %v5706
      %v5708 = vpop.f32.mrb[0].mxu0
      %5709 = vmatprep.mubr.bf16.mxu0 0
      %5710 = vmatmul.mubr.bf16.gmra.mrb[0].mxu0 %v5541
      %v5711 = vpop.f32.mrb[0].mxu0
      %v5712 = vadd.f32 0.0, %v5711
      %v5713 = vpop.f32.mrb[0].mxu0
      %v5714 = vpop.f32.mrb[0].mxu0
      %v5715 = vadd.f32 0.0, %v5714
      %v5716 = vpop.f32.mrb[0].mxu0
      %5717 = vmatprep.mubr.bf16.mxu0 0
      %5718 = vmatmul.mubr.bf16.gmra.mrb[0].mxu0 %v5542
      %v5719 = vpop.f32.mrb[0].mxu0
      %v5720 = vadd.f32 0.0, %v5719
      %v5721 = vpop.f32.mrb[0].mxu0
      %v5722 = vpop.f32.mrb[0].mxu0
      %v5723 = vadd.f32 0.0, %v5722
      %v5724 = vpop.f32.mrb[0].mxu0
      %5725 = vmatprep.mubr.bf16.mxu0 0
      %5726 = vmatmul.mubr.bf16.gmra.mrb[0].mxu0 %v5543
      %v5727 = vpop.f32.mrb[0].mxu0
      %v5728 = vadd.f32 0.0, %v5727
      %v5729 = vpop.f32.mrb[0].mxu0
      %v5730 = vpop.f32.mrb[0].mxu0
      %v5731 = vadd.f32 0.0, %v5730
      %v5732 = vpop.f32.mrb[0].mxu0
      %5733 = vmatprep.mubr.bf16.mxu0 0
      %5734 = vmatmul.mubr.bf16.gmra.mrb[0].mxu0 %v5544
      %v5735 = vpop.f32.mrb[0].mxu0
      %v5736 = vadd.f32 0.0, %v5735
      %v5737 = vpop.f32.mrb[0].mxu0
      %v5738 = vpop.f32.mrb[0].mxu0
      %v5739 = vadd.f32 0.0, %v5738
      %v5740 = vpop.f32.mrb[0].mxu0
      %5741 = vmatprep.mubr.bf16.mxu0 0
      %5742 = vmatmul.mubr.bf16.gmra.mrb[0].mxu0 %v5545
      %v5743 = vpop.f32.mrb[0].mxu0
      %v5744 = vadd.f32 0.0, %v5743
      %v5745 = vpop.f32.mrb[0].mxu0
      %v5746 = vpop.f32.mrb[0].mxu0
      %v5747 = vadd.f32 0.0, %v5746
      %v5748 = vpop.f32.mrb[0].mxu0
      %5749 = vmatprep.mubr.bf16.mxu0 0
      %5750 = vmatmul.mubr.bf16.gmra.mrb[0].mxu0 %v5546
      %v5751 = vpop.f32.mrb[0].mxu0
      %v5752 = vadd.f32 0.0, %v5751
      %v5753 = vpop.f32.mrb[0].mxu0
      %v5754 = vpop.f32.mrb[0].mxu0
      %v5755 = vadd.f32 0.0, %v5754
      %v5756 = vpop.f32.mrb[0].mxu0
      %5757 = vmatprep.mubr.bf16.mxu0 0
      %5758 = vmatmul.mubr.bf16.gmra.mrb[0].mxu0 %v5547
      %v5759 = vpop.f32.mrb[0].mxu0
      %v5760 = vadd.f32 0.0, %v5759
      %v5761 = vpop.f32.mrb[0].mxu0
      %v5762 = vpop.f32.mrb[0].mxu0
      %v5763 = vadd.f32 0.0, %v5762
      %v5764 = vpop.f32.mrb[0].mxu0
      %5765 = vmatprep.mubr.bf16.mxu0 0
      %5766 = vmatmul.mubr.bf16.gmra.mrb[0].mxu0 %v5548
      %v5767 = vpop.f32.mrb[0].mxu0
      %v5768 = vadd.f32 0.0, %v5767
      %v5769 = vpop.f32.mrb[0].mxu0
      %v5770 = vpop.f32.mrb[0].mxu0
      %v5771 = vadd.f32 0.0, %v5770
      %v5772 = vpop.f32.mrb[0].mxu0
      %5773 = vdwg.mxu0
      %v5774 = vadd.f32 %v5020, %v5648
      %v5775 = vadd.f32 %v5021, %v5651
      %v5776 = vadd.f32 %v5022, %v5656
      %v5777 = vadd.f32 %v5023, %v5659
      %v5778 = vadd.f32 %v5024, %v5664
      %v5779 = vadd.f32 %v5025, %v5667
      %v5780 = vadd.f32 %v5026, %v5672
      %v5781 = vadd.f32 %v5027, %v5675
      %v5782 = vadd.f32 %v5028, %v5680
      %v5783 = vadd.f32 %v5029, %v5683
      %v5784 = vadd.f32 %v5030, %v5688
      %v5785 = vadd.f32 %v5031, %v5691
      %v5786 = vadd.f32 %v5032, %v5696
      %v5787 = vadd.f32 %v5033, %v5699
      %v5788 = vadd.f32 %v5034, %v5704
      %v5789 = vadd.f32 %v5035, %v5707
      %v5790 = vadd.f32 %v5036, %v5712
      %v5791 = vadd.f32 %v5037, %v5715
      %v5792 = vadd.f32 %v5038, %v5720
      %v5793 = vadd.f32 %v5039, %v5723
      %v5794 = vadd.f32 %v5040, %v5728
      %v5795 = vadd.f32 %v5041, %v5731
      %v5796 = vadd.f32 %v5042, %v5736
      %v5797 = vadd.f32 %v5043, %v5739
      %v5798 = vadd.f32 %v5044, %v5744
      %v5799 = vadd.f32 %v5045, %v5747
      %v5800 = vadd.f32 %v5046, %v5752
      %v5801 = vadd.f32 %v5047, %v5755
      %v5802 = vadd.f32 %v5048, %v5760
      %v5803 = vadd.f32 %v5049, %v5763
      %v5804 = vadd.f32 %v5050, %v5768
      %v5805 = vadd.f32 %v5051, %v5771
      %v5806 = vld [vmem:[%s4665] sm:$0xe]
      %v5807 = vld [vmem:[%s4665 + $0xc] sm:$0xe]
      %v5808 = vld [vmem:[%s4665 + $0x18] sm:$0xe]
      %v5809 = vld [vmem:[%s4665 + $0x24] sm:$0xe]
      %v5810 = vld [vmem:[%s4665 + $0x30] sm:$0xe]
      %v5811 = vld [vmem:[%s4665 + $0x3c] sm:$0xe]
      %v5812 = vld [vmem:[%s4665 + $0x48] sm:$0xe]
      %v5813 = vld [vmem:[%s4665 + $0x54] sm:$0xe]
      %v5814 = vld [vmem:[%s4665 + $0x60] sm:$0xe]
      %v5815 = vld [vmem:[%s4665 + $0x6c] sm:$0xe]
      %v5816 = vld [vmem:[%s4665 + $0x78] sm:$0xe]
      %v5817 = vld [vmem:[%s4665 + $0x84] sm:$0xe]
      %v5818 = vld [vmem:[%s4665 + $0x90] sm:$0xe]
      %v5819 = vld [vmem:[%s4665 + $0x9c] sm:$0xe]
      %v5820 = vld [vmem:[%s4665 + $0xa8] sm:$0xe]
      %v5821 = vld [vmem:[%s4665 + $0xb4] sm:$0xe]
      %v5870 = vrot.slane %v5806, 5
      %v5871 = vrot.slane %v5870, 4
      %v5872 = vrot.slane %v5053, 5
      %v5873 = vsel %vm2592, %v5871, %v5872
      %v5874 = vrot.slane %v5872, 4
      %v5875 = vrot.slane %v5054, 5
      %v5876 = vsel %vm2592, %v5874, %v5875
      %v5877 = vrot.slane %v5807, 5
      %v5878 = vrot.slane %v5877, 4
      %v5879 = vrot.slane %v5056, 5
      %v5880 = vsel %vm2592, %v5878, %v5879
      %v5881 = vrot.slane %v5879, 4
      %v5882 = vrot.slane %v5057, 5
      %v5883 = vsel %vm2592, %v5881, %v5882
      %v5884 = vrot.slane %v5808, 5
      %v5885 = vrot.slane %v5884, 4
      %v5886 = vrot.slane %v5059, 5
      %v5887 = vsel %vm2592, %v5885, %v5886
      %v5888 = vrot.slane %v5886, 4
      %v5889 = vrot.slane %v5060, 5
      %v5890 = vsel %vm2592, %v5888, %v5889
      %v5891 = vrot.slane %v5809, 5
      %v5892 = vrot.slane %v5891, 4
      %v5893 = vrot.slane %v5062, 5
      %v5894 = vsel %vm2592, %v5892, %v5893
      %v5895 = vrot.slane %v5893, 4
      %v5896 = vrot.slane %v5063, 5
      %v5897 = vsel %vm2592, %v5895, %v5896
      %v5898 = vrot.slane %v5810, 5
      %v5899 = vrot.slane %v5898, 4
      %v5900 = vrot.slane %v5065, 5
      %v5901 = vsel %vm2592, %v5899, %v5900
      %v5902 = vrot.slane %v5900, 4
      %v5903 = vrot.slane %v5066, 5
      %v5904 = vsel %vm2592, %v5902, %v5903
      %v5905 = vrot.slane %v5811, 5
      %v5906 = vrot.slane %v5905, 4
      %v5907 = vrot.slane %v5068, 5
      %v5908 = vsel %vm2592, %v5906, %v5907
      %v5909 = vrot.slane %v5907, 4
      %v5910 = vrot.slane %v5069, 5
      %v5911 = vsel %vm2592, %v5909, %v5910
      %v5912 = vrot.slane %v5812, 5
      %v5913 = vrot.slane %v5912, 4
      %v5914 = vrot.slane %v5071, 5
      %v5915 = vsel %vm2592, %v5913, %v5914
      %v5916 = vrot.slane %v5914, 4
      %v5917 = vrot.slane %v5072, 5
      %v5918 = vsel %vm2592, %v5916, %v5917
      %v5919 = vrot.slane %v5813, 5
      %v5920 = vrot.slane %v5919, 4
      %v5921 = vrot.slane %v5074, 5
      %v5922 = vsel %vm2592, %v5920, %v5921
      %v5923 = vrot.slane %v5921, 4
      %v5924 = vrot.slane %v5075, 5
      %v5925 = vsel %vm2592, %v5923, %v5924
      %v5926 = vrot.slane %v5814, 5
      %v5927 = vrot.slane %v5926, 4
      %v5928 = vrot.slane %v5077, 5
      %v5929 = vsel %vm2592, %v5927, %v5928
      %v5930 = vrot.slane %v5928, 4
      %v5931 = vrot.slane %v5078, 5
      %v5932 = vsel %vm2592, %v5930, %v5931
      %v5933 = vrot.slane %v5815, 5
      %v5934 = vrot.slane %v5933, 4
      %v5935 = vrot.slane %v5080, 5
      %v5936 = vsel %vm2592, %v5934, %v5935
      %v5937 = vrot.slane %v5935, 4
      %v5938 = vrot.slane %v5081, 5
      %v5939 = vsel %vm2592, %v5937, %v5938
      %v5940 = vrot.slane %v5816, 5
      %v5941 = vrot.slane %v5940, 4
      %v5942 = vrot.slane %v5083, 5
      %v5943 = vsel %vm2592, %v5941, %v5942
      %v5944 = vrot.slane %v5942, 4
      %v5945 = vrot.slane %v5084, 5
      %v5946 = vsel %vm2592, %v5944, %v5945
      %v5947 = vrot.slane %v5817, 5
      %v5948 = vrot.slane %v5947, 4
      %v5949 = vrot.slane %v5086, 5
      %v5950 = vsel %vm2592, %v5948, %v5949
      %v5951 = vrot.slane %v5949, 4
      %v5952 = vrot.slane %v5087, 5
      %v5953 = vsel %vm2592, %v5951, %v5952
      %v5954 = vrot.slane %v5818, 5
      %v5955 = vrot.slane %v5954, 4
      %v5956 = vrot.slane %v5089, 5
      %v5957 = vsel %vm2592, %v5955, %v5956
      %v5958 = vrot.slane %v5956, 4
      %v5959 = vrot.slane %v5090, 5
      %v5960 = vsel %vm2592, %v5958, %v5959
      %v5961 = vrot.slane %v5819, 5
      %v5962 = vrot.slane %v5961, 4
      %v5963 = vrot.slane %v5092, 5
      %v5964 = vsel %vm2592, %v5962, %v5963
      %v5965 = vrot.slane %v5963, 4
      %v5966 = vrot.slane %v5093, 5
      %v5967 = vsel %vm2592, %v5965, %v5966
      %v5968 = vrot.slane %v5820, 5
      %v5969 = vrot.slane %v5968, 4
      %v5970 = vrot.slane %v5095, 5
      %v5971 = vsel %vm2592, %v5969, %v5970
      %v5972 = vrot.slane %v5970, 4
      %v5973 = vrot.slane %v5096, 5
      %v5974 = vsel %vm2592, %v5972, %v5973
      %v5975 = vrot.slane %v5821, 5
      %v5976 = vrot.slane %v5975, 4
      %v5977 = vrot.slane %v5098, 5
      %v5978 = vsel %vm2592, %v5976, %v5977
      %v5979 = vrot.slane %v5977, 4
      %v5980 = vrot.slane %v5099, 5
      %v5981 = vsel %vm2592, %v5979, %v5980
      %s5982 = scalar_lea.vmem %s4, 512
      %v5983 = vld [vmem:[%s5982] sm:$0xf]
      %v5984 = vld [vmem:[%s5982 + $0x4] sm:$0xf]
      %v5985 = vld [vmem:[%s5982 + $0x8] sm:$0xf]
      %v5986 = vld [vmem:[%s5982 + $0xc] sm:$0xf]
      %v5987 = vld [vmem:[%s5982 + $0x10] sm:$0xf]
      %v5988 = vld [vmem:[%s5982 + $0x14] sm:$0xf]
      %v5989 = vld [vmem:[%s5982 + $0x18] sm:$0xf]
      %v5990 = vld [vmem:[%s5982 + $0x1c] sm:$0xf]
      %v5991 = vld [vmem:[%s5982 + $0x20] sm:$0xf]
      %v5992 = vld [vmem:[%s5982 + $0x24] sm:$0xf]
      %v5993 = vld [vmem:[%s5982 + $0x28] sm:$0xf]
      %v5994 = vld [vmem:[%s5982 + $0x2c] sm:$0xf]
      %v5995 = vld [vmem:[%s5982 + $0x30] sm:$0xf]
      %v5996 = vld [vmem:[%s5982 + $0x34] sm:$0xf]
      %v5997 = vld [vmem:[%s5982 + $0x38] sm:$0xf]
      %v5998 = vld [vmem:[%s5982 + $0x3c] sm:$0xf]
      %v5999 = vunpack.c.l.b16 %v5873
      %v6000 = vunpack.c.l.b16 %v5876
      %v6001 = vunpack.c.l.b16 %v5880
      %v6002 = vunpack.c.l.b16 %v5883
      %v6003 = vunpack.c.l.b16 %v5887
      %v6004 = vunpack.c.l.b16 %v5890
      %v6005 = vunpack.c.l.b16 %v5894
      %v6006 = vunpack.c.l.b16 %v5897
      %v6007 = vunpack.c.l.b16 %v5901
      %v6008 = vunpack.c.l.b16 %v5904
      %v6009 = vunpack.c.l.b16 %v5908
      %v6010 = vunpack.c.l.b16 %v5911
      %v6011 = vunpack.c.l.b16 %v5915
      %v6012 = vunpack.c.l.b16 %v5918
      %v6013 = vunpack.c.l.b16 %v5922
      %v6014 = vunpack.c.l.b16 %v5925
      %v6015 = vunpack.c.l.b16 %v5929
      %v6016 = vunpack.c.l.b16 %v5932
      %v6017 = vunpack.c.l.b16 %v5936
      %v6018 = vunpack.c.l.b16 %v5939
      %v6019 = vunpack.c.l.b16 %v5943
      %v6020 = vunpack.c.l.b16 %v5946
      %v6021 = vunpack.c.l.b16 %v5950
      %v6022 = vunpack.c.l.b16 %v5953
      %v6023 = vunpack.c.l.b16 %v5957
      %v6024 = vunpack.c.l.b16 %v5960
      %v6025 = vunpack.c.l.b16 %v5964
      %v6026 = vunpack.c.l.b16 %v5967
      %v6027 = vunpack.c.l.b16 %v5971
      %v6028 = vunpack.c.l.b16 %v5974
      %v6029 = vunpack.c.l.b16 %v5978
      %v6030 = vunpack.c.l.b16 %v5981
      %v6031 = vpack.c.b16 %v6000, %v5999
      %v6032 = vpack.c.b16 %v6002, %v6001
      %v6033 = vpack.c.b16 %v6004, %v6003
      %v6034 = vpack.c.b16 %v6006, %v6005
      %v6035 = vpack.c.b16 %v6008, %v6007
      %v6036 = vpack.c.b16 %v6010, %v6009
      %v6037 = vpack.c.b16 %v6012, %v6011
      %v6038 = vpack.c.b16 %v6014, %v6013
      %v6039 = vpack.c.b16 %v6016, %v6015
      %v6040 = vpack.c.b16 %v6018, %v6017
      %v6041 = vpack.c.b16 %v6020, %v6019
      %v6042 = vpack.c.b16 %v6022, %v6021
      %v6043 = vpack.c.b16 %v6024, %v6023
      %v6044 = vpack.c.b16 %v6026, %v6025
      %v6045 = vpack.c.b16 %v6028, %v6027
      %v6046 = vpack.c.b16 %v6030, %v6029
      %v6079 = vunpack.c.l.b16 %v5983
      %v6080 = vunpack.c.l.b16 %v5984
      %v6081 = vunpack.c.l.b16 %v5985
      %v6082 = vunpack.c.l.b16 %v5986
      %v6083 = vunpack.c.l.b16 %v5987
      %v6084 = vunpack.c.l.b16 %v5988
      %v6085 = vunpack.c.l.b16 %v5989
      %v6086 = vunpack.c.l.b16 %v5990
      %v6087 = vunpack.c.l.b16 %v5991
      %v6088 = vunpack.c.l.b16 %v5992
      %v6089 = vunpack.c.l.b16 %v5993
      %v6090 = vunpack.c.l.b16 %v5994
      %v6091 = vunpack.c.l.b16 %v5995
      %v6092 = vunpack.c.l.b16 %v5996
      %v6093 = vunpack.c.l.b16 %v5997
      %v6094 = vunpack.c.l.b16 %v5998
      %v6095 = vpack.c.b16 %v6080, %v6079
      %v6096 = vpack.c.b16 %v6082, %v6081
      %v6097 = vpack.c.b16 %v6084, %v6083
      %v6098 = vpack.c.b16 %v6086, %v6085
      %v6099 = vpack.c.b16 %v6088, %v6087
      %v6100 = vpack.c.b16 %v6090, %v6089
      %v6101 = vpack.c.b16 %v6092, %v6091
      %v6102 = vpack.c.b16 %v6094, %v6093
      %6111 = vmatprep.subr.bf16.mxu0 0
      %6112 = vmatpush1.bf16.msra.mxu0 %v6095
      %6113 = vmatprep.subr.bf16.mxu0 0
      %6114 = vmatpush1.bf16.msra.mxu0 %v6096
      %6115 = vmatprep.subr.bf16.mxu0 0
      %6116 = vmatpush1.bf16.msra.mxu0 %v6097
      %6117 = vmatprep.subr.bf16.mxu0 0
      %6118 = vmatpush1.bf16.msra.mxu0 %v6098
      %6119 = vmatprep.subr.bf16.mxu0 0
      %6120 = vmatpush1.bf16.msra.mxu0 %v6099
      %6121 = vmatprep.subr.bf16.mxu0 0
      %6122 = vmatpush1.bf16.msra.mxu0 %v6100
      %6123 = vmatprep.subr.bf16.mxu0 0
      %6124 = vmatpush1.bf16.msra.mxu0 %v6101
      %6125 = vmatprep.subr.bf16.mxu0 0
      %6126 = vmatpush1.bf16.msra.mxu0 %v6102
      %6127 = vmatprep.subr.bf16.mxu0 0
      %6128 = vmatpush1.bf16.msra.mxu0 0
      %6129 = vmatprep.subr.bf16.mxu0 0
      %6130 = vmatpush1.bf16.msra.mxu0 0
      %6131 = vmatprep.subr.bf16.mxu0 0
      %6132 = vmatpush1.bf16.msra.mxu0 0
      %6133 = vmatprep.subr.bf16.mxu0 0
      %6134 = vmatpush1.bf16.msra.mxu0 0
      %6135 = vmatprep.subr.bf16.mxu0 0
      %6136 = vmatpush1.bf16.msra.mxu0 0
      %6137 = vmatprep.subr.bf16.mxu0 0
      %6138 = vmatpush1.bf16.msra.mxu0 0
      %6139 = vmatprep.subr.bf16.mxu0 0
      %6140 = vmatpush1.bf16.msra.mxu0 0
      %6141 = vmatprep.subr.bf16.mxu0 0
      %6142 = vmatpush1.bf16.msra.mxu0 0
      %6143 = vmatprep.mubr.bf16.mxu0 0
      %6144 = vmatmul.mubr.bf16.gmra.mrb[0].mxu0 %v6031
      %v6145 = vpop.f32.mrb[0].mxu0
      %v6146 = vadd.f32 0.0, %v6145
      %v6147 = vpop.f32.mrb[0].mxu0
      %v6148 = vpop.f32.mrb[0].mxu0
      %v6149 = vadd.f32 0.0, %v6148
      %v6150 = vpop.f32.mrb[0].mxu0
      %6151 = vmatprep.mubr.bf16.mxu0 0
      %6152 = vmatmul.mubr.bf16.gmra.mrb[0].mxu0 %v6032
      %v6153 = vpop.f32.mrb[0].mxu0
      %v6154 = vadd.f32 0.0, %v6153
      %v6155 = vpop.f32.mrb[0].mxu0
      %v6156 = vpop.f32.mrb[0].mxu0
      %v6157 = vadd.f32 0.0, %v6156
      %v6158 = vpop.f32.mrb[0].mxu0
      %6159 = vmatprep.mubr.bf16.mxu0 0
      %6160 = vmatmul.mubr.bf16.gmra.mrb[0].mxu0 %v6033
      %v6161 = vpop.f32.mrb[0].mxu0
      %v6162 = vadd.f32 0.0, %v6161
      %v6163 = vpop.f32.mrb[0].mxu0
      %v6164 = vpop.f32.mrb[0].mxu0
      %v6165 = vadd.f32 0.0, %v6164
      %v6166 = vpop.f32.mrb[0].mxu0
      %6167 = vmatprep.mubr.bf16.mxu0 0
      %6168 = vmatmul.mubr.bf16.gmra.mrb[0].mxu0 %v6034
      %v6169 = vpop.f32.mrb[0].mxu0
      %v6170 = vadd.f32 0.0, %v6169
      %v6171 = vpop.f32.mrb[0].mxu0
      %v6172 = vpop.f32.mrb[0].mxu0
      %v6173 = vadd.f32 0.0, %v6172
      %v6174 = vpop.f32.mrb[0].mxu0
      %6175 = vmatprep.mubr.bf16.mxu0 0
      %6176 = vmatmul.mubr.bf16.gmra.mrb[0].mxu0 %v6035
      %v6177 = vpop.f32.mrb[0].mxu0
      %v6178 = vadd.f32 0.0, %v6177
      %v6179 = vpop.f32.mrb[0].mxu0
      %v6180 = vpop.f32.mrb[0].mxu0
      %v6181 = vadd.f32 0.0, %v6180
      %v6182 = vpop.f32.mrb[0].mxu0
      %6183 = vmatprep.mubr.bf16.mxu0 0
      %6184 = vmatmul.mubr.bf16.gmra.mrb[0].mxu0 %v6036
      %v6185 = vpop.f32.mrb[0].mxu0
      %v6186 = vadd.f32 0.0, %v6185
      %v6187 = vpop.f32.mrb[0].mxu0
      %v6188 = vpop.f32.mrb[0].mxu0
      %v6189 = vadd.f32 0.0, %v6188
      %v6190 = vpop.f32.mrb[0].mxu0
      %6191 = vmatprep.mubr.bf16.mxu0 0
      %6192 = vmatmul.mubr.bf16.gmra.mrb[0].mxu0 %v6037
      %v6193 = vpop.f32.mrb[0].mxu0
      %v6194 = vadd.f32 0.0, %v6193
      %v6195 = vpop.f32.mrb[0].mxu0
      %v6196 = vpop.f32.mrb[0].mxu0
      %v6197 = vadd.f32 0.0, %v6196
      %v6198 = vpop.f32.mrb[0].mxu0
      %6199 = vmatprep.mubr.bf16.mxu0 0
      %6200 = vmatmul.mubr.bf16.gmra.mrb[0].mxu0 %v6038
      %v6201 = vpop.f32.mrb[0].mxu0
      %v6202 = vadd.f32 0.0, %v6201
      %v6203 = vpop.f32.mrb[0].mxu0
      %v6204 = vpop.f32.mrb[0].mxu0
      %v6205 = vadd.f32 0.0, %v6204
      %v6206 = vpop.f32.mrb[0].mxu0
      %6207 = vmatprep.mubr.bf16.mxu0 0
      %6208 = vmatmul.mubr.bf16.gmra.mrb[0].mxu0 %v6039
      %v6209 = vpop.f32.mrb[0].mxu0
      %v6210 = vadd.f32 0.0, %v6209
      %v6211 = vpop.f32.mrb[0].mxu0
      %v6212 = vpop.f32.mrb[0].mxu0
      %v6213 = vadd.f32 0.0, %v6212
      %v6214 = vpop.f32.mrb[0].mxu0
      %6215 = vmatprep.mubr.bf16.mxu0 0
      %6216 = vmatmul.mubr.bf16.gmra.mrb[0].mxu0 %v6040
      %v6217 = vpop.f32.mrb[0].mxu0
      %v6218 = vadd.f32 0.0, %v6217
      %v6219 = vpop.f32.mrb[0].mxu0
      %v6220 = vpop.f32.mrb[0].mxu0
      %v6221 = vadd.f32 0.0, %v6220
      %v6222 = vpop.f32.mrb[0].mxu0
      %6223 = vmatprep.mubr.bf16.mxu0 0
      %6224 = vmatmul.mubr.bf16.gmra.mrb[0].mxu0 %v6041
      %v6225 = vpop.f32.mrb[0].mxu0
      %v6226 = vadd.f32 0.0, %v6225
      %v6227 = vpop.f32.mrb[0].mxu0
      %v6228 = vpop.f32.mrb[0].mxu0
      %v6229 = vadd.f32 0.0, %v6228
      %v6230 = vpop.f32.mrb[0].mxu0
      %6231 = vmatprep.mubr.bf16.mxu0 0
      %6232 = vmatmul.mubr.bf16.gmra.mrb[0].mxu0 %v6042
      %v6233 = vpop.f32.mrb[0].mxu0
      %v6234 = vadd.f32 0.0, %v6233
      %v6235 = vpop.f32.mrb[0].mxu0
      %v6236 = vpop.f32.mrb[0].mxu0
      %v6237 = vadd.f32 0.0, %v6236
      %v6238 = vpop.f32.mrb[0].mxu0
      %6239 = vmatprep.mubr.bf16.mxu0 0
      %6240 = vmatmul.mubr.bf16.gmra.mrb[0].mxu0 %v6043
      %v6241 = vpop.f32.mrb[0].mxu0
      %v6242 = vadd.f32 0.0, %v6241
      %v6243 = vpop.f32.mrb[0].mxu0
      %v6244 = vpop.f32.mrb[0].mxu0
      %v6245 = vadd.f32 0.0, %v6244
      %v6246 = vpop.f32.mrb[0].mxu0
      %6247 = vmatprep.mubr.bf16.mxu0 0
      %6248 = vmatmul.mubr.bf16.gmra.mrb[0].mxu0 %v6044
      %v6249 = vpop.f32.mrb[0].mxu0
      %v6250 = vadd.f32 0.0, %v6249
      %v6251 = vpop.f32.mrb[0].mxu0
      %v6252 = vpop.f32.mrb[0].mxu0
      %v6253 = vadd.f32 0.0, %v6252
      %v6254 = vpop.f32.mrb[0].mxu0
      %6255 = vmatprep.mubr.bf16.mxu0 0
      %6256 = vmatmul.mubr.bf16.gmra.mrb[0].mxu0 %v6045
      %v6257 = vpop.f32.mrb[0].mxu0
      %v6258 = vadd.f32 0.0, %v6257
      %v6259 = vpop.f32.mrb[0].mxu0
      %v6260 = vpop.f32.mrb[0].mxu0
      %v6261 = vadd.f32 0.0, %v6260
      %v6262 = vpop.f32.mrb[0].mxu0
      %6263 = vmatprep.mubr.bf16.mxu0 0
      %6264 = vmatmul.mubr.bf16.gmra.mrb[0].mxu0 %v6046
      %v6265 = vpop.f32.mrb[0].mxu0
      %v6266 = vadd.f32 0.0, %v6265
      %v6267 = vpop.f32.mrb[0].mxu0
      %v6268 = vpop.f32.mrb[0].mxu0
      %v6269 = vadd.f32 0.0, %v6268
      %v6270 = vpop.f32.mrb[0].mxu0
      %6271 = vdwg.mxu0
      %v6272 = vadd.f32 %v5774, %v6146
      %v6273 = vadd.f32 %v5775, %v6149
      %v6274 = vadd.f32 %v5776, %v6154
      %v6275 = vadd.f32 %v5777, %v6157
      %v6276 = vadd.f32 %v5778, %v6162
      %v6277 = vadd.f32 %v5779, %v6165
      %v6278 = vadd.f32 %v5780, %v6170
      %v6279 = vadd.f32 %v5781, %v6173
      %v6280 = vadd.f32 %v5782, %v6178
      %v6281 = vadd.f32 %v5783, %v6181
      %v6282 = vadd.f32 %v5784, %v6186
      %v6283 = vadd.f32 %v5785, %v6189
      %v6284 = vadd.f32 %v5786, %v6194
      %v6285 = vadd.f32 %v5787, %v6197
      %v6286 = vadd.f32 %v5788, %v6202
      %v6287 = vadd.f32 %v5789, %v6205
      %v6288 = vadd.f32 %v5790, %v6210
      %v6289 = vadd.f32 %v5791, %v6213
      %v6290 = vadd.f32 %v5792, %v6218
      %v6291 = vadd.f32 %v5793, %v6221
      %v6292 = vadd.f32 %v5794, %v6226
      %v6293 = vadd.f32 %v5795, %v6229
      %v6294 = vadd.f32 %v5796, %v6234
      %v6295 = vadd.f32 %v5797, %v6237
      %v6296 = vadd.f32 %v5798, %v6242
      %v6297 = vadd.f32 %v5799, %v6245
      %v6298 = vadd.f32 %v5800, %v6250
      %v6299 = vadd.f32 %v5801, %v6253
      %v6300 = vadd.f32 %v5802, %v6258
      %v6301 = vadd.f32 %v5803, %v6261
      %v6302 = vadd.f32 %v5804, %v6266
      %v6303 = vadd.f32 %v5805, %v6269
      %v6304 = vld [vmem:[%s5] sm:$0x1]
      %v6306 = vlaneseq
      %v6307 = vshrl.u32 %v6306, 7
      %v6308 = vsub.s32 0, %v6307
      %v6309 = vrot.slane %v6304, %v6308
      %v6311 = vmul.f32 %v6272, %v6309
      %v6312 = vmul.f32 %v6273, %v6309
      %v6313 = vmul.f32 %v6274, %v6309
      %v6314 = vmul.f32 %v6275, %v6309
      %v6315 = vmul.f32 %v6276, %v6309
      %v6316 = vmul.f32 %v6277, %v6309
      %v6317 = vmul.f32 %v6278, %v6309
      %v6318 = vmul.f32 %v6279, %v6309
      %v6319 = vmul.f32 %v6280, %v6309
      %v6320 = vmul.f32 %v6281, %v6309
      %v6321 = vmul.f32 %v6282, %v6309
      %v6322 = vmul.f32 %v6283, %v6309
      %v6323 = vmul.f32 %v6284, %v6309
      %v6324 = vmul.f32 %v6285, %v6309
      %v6325 = vmul.f32 %v6286, %v6309
      %v6326 = vmul.f32 %v6287, %v6309
      %v6327 = vmul.f32 %v6288, %v6309
      %v6328 = vmul.f32 %v6289, %v6309
      %v6329 = vmul.f32 %v6290, %v6309
      %v6330 = vmul.f32 %v6291, %v6309
      %v6331 = vmul.f32 %v6292, %v6309
      %v6332 = vmul.f32 %v6293, %v6309
      %v6333 = vmul.f32 %v6294, %v6309
      %v6334 = vmul.f32 %v6295, %v6309
      %v6335 = vmul.f32 %v6296, %v6309
      %v6336 = vmul.f32 %v6297, %v6309
      %v6337 = vmul.f32 %v6298, %v6309
      %v6338 = vmul.f32 %v6299, %v6309
      %v6339 = vmul.f32 %v6300, %v6309
      %v6340 = vmul.f32 %v6301, %v6309
      %v6341 = vmul.f32 %v6302, %v6309
      %v6342 = vmul.f32 %v6303, %v6309
      %v6343 = vld [vmem:[%s6] sm:$0x1]
      %v6345 = vlaneseq
      %v6346 = vshrl.u32 %v6345, 7
      %v6347 = vsub.s32 0, %v6346
      %v6348 = vrot.slane %v6343, %v6347
      %v6350 = vadd.f32 %v6311, %v6348
      %v6351 = vadd.f32 %v6312, %v6348
      %v6352 = vadd.f32 %v6313, %v6348
      %v6353 = vadd.f32 %v6314, %v6348
      %v6354 = vadd.f32 %v6315, %v6348
      %v6355 = vadd.f32 %v6316, %v6348
      %v6356 = vadd.f32 %v6317, %v6348
      %v6357 = vadd.f32 %v6318, %v6348
      %v6358 = vadd.f32 %v6319, %v6348
      %v6359 = vadd.f32 %v6320, %v6348
      %v6360 = vadd.f32 %v6321, %v6348
      %v6361 = vadd.f32 %v6322, %v6348
      %v6362 = vadd.f32 %v6323, %v6348
      %v6363 = vadd.f32 %v6324, %v6348
      %v6364 = vadd.f32 %v6325, %v6348
      %v6365 = vadd.f32 %v6326, %v6348
      %v6366 = vadd.f32 %v6327, %v6348
      %v6367 = vadd.f32 %v6328, %v6348
      %v6368 = vadd.f32 %v6329, %v6348
      %v6369 = vadd.f32 %v6330, %v6348
      %v6370 = vadd.f32 %v6331, %v6348
      %v6371 = vadd.f32 %v6332, %v6348
      %v6372 = vadd.f32 %v6333, %v6348
      %v6373 = vadd.f32 %v6334, %v6348
      %v6374 = vadd.f32 %v6335, %v6348
      %v6375 = vadd.f32 %v6336, %v6348
      %v6376 = vadd.f32 %v6337, %v6348
      %v6377 = vadd.f32 %v6338, %v6348
      %v6378 = vadd.f32 %v6339, %v6348
      %v6379 = vadd.f32 %v6340, %v6348
      %v6380 = vadd.f32 %v6341, %v6348
      %v6381 = vadd.f32 %v6342, %v6348
      %v6382 = vmax.f32 %v6350, 0.0
      %v6383 = vmax.f32 %v6351, 0.0
      %v6384 = vmax.f32 %v6352, 0.0
      %v6385 = vmax.f32 %v6353, 0.0
      %v6386 = vmax.f32 %v6354, 0.0
      %v6387 = vmax.f32 %v6355, 0.0
      %v6388 = vmax.f32 %v6356, 0.0
      %v6389 = vmax.f32 %v6357, 0.0
      %v6390 = vmax.f32 %v6358, 0.0
      %v6391 = vmax.f32 %v6359, 0.0
      %v6392 = vmax.f32 %v6360, 0.0
      %v6393 = vmax.f32 %v6361, 0.0
      %v6394 = vmax.f32 %v6362, 0.0
      %v6395 = vmax.f32 %v6363, 0.0
      %v6396 = vmax.f32 %v6364, 0.0
      %v6397 = vmax.f32 %v6365, 0.0
      %v6398 = vmax.f32 %v6366, 0.0
      %v6399 = vmax.f32 %v6367, 0.0
      %v6400 = vmax.f32 %v6368, 0.0
      %v6401 = vmax.f32 %v6369, 0.0
      %v6402 = vmax.f32 %v6370, 0.0
      %v6403 = vmax.f32 %v6371, 0.0
      %v6404 = vmax.f32 %v6372, 0.0
      %v6405 = vmax.f32 %v6373, 0.0
      %v6406 = vmax.f32 %v6374, 0.0
      %v6407 = vmax.f32 %v6375, 0.0
      %v6408 = vmax.f32 %v6376, 0.0
      %v6409 = vmax.f32 %v6377, 0.0
      %v6410 = vmax.f32 %v6378, 0.0
      %v6411 = vmax.f32 %v6379, 0.0
      %v6412 = vmax.f32 %v6380, 0.0
      %v6413 = vmax.f32 %v6381, 0.0
      %v6414 = vpack.c.bf16 %v6383, %v6382
      %v6415 = vpack.c.bf16 %v6385, %v6384
      %v6416 = vpack.c.bf16 %v6387, %v6386
      %v6417 = vpack.c.bf16 %v6389, %v6388
      %v6418 = vpack.c.bf16 %v6391, %v6390
      %v6419 = vpack.c.bf16 %v6393, %v6392
      %v6420 = vpack.c.bf16 %v6395, %v6394
      %v6421 = vpack.c.bf16 %v6397, %v6396
      %v6422 = vpack.c.bf16 %v6399, %v6398
      %v6423 = vpack.c.bf16 %v6401, %v6400
      %v6424 = vpack.c.bf16 %v6403, %v6402
      %v6425 = vpack.c.bf16 %v6405, %v6404
      %v6426 = vpack.c.bf16 %v6407, %v6406
      %v6427 = vpack.c.bf16 %v6409, %v6408
      %v6428 = vpack.c.bf16 %v6411, %v6410
      %v6429 = vpack.c.bf16 %v6413, %v6412
      %v6430 = vld [vmem:[%s7] sm:$0xf]
      %v6431 = vld [vmem:[%s7 + $0x4] sm:$0xf]
      %v6432 = vld [vmem:[%s7 + $0x8] sm:$0xf]
      %v6433 = vld [vmem:[%s7 + $0xc] sm:$0xf]
      %v6434 = vld [vmem:[%s7 + $0x10] sm:$0xf]
      %v6435 = vld [vmem:[%s7 + $0x14] sm:$0xf]
      %v6436 = vld [vmem:[%s7 + $0x18] sm:$0xf]
      %v6437 = vld [vmem:[%s7 + $0x1c] sm:$0xf]
      %v6438 = vld [vmem:[%s7 + $0x20] sm:$0xf]
      %v6439 = vld [vmem:[%s7 + $0x24] sm:$0xf]
      %v6440 = vld [vmem:[%s7 + $0x28] sm:$0xf]
      %v6441 = vld [vmem:[%s7 + $0x2c] sm:$0xf]
      %v6442 = vld [vmem:[%s7 + $0x30] sm:$0xf]
      %v6443 = vld [vmem:[%s7 + $0x34] sm:$0xf]
      %v6444 = vld [vmem:[%s7 + $0x38] sm:$0xf]
      %v6445 = vld [vmem:[%s7 + $0x3c] sm:$0xf]
      %v6462 = vunpack.c.l.b16 %v6430
      %v6463 = vunpack.c.l.b16 %v6431
      %v6464 = vunpack.c.l.b16 %v6432
      %v6465 = vunpack.c.l.b16 %v6433
      %v6466 = vunpack.c.l.b16 %v6434
      %v6467 = vunpack.c.l.b16 %v6435
      %v6468 = vunpack.c.l.b16 %v6436
      %v6469 = vunpack.c.l.b16 %v6437
      %v6470 = vunpack.c.l.b16 %v6438
      %v6471 = vunpack.c.l.b16 %v6439
      %v6472 = vunpack.c.l.b16 %v6440
      %v6473 = vunpack.c.l.b16 %v6441
      %v6474 = vunpack.c.l.b16 %v6442
      %v6475 = vunpack.c.l.b16 %v6443
      %v6476 = vunpack.c.l.b16 %v6444
      %v6477 = vunpack.c.l.b16 %v6445
      %v6478 = vpack.c.b16 %v6463, %v6462
      %v6479 = vpack.c.b16 %v6465, %v6464
      %v6480 = vpack.c.b16 %v6467, %v6466
      %v6481 = vpack.c.b16 %v6469, %v6468
      %v6482 = vpack.c.b16 %v6471, %v6470
      %v6483 = vpack.c.b16 %v6473, %v6472
      %v6484 = vpack.c.b16 %v6475, %v6474
      %v6485 = vpack.c.b16 %v6477, %v6476
      %6494 = vmatprep.subr.bf16.mxu0 0
      %6495 = vmatpush1.bf16.msra.mxu0 %v6478
      %6496 = vmatprep.subr.bf16.mxu0 0
      %6497 = vmatpush1.bf16.msra.mxu0 %v6479
      %6498 = vmatprep.subr.bf16.mxu0 0
      %6499 = vmatpush1.bf16.msra.mxu0 %v6480
      %6500 = vmatprep.subr.bf16.mxu0 0
      %6501 = vmatpush1.bf16.msra.mxu0 %v6481
      %6502 = vmatprep.subr.bf16.mxu0 0
      %6503 = vmatpush1.bf16.msra.mxu0 %v6482
      %6504 = vmatprep.subr.bf16.mxu0 0
      %6505 = vmatpush1.bf16.msra.mxu0 %v6483
      %6506 = vmatprep.subr.bf16.mxu0 0
      %6507 = vmatpush1.bf16.msra.mxu0 %v6484
      %6508 = vmatprep.subr.bf16.mxu0 0
      %6509 = vmatpush1.bf16.msra.mxu0 %v6485
      %6510 = vmatprep.subr.bf16.mxu0 0
      %6511 = vmatpush1.bf16.msra.mxu0 0
      %6512 = vmatprep.subr.bf16.mxu0 0
      %6513 = vmatpush1.bf16.msra.mxu0 0
      %6514 = vmatprep.subr.bf16.mxu0 0
      %6515 = vmatpush1.bf16.msra.mxu0 0
      %6516 = vmatprep.subr.bf16.mxu0 0
      %6517 = vmatpush1.bf16.msra.mxu0 0
      %6518 = vmatprep.subr.bf16.mxu0 0
      %6519 = vmatpush1.bf16.msra.mxu0 0
      %6520 = vmatprep.subr.bf16.mxu0 0
      %6521 = vmatpush1.bf16.msra.mxu0 0
      %6522 = vmatprep.subr.bf16.mxu0 0
      %6523 = vmatpush1.bf16.msra.mxu0 0
      %6524 = vmatprep.subr.bf16.mxu0 0
      %6525 = vmatpush1.bf16.msra.mxu0 0
      %6526 = vmatprep.mubr.bf16.mxu0 0
      %6527 = vmatmul.mubr.bf16.gmra.mrb[0].mxu0 %v6414
      %v6528 = vpop.f32.mrb[0].mxu0
      %v6529 = vadd.f32 0.0, %v6528
      %v6530 = vpop.f32.mrb[0].mxu0
      %v6531 = vpop.f32.mrb[0].mxu0
      %v6532 = vadd.f32 0.0, %v6531
      %v6533 = vpop.f32.mrb[0].mxu0
      %6534 = vmatprep.mubr.bf16.mxu0 0
      %6535 = vmatmul.mubr.bf16.gmra.mrb[0].mxu0 %v6415
      %v6536 = vpop.f32.mrb[0].mxu0
      %v6537 = vadd.f32 0.0, %v6536
      %v6538 = vpop.f32.mrb[0].mxu0
      %v6539 = vpop.f32.mrb[0].mxu0
      %v6540 = vadd.f32 0.0, %v6539
      %v6541 = vpop.f32.mrb[0].mxu0
      %6542 = vmatprep.mubr.bf16.mxu0 0
      %6543 = vmatmul.mubr.bf16.gmra.mrb[0].mxu0 %v6416
      %v6544 = vpop.f32.mrb[0].mxu0
      %v6545 = vadd.f32 0.0, %v6544
      %v6546 = vpop.f32.mrb[0].mxu0
      %v6547 = vpop.f32.mrb[0].mxu0
      %v6548 = vadd.f32 0.0, %v6547
      %v6549 = vpop.f32.mrb[0].mxu0
      %6550 = vmatprep.mubr.bf16.mxu0 0
      %6551 = vmatmul.mubr.bf16.gmra.mrb[0].mxu0 %v6417
      %v6552 = vpop.f32.mrb[0].mxu0
      %v6553 = vadd.f32 0.0, %v6552
      %v6554 = vpop.f32.mrb[0].mxu0
      %v6555 = vpop.f32.mrb[0].mxu0
      %v6556 = vadd.f32 0.0, %v6555
      %v6557 = vpop.f32.mrb[0].mxu0
      %6558 = vmatprep.mubr.bf16.mxu0 0
      %6559 = vmatmul.mubr.bf16.gmra.mrb[0].mxu0 %v6418
      %v6560 = vpop.f32.mrb[0].mxu0
      %v6561 = vadd.f32 0.0, %v6560
      %v6562 = vpop.f32.mrb[0].mxu0
      %v6563 = vpop.f32.mrb[0].mxu0
      %v6564 = vadd.f32 0.0, %v6563
      %v6565 = vpop.f32.mrb[0].mxu0
      %6566 = vmatprep.mubr.bf16.mxu0 0
      %6567 = vmatmul.mubr.bf16.gmra.mrb[0].mxu0 %v6419
      %v6568 = vpop.f32.mrb[0].mxu0
      %v6569 = vadd.f32 0.0, %v6568
      %v6570 = vpop.f32.mrb[0].mxu0
      %v6571 = vpop.f32.mrb[0].mxu0
      %v6572 = vadd.f32 0.0, %v6571
      %v6573 = vpop.f32.mrb[0].mxu0
      %6574 = vmatprep.mubr.bf16.mxu0 0
      %6575 = vmatmul.mubr.bf16.gmra.mrb[0].mxu0 %v6420
      %v6576 = vpop.f32.mrb[0].mxu0
      %v6577 = vadd.f32 0.0, %v6576
      %v6578 = vpop.f32.mrb[0].mxu0
      %v6579 = vpop.f32.mrb[0].mxu0
      %v6580 = vadd.f32 0.0, %v6579
      %v6581 = vpop.f32.mrb[0].mxu0
      %6582 = vmatprep.mubr.bf16.mxu0 0
      %6583 = vmatmul.mubr.bf16.gmra.mrb[0].mxu0 %v6421
      %v6584 = vpop.f32.mrb[0].mxu0
      %v6585 = vadd.f32 0.0, %v6584
      %v6586 = vpop.f32.mrb[0].mxu0
      %v6587 = vpop.f32.mrb[0].mxu0
      %v6588 = vadd.f32 0.0, %v6587
      %v6589 = vpop.f32.mrb[0].mxu0
      %6590 = vmatprep.mubr.bf16.mxu0 0
      %6591 = vmatmul.mubr.bf16.gmra.mrb[0].mxu0 %v6422
      %v6592 = vpop.f32.mrb[0].mxu0
      %v6593 = vadd.f32 0.0, %v6592
      %v6594 = vpop.f32.mrb[0].mxu0
      %v6595 = vpop.f32.mrb[0].mxu0
      %v6596 = vadd.f32 0.0, %v6595
      %v6597 = vpop.f32.mrb[0].mxu0
      %6598 = vmatprep.mubr.bf16.mxu0 0
      %6599 = vmatmul.mubr.bf16.gmra.mrb[0].mxu0 %v6423
      %v6600 = vpop.f32.mrb[0].mxu0
      %v6601 = vadd.f32 0.0, %v6600
      %v6602 = vpop.f32.mrb[0].mxu0
      %v6603 = vpop.f32.mrb[0].mxu0
      %v6604 = vadd.f32 0.0, %v6603
      %v6605 = vpop.f32.mrb[0].mxu0
      %6606 = vmatprep.mubr.bf16.mxu0 0
      %6607 = vmatmul.mubr.bf16.gmra.mrb[0].mxu0 %v6424
      %v6608 = vpop.f32.mrb[0].mxu0
      %v6609 = vadd.f32 0.0, %v6608
      %v6610 = vpop.f32.mrb[0].mxu0
      %v6611 = vpop.f32.mrb[0].mxu0
      %v6612 = vadd.f32 0.0, %v6611
      %v6613 = vpop.f32.mrb[0].mxu0
      %6614 = vmatprep.mubr.bf16.mxu0 0
      %6615 = vmatmul.mubr.bf16.gmra.mrb[0].mxu0 %v6425
      %v6616 = vpop.f32.mrb[0].mxu0
      %v6617 = vadd.f32 0.0, %v6616
      %v6618 = vpop.f32.mrb[0].mxu0
      %v6619 = vpop.f32.mrb[0].mxu0
      %v6620 = vadd.f32 0.0, %v6619
      %v6621 = vpop.f32.mrb[0].mxu0
      %6622 = vmatprep.mubr.bf16.mxu0 0
      %6623 = vmatmul.mubr.bf16.gmra.mrb[0].mxu0 %v6426
      %v6624 = vpop.f32.mrb[0].mxu0
      %v6625 = vadd.f32 0.0, %v6624
      %v6626 = vpop.f32.mrb[0].mxu0
      %v6627 = vpop.f32.mrb[0].mxu0
      %v6628 = vadd.f32 0.0, %v6627
      %v6629 = vpop.f32.mrb[0].mxu0
      %6630 = vmatprep.mubr.bf16.mxu0 0
      %6631 = vmatmul.mubr.bf16.gmra.mrb[0].mxu0 %v6427
      %v6632 = vpop.f32.mrb[0].mxu0
      %v6633 = vadd.f32 0.0, %v6632
      %v6634 = vpop.f32.mrb[0].mxu0
      %v6635 = vpop.f32.mrb[0].mxu0
      %v6636 = vadd.f32 0.0, %v6635
      %v6637 = vpop.f32.mrb[0].mxu0
      %6638 = vmatprep.mubr.bf16.mxu0 0
      %6639 = vmatmul.mubr.bf16.gmra.mrb[0].mxu0 %v6428
      %v6640 = vpop.f32.mrb[0].mxu0
      %v6641 = vadd.f32 0.0, %v6640
      %v6642 = vpop.f32.mrb[0].mxu0
      %v6643 = vpop.f32.mrb[0].mxu0
      %v6644 = vadd.f32 0.0, %v6643
      %v6645 = vpop.f32.mrb[0].mxu0
      %6646 = vmatprep.mubr.bf16.mxu0 0
      %6647 = vmatmul.mubr.bf16.gmra.mrb[0].mxu0 %v6429
      %v6648 = vpop.f32.mrb[0].mxu0
      %v6649 = vadd.f32 0.0, %v6648
      %v6650 = vpop.f32.mrb[0].mxu0
      %v6651 = vpop.f32.mrb[0].mxu0
      %v6652 = vadd.f32 0.0, %v6651
      %v6653 = vpop.f32.mrb[0].mxu0
      %6654 = vdwg.mxu0
      %v6655 = vld [vmem:[%s8] sm:$0x1]
      %v6657 = vlaneseq
      %v6658 = vshrl.u32 %v6657, 7
      %v6659 = vsub.s32 0, %v6658
      %v6660 = vrot.slane %v6655, %v6659
      %v6662 = vmul.f32 %v6529, %v6660
      %v6663 = vmul.f32 %v6532, %v6660
      %v6664 = vmul.f32 %v6537, %v6660
      %v6665 = vmul.f32 %v6540, %v6660
      %v6666 = vmul.f32 %v6545, %v6660
      %v6667 = vmul.f32 %v6548, %v6660
      %v6668 = vmul.f32 %v6553, %v6660
      %v6669 = vmul.f32 %v6556, %v6660
      %v6670 = vmul.f32 %v6561, %v6660
      %v6671 = vmul.f32 %v6564, %v6660
      %v6672 = vmul.f32 %v6569, %v6660
      %v6673 = vmul.f32 %v6572, %v6660
      %v6674 = vmul.f32 %v6577, %v6660
      %v6675 = vmul.f32 %v6580, %v6660
      %v6676 = vmul.f32 %v6585, %v6660
      %v6677 = vmul.f32 %v6588, %v6660
      %v6678 = vmul.f32 %v6593, %v6660
      %v6679 = vmul.f32 %v6596, %v6660
      %v6680 = vmul.f32 %v6601, %v6660
      %v6681 = vmul.f32 %v6604, %v6660
      %v6682 = vmul.f32 %v6609, %v6660
      %v6683 = vmul.f32 %v6612, %v6660
      %v6684 = vmul.f32 %v6617, %v6660
      %v6685 = vmul.f32 %v6620, %v6660
      %v6686 = vmul.f32 %v6625, %v6660
      %v6687 = vmul.f32 %v6628, %v6660
      %v6688 = vmul.f32 %v6633, %v6660
      %v6689 = vmul.f32 %v6636, %v6660
      %v6690 = vmul.f32 %v6641, %v6660
      %v6691 = vmul.f32 %v6644, %v6660
      %v6692 = vmul.f32 %v6649, %v6660
      %v6693 = vmul.f32 %v6652, %v6660
      %v6694 = vld [vmem:[%s9] sm:$0x1]
      %v6696 = vlaneseq
      %v6697 = vshrl.u32 %v6696, 7
      %v6698 = vsub.s32 0, %v6697
      %v6699 = vrot.slane %v6694, %v6698
      %v6701 = vadd.f32 %v6662, %v6699
      %v6702 = vadd.f32 %v6663, %v6699
      %v6703 = vadd.f32 %v6664, %v6699
      %v6704 = vadd.f32 %v6665, %v6699
      %v6705 = vadd.f32 %v6666, %v6699
      %v6706 = vadd.f32 %v6667, %v6699
      %v6707 = vadd.f32 %v6668, %v6699
      %v6708 = vadd.f32 %v6669, %v6699
      %v6709 = vadd.f32 %v6670, %v6699
      %v6710 = vadd.f32 %v6671, %v6699
      %v6711 = vadd.f32 %v6672, %v6699
      %v6712 = vadd.f32 %v6673, %v6699
      %v6713 = vadd.f32 %v6674, %v6699
      %v6714 = vadd.f32 %v6675, %v6699
      %v6715 = vadd.f32 %v6676, %v6699
      %v6716 = vadd.f32 %v6677, %v6699
      %v6717 = vadd.f32 %v6678, %v6699
      %v6718 = vadd.f32 %v6679, %v6699
      %v6719 = vadd.f32 %v6680, %v6699
      %v6720 = vadd.f32 %v6681, %v6699
      %v6721 = vadd.f32 %v6682, %v6699
      %v6722 = vadd.f32 %v6683, %v6699
      %v6723 = vadd.f32 %v6684, %v6699
      %v6724 = vadd.f32 %v6685, %v6699
      %v6725 = vadd.f32 %v6686, %v6699
      %v6726 = vadd.f32 %v6687, %v6699
      %v6727 = vadd.f32 %v6688, %v6699
      %v6728 = vadd.f32 %v6689, %v6699
      %v6729 = vadd.f32 %v6690, %v6699
      %v6730 = vadd.f32 %v6691, %v6699
      %v6731 = vadd.f32 %v6692, %v6699
      %v6732 = vadd.f32 %v6693, %v6699
      %v6733 = vld [vmem:[%s435] sm:$0xf]
      %v6734 = vld [vmem:[%s435 + $0x4] sm:$0xf]
      %v6735 = vld [vmem:[%s435 + $0x8] sm:$0xf]
      %v6736 = vld [vmem:[%s435 + $0xc] sm:$0xf]
      %v6737 = vld [vmem:[%s435 + $0x10] sm:$0xf]
      %v6738 = vld [vmem:[%s435 + $0x14] sm:$0xf]
      %v6739 = vld [vmem:[%s435 + $0x18] sm:$0xf]
      %v6740 = vld [vmem:[%s435 + $0x1c] sm:$0xf]
      %v6741 = vld [vmem:[%s435 + $0x20] sm:$0xf]
      %v6742 = vld [vmem:[%s435 + $0x24] sm:$0xf]
      %v6743 = vld [vmem:[%s435 + $0x28] sm:$0xf]
      %v6744 = vld [vmem:[%s435 + $0x2c] sm:$0xf]
      %v6745 = vld [vmem:[%s435 + $0x30] sm:$0xf]
      %v6746 = vld [vmem:[%s435 + $0x34] sm:$0xf]
      %v6747 = vld [vmem:[%s435 + $0x38] sm:$0xf]
      %v6748 = vld [vmem:[%s435 + $0x3c] sm:$0xf]
      %v6749 = vld [vmem:[%s435 + $0x40] sm:$0xf]
      %v6750 = vld [vmem:[%s435 + $0x44] sm:$0xf]
      %v6751 = vld [vmem:[%s435 + $0x48] sm:$0xf]
      %v6752 = vld [vmem:[%s435 + $0x4c] sm:$0xf]
      %v6753 = vld [vmem:[%s435 + $0x50] sm:$0xf]
      %v6754 = vld [vmem:[%s435 + $0x54] sm:$0xf]
      %v6755 = vld [vmem:[%s435 + $0x58] sm:$0xf]
      %v6756 = vld [vmem:[%s435 + $0x5c] sm:$0xf]
      %v6757 = vld [vmem:[%s435 + $0x60] sm:$0xf]
      %v6758 = vld [vmem:[%s435 + $0x64] sm:$0xf]
      %v6759 = vld [vmem:[%s435 + $0x68] sm:$0xf]
      %v6760 = vld [vmem:[%s435 + $0x6c] sm:$0xf]
      %v6761 = vld [vmem:[%s435 + $0x70] sm:$0xf]
      %v6762 = vld [vmem:[%s435 + $0x74] sm:$0xf]
      %v6763 = vld [vmem:[%s435 + $0x78] sm:$0xf]
      %v6764 = vld [vmem:[%s435 + $0x7c] sm:$0xf]
      %v6765 = vld [vmem:[%s10] sm:$0xf]
      %v6766 = vld [vmem:[%s10 + $0x4] sm:$0xf]
      %v6767 = vld [vmem:[%s10 + $0x8] sm:$0xf]
      %v6768 = vld [vmem:[%s10 + $0xc] sm:$0xf]
      %v6769 = vld [vmem:[%s10 + $0x10] sm:$0xf]
      %v6770 = vld [vmem:[%s10 + $0x14] sm:$0xf]
      %v6771 = vld [vmem:[%s10 + $0x18] sm:$0xf]
      %v6772 = vld [vmem:[%s10 + $0x1c] sm:$0xf]
      %v6773 = vld [vmem:[%s10 + $0x20] sm:$0xf]
      %v6774 = vld [vmem:[%s10 + $0x24] sm:$0xf]
      %v6775 = vld [vmem:[%s10 + $0x28] sm:$0xf]
      %v6776 = vld [vmem:[%s10 + $0x2c] sm:$0xf]
      %v6777 = vld [vmem:[%s10 + $0x30] sm:$0xf]
      %v6778 = vld [vmem:[%s10 + $0x34] sm:$0xf]
      %v6779 = vld [vmem:[%s10 + $0x38] sm:$0xf]
      %v6780 = vld [vmem:[%s10 + $0x3c] sm:$0xf]
      %v6813 = vunpack.c.l.b16 %v6733
      %v6814 = vunpack.c.l.b16 %v6734
      %v6815 = vunpack.c.l.b16 %v6735
      %v6816 = vunpack.c.l.b16 %v6736
      %v6817 = vunpack.c.l.b16 %v6737
      %v6818 = vunpack.c.l.b16 %v6738
      %v6819 = vunpack.c.l.b16 %v6739
      %v6820 = vunpack.c.l.b16 %v6740
      %v6821 = vunpack.c.l.b16 %v6741
      %v6822 = vunpack.c.l.b16 %v6742
      %v6823 = vunpack.c.l.b16 %v6743
      %v6824 = vunpack.c.l.b16 %v6744
      %v6825 = vunpack.c.l.b16 %v6745
      %v6826 = vunpack.c.l.b16 %v6746
      %v6827 = vunpack.c.l.b16 %v6747
      %v6828 = vunpack.c.l.b16 %v6748
      %v6829 = vunpack.c.l.b16 %v6749
      %v6830 = vunpack.c.l.b16 %v6750
      %v6831 = vunpack.c.l.b16 %v6751
      %v6832 = vunpack.c.l.b16 %v6752
      %v6833 = vunpack.c.l.b16 %v6753
      %v6834 = vunpack.c.l.b16 %v6754
      %v6835 = vunpack.c.l.b16 %v6755
      %v6836 = vunpack.c.l.b16 %v6756
      %v6837 = vunpack.c.l.b16 %v6757
      %v6838 = vunpack.c.l.b16 %v6758
      %v6839 = vunpack.c.l.b16 %v6759
      %v6840 = vunpack.c.l.b16 %v6760
      %v6841 = vunpack.c.l.b16 %v6761
      %v6842 = vunpack.c.l.b16 %v6762
      %v6843 = vunpack.c.l.b16 %v6763
      %v6844 = vunpack.c.l.b16 %v6764
      %v6845 = vpack.c.b16 %v6814, %v6813
      %v6846 = vpack.c.b16 %v6816, %v6815
      %v6847 = vpack.c.b16 %v6818, %v6817
      %v6848 = vpack.c.b16 %v6820, %v6819
      %v6849 = vpack.c.b16 %v6822, %v6821
      %v6850 = vpack.c.b16 %v6824, %v6823
      %v6851 = vpack.c.b16 %v6826, %v6825
      %v6852 = vpack.c.b16 %v6828, %v6827
      %v6853 = vpack.c.b16 %v6830, %v6829
      %v6854 = vpack.c.b16 %v6832, %v6831
      %v6855 = vpack.c.b16 %v6834, %v6833
      %v6856 = vpack.c.b16 %v6836, %v6835
      %v6857 = vpack.c.b16 %v6838, %v6837
      %v6858 = vpack.c.b16 %v6840, %v6839
      %v6859 = vpack.c.b16 %v6842, %v6841
      %v6860 = vpack.c.b16 %v6844, %v6843
      %v6893 = vunpack.c.l.b16 %v6765
      %v6894 = vunpack.c.l.b16 %v6766
      %v6895 = vunpack.c.l.b16 %v6767
      %v6896 = vunpack.c.l.b16 %v6768
      %v6897 = vunpack.c.l.b16 %v6769
      %v6898 = vunpack.c.l.b16 %v6770
      %v6899 = vunpack.c.l.b16 %v6771
      %v6900 = vunpack.c.l.b16 %v6772
      %v6901 = vunpack.c.l.b16 %v6773
      %v6902 = vunpack.c.l.b16 %v6774
      %v6903 = vunpack.c.l.b16 %v6775
      %v6904 = vunpack.c.l.b16 %v6776
      %v6905 = vunpack.c.l.b16 %v6777
      %v6906 = vunpack.c.l.b16 %v6778
      %v6907 = vunpack.c.l.b16 %v6779
      %v6908 = vunpack.c.l.b16 %v6780
      %v6909 = vpack.c.b16 %v6894, %v6893
      %v6910 = vpack.c.b16 %v6896, %v6895
      %v6911 = vpack.c.b16 %v6898, %v6897
      %v6912 = vpack.c.b16 %v6900, %v6899
      %v6913 = vpack.c.b16 %v6902, %v6901
      %v6914 = vpack.c.b16 %v6904, %v6903
      %v6915 = vpack.c.b16 %v6906, %v6905
      %v6916 = vpack.c.b16 %v6908, %v6907
      %6925 = vmatprep.subr.bf16.mxu0 0
      %6926 = vmatpush1.bf16.msra.mxu0 %v6909
      %6927 = vmatprep.subr.bf16.mxu0 0
      %6928 = vmatpush1.bf16.msra.mxu0 %v6910
      %6929 = vmatprep.subr.bf16.mxu0 0
      %6930 = vmatpush1.bf16.msra.mxu0 %v6911
      %6931 = vmatprep.subr.bf16.mxu0 0
      %6932 = vmatpush1.bf16.msra.mxu0 %v6912
      %6933 = vmatprep.subr.bf16.mxu0 0
      %6934 = vmatpush1.bf16.msra.mxu0 %v6913
      %6935 = vmatprep.subr.bf16.mxu0 0
      %6936 = vmatpush1.bf16.msra.mxu0 %v6914
      %6937 = vmatprep.subr.bf16.mxu0 0
      %6938 = vmatpush1.bf16.msra.mxu0 %v6915
      %6939 = vmatprep.subr.bf16.mxu0 0
      %6940 = vmatpush1.bf16.msra.mxu0 %v6916
      %6941 = vmatprep.subr.bf16.mxu0 0
      %6942 = vmatpush1.bf16.msra.mxu0 0
      %6943 = vmatprep.subr.bf16.mxu0 0
      %6944 = vmatpush1.bf16.msra.mxu0 0
      %6945 = vmatprep.subr.bf16.mxu0 0
      %6946 = vmatpush1.bf16.msra.mxu0 0
      %6947 = vmatprep.subr.bf16.mxu0 0
      %6948 = vmatpush1.bf16.msra.mxu0 0
      %6949 = vmatprep.subr.bf16.mxu0 0
      %6950 = vmatpush1.bf16.msra.mxu0 0
      %6951 = vmatprep.subr.bf16.mxu0 0
      %6952 = vmatpush1.bf16.msra.mxu0 0
      %6953 = vmatprep.subr.bf16.mxu0 0
      %6954 = vmatpush1.bf16.msra.mxu0 0
      %6955 = vmatprep.subr.bf16.mxu0 0
      %6956 = vmatpush1.bf16.msra.mxu0 0
      %6957 = vmatprep.mubr.bf16.mxu0 0
      %6958 = vmatmul.mubr.bf16.gmra.mrb[0].mxu0 %v6845
      %v6959 = vpop.f32.mrb[0].mxu0
      %v6960 = vadd.f32 0.0, %v6959
      %v6961 = vpop.f32.mrb[0].mxu0
      %v6962 = vpop.f32.mrb[0].mxu0
      %v6963 = vadd.f32 0.0, %v6962
      %v6964 = vpop.f32.mrb[0].mxu0
      %6965 = vmatprep.mubr.bf16.mxu0 0
      %6966 = vmatmul.mubr.bf16.gmra.mrb[0].mxu0 %v6846
      %v6967 = vpop.f32.mrb[0].mxu0
      %v6968 = vadd.f32 0.0, %v6967
      %v6969 = vpop.f32.mrb[0].mxu0
      %v6970 = vpop.f32.mrb[0].mxu0
      %v6971 = vadd.f32 0.0, %v6970
      %v6972 = vpop.f32.mrb[0].mxu0
      %6973 = vmatprep.mubr.bf16.mxu0 0
      %6974 = vmatmul.mubr.bf16.gmra.mrb[0].mxu0 %v6847
      %v6975 = vpop.f32.mrb[0].mxu0
      %v6976 = vadd.f32 0.0, %v6975
      %v6977 = vpop.f32.mrb[0].mxu0
      %v6978 = vpop.f32.mrb[0].mxu0
      %v6979 = vadd.f32 0.0, %v6978
      %v6980 = vpop.f32.mrb[0].mxu0
      %6981 = vmatprep.mubr.bf16.mxu0 0
      %6982 = vmatmul.mubr.bf16.gmra.mrb[0].mxu0 %v6848
      %v6983 = vpop.f32.mrb[0].mxu0
      %v6984 = vadd.f32 0.0, %v6983
      %v6985 = vpop.f32.mrb[0].mxu0
      %v6986 = vpop.f32.mrb[0].mxu0
      %v6987 = vadd.f32 0.0, %v6986
      %v6988 = vpop.f32.mrb[0].mxu0
      %6989 = vmatprep.mubr.bf16.mxu0 0
      %6990 = vmatmul.mubr.bf16.gmra.mrb[0].mxu0 %v6849
      %v6991 = vpop.f32.mrb[0].mxu0
      %v6992 = vadd.f32 0.0, %v6991
      %v6993 = vpop.f32.mrb[0].mxu0
      %v6994 = vpop.f32.mrb[0].mxu0
      %v6995 = vadd.f32 0.0, %v6994
      %v6996 = vpop.f32.mrb[0].mxu0
      %6997 = vmatprep.mubr.bf16.mxu0 0
      %6998 = vmatmul.mubr.bf16.gmra.mrb[0].mxu0 %v6850
      %v6999 = vpop.f32.mrb[0].mxu0
      %v7000 = vadd.f32 0.0, %v6999
      %v7001 = vpop.f32.mrb[0].mxu0
      %v7002 = vpop.f32.mrb[0].mxu0
      %v7003 = vadd.f32 0.0, %v7002
      %v7004 = vpop.f32.mrb[0].mxu0
      %7005 = vmatprep.mubr.bf16.mxu0 0
      %7006 = vmatmul.mubr.bf16.gmra.mrb[0].mxu0 %v6851
      %v7007 = vpop.f32.mrb[0].mxu0
      %v7008 = vadd.f32 0.0, %v7007
      %v7009 = vpop.f32.mrb[0].mxu0
      %v7010 = vpop.f32.mrb[0].mxu0
      %v7011 = vadd.f32 0.0, %v7010
      %v7012 = vpop.f32.mrb[0].mxu0
      %7013 = vmatprep.mubr.bf16.mxu0 0
      %7014 = vmatmul.mubr.bf16.gmra.mrb[0].mxu0 %v6852
      %v7015 = vpop.f32.mrb[0].mxu0
      %v7016 = vadd.f32 0.0, %v7015
      %v7017 = vpop.f32.mrb[0].mxu0
      %v7018 = vpop.f32.mrb[0].mxu0
      %v7019 = vadd.f32 0.0, %v7018
      %v7020 = vpop.f32.mrb[0].mxu0
      %7021 = vmatprep.mubr.bf16.mxu0 0
      %7022 = vmatmul.mubr.bf16.gmra.mrb[0].mxu0 %v6853
      %v7023 = vpop.f32.mrb[0].mxu0
      %v7024 = vadd.f32 0.0, %v7023
      %v7025 = vpop.f32.mrb[0].mxu0
      %v7026 = vpop.f32.mrb[0].mxu0
      %v7027 = vadd.f32 0.0, %v7026
      %v7028 = vpop.f32.mrb[0].mxu0
      %7029 = vmatprep.mubr.bf16.mxu0 0
      %7030 = vmatmul.mubr.bf16.gmra.mrb[0].mxu0 %v6854
      %v7031 = vpop.f32.mrb[0].mxu0
      %v7032 = vadd.f32 0.0, %v7031
      %v7033 = vpop.f32.mrb[0].mxu0
      %v7034 = vpop.f32.mrb[0].mxu0
      %v7035 = vadd.f32 0.0, %v7034
      %v7036 = vpop.f32.mrb[0].mxu0
      %7037 = vmatprep.mubr.bf16.mxu0 0
      %7038 = vmatmul.mubr.bf16.gmra.mrb[0].mxu0 %v6855
      %v7039 = vpop.f32.mrb[0].mxu0
      %v7040 = vadd.f32 0.0, %v7039
      %v7041 = vpop.f32.mrb[0].mxu0
      %v7042 = vpop.f32.mrb[0].mxu0
      %v7043 = vadd.f32 0.0, %v7042
      %v7044 = vpop.f32.mrb[0].mxu0
      %7045 = vmatprep.mubr.bf16.mxu0 0
      %7046 = vmatmul.mubr.bf16.gmra.mrb[0].mxu0 %v6856
      %v7047 = vpop.f32.mrb[0].mxu0
      %v7048 = vadd.f32 0.0, %v7047
      %v7049 = vpop.f32.mrb[0].mxu0
      %v7050 = vpop.f32.mrb[0].mxu0
      %v7051 = vadd.f32 0.0, %v7050
      %v7052 = vpop.f32.mrb[0].mxu0
      %7053 = vmatprep.mubr.bf16.mxu0 0
      %7054 = vmatmul.mubr.bf16.gmra.mrb[0].mxu0 %v6857
      %v7055 = vpop.f32.mrb[0].mxu0
      %v7056 = vadd.f32 0.0, %v7055
      %v7057 = vpop.f32.mrb[0].mxu0
      %v7058 = vpop.f32.mrb[0].mxu0
      %v7059 = vadd.f32 0.0, %v7058
      %v7060 = vpop.f32.mrb[0].mxu0
      %7061 = vmatprep.mubr.bf16.mxu0 0
      %7062 = vmatmul.mubr.bf16.gmra.mrb[0].mxu0 %v6858
      %v7063 = vpop.f32.mrb[0].mxu0
      %v7064 = vadd.f32 0.0, %v7063
      %v7065 = vpop.f32.mrb[0].mxu0
      %v7066 = vpop.f32.mrb[0].mxu0
      %v7067 = vadd.f32 0.0, %v7066
      %v7068 = vpop.f32.mrb[0].mxu0
      %7069 = vmatprep.mubr.bf16.mxu0 0
      %7070 = vmatmul.mubr.bf16.gmra.mrb[0].mxu0 %v6859
      %v7071 = vpop.f32.mrb[0].mxu0
      %v7072 = vadd.f32 0.0, %v7071
      %v7073 = vpop.f32.mrb[0].mxu0
      %v7074 = vpop.f32.mrb[0].mxu0
      %v7075 = vadd.f32 0.0, %v7074
      %v7076 = vpop.f32.mrb[0].mxu0
      %7077 = vmatprep.mubr.bf16.mxu0 0
      %7078 = vmatmul.mubr.bf16.gmra.mrb[0].mxu0 %v6860
      %v7079 = vpop.f32.mrb[0].mxu0
      %v7080 = vadd.f32 0.0, %v7079
      %v7081 = vpop.f32.mrb[0].mxu0
      %v7082 = vpop.f32.mrb[0].mxu0
      %v7083 = vadd.f32 0.0, %v7082
      %v7084 = vpop.f32.mrb[0].mxu0
      %7085 = vdwg.mxu0
      %v7086 = vld [vmem:[%s11] sm:$0x1]
      %v7088 = vlaneseq
      %v7089 = vshrl.u32 %v7088, 7
      %v7090 = vsub.s32 0, %v7089
      %v7091 = vrot.slane %v7086, %v7090
      %v7093 = vmul.f32 %v6960, %v7091
      %v7094 = vmul.f32 %v6963, %v7091
      %v7095 = vmul.f32 %v6968, %v7091
      %v7096 = vmul.f32 %v6971, %v7091
      %v7097 = vmul.f32 %v6976, %v7091
      %v7098 = vmul.f32 %v6979, %v7091
      %v7099 = vmul.f32 %v6984, %v7091
      %v7100 = vmul.f32 %v6987, %v7091
      %v7101 = vmul.f32 %v6992, %v7091
      %v7102 = vmul.f32 %v6995, %v7091
      %v7103 = vmul.f32 %v7000, %v7091
      %v7104 = vmul.f32 %v7003, %v7091
      %v7105 = vmul.f32 %v7008, %v7091
      %v7106 = vmul.f32 %v7011, %v7091
      %v7107 = vmul.f32 %v7016, %v7091
      %v7108 = vmul.f32 %v7019, %v7091
      %v7109 = vmul.f32 %v7024, %v7091
      %v7110 = vmul.f32 %v7027, %v7091
      %v7111 = vmul.f32 %v7032, %v7091
      %v7112 = vmul.f32 %v7035, %v7091
      %v7113 = vmul.f32 %v7040, %v7091
      %v7114 = vmul.f32 %v7043, %v7091
      %v7115 = vmul.f32 %v7048, %v7091
      %v7116 = vmul.f32 %v7051, %v7091
      %v7117 = vmul.f32 %v7056, %v7091
      %v7118 = vmul.f32 %v7059, %v7091
      %v7119 = vmul.f32 %v7064, %v7091
      %v7120 = vmul.f32 %v7067, %v7091
      %v7121 = vmul.f32 %v7072, %v7091
      %v7122 = vmul.f32 %v7075, %v7091
      %v7123 = vmul.f32 %v7080, %v7091
      %v7124 = vmul.f32 %v7083, %v7091
      %v7125 = vld [vmem:[%s12] sm:$0x1]
      %v7127 = vlaneseq
      %v7128 = vshrl.u32 %v7127, 7
      %v7129 = vsub.s32 0, %v7128
      %v7130 = vrot.slane %v7125, %v7129
      %v7132 = vadd.f32 %v7093, %v7130
      %v7133 = vadd.f32 %v7094, %v7130
      %v7134 = vadd.f32 %v7095, %v7130
      %v7135 = vadd.f32 %v7096, %v7130
      %v7136 = vadd.f32 %v7097, %v7130
      %v7137 = vadd.f32 %v7098, %v7130
      %v7138 = vadd.f32 %v7099, %v7130
      %v7139 = vadd.f32 %v7100, %v7130
      %v7140 = vadd.f32 %v7101, %v7130
      %v7141 = vadd.f32 %v7102, %v7130
      %v7142 = vadd.f32 %v7103, %v7130
      %v7143 = vadd.f32 %v7104, %v7130
      %v7144 = vadd.f32 %v7105, %v7130
      %v7145 = vadd.f32 %v7106, %v7130
      %v7146 = vadd.f32 %v7107, %v7130
      %v7147 = vadd.f32 %v7108, %v7130
      %v7148 = vadd.f32 %v7109, %v7130
      %v7149 = vadd.f32 %v7110, %v7130
      %v7150 = vadd.f32 %v7111, %v7130
      %v7151 = vadd.f32 %v7112, %v7130
      %v7152 = vadd.f32 %v7113, %v7130
      %v7153 = vadd.f32 %v7114, %v7130
      %v7154 = vadd.f32 %v7115, %v7130
      %v7155 = vadd.f32 %v7116, %v7130
      %v7156 = vadd.f32 %v7117, %v7130
      %v7157 = vadd.f32 %v7118, %v7130
      %v7158 = vadd.f32 %v7119, %v7130
      %v7159 = vadd.f32 %v7120, %v7130
      %v7160 = vadd.f32 %v7121, %v7130
      %v7161 = vadd.f32 %v7122, %v7130
      %v7162 = vadd.f32 %v7123, %v7130
      %v7163 = vadd.f32 %v7124, %v7130
      %v7164 = vadd.f32 %v6701, %v7132
      %v7165 = vadd.f32 %v6702, %v7133
      %v7166 = vadd.f32 %v6703, %v7134
      %v7167 = vadd.f32 %v6704, %v7135
      %v7168 = vadd.f32 %v6705, %v7136
      %v7169 = vadd.f32 %v6706, %v7137
      %v7170 = vadd.f32 %v6707, %v7138
      %v7171 = vadd.f32 %v6708, %v7139
      %v7172 = vadd.f32 %v6709, %v7140
      %v7173 = vadd.f32 %v6710, %v7141
      %v7174 = vadd.f32 %v6711, %v7142
      %v7175 = vadd.f32 %v6712, %v7143
      %v7176 = vadd.f32 %v6713, %v7144
      %v7177 = vadd.f32 %v6714, %v7145
      %v7178 = vadd.f32 %v6715, %v7146
      %v7179 = vadd.f32 %v6716, %v7147
      %v7180 = vadd.f32 %v6717, %v7148
      %v7181 = vadd.f32 %v6718, %v7149
      %v7182 = vadd.f32 %v6719, %v7150
      %v7183 = vadd.f32 %v6720, %v7151
      %v7184 = vadd.f32 %v6721, %v7152
      %v7185 = vadd.f32 %v6722, %v7153
      %v7186 = vadd.f32 %v6723, %v7154
      %v7187 = vadd.f32 %v6724, %v7155
      %v7188 = vadd.f32 %v6725, %v7156
      %v7189 = vadd.f32 %v6726, %v7157
      %v7190 = vadd.f32 %v6727, %v7158
      %v7191 = vadd.f32 %v6728, %v7159
      %v7192 = vadd.f32 %v6729, %v7160
      %v7193 = vadd.f32 %v6730, %v7161
      %v7194 = vadd.f32 %v6731, %v7162
      %v7195 = vadd.f32 %v6732, %v7163
      %v7196 = vmax.f32 %v7164, 0.0
      %v7197 = vmax.f32 %v7165, 0.0
      %v7198 = vmax.f32 %v7166, 0.0
      %v7199 = vmax.f32 %v7167, 0.0
      %v7200 = vmax.f32 %v7168, 0.0
      %v7201 = vmax.f32 %v7169, 0.0
      %v7202 = vmax.f32 %v7170, 0.0
      %v7203 = vmax.f32 %v7171, 0.0
      %v7204 = vmax.f32 %v7172, 0.0
      %v7205 = vmax.f32 %v7173, 0.0
      %v7206 = vmax.f32 %v7174, 0.0
      %v7207 = vmax.f32 %v7175, 0.0
      %v7208 = vmax.f32 %v7176, 0.0
      %v7209 = vmax.f32 %v7177, 0.0
      %v7210 = vmax.f32 %v7178, 0.0
      %v7211 = vmax.f32 %v7179, 0.0
      %v7212 = vmax.f32 %v7180, 0.0
      %v7213 = vmax.f32 %v7181, 0.0
      %v7214 = vmax.f32 %v7182, 0.0
      %v7215 = vmax.f32 %v7183, 0.0
      %v7216 = vmax.f32 %v7184, 0.0
      %v7217 = vmax.f32 %v7185, 0.0
      %v7218 = vmax.f32 %v7186, 0.0
      %v7219 = vmax.f32 %v7187, 0.0
      %v7220 = vmax.f32 %v7188, 0.0
      %v7221 = vmax.f32 %v7189, 0.0
      %v7222 = vmax.f32 %v7190, 0.0
      %v7223 = vmax.f32 %v7191, 0.0
      %v7224 = vmax.f32 %v7192, 0.0
      %v7225 = vmax.f32 %v7193, 0.0
      %v7226 = vmax.f32 %v7194, 0.0
      %v7227 = vmax.f32 %v7195, 0.0
      %v7228 = vpack.c.bf16 %v7197, %v7196
      %v7229 = vpack.c.bf16 %v7199, %v7198
      %v7230 = vpack.c.bf16 %v7201, %v7200
      %v7231 = vpack.c.bf16 %v7203, %v7202
      %v7232 = vpack.c.bf16 %v7205, %v7204
      %v7233 = vpack.c.bf16 %v7207, %v7206
      %v7234 = vpack.c.bf16 %v7209, %v7208
      %v7235 = vpack.c.bf16 %v7211, %v7210
      %v7236 = vpack.c.bf16 %v7213, %v7212
      %v7237 = vpack.c.bf16 %v7215, %v7214
      %v7238 = vpack.c.bf16 %v7217, %v7216
      %v7239 = vpack.c.bf16 %v7219, %v7218
      %v7240 = vpack.c.bf16 %v7221, %v7220
      %v7241 = vpack.c.bf16 %v7223, %v7222
      %v7242 = vpack.c.bf16 %v7225, %v7224
      %v7243 = vpack.c.bf16 %v7227, %v7226
      %v7260 = vunpack.c.l.b16 %v7228
      %v7261 = vunpack.c.h.b16 %v7228
      %v7262 = vunpack.c.l.b16 %v7229
      %v7263 = vunpack.c.h.b16 %v7229
      %v7264 = vunpack.c.l.b16 %v7230
      %v7265 = vunpack.c.h.b16 %v7230
      %v7266 = vunpack.c.l.b16 %v7231
      %v7267 = vunpack.c.h.b16 %v7231
      %v7268 = vunpack.c.l.b16 %v7232
      %v7269 = vunpack.c.h.b16 %v7232
      %v7270 = vunpack.c.l.b16 %v7233
      %v7271 = vunpack.c.h.b16 %v7233
      %v7272 = vunpack.c.l.b16 %v7234
      %v7273 = vunpack.c.h.b16 %v7234
      %v7274 = vunpack.c.l.b16 %v7235
      %v7275 = vunpack.c.h.b16 %v7235
      %v7276 = vunpack.c.l.b16 %v7236
      %v7277 = vunpack.c.h.b16 %v7236
      %v7278 = vunpack.c.l.b16 %v7237
      %v7279 = vunpack.c.h.b16 %v7237
      %v7280 = vunpack.c.l.b16 %v7238
      %v7281 = vunpack.c.h.b16 %v7238
      %v7282 = vunpack.c.l.b16 %v7239
      %v7283 = vunpack.c.h.b16 %v7239
      %v7284 = vunpack.c.l.b16 %v7240
      %v7285 = vunpack.c.h.b16 %v7240
      %v7286 = vunpack.c.l.b16 %v7241
      %v7287 = vunpack.c.h.b16 %v7241
      %v7288 = vunpack.c.l.b16 %v7242
      %v7289 = vunpack.c.h.b16 %v7242
      %v7290 = vunpack.c.l.b16 %v7243
      %v7291 = vunpack.c.h.b16 %v7243
      %v7292 = vpack.c.b16 %v7260, %v7260
      %v7293 = vpack.c.b16 %v7261, %v7261
      %v7294 = vpack.c.b16 %v7262, %v7262
      %v7295 = vpack.c.b16 %v7263, %v7263
      %v7296 = vpack.c.b16 %v7264, %v7264
      %v7297 = vpack.c.b16 %v7265, %v7265
      %v7298 = vpack.c.b16 %v7266, %v7266
      %v7299 = vpack.c.b16 %v7267, %v7267
      %v7300 = vpack.c.b16 %v7268, %v7268
      %v7301 = vpack.c.b16 %v7269, %v7269
      %v7302 = vpack.c.b16 %v7270, %v7270
      %v7303 = vpack.c.b16 %v7271, %v7271
      %v7304 = vpack.c.b16 %v7272, %v7272
      %v7305 = vpack.c.b16 %v7273, %v7273
      %v7306 = vpack.c.b16 %v7274, %v7274
      %v7307 = vpack.c.b16 %v7275, %v7275
      %v7308 = vpack.c.b16 %v7276, %v7276
      %v7309 = vpack.c.b16 %v7277, %v7277
      %v7310 = vpack.c.b16 %v7278, %v7278
      %v7311 = vpack.c.b16 %v7279, %v7279
      %v7312 = vpack.c.b16 %v7280, %v7280
      %v7313 = vpack.c.b16 %v7281, %v7281
      %v7314 = vpack.c.b16 %v7282, %v7282
      %v7315 = vpack.c.b16 %v7283, %v7283
      %v7316 = vpack.c.b16 %v7284, %v7284
      %v7317 = vpack.c.b16 %v7285, %v7285
      %v7318 = vpack.c.b16 %v7286, %v7286
      %v7319 = vpack.c.b16 %v7287, %v7287
      %v7320 = vpack.c.b16 %v7288, %v7288
      %v7321 = vpack.c.b16 %v7289, %v7289
      %v7322 = vpack.c.b16 %v7290, %v7290
      %v7323 = vpack.c.b16 %v7291, %v7291
      %7356 = vst [vmem:[%s440] sm:$0xf] %v7292
      %7357 = vst [vmem:[%s440 + $0x4] sm:$0xf] %v7293
      %7358 = vst [vmem:[%s440 + $0x8] sm:$0xf] %v7294
      %7359 = vst [vmem:[%s440 + $0xc] sm:$0xf] %v7295
      %7360 = vst [vmem:[%s440 + $0x10] sm:$0xf] %v7296
      %7361 = vst [vmem:[%s440 + $0x14] sm:$0xf] %v7297
      %7362 = vst [vmem:[%s440 + $0x18] sm:$0xf] %v7298
      %7363 = vst [vmem:[%s440 + $0x1c] sm:$0xf] %v7299
      %7364 = vst [vmem:[%s440 + $0x20] sm:$0xf] %v7300
      %7365 = vst [vmem:[%s440 + $0x24] sm:$0xf] %v7301
      %7366 = vst [vmem:[%s440 + $0x28] sm:$0xf] %v7302
      %7367 = vst [vmem:[%s440 + $0x2c] sm:$0xf] %v7303
      %7368 = vst [vmem:[%s440 + $0x30] sm:$0xf] %v7304
      %7369 = vst [vmem:[%s440 + $0x34] sm:$0xf] %v7305
      %7370 = vst [vmem:[%s440 + $0x38] sm:$0xf] %v7306
      %7371 = vst [vmem:[%s440 + $0x3c] sm:$0xf] %v7307
      %7372 = vst [vmem:[%s440 + $0x40] sm:$0xf] %v7308
      %7373 = vst [vmem:[%s440 + $0x44] sm:$0xf] %v7309
      %7374 = vst [vmem:[%s440 + $0x48] sm:$0xf] %v7310
      %7375 = vst [vmem:[%s440 + $0x4c] sm:$0xf] %v7311
      %7376 = vst [vmem:[%s440 + $0x50] sm:$0xf] %v7312
      %7377 = vst [vmem:[%s440 + $0x54] sm:$0xf] %v7313
      %7378 = vst [vmem:[%s440 + $0x58] sm:$0xf] %v7314
      %7379 = vst [vmem:[%s440 + $0x5c] sm:$0xf] %v7315
      %7380 = vst [vmem:[%s440 + $0x60] sm:$0xf] %v7316
      %7381 = vst [vmem:[%s440 + $0x64] sm:$0xf] %v7317
      %7382 = vst [vmem:[%s440 + $0x68] sm:$0xf] %v7318
      %7383 = vst [vmem:[%s440 + $0x6c] sm:$0xf] %v7319
      %7384 = vst [vmem:[%s440 + $0x70] sm:$0xf] %v7320
      %7385 = vst [vmem:[%s440 + $0x74] sm:$0xf] %v7321
      %7386 = vst [vmem:[%s440 + $0x78] sm:$0xf] %v7322
      %7387 = vst [vmem:[%s440 + $0x7c] sm:$0xf] %v7323
      %p7388 = scmp.lt.s32.totalorder %s24, 1
      %s7389 = scalar_select %p7388, %s24, 1
      %s7390 = smul.addr %s7389, 32
      %s7391 = smul.addr %s7390, 4
      %s7392 = scalar_lea.vmem %s13, %s7391
      // Predicated region
      $region73: #{bottleneck_forward.1} parent=71 // pred_check
        %p7393 = pneg %p320
      $region74: #{bottleneck_forward.1} parent=71 // pred_check_branch
        %7395 = sbr.rel (%p7393) target = $region76
      $region75: #{bottleneck_forward.1} parent=71 // pred_region
        _
      $region76: #{bottleneck_forward.1} parent=71 // pred_fallthru
        _
    $region72: #{bottleneck_forward.1} parent=5 // pred_fallthru
      _
    %p7396 = scmp.le.s32.totalorder 2, %s19
    // Predicated region
    $region77: #{bottleneck_forward.1} parent=5 // pred_check
      %p7397 = pneg %p7396
    $region78: #{bottleneck_forward.1} parent=5 // pred_check_branch
      %7399 = sbr.rel (%p7397) target = $region80
    $region79: #{bottleneck_forward.1} parent=5 // pred_region
      %s7400 = ssub.s32 %s19, 2
      // Predicated region
      $region81: #{bottleneck_forward.1} parent=79 // pred_check
        %p7401 = pneg %p326
      $region82: #{bottleneck_forward.1} parent=79 // pred_check_branch
        %7403 = sbr.rel (%p7401) target = $region84
      $region83: #{bottleneck_forward.1} parent=79 // pred_region
        %p7404 = scmp.lt.s32.totalorder %s25, 1
        %s7405 = scalar_select %p7404, %s25, 1
        %s7406 = smul.addr %s7405, 32
        %s7407 = smul.addr %s7406, 4
        %s7408 = scalar_lea.vmem %s13, %s7407
      $region84: #{bottleneck_forward.1} parent=79 // pred_fallthru
        _
    $region80: #{bottleneck_forward.1} parent=5 // pred_fallthru
      _
  $region6: #{bottleneck_forward.1} parent=0 // loop_footer
    %s23 = sadd.s32 1, %s19
  $region7: #{bottleneck_forward.1} parent=0 // loop_footer_branch
    %18 = sbr.rel target = $region3
  $region8: #{bottleneck_forward.1} parent=0 // loop_exit
    _

</llo_original>
